<compile_context>
chip_gen: v7x
topology: tpu7x:2x2x1
jax: 0.10.0
libtpu: 0.0.40
codegen_flags: <defaults>
</compile_context>

<pallas_src>
import functools
import math

import jax
import jax.numpy as jnp
from jax.experimental import pallas as pl
from jax.experimental.pallas import tpu as pltpu


# 48 MiB is safe on every generation (v7x physical VMEM is 64 MiB); raise to ~96 MiB on
# v5e/v6e (128 MiB VMEM) for large image sizes.
_VMEM_LIMIT = 48 * 1024 * 1024
# 256x256 output tiles match the v6e/v7x 2x256x256 MXU; clamped to the problem below.
_TM, _TN, _TK = 256, 256, 512


# ----------------------------- small helpers -----------------------------

def _round_up(x, m):
    return ((x + m - 1) // m) * m


def _pad2(a, rows, cols):
    r, c = a.shape
    if r == rows and c == cols:
        return a
    return jnp.pad(a, ((0, rows - r), (0, cols - c)))


def _pad_rows(a, rows):
    r = a.shape[0]
    if r == rows:
        return a
    return jnp.pad(a, ((0, rows - r), (0, 0)))


def _act_fn(y, act):
    if act == "relu":
        return jnp.maximum(y, 0.0)
    if act == "leaky":            # nn.LeakyReLU(0.2) in the reference module
        return jnp.where(y > 0, y, 0.2 * y)
    if act == "sigmoid":
        return jax.nn.sigmoid(y)
    return y


# ----------------- tiled matmul (+bias +act +fused BN stats) kernel -----------------

def _mm_kernel(x_ref, w_ref, b_ref, o_ref, *rest, act, stats, k_axis):
    """Tiled matmul with f32 VMEM accumulation.  Optional fused bias/activation and
    fused per-channel BN partial statistics (sum, sum-of-squares) in the epilogue."""
    if stats:
        sum_ref, sq_ref, acc_ref = rest
    else:
        (acc_ref,) = rest

    k = pl.program_id(k_axis)

    @pl.when(k == 0)
    def _():
        acc_ref[...] = jnp.zeros_like(acc_ref)

    acc_ref[...] += jnp.dot(x_ref[...], w_ref[...],
                            preferred_element_type=jnp.float32)

    @pl.when(k == pl.num_programs(k_axis) - 1)
    def _():
        y = acc_ref[...] + b_ref[...]
        y = _act_fn(y, act)
        o_ref[...] = y.astype(o_ref.dtype)
        if stats:
            # Per-channel partial BN statistics of this tile (zero-padded rows add 0).
            # TODO(synk): E[x^2]-mean^2 can cancel for large-mean activations; a
            # centered second pass would be numerically safer.
            sum_ref[...] = jnp.sum(y, axis=0, keepdims=True)
            sq_ref[...] = jnp.sum(y * y, axis=0, keepdims=True)


def matmul_bias_act(x, w, bias=None, act="none", *, stats=False,
                    out_dtype=jnp.bfloat16, tm=_TM, tn=_TN, tk=_TK):
    """(M, K) @ (K, N) + bias with optional fused activation and BN partial stats."""
    M, K = x.shape
    K2, N = w.shape
    assert K == K2

    tm = min(tm, _round_up(M, 8))
    tk = min(tk, _round_up(K, 128))
    tn = min(tn, _round_up(N, 128))
    Mp, Kp, Np = _round_up(M, tm), _round_up(K, tk), _round_up(N, tn)

    xp = _pad2(x, Mp, Kp).astype(jnp.bfloat16)
    wp = _pad2(w, Kp, Np).astype(jnp.bfloat16)
    b = bias if bias is not None else jnp.zeros((N,), jnp.float32)
    bp = _pad2(b.reshape(1, N).astype(jnp.float32), 1, Np)

    gi, gj, gk = Mp // tm, Np // tn, Kp // tk
    out_shape = [jax.ShapeDtypeStruct((Mp, Np), out_dtype)]
    out_specs = [pl.BlockSpec((tm, tn), lambda i, j, k: (i, j))]
    if stats:
        out_shape += [jax.ShapeDtypeStruct((gi, Np), jnp.float32)] * 2
        out_specs += [pl.BlockSpec((1, tn), lambda i, j, k: (i, j))] * 2

    res = pl.pallas_call(
        functools.partial(_mm_kernel, act=act, stats=stats, k_axis=2),
        out_shape=tuple(out_shape),
        grid=(gi, gj, gk),
        in_specs=[pl.BlockSpec((tm, tk), lambda i, j, k: (i, k)),
                  pl.BlockSpec((tk, tn), lambda i, j, k: (k, j)),
                  pl.BlockSpec((1, tn), lambda i, j, k: (0, j))],
        out_specs=tuple(out_specs),
        scratch_shapes=[pltpu.VMEM((tm, tn), jnp.float32)],
        compiler_params=pltpu.CompilerParams(
            dimension_semantics=("parallel", "parallel", "arbitrary"),
            vmem_limit_bytes=_VMEM_LIMIT),
    )(xp, wp, bp)

    if stats:
        out, ssum, ssq = res
        ssum = jnp.sum(ssum[:, :N], axis=0, keepdims=True)
        ssq = jnp.sum(ssq[:, :N], axis=0, keepdims=True)
        return out[:M, :N], ssum, ssq
    return res[0][:M, :N]


def phase_matmul_bias_act(x, w, bias=None, act="none", *, stats=False,
                          out_dtype=jnp.bfloat16, tm=_TM, tn=_TN, tk=_TK):
    """Batched (P, M, K) @ (P, K, N): all 4 tconv sub-pixel phases in ONE pallas_call
    with a leading "parallel" phase grid axis (megacore-shardable on v7x)."""
    P, M, K = x.shape
    _, K2, N = w.shape
    assert K == K2

    tm = min(tm, _round_up(M, 8))
    tk = min(tk, _round_up(K, 128))
    tn = min(tn, _round_up(N, 128))
    Mp, Kp, Np = _round_up(M, tm), _round_up(K, tk), _round_up(N, tn)

    xp = jnp.pad(x, ((0, 0), (0, Mp - M), (0, Kp - K))).astype(jnp.bfloat16)
    wp = jnp.pad(w, ((0, 0), (0, Kp - K), (0, Np - N))).astype(jnp.bfloat16)
    b = bias if bias is not None else jnp.zeros((N,), jnp.float32)
    bp = _pad2(b.reshape(1, N).astype(jnp.float32), 1, Np)

    gi, gj, gk = Mp // tm, Np // tn, Kp // tk
    out_shape = [jax.ShapeDtypeStruct((P, Mp, Np), out_dtype)]
    out_specs = [pl.BlockSpec((None, tm, tn), lambda p, i, j, k: (p, i, j))]
    if stats:
        out_shape += [jax.ShapeDtypeStruct((P, gi, Np), jnp.float32)] * 2
        out_specs += [pl.BlockSpec((None, 1, tn), lambda p, i, j, k: (p, i, j))] * 2

    res = pl.pallas_call(
        functools.partial(_mm_kernel, act=act, stats=stats, k_axis=3),
        out_shape=tuple(out_shape),
        grid=(P, gi, gj, gk),
        in_specs=[pl.BlockSpec((None, tm, tk), lambda p, i, j, k: (p, i, k)),
                  pl.BlockSpec((None, tk, tn), lambda p, i, j, k: (p, k, j)),
                  pl.BlockSpec((1, tn), lambda p, i, j, k: (0, j))],
        out_specs=tuple(out_specs),
        scratch_shapes=[pltpu.VMEM((tm, tn), jnp.float32)],
        compiler_params=pltpu.CompilerParams(
            dimension_semantics=("parallel", "parallel", "parallel", "arbitrary"),
            vmem_limit_bytes=_VMEM_LIMIT),
    )(xp, wp, bp)

    if stats:
        out, ssum, ssq = res
        ssum = jnp.sum(ssum[..., :N], axis=(0, 1)).reshape(1, N)
        ssq = jnp.sum(ssq[..., :N], axis=(0, 1)).reshape(1, N)
        return out[:, :M, :N], ssum, ssq
    return res[0][:, :M, :N]


# ----------------------- batchnorm apply (+act +residual) kernel -----------------------

def _bn_apply_kernel(x_ref, s_ref, q_ref, g_ref, b_ref, o_ref, *, count, eps, act):
    inv = 1.0 / count
    mean = s_ref[...] * inv
    var = q_ref[...] * inv - mean * mean          # biased variance (training-mode BN)
    scale = jax.lax.rsqrt(var + eps) * g_ref[...]
    y = (x_ref[...].astype(jnp.float32) - mean) * scale + b_ref[...]
    o_ref[...] = _act_fn(y, act).astype(o_ref.dtype)


def _bn_apply_res_kernel(x_ref, r_ref, s_ref, q_ref, g_ref, b_ref, o_ref, *, count, eps, act):
    inv = 1.0 / count
    mean = s_ref[...] * inv
    var = q_ref[...] * inv - mean * mean
    scale = jax.lax.rsqrt(var + eps) * g_ref[...]
    y = (x_ref[...].astype(jnp.float32) - mean) * scale + b_ref[...]
    o_ref[...] = _act_fn(y + r_ref[...].astype(jnp.float32), act).astype(o_ref.dtype)


def batchnorm_act(x, ssum, ssq, gamma, beta, act="none", residual=None, eps=1e-5,
                  out_dtype=jnp.bfloat16):
    """BatchNorm (training mode) + activation (+ optional fused residual add) over all
    leading dims.  Statistics arrive pre-reduced as (1, C) sums from the producing
    matmul's fused epilogue; mean/rstd are rebuilt per tile in-register (cheap)."""
    shape = x.shape
    C = shape[-1]
    rows = math.prod(shape[:-1])
    x2 = x.reshape(rows, C)

    tr = min(512, _round_up(rows, 8))
    Rp = _round_up(rows, tr)
    x2p = _pad_rows(x2, Rp)

    # TODO(synk): C of 32/64 means lane-sparse (masked) stores here; persistent
    # channel padding to 128 would make these fully lane-dense.
    vec_spec = pl.BlockSpec((1, C), lambda i: (0, 0))
    row_spec = pl.BlockSpec((tr, C), lambda i: (i, 0))
    g = gamma.reshape(1, C).astype(jnp.float32)
    b = beta.reshape(1, C).astype(jnp.float32)

    if residual is None:
        kern = functools.partial(_bn_apply_kernel, count=float(rows), eps=eps, act=act)
        args = (x2p, ssum, ssq, g, b)
        in_specs = [row_spec, vec_spec, vec_spec, vec_spec, vec_spec]
    else:
        r2p = _pad_rows(residual.reshape(rows, C), Rp)
        kern = functools.partial(_bn_apply_res_kernel, count=float(rows), eps=eps, act=act)
        args = (x2p, r2p, ssum, ssq, g, b)
        in_specs = [row_spec, row_spec, vec_spec, vec_spec, vec_spec, vec_spec]

    y = pl.pallas_call(
        kern,
        out_shape=jax.ShapeDtypeStruct((Rp, C), out_dtype),
        grid=(Rp // tr,),
        in_specs=in_specs,
        out_specs=row_spec,
        compiler_params=pltpu.CompilerParams(
            dimension_semantics=("parallel",), vmem_limit_bytes=_VMEM_LIMIT),
    )(*args)
    return y[:rows].reshape(shape)


# ----------------------- projection + reparameterization (fused) -----------------------

def _proj_reparam_kernel(x_ref, w_ref, b_ref, eps_ref, y_ref, z_ref, acc_ref, *, hidden):
    k = pl.program_id(0)

    @pl.when(k == 0)
    def _():
        acc_ref[...] = jnp.zeros_like(acc_ref)

    acc_ref[...] += jnp.dot(x_ref[...], w_ref[...], preferred_element_type=jnp.float32)

    @pl.when(k == pl.num_programs(0) - 1)
    def _():
        y = acc_ref[...] + b_ref[...]
        y_ref[...] = y
        mu = y[:, :hidden]
        lv = y[:, hidden:]
        z_ref[...] = mu + eps_ref[...] * jnp.exp(0.5 * lv)


def project_reparam(flat, w, b, eps, hidden):
    """Single merged (K, 2*hidden) projection matmul; mu / log_var / z split and the
    reparameterization happen in the finalize pl.when (no HBM round trip)."""
    M, K = flat.shape
    two_h = w.shape[1]
    Mp = _round_up(M, 8)
    tk = min(_TK, _round_up(K, 128))
    Kp = _round_up(K, tk)

    xp = _pad2(flat, Mp, Kp).astype(jnp.bfloat16)
    wp = _pad_rows(w, Kp).astype(jnp.bfloat16)
    bp = b.reshape(1, two_h).astype(jnp.float32)
    ep = _pad_rows(eps.astype(jnp.float32), Mp)

    y, z = pl.pallas_call(
        functools.partial(_proj_reparam_kernel, hidden=hidden),
        out_shape=(jax.ShapeDtypeStruct((Mp, two_h), jnp.float32),
                   jax.ShapeDtypeStruct((Mp, hidden), jnp.float32)),
        grid=(Kp // tk,),
        in_specs=[pl.BlockSpec((Mp, tk), lambda k: (0, k)),
                  pl.BlockSpec((tk, two_h), lambda k: (k, 0)),
                  pl.BlockSpec((1, two_h), lambda k: (0, 0)),
                  pl.BlockSpec((Mp, hidden), lambda k: (0, 0))],
        out_specs=(pl.BlockSpec((Mp, two_h), lambda k: (0, 0)),
                   pl.BlockSpec((Mp, hidden), lambda k: (0, 0))),
        scratch_shapes=[pltpu.VMEM((Mp, two_h), jnp.float32)],
        compiler_params=pltpu.CompilerParams(
            dimension_semantics=("arbitrary",), vmem_limit_bytes=_VMEM_LIMIT),
    )(xp, wp, bp, ep)
    return y[:M, :hidden], y[:M, hidden:], z[:M]


# --------------------------- conv glue (plain JAX, bf16) ---------------------------

def _im2col(x, k, stride, pad):
    """x: (N,H,W,C) bf16 -> (N*OH*OW, k*k*C) with (ki, kj, c) inner ordering.
    TODO(synk): in-kernel tap gathering from a VMEM-resident tile would remove the
    duplicated HBM bytes here."""
    N, H, W, C = x.shape
    xp = jnp.pad(x, ((0, 0), (pad, pad), (pad, pad), (0, 0)))
    OH = (H + 2 * pad - k) // stride + 1
    OW = (W + 2 * pad - k) // stride + 1
    patches = []
    for i in range(k):
        for j in range(k):
            patches.append(xp[:, i:i + stride * OH:stride, j:j + stride * OW:stride, :])
    cols = jnp.stack(patches, axis=3)             # (N, OH, OW, k*k, C)
    return cols.reshape(N * OH * OW, k * k * C), OH, OW


def conv2d_mat(x, w_mat, k, stride, pad, bias=None, act="none", stats=False):
    """Conv with a pre-transformed (k*k*Cin, Cout) weight matrix; optional fused BN stats."""
    N, H, W, C = x.shape
    Cout = w_mat.shape[1]
    if k == 1 and stride == 1 and pad == 0:       # 1x1 conv: plain matmul, no im2col
        cols, OH, OW = x.reshape(N * H * W, C), H, W
    else:
        cols, OH, OW = _im2col(x, k, stride, pad)
    res = matmul_bias_act(cols, w_mat, bias, act, stats=stats)
    if stats:
        out, ssum, ssq = res
        return out.reshape(N, OH, OW, Cout), ssum, ssq
    return res.reshape(N, OH, OW, Cout)


def conv_transpose2d_s2(x, w4, bias=None, act="none", stats=False, out_dtype=jnp.bfloat16):
    """ConvTranspose2d(k=4, stride=2, pad=1) via sub-pixel decomposition.  All 4 output
    phases run in ONE pallas_call.  Returns the phase-stacked (2, 2, N, H, W, Cout)
    output (+ BN sums): BN is order-agnostic, so the pixel shuffle is deferred."""
    N, H, W, Cin = x.shape
    Cout = w4.shape[-1]
    M = N * H * W
    cols = []
    for r in (0, 1):
        for s in (0, 1):
            pad_r = (1, 0) if r == 0 else (0, 1)
            pad_s = (1, 0) if s == 0 else (0, 1)
            xp = jnp.pad(x, ((0, 0), pad_r, pad_s, (0, 0)))
            taps = [xp[:, di:di + H, dj:dj + W, :] for di in (0, 1) for dj in (0, 1)]
            cols.append(jnp.stack(taps, axis=3).reshape(M, 4 * Cin))
    cols4 = jnp.stack(cols, axis=0).astype(jnp.bfloat16)          # (4, M, 4*Cin)

    res = phase_matmul_bias_act(cols4, w4, bias, act, stats=stats, out_dtype=out_dtype)
    if stats:
        out, ssum, ssq = res
        return out.reshape(2, 2, N, H, W, Cout), ssum, ssq
    return res.reshape(2, 2, N, H, W, Cout)


def pixel_shuffle(yp):
    """(2, 2, N, H, W, C) phase-stacked -> (N, 2H, 2W, C).
    TODO(synk): could be absorbed into the tconv kernel's store with a strided out
    index_map; kept as XLA glue for robustness."""
    _, _, N, H, W, C = yp.shape
    return jnp.transpose(yp, (2, 3, 0, 4, 1, 5)).reshape(N, 2 * H, 2 * W, C)


def resblock(x, p, act):
    r, s, q = conv2d_mat(x, p["w1"], 1, 1, 0, stats=True)
    r = batchnorm_act(r, s, q, p["g1"], p["b1"], "relu")
    r, s, q = conv2d_mat(r, p["w2"], 3, 1, 1, stats=True)
    r = batchnorm_act(r, s, q, p["g2"], p["b2"], "relu")
    r, s, q = conv2d_mat(r, p["w3"], 3, 1, 1, stats=True)
    # third BN fused with the residual add + activation
    return batchnorm_act(r, s, q, p["g3"], p["b3"], act, residual=x)


# --------------------------- parameters (pre-transformed at init) ---------------------------

def init_params(key, hidden_dim, img_size, img_channel=1, ref_dim=32):
    keys = iter(jax.random.split(key, 32))

    def nrm(shape):
        return 0.05 * jax.random.normal(next(keys), shape, jnp.float32)

    def bn(c):
        return jnp.ones((c,), jnp.float32), jnp.zeros((c,), jnp.float32)

    def conv_mat(w):  # PyTorch (Cout, Cin, k, k) -> im2col-major (k*k*Cin, Cout)
        Cout, Cin, k, _ = w.shape
        return jnp.transpose(w, (2, 3, 1, 0)).reshape(k * k * Cin, Cout).astype(jnp.bfloat16)

    def tconv_phases(w):
        # PyTorch ConvTranspose (Cin, Cout, 4, 4) -> stacked (4, 4*Cin, Cout) sub-pixel
        # phase matrices (phase p = 2*r + s), tap ordering (di, dj, cin) matching the
        # 2x2 window gather in conv_transpose2d_s2.
        Cin, Cout = w.shape[0], w.shape[1]
        tap = {0: (3, 1), 1: (2, 0)}
        phases = []
        for r in (0, 1):
            for s in (0, 1):
                sel = [w[:, :, tap[r][di], tap[s][dj]] for di in (0, 1) for dj in (0, 1)]
                phases.append(jnp.stack(sel, axis=0).reshape(4 * Cin, Cout))
        return jnp.stack(phases, axis=0).astype(jnp.bfloat16)

    def res_params(c):
        q = {}
        q["w1"] = conv_mat(nrm((c // 4, c, 1, 1))); q["g1"], q["b1"] = bn(c // 4)
        q["w2"] = conv_mat(nrm((c // 4, c // 4, 3, 3))); q["g2"], q["b2"] = bn(c // 4)
        q["w3"] = conv_mat(nrm((c, c // 4, 3, 3))); q["g3"], q["b3"] = bn(c)
        return q

    C4 = ref_dim * 4
    H8, W8 = img_size[0] // 8, img_size[1] // 8
    k0 = H8
    project_dim = C4 * H8 * W8

    p = {}
    # encoder
    p["e1_w"] = conv_mat(nrm((ref_dim, img_channel, 4, 4))); p["e1_g"], p["e1_b"] = bn(ref_dim)
    p["e2_w"] = conv_mat(nrm((ref_dim * 2, ref_dim, 4, 4))); p["e2_g"], p["e2_b"] = bn(ref_dim * 2)
    p["e3_w"] = conv_mat(nrm((C4, ref_dim * 2, 4, 4))); p["e3_g"], p["e3_b"] = bn(C4)
    p["enc_res"] = res_params(C4)

    # projection: PyTorch Linear weight (2H, project_dim) with input order (c,h,w);
    # permute rows so the NHWC flatten (h,w,c) used in the forward matches exactly.
    # mu/log_var weights stay concatenated -> one fused matmul.
    W_pt = nrm((hidden_dim * 2, project_dim))
    p["proj_w"] = jnp.transpose(W_pt.reshape(hidden_dim * 2, C4, H8, W8),
                                (2, 3, 1, 0)).reshape(project_dim, hidden_dim * 2).astype(jnp.bfloat16)
    p["proj_b"] = nrm((hidden_dim * 2,))

    # decoder
    d1 = nrm((hidden_dim, C4, k0, k0))            # ConvTranspose over a 1x1 input == matmul
    p["d1_w"] = jnp.transpose(d1, (0, 2, 3, 1)).reshape(hidden_dim, k0 * k0 * C4).astype(jnp.bfloat16)
    p["d1_g"], p["d1_b"] = bn(C4)
    p["dec_res"] = res_params(C4)
    p["d2_w"] = tconv_phases(nrm((C4, ref_dim * 2, 4, 4))); p["d2_g"], p["d2_b"] = bn(ref_dim * 2)
    p["d3_w"] = tconv_phases(nrm((ref_dim * 2, ref_dim, 4, 4))); p["d3_g"], p["d3_b"] = bn(ref_dim)
    p["d4_w"] = tconv_phases(nrm((ref_dim, img_channel, 4, 4)))
    p["d4_bias"] = nrm((img_channel,))
    return p


# ------------------------------- VAE_conv forward -------------------------------

def vae_conv_forward(params, x_nchw, eps, *, hidden_dim, img_size):
    N = x_nchw.shape[0]
    x = jnp.transpose(x_nchw, (0, 2, 3, 1)).astype(jnp.bfloat16)   # NCHW -> NHWC bf16

    # ---- encoder (BN stats fused into each conv matmul) ----
    h, s, q = conv2d_mat(x, params["e1_w"], 4, 2, 1, stats=True)
    h = batchnorm_act(h, s, q, params["e1_g"], params["e1_b"], "leaky")
    h, s, q = conv2d_mat(h, params["e2_w"], 4, 2, 1, stats=True)
    h = batchnorm_act(h, s, q, params["e2_g"], params["e2_b"], "leaky")
    h, s, q = conv2d_mat(h, params["e3_w"], 4, 2, 1, stats=True)
    h = batchnorm_act(h, s, q, params["e3_g"], params["e3_b"], "leaky")
    h = resblock(h, params["enc_res"], "leaky")

    # ---- projection + reparameterization (single fused kernel, merged mu/lv weight) ----
    flat = h.reshape(N, -1)
    mu, log_var, z = project_reparam(flat, params["proj_w"], params["proj_b"], eps, hidden_dim)

    # ---- decoder ----
    k0 = img_size[0] // 8
    C4 = params["d1_g"].shape[0]
    y, s, q = matmul_bias_act(z, params["d1_w"], stats=True)        # d1: pure matmul
    # d1's matmul N axis is (kh, kw, cout); fold spatial groups into per-channel sums.
    s = s.reshape(k0 * k0, C4).sum(axis=0).reshape(1, C4)
    q = q.reshape(k0 * k0, C4).sum(axis=0).reshape(1, C4)
    h = batchnorm_act(y.reshape(N, k0, k0, C4), s, q, params["d1_g"], params["d1_b"], "relu")
    h = resblock(h, params["dec_res"], "relu")

    yp, s, q = conv_transpose2d_s2(h, params["d2_w"], stats=True)
    h = pixel_shuffle(batchnorm_act(yp, s, q, params["d2_g"], params["d2_b"], "relu"))
    yp, s, q = conv_transpose2d_s2(h, params["d3_w"], stats=True)
    h = pixel_shuffle(batchnorm_act(yp, s, q, params["d3_g"], params["d3_b"], "relu"))
    yp = conv_transpose2d_s2(h, params["d4_w"], bias=params["d4_bias"], act="sigmoid",
                             stats=False, out_dtype=jnp.float32)
    h = pixel_shuffle(yp)

    rec = jnp.transpose(h, (0, 3, 1, 2)).reshape(N, 1, img_size[0], img_size[1])
    return rec, mu, log_var


if __name__ == "__main__":
    key = jax.random.PRNGKey(0)
    k_params, k_x, k_eps = jax.random.split(key, 3)

    img_size = (16, 16)      # must be divisible by 8 (square, like the PyTorch module assumes)
    img_channel = 1
    hidden_dim = 32          # stands in for args.hidden_dim
    batch = 2

    params = init_params(k_params, hidden_dim, img_size, img_channel)
    x = jax.random.normal(k_x, (batch, img_channel, img_size[0], img_size[1]), jnp.float32)
    eps = jax.random.normal(k_eps, (batch, hidden_dim), jnp.float32)

    fwd = jax.jit(functools.partial(vae_conv_forward, hidden_dim=hidden_dim, img_size=img_size))
    rec, mu, log_var = fwd(params, x, eps)
    jax.block_until_ready((rec, mu, log_var))

    assert rec.shape == (batch, 1, img_size[0], img_size[1])
    assert mu.shape == (batch, hidden_dim) and log_var.shape == (batch, hidden_dim)
    assert bool(jnp.all((rec >= 0.0) & (rec <= 1.0)))
    print("KERNEL_OK")
</pallas_src>

<mosaic_0001>
module attributes {stable_mosaic.version = 11 : i64} {
  func.func @_bn_apply_kernel(%arg0: i32, %arg1: memref<128x32xbf16, #tpu.memory_space<vmem>>, %arg2: memref<1x32xf32, #tpu.memory_space<vmem>>, %arg3: memref<1x32xf32, #tpu.memory_space<vmem>>, %arg4: memref<1x32xf32, #tpu.memory_space<vmem>>, %arg5: memref<1x32xf32, #tpu.memory_space<vmem>>, %arg6: memref<128x32xbf16, #tpu.memory_space<vmem>>) attributes {dimension_semantics = [#tpu.dimension_semantics<parallel>], iteration_bounds = array<i64: 1>, scalar_prefetch = 0 : i64, scratch_operands = 0 : i64, tpu.core_type = #tpu.core_type<tc>, window_params = [{transform_indices = @transform_0, window_bounds = array<i64: 128, 32>}, {pipeline_mode = #tpu.pipeline_mode<synchronous>, transform_indices = @transform_1, window_bounds = array<i64: 1, 32>}, {pipeline_mode = #tpu.pipeline_mode<synchronous>, transform_indices = @transform_2, window_bounds = array<i64: 1, 32>}, {pipeline_mode = #tpu.pipeline_mode<synchronous>, transform_indices = @transform_3, window_bounds = array<i64: 1, 32>}, {pipeline_mode = #tpu.pipeline_mode<synchronous>, transform_indices = @transform_4, window_bounds = array<i64: 1, 32>}, {transform_indices = @transform_5, window_bounds = array<i64: 128, 32>}]} {
    %c0 = arith.constant 0 : index
    %c0_0 = arith.constant 0 : index
    %0 = vector.load %arg2[%c0, %c0_0] : memref<1x32xf32, #tpu.memory_space<vmem>>, vector<1x32xf32>
    %cst = arith.constant 7.812500e-03 : f32
    %1 = vector.broadcast %cst : f32 to vector<1x32xf32>
    %2 = arith.mulf %0, %1 : vector<1x32xf32>
    %c0_1 = arith.constant 0 : index
    %c0_2 = arith.constant 0 : index
    %3 = vector.load %arg3[%c0_1, %c0_2] : memref<1x32xf32, #tpu.memory_space<vmem>>, vector<1x32xf32>
    %cst_3 = arith.constant 7.812500e-03 : f32
    %4 = vector.broadcast %cst_3 : f32 to vector<1x32xf32>
    %5 = arith.mulf %3, %4 : vector<1x32xf32>
    %6 = arith.mulf %2, %2 : vector<1x32xf32>
    %7 = arith.subf %5, %6 : vector<1x32xf32>
    %cst_4 = arith.constant 9.99999974E-6 : f32
    %8 = vector.broadcast %cst_4 : f32 to vector<1x32xf32>
    %9 = arith.addf %7, %8 : vector<1x32xf32>
    %10 = math.rsqrt %9 : vector<1x32xf32>
    %c0_5 = arith.constant 0 : index
    %c0_6 = arith.constant 0 : index
    %11 = vector.load %arg4[%c0_5, %c0_6] : memref<1x32xf32, #tpu.memory_space<vmem>>, vector<1x32xf32>
    %12 = arith.mulf %10, %11 : vector<1x32xf32>
    %c0_7 = arith.constant 0 : index
    %c0_8 = arith.constant 0 : index
    %13 = vector.load %arg1[%c0_7, %c0_8] : memref<128x32xbf16, #tpu.memory_space<vmem>>, vector<128x32xbf16>
    %14 = arith.extf %13 : vector<128x32xbf16> to vector<128x32xf32>
    %15 = vector.broadcast %2 : vector<1x32xf32> to vector<128x32xf32>
    %16 = arith.subf %14, %15 : vector<128x32xf32>
    %17 = vector.broadcast %12 : vector<1x32xf32> to vector<128x32xf32>
    %18 = arith.mulf %16, %17 : vector<128x32xf32>
    %c0_9 = arith.constant 0 : index
    %c0_10 = arith.constant 0 : index
    %19 = vector.load %arg5[%c0_9, %c0_10] : memref<1x32xf32, #tpu.memory_space<vmem>>, vector<1x32xf32>
    %20 = vector.broadcast %19 : vector<1x32xf32> to vector<128x32xf32>
    %21 = arith.addf %18, %20 : vector<128x32xf32>
    %cst_11 = arith.constant 0.000000e+00 : f32
    %22 = vector.broadcast %cst_11 : f32 to vector<128x32xf32>
    %23 = arith.cmpf ogt, %21, %22 : vector<128x32xf32>
    %cst_12 = arith.constant 2.000000e-01 : f32
    %24 = vector.broadcast %cst_12 : f32 to vector<128x32xf32>
    %25 = arith.mulf %24, %21 : vector<128x32xf32>
    %26 = arith.select %23, %21, %25 : vector<128x32xi1>, vector<128x32xf32>
    %27 = arith.truncf %26 : vector<128x32xf32> to vector<128x32xbf16>
    %c0_13 = arith.constant 0 : index
    %c0_14 = arith.constant 0 : index
    %28 = vector.load %arg6[%c0_13, %c0_14] : memref<128x32xbf16, #tpu.memory_space<vmem>>, vector<128x32xbf16>
    tpu.vector_store %arg6[%c0_13, %c0_14], %27 {strides = array<i32>} : memref<128x32xbf16, #tpu.memory_space<vmem>>, vector<128x32xbf16>,
    return
  }
  func.func @transform_0(%arg0: i32) -> (i32, i32) {
    %c0_i32 = arith.constant 0 : i32
    %c0_i32_0 = arith.constant 0 : i32
    return %arg0, %c0_i32 : i32, i32
  }
  func.func @transform_1(%arg0: i32) -> (i32, i32) {
    %c0_i32 = arith.constant 0 : i32
    %c0_i32_0 = arith.constant 0 : i32
    %c0_i32_1 = arith.constant 0 : i32
    return %c0_i32, %c0_i32_0 : i32, i32
  }
  func.func @transform_2(%arg0: i32) -> (i32, i32) {
    %c0_i32 = arith.constant 0 : i32
    %c0_i32_0 = arith.constant 0 : i32
    %c0_i32_1 = arith.constant 0 : i32
    return %c0_i32, %c0_i32_0 : i32, i32
  }
  func.func @transform_3(%arg0: i32) -> (i32, i32) {
    %c0_i32 = arith.constant 0 : i32
    %c0_i32_0 = arith.constant 0 : i32
    %c0_i32_1 = arith.constant 0 : i32
    return %c0_i32, %c0_i32_0 : i32, i32
  }
  func.func @transform_4(%arg0: i32) -> (i32, i32) {
    %c0_i32 = arith.constant 0 : i32
    %c0_i32_0 = arith.constant 0 : i32
    %c0_i32_1 = arith.constant 0 : i32
    return %c0_i32, %c0_i32_0 : i32, i32
  }
  func.func @transform_5(%arg0: i32) -> (i32, i32) {
    %c0_i32 = arith.constant 0 : i32
    %c0_i32_0 = arith.constant 0 : i32
    return %arg0, %c0_i32 : i32, i32
  }
}

module attributes {stable_mosaic.version = 11 : i64} {
  func.func @_mm_kernel(%arg0: i32, %arg1: i32, %arg2: i32, %arg3: memref<128x128xbf16, #tpu.memory_space<vmem>>, %arg4: memref<128x128xbf16, #tpu.memory_space<vmem>>, %arg5: memref<1x128xf32, #tpu.memory_space<vmem>>, %arg6: memref<128x128xbf16, #tpu.memory_space<vmem>>, %arg7: memref<1x128xf32, #tpu.memory_space<vmem>>, %arg8: memref<1x128xf32, #tpu.memory_space<vmem>>, %arg9: memref<128x128xf32, #tpu.memory_space<vmem>>) attributes {dimension_semantics = [#tpu.dimension_semantics<parallel>, #tpu.dimension_semantics<parallel>, #tpu.dimension_semantics<arbitrary>], iteration_bounds = array<i64: 1, 1, 1>, scalar_prefetch = 0 : i64, scratch_operands = 1 : i64, tpu.core_type = #tpu.core_type<tc>, window_params = [{transform_indices = @transform_0, window_bounds = array<i64: 128, 128>}, {transform_indices = @transform_1, window_bounds = array<i64: 128, 128>}, {transform_indices = @transform_2, window_bounds = array<i64: 1, 128>}, {transform_indices = @transform_3, window_bounds = array<i64: 128, 128>}, {transform_indices = @transform_4, window_bounds = array<i64: 1, 128>}, {transform_indices = @transform_5, window_bounds = array<i64: 1, 128>}]} {
    %c0_i32 = arith.constant 0 : i32
    %0 = arith.cmpi eq, %arg2, %c0_i32 : i32
    %1 = arith.extui %0 : i1 to i32
    %c0_i32_0 = arith.constant 0 : i32
    %2 = arith.cmpi ne, %1, %c0_i32_0 : i32
    scf.if %2 {
      %cst_10 = arith.constant 0.000000e+00 : f32
      %12 = vector.broadcast %cst_10 : f32 to vector<128x128xf32>
      %c0_11 = arith.constant 0 : index
      %c0_12 = arith.constant 0 : index
      %13 = vector.load %arg9[%c0_11, %c0_12] : memref<128x128xf32, #tpu.memory_space<vmem>>, vector<128x128xf32>
      tpu.vector_store %arg9[%c0_11, %c0_12], %12 {strides = array<i32>} : memref<128x128xf32, #tpu.memory_space<vmem>>, vector<128x128xf32>,
    } else {
    }
    %c0 = arith.constant 0 : index
    %c0_1 = arith.constant 0 : index
    %3 = vector.load %arg9[%c0, %c0_1] : memref<128x128xf32, #tpu.memory_space<vmem>>, vector<128x128xf32>
    %c0_2 = arith.constant 0 : index
    %c0_3 = arith.constant 0 : index
    %4 = vector.load %arg3[%c0_2, %c0_3] : memref<128x128xbf16, #tpu.memory_space<vmem>>, vector<128x128xbf16>
    %c0_4 = arith.constant 0 : index
    %c0_5 = arith.constant 0 : index
    %5 = vector.load %arg4[%c0_4, %c0_5] : memref<128x128xbf16, #tpu.memory_space<vmem>>, vector<128x128xbf16>
    %cst = arith.constant dense<0.000000e+00> : vector<128x128xf32>
    %6 = tpu.matmul %4, %5, %cst {dimension_numbers = #tpu.dot_dimension_numbers<[1], [0], [0], [1], [0, 0, 1, 1], [], []>} : vector<128x128xbf16>, vector<128x128xbf16>, vector<128x128xf32> -> vector<128x128xf32>
    %7 = arith.addf %3, %6 : vector<128x128xf32>
    %c0_6 = arith.constant 0 : index
    %c0_7 = arith.constant 0 : index
    %8 = vector.load %arg9[%c0_6, %c0_7] : memref<128x128xf32, #tpu.memory_space<vmem>>, vector<128x128xf32>
    tpu.vector_store %arg9[%c0_6, %c0_7], %7 {strides = array<i32>} : memref<128x128xf32, #tpu.memory_space<vmem>>, vector<128x128xf32>,
    %c0_i32_8 = arith.constant 0 : i32
    %9 = arith.cmpi eq, %arg2, %c0_i32_8 : i32
    %10 = arith.extui %9 : i1 to i32
    %c0_i32_9 = arith.constant 0 : i32
    %11 = arith.cmpi ne, %10, %c0_i32_9 : i32
    scf.if %11 {
      %c0_10 = arith.constant 0 : index
      %c0_11 = arith.constant 0 : index
      %12 = vector.load %arg9[%c0_10, %c0_11] : memref<128x128xf32, #tpu.memory_space<vmem>>, vector<128x128xf32>
      %c0_12 = arith.constant 0 : index
      %c0_13 = arith.constant 0 : index
      %13 = vector.load %arg5[%c0_12, %c0_13] : memref<1x128xf32, #tpu.memory_space<vmem>>, vector<1x128xf32>
      %14 = vector.broadcast %13 : vector<1x128xf32> to vector<128x128xf32>
      %15 = arith.addf %12, %14 : vector<128x128xf32>
      %16 = arith.truncf %15 : vector<128x128xf32> to vector<128x128xbf16>
      %c0_14 = arith.constant 0 : index
      %c0_15 = arith.constant 0 : index
      %17 = vector.load %arg6[%c0_14, %c0_15] : memref<128x128xbf16, #tpu.memory_space<vmem>>, vector<128x128xbf16>
      tpu.vector_store %arg6[%c0_14, %c0_15], %16 {strides = array<i32>} : memref<128x128xbf16, #tpu.memory_space<vmem>>, vector<128x128xbf16>,
      %cst_16 = arith.constant dense<0.000000e+00> : vector<128xf32>
      %18 = vector.multi_reduction <add>, %15, %cst_16 [0] : vector<128x128xf32> to vector<128xf32>
      %19 = vector.shape_cast %18 : vector<128xf32> to vector<1x128xf32>
      %c0_17 = arith.constant 0 : index
      %c0_18 = arith.constant 0 : index
      %20 = vector.load %arg7[%c0_17, %c0_18] : memref<1x128xf32, #tpu.memory_space<vmem>>, vector<1x128xf32>
      tpu.vector_store %arg7[%c0_17, %c0_18], %19 {strides = array<i32>} : memref<1x128xf32, #tpu.memory_space<vmem>>, vector<1x128xf32>,
      %21 = arith.mulf %15, %15 : vector<128x128xf32>
      %cst_19 = arith.constant dense<0.000000e+00> : vector<128xf32>
      %22 = vector.multi_reduction <add>, %21, %cst_19 [0] : vector<128x128xf32> to vector<128xf32>
      %23 = vector.shape_cast %22 : vector<128xf32> to vector<1x128xf32>
      %c0_20 = arith.constant 0 : index
      %c0_21 = arith.constant 0 : index
      %24 = vector.load %arg8[%c0_20, %c0_21] : memref<1x128xf32, #tpu.memory_space<vmem>>, vector<1x128xf32>
      tpu.vector_store %arg8[%c0_20, %c0_21], %23 {strides = array<i32>} : memref<1x128xf32, #tpu.memory_space<vmem>>, vector<1x128xf32>,
    } else {
    }
    return
  }
  func.func @transform_0(%arg0: i32, %arg1: i32, %arg2: i32) -> (i32, i32) {
    %c0_i32 = arith.constant 0 : i32
    return %arg0, %arg2 : i32, i32
  }
  func.func @transform_1(%arg0: i32, %arg1: i32, %arg2: i32) -> (i32, i32) {
    %c0_i32 = arith.constant 0 : i32
    return %arg2, %arg1 : i32, i32
  }
  func.func @transform_2(%arg0: i32, %arg1: i32, %arg2: i32) -> (i32, i32) {
    %c0_i32 = arith.constant 0 : i32
    %c0_i32_0 = arith.constant 0 : i32
    return %c0_i32, %arg1 : i32, i32
  }
  func.func @transform_3(%arg0: i32, %arg1: i32, %arg2: i32) -> (i32, i32) {
    %c0_i32 = arith.constant 0 : i32
    return %arg0, %arg1 : i32, i32
  }
  func.func @transform_4(%arg0: i32, %arg1: i32, %arg2: i32) -> (i32, i32) {
    %c0_i32 = arith.constant 0 : i32
    return %arg0, %arg1 : i32, i32
  }
  func.func @transform_5(%arg0: i32, %arg1: i32, %arg2: i32) -> (i32, i32) {
    %c0_i32 = arith.constant 0 : i32
    return %arg0, %arg1 : i32, i32
  }
}

module attributes {stable_mosaic.version = 11 : i64} {
  func.func @_mm_kernel(%arg0: i32, %arg1: i32, %arg2: i32, %arg3: memref<32x512xbf16, #tpu.memory_space<vmem>>, %arg4: memref<512x128xbf16, #tpu.memory_space<vmem>>, %arg5: memref<1x128xf32, #tpu.memory_space<vmem>>, %arg6: memref<32x128xbf16, #tpu.memory_space<vmem>>, %arg7: memref<1x128xf32, #tpu.memory_space<vmem>>, %arg8: memref<1x128xf32, #tpu.memory_space<vmem>>, %arg9: memref<32x128xf32, #tpu.memory_space<vmem>>) attributes {dimension_semantics = [#tpu.dimension_semantics<parallel>, #tpu.dimension_semantics<parallel>, #tpu.dimension_semantics<arbitrary>], iteration_bounds = array<i64: 1, 1, 1>, scalar_prefetch = 0 : i64, scratch_operands = 1 : i64, tpu.core_type = #tpu.core_type<tc>, window_params = [{transform_indices = @transform_0, window_bounds = array<i64: 32, 512>}, {transform_indices = @transform_1, window_bounds = array<i64: 512, 128>}, {transform_indices = @transform_2, window_bounds = array<i64: 1, 128>}, {transform_indices = @transform_3, window_bounds = array<i64: 32, 128>}, {transform_indices = @transform_4, window_bounds = array<i64: 1, 128>}, {transform_indices = @transform_5, window_bounds = array<i64: 1, 128>}]} {
    %c0_i32 = arith.constant 0 : i32
    %0 = arith.cmpi eq, %arg2, %c0_i32 : i32
    %1 = arith.extui %0 : i1 to i32
    %c0_i32_0 = arith.constant 0 : i32
    %2 = arith.cmpi ne, %1, %c0_i32_0 : i32
    scf.if %2 {
      %cst_10 = arith.constant 0.000000e+00 : f32
      %12 = vector.broadcast %cst_10 : f32 to vector<32x128xf32>
      %c0_11 = arith.constant 0 : index
      %c0_12 = arith.constant 0 : index
      %13 = vector.load %arg9[%c0_11, %c0_12] : memref<32x128xf32, #tpu.memory_space<vmem>>, vector<32x128xf32>
      tpu.vector_store %arg9[%c0_11, %c0_12], %12 {strides = array<i32>} : memref<32x128xf32, #tpu.memory_space<vmem>>, vector<32x128xf32>,
    } else {
    }
    %c0 = arith.constant 0 : index
    %c0_1 = arith.constant 0 : index
    %3 = vector.load %arg9[%c0, %c0_1] : memref<32x128xf32, #tpu.memory_space<vmem>>, vector<32x128xf32>
    %c0_2 = arith.constant 0 : index
    %c0_3 = arith.constant 0 : index
    %4 = vector.load %arg3[%c0_2, %c0_3] : memref<32x512xbf16, #tpu.memory_space<vmem>>, vector<32x512xbf16>
    %c0_4 = arith.constant 0 : index
    %c0_5 = arith.constant 0 : index
    %5 = vector.load %arg4[%c0_4, %c0_5] : memref<512x128xbf16, #tpu.memory_space<vmem>>, vector<512x128xbf16>
    %cst = arith.constant dense<0.000000e+00> : vector<32x128xf32>
    %6 = tpu.matmul %4, %5, %cst {dimension_numbers = #tpu.dot_dimension_numbers<[1], [0], [0], [1], [0, 0, 1, 1], [], []>} : vector<32x512xbf16>, vector<512x128xbf16>, vector<32x128xf32> -> vector<32x128xf32>
    %7 = arith.addf %3, %6 : vector<32x128xf32>
    %c0_6 = arith.constant 0 : index
    %c0_7 = arith.constant 0 : index
    %8 = vector.load %arg9[%c0_6, %c0_7] : memref<32x128xf32, #tpu.memory_space<vmem>>, vector<32x128xf32>
    tpu.vector_store %arg9[%c0_6, %c0_7], %7 {strides = array<i32>} : memref<32x128xf32, #tpu.memory_space<vmem>>, vector<32x128xf32>,
    %c0_i32_8 = arith.constant 0 : i32
    %9 = arith.cmpi eq, %arg2, %c0_i32_8 : i32
    %10 = arith.extui %9 : i1 to i32
    %c0_i32_9 = arith.constant 0 : i32
    %11 = arith.cmpi ne, %10, %c0_i32_9 : i32
    scf.if %11 {
      %c0_10 = arith.constant 0 : index
      %c0_11 = arith.constant 0 : index
      %12 = vector.load %arg9[%c0_10, %c0_11] : memref<32x128xf32, #tpu.memory_space<vmem>>, vector<32x128xf32>
      %c0_12 = arith.constant 0 : index
      %c0_13 = arith.constant 0 : index
      %13 = vector.load %arg5[%c0_12, %c0_13] : memref<1x128xf32, #tpu.memory_space<vmem>>, vector<1x128xf32>
      %14 = vector.broadcast %13 : vector<1x128xf32> to vector<32x128xf32>
      %15 = arith.addf %12, %14 : vector<32x128xf32>
      %16 = arith.truncf %15 : vector<32x128xf32> to vector<32x128xbf16>
      %c0_14 = arith.constant 0 : index
      %c0_15 = arith.constant 0 : index
      %17 = vector.load %arg6[%c0_14, %c0_15] : memref<32x128xbf16, #tpu.memory_space<vmem>>, vector<32x128xbf16>
      tpu.vector_store %arg6[%c0_14, %c0_15], %16 {strides = array<i32>} : memref<32x128xbf16, #tpu.memory_space<vmem>>, vector<32x128xbf16>,
      %cst_16 = arith.constant dense<0.000000e+00> : vector<128xf32>
      %18 = vector.multi_reduction <add>, %15, %cst_16 [0] : vector<32x128xf32> to vector<128xf32>
      %19 = vector.shape_cast %18 : vector<128xf32> to vector<1x128xf32>
      %c0_17 = arith.constant 0 : index
      %c0_18 = arith.constant 0 : index
      %20 = vector.load %arg7[%c0_17, %c0_18] : memref<1x128xf32, #tpu.memory_space<vmem>>, vector<1x128xf32>
      tpu.vector_store %arg7[%c0_17, %c0_18], %19 {strides = array<i32>} : memref<1x128xf32, #tpu.memory_space<vmem>>, vector<1x128xf32>,
      %21 = arith.mulf %15, %15 : vector<32x128xf32>
      %cst_19 = arith.constant dense<0.000000e+00> : vector<128xf32>
      %22 = vector.multi_reduction <add>, %21, %cst_19 [0] : vector<32x128xf32> to vector<128xf32>
      %23 = vector.shape_cast %22 : vector<128xf32> to vector<1x128xf32>
      %c0_20 = arith.constant 0 : index
      %c0_21 = arith.constant 0 : index
      %24 = vector.load %arg8[%c0_20, %c0_21] : memref<1x128xf32, #tpu.memory_space<vmem>>, vector<1x128xf32>
      tpu.vector_store %arg8[%c0_20, %c0_21], %23 {strides = array<i32>} : memref<1x128xf32, #tpu.memory_space<vmem>>, vector<1x128xf32>,
    } else {
    }
    return
  }
  func.func @transform_0(%arg0: i32, %arg1: i32, %arg2: i32) -> (i32, i32) {
    %c0_i32 = arith.constant 0 : i32
    return %arg0, %arg2 : i32, i32
  }
  func.func @transform_1(%arg0: i32, %arg1: i32, %arg2: i32) -> (i32, i32) {
    %c0_i32 = arith.constant 0 : i32
    return %arg2, %arg1 : i32, i32
  }
  func.func @transform_2(%arg0: i32, %arg1: i32, %arg2: i32) -> (i32, i32) {
    %c0_i32 = arith.constant 0 : i32
    %c0_i32_0 = arith.constant 0 : i32
    return %c0_i32, %arg1 : i32, i32
  }
  func.func @transform_3(%arg0: i32, %arg1: i32, %arg2: i32) -> (i32, i32) {
    %c0_i32 = arith.constant 0 : i32
    return %arg0, %arg1 : i32, i32
  }
  func.func @transform_4(%arg0: i32, %arg1: i32, %arg2: i32) -> (i32, i32) {
    %c0_i32 = arith.constant 0 : i32
    return %arg0, %arg1 : i32, i32
  }
  func.func @transform_5(%arg0: i32, %arg1: i32, %arg2: i32) -> (i32, i32) {
    %c0_i32 = arith.constant 0 : i32
    return %arg0, %arg1 : i32, i32
  }
}

module attributes {stable_mosaic.version = 11 : i64} {
  func.func @_bn_apply_kernel(%arg0: i32, %arg1: memref<32x64xbf16, #tpu.memory_space<vmem>>, %arg2: memref<1x64xf32, #tpu.memory_space<vmem>>, %arg3: memref<1x64xf32, #tpu.memory_space<vmem>>, %arg4: memref<1x64xf32, #tpu.memory_space<vmem>>, %arg5: memref<1x64xf32, #tpu.memory_space<vmem>>, %arg6: memref<32x64xbf16, #tpu.memory_space<vmem>>) attributes {dimension_semantics = [#tpu.dimension_semantics<parallel>], iteration_bounds = array<i64: 1>, scalar_prefetch = 0 : i64, scratch_operands = 0 : i64, tpu.core_type = #tpu.core_type<tc>, window_params = [{transform_indices = @transform_0, window_bounds = array<i64: 32, 64>}, {pipeline_mode = #tpu.pipeline_mode<synchronous>, transform_indices = @transform_1, window_bounds = array<i64: 1, 64>}, {pipeline_mode = #tpu.pipeline_mode<synchronous>, transform_indices = @transform_2, window_bounds = array<i64: 1, 64>}, {pipeline_mode = #tpu.pipeline_mode<synchronous>, transform_indices = @transform_3, window_bounds = array<i64: 1, 64>}, {pipeline_mode = #tpu.pipeline_mode<synchronous>, transform_indices = @transform_4, window_bounds = array<i64: 1, 64>}, {transform_indices = @transform_5, window_bounds = array<i64: 32, 64>}]} {
    %c0 = arith.constant 0 : index
    %c0_0 = arith.constant 0 : index
    %0 = vector.load %arg2[%c0, %c0_0] : memref<1x64xf32, #tpu.memory_space<vmem>>, vector<1x64xf32>
    %cst = arith.constant 3.125000e-02 : f32
    %1 = vector.broadcast %cst : f32 to vector<1x64xf32>
    %2 = arith.mulf %0, %1 : vector<1x64xf32>
    %c0_1 = arith.constant 0 : index
    %c0_2 = arith.constant 0 : index
    %3 = vector.load %arg3[%c0_1, %c0_2] : memref<1x64xf32, #tpu.memory_space<vmem>>, vector<1x64xf32>
    %cst_3 = arith.constant 3.125000e-02 : f32
    %4 = vector.broadcast %cst_3 : f32 to vector<1x64xf32>
    %5 = arith.mulf %3, %4 : vector<1x64xf32>
    %6 = arith.mulf %2, %2 : vector<1x64xf32>
    %7 = arith.subf %5, %6 : vector<1x64xf32>
    %cst_4 = arith.constant 9.99999974E-6 : f32
    %8 = vector.broadcast %cst_4 : f32 to vector<1x64xf32>
    %9 = arith.addf %7, %8 : vector<1x64xf32>
    %10 = math.rsqrt %9 : vector<1x64xf32>
    %c0_5 = arith.constant 0 : index
    %c0_6 = arith.constant 0 : index
    %11 = vector.load %arg4[%c0_5, %c0_6] : memref<1x64xf32, #tpu.memory_space<vmem>>, vector<1x64xf32>
    %12 = arith.mulf %10, %11 : vector<1x64xf32>
    %c0_7 = arith.constant 0 : index
    %c0_8 = arith.constant 0 : index
    %13 = vector.load %arg1[%c0_7, %c0_8] : memref<32x64xbf16, #tpu.memory_space<vmem>>, vector<32x64xbf16>
    %14 = arith.extf %13 : vector<32x64xbf16> to vector<32x64xf32>
    %15 = vector.broadcast %2 : vector<1x64xf32> to vector<32x64xf32>
    %16 = arith.subf %14, %15 : vector<32x64xf32>
    %17 = vector.broadcast %12 : vector<1x64xf32> to vector<32x64xf32>
    %18 = arith.mulf %16, %17 : vector<32x64xf32>
    %c0_9 = arith.constant 0 : index
    %c0_10 = arith.constant 0 : index
    %19 = vector.load %arg5[%c0_9, %c0_10] : memref<1x64xf32, #tpu.memory_space<vmem>>, vector<1x64xf32>
    %20 = vector.broadcast %19 : vector<1x64xf32> to vector<32x64xf32>
    %21 = arith.addf %18, %20 : vector<32x64xf32>
    %cst_11 = arith.constant 0.000000e+00 : f32
    %22 = vector.broadcast %cst_11 : f32 to vector<32x64xf32>
    %23 = arith.cmpf ogt, %21, %22 : vector<32x64xf32>
    %cst_12 = arith.constant 2.000000e-01 : f32
    %24 = vector.broadcast %cst_12 : f32 to vector<32x64xf32>
    %25 = arith.mulf %24, %21 : vector<32x64xf32>
    %26 = arith.select %23, %21, %25 : vector<32x64xi1>, vector<32x64xf32>
    %27 = arith.truncf %26 : vector<32x64xf32> to vector<32x64xbf16>
    %c0_13 = arith.constant 0 : index
    %c0_14 = arith.constant 0 : index
    %28 = vector.load %arg6[%c0_13, %c0_14] : memref<32x64xbf16, #tpu.memory_space<vmem>>, vector<32x64xbf16>
    tpu.vector_store %arg6[%c0_13, %c0_14], %27 {strides = array<i32>} : memref<32x64xbf16, #tpu.memory_space<vmem>>, vector<32x64xbf16>,
    return
  }
  func.func @transform_0(%arg0: i32) -> (i32, i32) {
    %c0_i32 = arith.constant 0 : i32
    %c0_i32_0 = arith.constant 0 : i32
    return %arg0, %c0_i32 : i32, i32
  }
  func.func @transform_1(%arg0: i32) -> (i32, i32) {
    %c0_i32 = arith.constant 0 : i32
    %c0_i32_0 = arith.constant 0 : i32
    %c0_i32_1 = arith.constant 0 : i32
    return %c0_i32, %c0_i32_0 : i32, i32
  }
  func.func @transform_2(%arg0: i32) -> (i32, i32) {
    %c0_i32 = arith.constant 0 : i32
    %c0_i32_0 = arith.constant 0 : i32
    %c0_i32_1 = arith.constant 0 : i32
    return %c0_i32, %c0_i32_0 : i32, i32
  }
  func.func @transform_3(%arg0: i32) -> (i32, i32) {
    %c0_i32 = arith.constant 0 : i32
    %c0_i32_0 = arith.constant 0 : i32
    %c0_i32_1 = arith.constant 0 : i32
    return %c0_i32, %c0_i32_0 : i32, i32
  }
  func.func @transform_4(%arg0: i32) -> (i32, i32) {
    %c0_i32 = arith.constant 0 : i32
    %c0_i32_0 = arith.constant 0 : i32
    %c0_i32_1 = arith.constant 0 : i32
    return %c0_i32, %c0_i32_0 : i32, i32
  }
  func.func @transform_5(%arg0: i32) -> (i32, i32) {
    %c0_i32 = arith.constant 0 : i32
    %c0_i32_0 = arith.constant 0 : i32
    return %arg0, %c0_i32 : i32, i32
  }
}

module attributes {stable_mosaic.version = 11 : i64} {
  func.func @_bn_apply_kernel(%arg0: i32, %arg1: memref<8x128xbf16, #tpu.memory_space<vmem>>, %arg2: memref<1x128xf32, #tpu.memory_space<vmem>>, %arg3: memref<1x128xf32, #tpu.memory_space<vmem>>, %arg4: memref<1x128xf32, #tpu.memory_space<vmem>>, %arg5: memref<1x128xf32, #tpu.memory_space<vmem>>, %arg6: memref<8x128xbf16, #tpu.memory_space<vmem>>) attributes {dimension_semantics = [#tpu.dimension_semantics<parallel>], iteration_bounds = array<i64: 1>, scalar_prefetch = 0 : i64, scratch_operands = 0 : i64, tpu.core_type = #tpu.core_type<tc>, window_params = [{transform_indices = @transform_0, window_bounds = array<i64: 8, 128>}, {pipeline_mode = #tpu.pipeline_mode<synchronous>, transform_indices = @transform_1, window_bounds = array<i64: 1, 128>}, {pipeline_mode = #tpu.pipeline_mode<synchronous>, transform_indices = @transform_2, window_bounds = array<i64: 1, 128>}, {pipeline_mode = #tpu.pipeline_mode<synchronous>, transform_indices = @transform_3, window_bounds = array<i64: 1, 128>}, {pipeline_mode = #tpu.pipeline_mode<synchronous>, transform_indices = @transform_4, window_bounds = array<i64: 1, 128>}, {transform_indices = @transform_5, window_bounds = array<i64: 8, 128>}]} {
    %c0 = arith.constant 0 : index
    %c0_0 = arith.constant 0 : index
    %0 = vector.load %arg2[%c0, %c0_0] : memref<1x128xf32, #tpu.memory_space<vmem>>, vector<1x128xf32>
    %cst = arith.constant 1.250000e-01 : f32
    %1 = vector.broadcast %cst : f32 to vector<1x128xf32>
    %2 = arith.mulf %0, %1 : vector<1x128xf32>
    %c0_1 = arith.constant 0 : index
    %c0_2 = arith.constant 0 : index
    %3 = vector.load %arg3[%c0_1, %c0_2] : memref<1x128xf32, #tpu.memory_space<vmem>>, vector<1x128xf32>
    %cst_3 = arith.constant 1.250000e-01 : f32
    %4 = vector.broadcast %cst_3 : f32 to vector<1x128xf32>
    %5 = arith.mulf %3, %4 : vector<1x128xf32>
    %6 = arith.mulf %2, %2 : vector<1x128xf32>
    %7 = arith.subf %5, %6 : vector<1x128xf32>
    %cst_4 = arith.constant 9.99999974E-6 : f32
    %8 = vector.broadcast %cst_4 : f32 to vector<1x128xf32>
    %9 = arith.addf %7, %8 : vector<1x128xf32>
    %10 = math.rsqrt %9 : vector<1x128xf32>
    %c0_5 = arith.constant 0 : index
    %c0_6 = arith.constant 0 : index
    %11 = vector.load %arg4[%c0_5, %c0_6] : memref<1x128xf32, #tpu.memory_space<vmem>>, vector<1x128xf32>
    %12 = arith.mulf %10, %11 : vector<1x128xf32>
    %c0_7 = arith.constant 0 : index
    %c0_8 = arith.constant 0 : index
    %13 = vector.load %arg1[%c0_7, %c0_8] : memref<8x128xbf16, #tpu.memory_space<vmem>>, vector<8x128xbf16>
    %14 = arith.extf %13 : vector<8x128xbf16> to vector<8x128xf32>
    %15 = vector.broadcast %2 : vector<1x128xf32> to vector<8x128xf32>
    %16 = arith.subf %14, %15 : vector<8x128xf32>
    %17 = vector.broadcast %12 : vector<1x128xf32> to vector<8x128xf32>
    %18 = arith.mulf %16, %17 : vector<8x128xf32>
    %c0_9 = arith.constant 0 : index
    %c0_10 = arith.constant 0 : index
    %19 = vector.load %arg5[%c0_9, %c0_10] : memref<1x128xf32, #tpu.memory_space<vmem>>, vector<1x128xf32>
    %20 = vector.broadcast %19 : vector<1x128xf32> to vector<8x128xf32>
    %21 = arith.addf %18, %20 : vector<8x128xf32>
    %cst_11 = arith.constant 0.000000e+00 : f32
    %22 = vector.broadcast %cst_11 : f32 to vector<8x128xf32>
    %23 = arith.cmpf ogt, %21, %22 : vector<8x128xf32>
    %cst_12 = arith.constant 2.000000e-01 : f32
    %24 = vector.broadcast %cst_12 : f32 to vector<8x128xf32>
    %25 = arith.mulf %24, %21 : vector<8x128xf32>
    %26 = arith.select %23, %21, %25 : vector<8x128xi1>, vector<8x128xf32>
    %27 = arith.truncf %26 : vector<8x128xf32> to vector<8x128xbf16>
    %c0_13 = arith.constant 0 : index
    %c0_14 = arith.constant 0 : index
    %28 = vector.load %arg6[%c0_13, %c0_14] : memref<8x128xbf16, #tpu.memory_space<vmem>>, vector<8x128xbf16>
    tpu.vector_store %arg6[%c0_13, %c0_14], %27 {strides = array<i32>} : memref<8x128xbf16, #tpu.memory_space<vmem>>, vector<8x128xbf16>,
    return
  }
  func.func @transform_0(%arg0: i32) -> (i32, i32) {
    %c0_i32 = arith.constant 0 : i32
    %c0_i32_0 = arith.constant 0 : i32
    return %arg0, %c0_i32 : i32, i32
  }
  func.func @transform_1(%arg0: i32) -> (i32, i32) {
    %c0_i32 = arith.constant 0 : i32
    %c0_i32_0 = arith.constant 0 : i32
    %c0_i32_1 = arith.constant 0 : i32
    return %c0_i32, %c0_i32_0 : i32, i32
  }
  func.func @transform_2(%arg0: i32) -> (i32, i32) {
    %c0_i32 = arith.constant 0 : i32
    %c0_i32_0 = arith.constant 0 : i32
    %c0_i32_1 = arith.constant 0 : i32
    return %c0_i32, %c0_i32_0 : i32, i32
  }
  func.func @transform_3(%arg0: i32) -> (i32, i32) {
    %c0_i32 = arith.constant 0 : i32
    %c0_i32_0 = arith.constant 0 : i32
    %c0_i32_1 = arith.constant 0 : i32
    return %c0_i32, %c0_i32_0 : i32, i32
  }
  func.func @transform_4(%arg0: i32) -> (i32, i32) {
    %c0_i32 = arith.constant 0 : i32
    %c0_i32_0 = arith.constant 0 : i32
    %c0_i32_1 = arith.constant 0 : i32
    return %c0_i32, %c0_i32_0 : i32, i32
  }
  func.func @transform_5(%arg0: i32) -> (i32, i32) {
    %c0_i32 = arith.constant 0 : i32
    %c0_i32_0 = arith.constant 0 : i32
    return %arg0, %c0_i32 : i32, i32
  }
}

module attributes {stable_mosaic.version = 11 : i64} {
  func.func @_mm_kernel(%arg0: i32, %arg1: i32, %arg2: i32, %arg3: memref<8x512xbf16, #tpu.memory_space<vmem>>, %arg4: memref<512x128xbf16, #tpu.memory_space<vmem>>, %arg5: memref<1x128xf32, #tpu.memory_space<vmem>>, %arg6: memref<8x128xbf16, #tpu.memory_space<vmem>>, %arg7: memref<1x128xf32, #tpu.memory_space<vmem>>, %arg8: memref<1x128xf32, #tpu.memory_space<vmem>>, %arg9: memref<8x128xf32, #tpu.memory_space<vmem>>) attributes {dimension_semantics = [#tpu.dimension_semantics<parallel>, #tpu.dimension_semantics<parallel>, #tpu.dimension_semantics<arbitrary>], iteration_bounds = array<i64: 1, 1, 2>, scalar_prefetch = 0 : i64, scratch_operands = 1 : i64, tpu.core_type = #tpu.core_type<tc>, window_params = [{transform_indices = @transform_0, window_bounds = array<i64: 8, 512>}, {transform_indices = @transform_1, window_bounds = array<i64: 512, 128>}, {transform_indices = @transform_2, window_bounds = array<i64: 1, 128>}, {transform_indices = @transform_3, window_bounds = array<i64: 8, 128>}, {transform_indices = @transform_4, window_bounds = array<i64: 1, 128>}, {transform_indices = @transform_5, window_bounds = array<i64: 1, 128>}]} {
    %c0_i32 = arith.constant 0 : i32
    %0 = arith.cmpi eq, %arg2, %c0_i32 : i32
    %1 = arith.extui %0 : i1 to i32
    %c0_i32_0 = arith.constant 0 : i32
    %2 = arith.cmpi ne, %1, %c0_i32_0 : i32
    scf.if %2 {
      %cst_9 = arith.constant 0.000000e+00 : f32
      %12 = vector.broadcast %cst_9 : f32 to vector<8x128xf32>
      %c0_10 = arith.constant 0 : index
      %c0_11 = arith.constant 0 : index
      %13 = vector.load %arg9[%c0_10, %c0_11] : memref<8x128xf32, #tpu.memory_space<vmem>>, vector<8x128xf32>
      tpu.vector_store %arg9[%c0_10, %c0_11], %12 {strides = array<i32>} : memref<8x128xf32, #tpu.memory_space<vmem>>, vector<8x128xf32>,
    } else {
    }
    %c0 = arith.constant 0 : index
    %c0_1 = arith.constant 0 : index
    %3 = vector.load %arg9[%c0, %c0_1] : memref<8x128xf32, #tpu.memory_space<vmem>>, vector<8x128xf32>
    %c0_2 = arith.constant 0 : index
    %c0_3 = arith.constant 0 : index
    %4 = vector.load %arg3[%c0_2, %c0_3] : memref<8x512xbf16, #tpu.memory_space<vmem>>, vector<8x512xbf16>
    %c0_4 = arith.constant 0 : index
    %c0_5 = arith.constant 0 : index
    %5 = vector.load %arg4[%c0_4, %c0_5] : memref<512x128xbf16, #tpu.memory_space<vmem>>, vector<512x128xbf16>
    %cst = arith.constant dense<0.000000e+00> : vector<8x128xf32>
    %6 = tpu.matmul %4, %5, %cst {dimension_numbers = #tpu.dot_dimension_numbers<[1], [0], [0], [1], [0, 0, 1, 1], [], []>} : vector<8x512xbf16>, vector<512x128xbf16>, vector<8x128xf32> -> vector<8x128xf32>
    %7 = arith.addf %3, %6 : vector<8x128xf32>
    %c0_6 = arith.constant 0 : index
    %c0_7 = arith.constant 0 : index
    %8 = vector.load %arg9[%c0_6, %c0_7] : memref<8x128xf32, #tpu.memory_space<vmem>>, vector<8x128xf32>
    tpu.vector_store %arg9[%c0_6, %c0_7], %7 {strides = array<i32>} : memref<8x128xf32, #tpu.memory_space<vmem>>, vector<8x128xf32>,
    %c1_i32 = arith.constant 1 : i32
    %9 = arith.cmpi eq, %arg2, %c1_i32 : i32
    %10 = arith.extui %9 : i1 to i32
    %c0_i32_8 = arith.constant 0 : i32
    %11 = arith.cmpi ne, %10, %c0_i32_8 : i32
    scf.if %11 {
      %c0_9 = arith.constant 0 : index
      %c0_10 = arith.constant 0 : index
      %12 = vector.load %arg9[%c0_9, %c0_10] : memref<8x128xf32, #tpu.memory_space<vmem>>, vector<8x128xf32>
      %c0_11 = arith.constant 0 : index
      %c0_12 = arith.constant 0 : index
      %13 = vector.load %arg5[%c0_11, %c0_12] : memref<1x128xf32, #tpu.memory_space<vmem>>, vector<1x128xf32>
      %14 = vector.broadcast %13 : vector<1x128xf32> to vector<8x128xf32>
      %15 = arith.addf %12, %14 : vector<8x128xf32>
      %16 = arith.truncf %15 : vector<8x128xf32> to vector<8x128xbf16>
      %c0_13 = arith.constant 0 : index
      %c0_14 = arith.constant 0 : index
      %17 = vector.load %arg6[%c0_13, %c0_14] : memref<8x128xbf16, #tpu.memory_space<vmem>>, vector<8x128xbf16>
      tpu.vector_store %arg6[%c0_13, %c0_14], %16 {strides = array<i32>} : memref<8x128xbf16, #tpu.memory_space<vmem>>, vector<8x128xbf16>,
      %cst_15 = arith.constant dense<0.000000e+00> : vector<128xf32>
      %18 = vector.multi_reduction <add>, %15, %cst_15 [0] : vector<8x128xf32> to vector<128xf32>
      %19 = vector.shape_cast %18 : vector<128xf32> to vector<1x128xf32>
      %c0_16 = arith.constant 0 : index
      %c0_17 = arith.constant 0 : index
      %20 = vector.load %arg7[%c0_16, %c0_17] : memref<1x128xf32, #tpu.memory_space<vmem>>, vector<1x128xf32>
      tpu.vector_store %arg7[%c0_16, %c0_17], %19 {strides = array<i32>} : memref<1x128xf32, #tpu.memory_space<vmem>>, vector<1x128xf32>,
      %21 = arith.mulf %15, %15 : vector<8x128xf32>
      %cst_18 = arith.constant dense<0.000000e+00> : vector<128xf32>
      %22 = vector.multi_reduction <add>, %21, %cst_18 [0] : vector<8x128xf32> to vector<128xf32>
      %23 = vector.shape_cast %22 : vector<128xf32> to vector<1x128xf32>
      %c0_19 = arith.constant 0 : index
      %c0_20 = arith.constant 0 : index
      %24 = vector.load %arg8[%c0_19, %c0_20] : memref<1x128xf32, #tpu.memory_space<vmem>>, vector<1x128xf32>
      tpu.vector_store %arg8[%c0_19, %c0_20], %23 {strides = array<i32>} : memref<1x128xf32, #tpu.memory_space<vmem>>, vector<1x128xf32>,
    } else {
    }
    return
  }
  func.func @transform_0(%arg0: i32, %arg1: i32, %arg2: i32) -> (i32, i32) {
    %c0_i32 = arith.constant 0 : i32
    return %arg0, %arg2 : i32, i32
  }
  func.func @transform_1(%arg0: i32, %arg1: i32, %arg2: i32) -> (i32, i32) {
    %c0_i32 = arith.constant 0 : i32
    return %arg2, %arg1 : i32, i32
  }
  func.func @transform_2(%arg0: i32, %arg1: i32, %arg2: i32) -> (i32, i32) {
    %c0_i32 = arith.constant 0 : i32
    %c0_i32_0 = arith.constant 0 : i32
    return %c0_i32, %arg1 : i32, i32
  }
  func.func @transform_3(%arg0: i32, %arg1: i32, %arg2: i32) -> (i32, i32) {
    %c0_i32 = arith.constant 0 : i32
    return %arg0, %arg1 : i32, i32
  }
  func.func @transform_4(%arg0: i32, %arg1: i32, %arg2: i32) -> (i32, i32) {
    %c0_i32 = arith.constant 0 : i32
    return %arg0, %arg1 : i32, i32
  }
  func.func @transform_5(%arg0: i32, %arg1: i32, %arg2: i32) -> (i32, i32) {
    %c0_i32 = arith.constant 0 : i32
    return %arg0, %arg1 : i32, i32
  }
}

module attributes {stable_mosaic.version = 11 : i64} {
  func.func @_mm_kernel(%arg0: i32, %arg1: i32, %arg2: i32, %arg3: memref<8x128xbf16, #tpu.memory_space<vmem>>, %arg4: memref<128x128xbf16, #tpu.memory_space<vmem>>, %arg5: memref<1x128xf32, #tpu.memory_space<vmem>>, %arg6: memref<8x128xbf16, #tpu.memory_space<vmem>>, %arg7: memref<1x128xf32, #tpu.memory_space<vmem>>, %arg8: memref<1x128xf32, #tpu.memory_space<vmem>>, %arg9: memref<8x128xf32, #tpu.memory_space<vmem>>) attributes {dimension_semantics = [#tpu.dimension_semantics<parallel>, #tpu.dimension_semantics<parallel>, #tpu.dimension_semantics<arbitrary>], iteration_bounds = array<i64: 1, 1, 1>, scalar_prefetch = 0 : i64, scratch_operands = 1 : i64, tpu.core_type = #tpu.core_type<tc>, window_params = [{transform_indices = @transform_0, window_bounds = array<i64: 8, 128>}, {transform_indices = @transform_1, window_bounds = array<i64: 128, 128>}, {transform_indices = @transform_2, window_bounds = array<i64: 1, 128>}, {transform_indices = @transform_3, window_bounds = array<i64: 8, 128>}, {transform_indices = @transform_4, window_bounds = array<i64: 1, 128>}, {transform_indices = @transform_5, window_bounds = array<i64: 1, 128>}]} {
    %c0_i32 = arith.constant 0 : i32
    %0 = arith.cmpi eq, %arg2, %c0_i32 : i32
    %1 = arith.extui %0 : i1 to i32
    %c0_i32_0 = arith.constant 0 : i32
    %2 = arith.cmpi ne, %1, %c0_i32_0 : i32
    scf.if %2 {
      %cst_10 = arith.constant 0.000000e+00 : f32
      %12 = vector.broadcast %cst_10 : f32 to vector<8x128xf32>
      %c0_11 = arith.constant 0 : index
      %c0_12 = arith.constant 0 : index
      %13 = vector.load %arg9[%c0_11, %c0_12] : memref<8x128xf32, #tpu.memory_space<vmem>>, vector<8x128xf32>
      tpu.vector_store %arg9[%c0_11, %c0_12], %12 {strides = array<i32>} : memref<8x128xf32, #tpu.memory_space<vmem>>, vector<8x128xf32>,
    } else {
    }
    %c0 = arith.constant 0 : index
    %c0_1 = arith.constant 0 : index
    %3 = vector.load %arg9[%c0, %c0_1] : memref<8x128xf32, #tpu.memory_space<vmem>>, vector<8x128xf32>
    %c0_2 = arith.constant 0 : index
    %c0_3 = arith.constant 0 : index
    %4 = vector.load %arg3[%c0_2, %c0_3] : memref<8x128xbf16, #tpu.memory_space<vmem>>, vector<8x128xbf16>
    %c0_4 = arith.constant 0 : index
    %c0_5 = arith.constant 0 : index
    %5 = vector.load %arg4[%c0_4, %c0_5] : memref<128x128xbf16, #tpu.memory_space<vmem>>, vector<128x128xbf16>
    %cst = arith.constant dense<0.000000e+00> : vector<8x128xf32>
    %6 = tpu.matmul %4, %5, %cst {dimension_numbers = #tpu.dot_dimension_numbers<[1], [0], [0], [1], [0, 0, 1, 1], [], []>} : vector<8x128xbf16>, vector<128x128xbf16>, vector<8x128xf32> -> vector<8x128xf32>
    %7 = arith.addf %3, %6 : vector<8x128xf32>
    %c0_6 = arith.constant 0 : index
    %c0_7 = arith.constant 0 : index
    %8 = vector.load %arg9[%c0_6, %c0_7] : memref<8x128xf32, #tpu.memory_space<vmem>>, vector<8x128xf32>
    tpu.vector_store %arg9[%c0_6, %c0_7], %7 {strides = array<i32>} : memref<8x128xf32, #tpu.memory_space<vmem>>, vector<8x128xf32>,
    %c0_i32_8 = arith.constant 0 : i32
    %9 = arith.cmpi eq, %arg2, %c0_i32_8 : i32
    %10 = arith.extui %9 : i1 to i32
    %c0_i32_9 = arith.constant 0 : i32
    %11 = arith.cmpi ne, %10, %c0_i32_9 : i32
    scf.if %11 {
      %c0_10 = arith.constant 0 : index
      %c0_11 = arith.constant 0 : index
      %12 = vector.load %arg9[%c0_10, %c0_11] : memref<8x128xf32, #tpu.memory_space<vmem>>, vector<8x128xf32>
      %c0_12 = arith.constant 0 : index
      %c0_13 = arith.constant 0 : index
      %13 = vector.load %arg5[%c0_12, %c0_13] : memref<1x128xf32, #tpu.memory_space<vmem>>, vector<1x128xf32>
      %14 = vector.broadcast %13 : vector<1x128xf32> to vector<8x128xf32>
      %15 = arith.addf %12, %14 : vector<8x128xf32>
      %16 = arith.truncf %15 : vector<8x128xf32> to vector<8x128xbf16>
      %c0_14 = arith.constant 0 : index
      %c0_15 = arith.constant 0 : index
      %17 = vector.load %arg6[%c0_14, %c0_15] : memref<8x128xbf16, #tpu.memory_space<vmem>>, vector<8x128xbf16>
      tpu.vector_store %arg6[%c0_14, %c0_15], %16 {strides = array<i32>} : memref<8x128xbf16, #tpu.memory_space<vmem>>, vector<8x128xbf16>,
      %cst_16 = arith.constant dense<0.000000e+00> : vector<128xf32>
      %18 = vector.multi_reduction <add>, %15, %cst_16 [0] : vector<8x128xf32> to vector<128xf32>
      %19 = vector.shape_cast %18 : vector<128xf32> to vector<1x128xf32>
      %c0_17 = arith.constant 0 : index
      %c0_18 = arith.constant 0 : index
      %20 = vector.load %arg7[%c0_17, %c0_18] : memref<1x128xf32, #tpu.memory_space<vmem>>, vector<1x128xf32>
      tpu.vector_store %arg7[%c0_17, %c0_18], %19 {strides = array<i32>} : memref<1x128xf32, #tpu.memory_space<vmem>>, vector<1x128xf32>,
      %21 = arith.mulf %15, %15 : vector<8x128xf32>
      %cst_19 = arith.constant dense<0.000000e+00> : vector<128xf32>
      %22 = vector.multi_reduction <add>, %21, %cst_19 [0] : vector<8x128xf32> to vector<128xf32>
      %23 = vector.shape_cast %22 : vector<128xf32> to vector<1x128xf32>
      %c0_20 = arith.constant 0 : index
      %c0_21 = arith.constant 0 : index
      %24 = vector.load %arg8[%c0_20, %c0_21] : memref<1x128xf32, #tpu.memory_space<vmem>>, vector<1x128xf32>
      tpu.vector_store %arg8[%c0_20, %c0_21], %23 {strides = array<i32>} : memref<1x128xf32, #tpu.memory_space<vmem>>, vector<1x128xf32>,
    } else {
    }
    return
  }
  func.func @transform_0(%arg0: i32, %arg1: i32, %arg2: i32) -> (i32, i32) {
    %c0_i32 = arith.constant 0 : i32
    return %arg0, %arg2 : i32, i32
  }
  func.func @transform_1(%arg0: i32, %arg1: i32, %arg2: i32) -> (i32, i32) {
    %c0_i32 = arith.constant 0 : i32
    return %arg2, %arg1 : i32, i32
  }
  func.func @transform_2(%arg0: i32, %arg1: i32, %arg2: i32) -> (i32, i32) {
    %c0_i32 = arith.constant 0 : i32
    %c0_i32_0 = arith.constant 0 : i32
    return %c0_i32, %arg1 : i32, i32
  }
  func.func @transform_3(%arg0: i32, %arg1: i32, %arg2: i32) -> (i32, i32) {
    %c0_i32 = arith.constant 0 : i32
    return %arg0, %arg1 : i32, i32
  }
  func.func @transform_4(%arg0: i32, %arg1: i32, %arg2: i32) -> (i32, i32) {
    %c0_i32 = arith.constant 0 : i32
    return %arg0, %arg1 : i32, i32
  }
  func.func @transform_5(%arg0: i32, %arg1: i32, %arg2: i32) -> (i32, i32) {
    %c0_i32 = arith.constant 0 : i32
    return %arg0, %arg1 : i32, i32
  }
}

module attributes {stable_mosaic.version = 11 : i64} {
  func.func @_bn_apply_kernel(%arg0: i32, %arg1: memref<8x32xbf16, #tpu.memory_space<vmem>>, %arg2: memref<1x32xf32, #tpu.memory_space<vmem>>, %arg3: memref<1x32xf32, #tpu.memory_space<vmem>>, %arg4: memref<1x32xf32, #tpu.memory_space<vmem>>, %arg5: memref<1x32xf32, #tpu.memory_space<vmem>>, %arg6: memref<8x32xbf16, #tpu.memory_space<vmem>>) attributes {dimension_semantics = [#tpu.dimension_semantics<parallel>], iteration_bounds = array<i64: 1>, scalar_prefetch = 0 : i64, scratch_operands = 0 : i64, tpu.core_type = #tpu.core_type<tc>, window_params = [{transform_indices = @transform_0, window_bounds = array<i64: 8, 32>}, {pipeline_mode = #tpu.pipeline_mode<synchronous>, transform_indices = @transform_1, window_bounds = array<i64: 1, 32>}, {pipeline_mode = #tpu.pipeline_mode<synchronous>, transform_indices = @transform_2, window_bounds = array<i64: 1, 32>}, {pipeline_mode = #tpu.pipeline_mode<synchronous>, transform_indices = @transform_3, window_bounds = array<i64: 1, 32>}, {pipeline_mode = #tpu.pipeline_mode<synchronous>, transform_indices = @transform_4, window_bounds = array<i64: 1, 32>}, {transform_indices = @transform_5, window_bounds = array<i64: 8, 32>}]} {
    %c0 = arith.constant 0 : index
    %c0_0 = arith.constant 0 : index
    %0 = vector.load %arg2[%c0, %c0_0] : memref<1x32xf32, #tpu.memory_space<vmem>>, vector<1x32xf32>
    %cst = arith.constant 1.250000e-01 : f32
    %1 = vector.broadcast %cst : f32 to vector<1x32xf32>
    %2 = arith.mulf %0, %1 : vector<1x32xf32>
    %c0_1 = arith.constant 0 : index
    %c0_2 = arith.constant 0 : index
    %3 = vector.load %arg3[%c0_1, %c0_2] : memref<1x32xf32, #tpu.memory_space<vmem>>, vector<1x32xf32>
    %cst_3 = arith.constant 1.250000e-01 : f32
    %4 = vector.broadcast %cst_3 : f32 to vector<1x32xf32>
    %5 = arith.mulf %3, %4 : vector<1x32xf32>
    %6 = arith.mulf %2, %2 : vector<1x32xf32>
    %7 = arith.subf %5, %6 : vector<1x32xf32>
    %cst_4 = arith.constant 9.99999974E-6 : f32
    %8 = vector.broadcast %cst_4 : f32 to vector<1x32xf32>
    %9 = arith.addf %7, %8 : vector<1x32xf32>
    %10 = math.rsqrt %9 : vector<1x32xf32>
    %c0_5 = arith.constant 0 : index
    %c0_6 = arith.constant 0 : index
    %11 = vector.load %arg4[%c0_5, %c0_6] : memref<1x32xf32, #tpu.memory_space<vmem>>, vector<1x32xf32>
    %12 = arith.mulf %10, %11 : vector<1x32xf32>
    %c0_7 = arith.constant 0 : index
    %c0_8 = arith.constant 0 : index
    %13 = vector.load %arg1[%c0_7, %c0_8] : memref<8x32xbf16, #tpu.memory_space<vmem>>, vector<8x32xbf16>
    %14 = arith.extf %13 : vector<8x32xbf16> to vector<8x32xf32>
    %15 = vector.broadcast %2 : vector<1x32xf32> to vector<8x32xf32>
    %16 = arith.subf %14, %15 : vector<8x32xf32>
    %17 = vector.broadcast %12 : vector<1x32xf32> to vector<8x32xf32>
    %18 = arith.mulf %16, %17 : vector<8x32xf32>
    %c0_9 = arith.constant 0 : index
    %c0_10 = arith.constant 0 : index
    %19 = vector.load %arg5[%c0_9, %c0_10] : memref<1x32xf32, #tpu.memory_space<vmem>>, vector<1x32xf32>
    %20 = vector.broadcast %19 : vector<1x32xf32> to vector<8x32xf32>
    %21 = arith.addf %18, %20 : vector<8x32xf32>
    %cst_11 = arith.constant 0.000000e+00 : f32
    %22 = vector.broadcast %cst_11 : f32 to vector<8x32xf32>
    %23 = arith.maximumf %21, %22 : vector<8x32xf32>
    %24 = arith.truncf %23 : vector<8x32xf32> to vector<8x32xbf16>
    %c0_12 = arith.constant 0 : index
    %c0_13 = arith.constant 0 : index
    %25 = vector.load %arg6[%c0_12, %c0_13] : memref<8x32xbf16, #tpu.memory_space<vmem>>, vector<8x32xbf16>
    tpu.vector_store %arg6[%c0_12, %c0_13], %24 {strides = array<i32>} : memref<8x32xbf16, #tpu.memory_space<vmem>>, vector<8x32xbf16>,
    return
  }
  func.func @transform_0(%arg0: i32) -> (i32, i32) {
    %c0_i32 = arith.constant 0 : i32
    %c0_i32_0 = arith.constant 0 : i32
    return %arg0, %c0_i32 : i32, i32
  }
  func.func @transform_1(%arg0: i32) -> (i32, i32) {
    %c0_i32 = arith.constant 0 : i32
    %c0_i32_0 = arith.constant 0 : i32
    %c0_i32_1 = arith.constant 0 : i32
    return %c0_i32, %c0_i32_0 : i32, i32
  }
  func.func @transform_2(%arg0: i32) -> (i32, i32) {
    %c0_i32 = arith.constant 0 : i32
    %c0_i32_0 = arith.constant 0 : i32
    %c0_i32_1 = arith.constant 0 : i32
    return %c0_i32, %c0_i32_0 : i32, i32
  }
  func.func @transform_3(%arg0: i32) -> (i32, i32) {
    %c0_i32 = arith.constant 0 : i32
    %c0_i32_0 = arith.constant 0 : i32
    %c0_i32_1 = arith.constant 0 : i32
    return %c0_i32, %c0_i32_0 : i32, i32
  }
  func.func @transform_4(%arg0: i32) -> (i32, i32) {
    %c0_i32 = arith.constant 0 : i32
    %c0_i32_0 = arith.constant 0 : i32
    %c0_i32_1 = arith.constant 0 : i32
    return %c0_i32, %c0_i32_0 : i32, i32
  }
  func.func @transform_5(%arg0: i32) -> (i32, i32) {
    %c0_i32 = arith.constant 0 : i32
    %c0_i32_0 = arith.constant 0 : i32
    return %arg0, %c0_i32 : i32, i32
  }
}

module attributes {stable_mosaic.version = 11 : i64} {
  func.func @_mm_kernel(%arg0: i32, %arg1: i32, %arg2: i32, %arg3: memref<8x384xbf16, #tpu.memory_space<vmem>>, %arg4: memref<384x128xbf16, #tpu.memory_space<vmem>>, %arg5: memref<1x128xf32, #tpu.memory_space<vmem>>, %arg6: memref<8x128xbf16, #tpu.memory_space<vmem>>, %arg7: memref<1x128xf32, #tpu.memory_space<vmem>>, %arg8: memref<1x128xf32, #tpu.memory_space<vmem>>, %arg9: memref<8x128xf32, #tpu.memory_space<vmem>>) attributes {dimension_semantics = [#tpu.dimension_semantics<parallel>, #tpu.dimension_semantics<parallel>, #tpu.dimension_semantics<arbitrary>], iteration_bounds = array<i64: 1, 1, 1>, scalar_prefetch = 0 : i64, scratch_operands = 1 : i64, tpu.core_type = #tpu.core_type<tc>, window_params = [{transform_indices = @transform_0, window_bounds = array<i64: 8, 384>}, {transform_indices = @transform_1, window_bounds = array<i64: 384, 128>}, {transform_indices = @transform_2, window_bounds = array<i64: 1, 128>}, {transform_indices = @transform_3, window_bounds = array<i64: 8, 128>}, {transform_indices = @transform_4, window_bounds = array<i64: 1, 128>}, {transform_indices = @transform_5, window_bounds = array<i64: 1, 128>}]} {
    %c0_i32 = arith.constant 0 : i32
    %0 = arith.cmpi eq, %arg2, %c0_i32 : i32
    %1 = arith.extui %0 : i1 to i32
    %c0_i32_0 = arith.constant 0 : i32
    %2 = arith.cmpi ne, %1, %c0_i32_0 : i32
    scf.if %2 {
      %cst_10 = arith.constant 0.000000e+00 : f32
      %12 = vector.broadcast %cst_10 : f32 to vector<8x128xf32>
      %c0_11 = arith.constant 0 : index
      %c0_12 = arith.constant 0 : index
      %13 = vector.load %arg9[%c0_11, %c0_12] : memref<8x128xf32, #tpu.memory_space<vmem>>, vector<8x128xf32>
      tpu.vector_store %arg9[%c0_11, %c0_12], %12 {strides = array<i32>} : memref<8x128xf32, #tpu.memory_space<vmem>>, vector<8x128xf32>,
    } else {
    }
    %c0 = arith.constant 0 : index
    %c0_1 = arith.constant 0 : index
    %3 = vector.load %arg9[%c0, %c0_1] : memref<8x128xf32, #tpu.memory_space<vmem>>, vector<8x128xf32>
    %c0_2 = arith.constant 0 : index
    %c0_3 = arith.constant 0 : index
    %4 = vector.load %arg3[%c0_2, %c0_3] : memref<8x384xbf16, #tpu.memory_space<vmem>>, vector<8x384xbf16>
    %c0_4 = arith.constant 0 : index
    %c0_5 = arith.constant 0 : index
    %5 = vector.load %arg4[%c0_4, %c0_5] : memref<384x128xbf16, #tpu.memory_space<vmem>>, vector<384x128xbf16>
    %cst = arith.constant dense<0.000000e+00> : vector<8x128xf32>
    %6 = tpu.matmul %4, %5, %cst {dimension_numbers = #tpu.dot_dimension_numbers<[1], [0], [0], [1], [0, 0, 1, 1], [], []>} : vector<8x384xbf16>, vector<384x128xbf16>, vector<8x128xf32> -> vector<8x128xf32>
    %7 = arith.addf %3, %6 : vector<8x128xf32>
    %c0_6 = arith.constant 0 : index
    %c0_7 = arith.constant 0 : index
    %8 = vector.load %arg9[%c0_6, %c0_7] : memref<8x128xf32, #tpu.memory_space<vmem>>, vector<8x128xf32>
    tpu.vector_store %arg9[%c0_6, %c0_7], %7 {strides = array<i32>} : memref<8x128xf32, #tpu.memory_space<vmem>>, vector<8x128xf32>,
    %c0_i32_8 = arith.constant 0 : i32
    %9 = arith.cmpi eq, %arg2, %c0_i32_8 : i32
    %10 = arith.extui %9 : i1 to i32
    %c0_i32_9 = arith.constant 0 : i32
    %11 = arith.cmpi ne, %10, %c0_i32_9 : i32
    scf.if %11 {
      %c0_10 = arith.constant 0 : index
      %c0_11 = arith.constant 0 : index
      %12 = vector.load %arg9[%c0_10, %c0_11] : memref<8x128xf32, #tpu.memory_space<vmem>>, vector<8x128xf32>
      %c0_12 = arith.constant 0 : index
      %c0_13 = arith.constant 0 : index
      %13 = vector.load %arg5[%c0_12, %c0_13] : memref<1x128xf32, #tpu.memory_space<vmem>>, vector<1x128xf32>
      %14 = vector.broadcast %13 : vector<1x128xf32> to vector<8x128xf32>
      %15 = arith.addf %12, %14 : vector<8x128xf32>
      %16 = arith.truncf %15 : vector<8x128xf32> to vector<8x128xbf16>
      %c0_14 = arith.constant 0 : index
      %c0_15 = arith.constant 0 : index
      %17 = vector.load %arg6[%c0_14, %c0_15] : memref<8x128xbf16, #tpu.memory_space<vmem>>, vector<8x128xbf16>
      tpu.vector_store %arg6[%c0_14, %c0_15], %16 {strides = array<i32>} : memref<8x128xbf16, #tpu.memory_space<vmem>>, vector<8x128xbf16>,
      %cst_16 = arith.constant dense<0.000000e+00> : vector<128xf32>
      %18 = vector.multi_reduction <add>, %15, %cst_16 [0] : vector<8x128xf32> to vector<128xf32>
      %19 = vector.shape_cast %18 : vector<128xf32> to vector<1x128xf32>
      %c0_17 = arith.constant 0 : index
      %c0_18 = arith.constant 0 : index
      %20 = vector.load %arg7[%c0_17, %c0_18] : memref<1x128xf32, #tpu.memory_space<vmem>>, vector<1x128xf32>
      tpu.vector_store %arg7[%c0_17, %c0_18], %19 {strides = array<i32>} : memref<1x128xf32, #tpu.memory_space<vmem>>, vector<1x128xf32>,
      %21 = arith.mulf %15, %15 : vector<8x128xf32>
      %cst_19 = arith.constant dense<0.000000e+00> : vector<128xf32>
      %22 = vector.multi_reduction <add>, %21, %cst_19 [0] : vector<8x128xf32> to vector<128xf32>
      %23 = vector.shape_cast %22 : vector<128xf32> to vector<1x128xf32>
      %c0_20 = arith.constant 0 : index
      %c0_21 = arith.constant 0 : index
      %24 = vector.load %arg8[%c0_20, %c0_21] : memref<1x128xf32, #tpu.memory_space<vmem>>, vector<1x128xf32>
      tpu.vector_store %arg8[%c0_20, %c0_21], %23 {strides = array<i32>} : memref<1x128xf32, #tpu.memory_space<vmem>>, vector<1x128xf32>,
    } else {
    }
    return
  }
  func.func @transform_0(%arg0: i32, %arg1: i32, %arg2: i32) -> (i32, i32) {
    %c0_i32 = arith.constant 0 : i32
    return %arg0, %arg2 : i32, i32
  }
  func.func @transform_1(%arg0: i32, %arg1: i32, %arg2: i32) -> (i32, i32) {
    %c0_i32 = arith.constant 0 : i32
    return %arg2, %arg1 : i32, i32
  }
  func.func @transform_2(%arg0: i32, %arg1: i32, %arg2: i32) -> (i32, i32) {
    %c0_i32 = arith.constant 0 : i32
    %c0_i32_0 = arith.constant 0 : i32
    return %c0_i32, %arg1 : i32, i32
  }
  func.func @transform_3(%arg0: i32, %arg1: i32, %arg2: i32) -> (i32, i32) {
    %c0_i32 = arith.constant 0 : i32
    return %arg0, %arg1 : i32, i32
  }
  func.func @transform_4(%arg0: i32, %arg1: i32, %arg2: i32) -> (i32, i32) {
    %c0_i32 = arith.constant 0 : i32
    return %arg0, %arg1 : i32, i32
  }
  func.func @transform_5(%arg0: i32, %arg1: i32, %arg2: i32) -> (i32, i32) {
    %c0_i32 = arith.constant 0 : i32
    return %arg0, %arg1 : i32, i32
  }
}

module attributes {stable_mosaic.version = 11 : i64} {
  func.func @_bn_apply_res_kernel(%arg0: i32, %arg1: memref<8x128xbf16, #tpu.memory_space<vmem>>, %arg2: memref<8x128xbf16, #tpu.memory_space<vmem>>, %arg3: memref<1x128xf32, #tpu.memory_space<vmem>>, %arg4: memref<1x128xf32, #tpu.memory_space<vmem>>, %arg5: memref<1x128xf32, #tpu.memory_space<vmem>>, %arg6: memref<1x128xf32, #tpu.memory_space<vmem>>, %arg7: memref<8x128xbf16, #tpu.memory_space<vmem>>) attributes {dimension_semantics = [#tpu.dimension_semantics<parallel>], iteration_bounds = array<i64: 1>, scalar_prefetch = 0 : i64, scratch_operands = 0 : i64, tpu.core_type = #tpu.core_type<tc>, window_params = [{transform_indices = @transform_0, window_bounds = array<i64: 8, 128>}, {transform_indices = @transform_1, window_bounds = array<i64: 8, 128>}, {pipeline_mode = #tpu.pipeline_mode<synchronous>, transform_indices = @transform_2, window_bounds = array<i64: 1, 128>}, {pipeline_mode = #tpu.pipeline_mode<synchronous>, transform_indices = @transform_3, window_bounds = array<i64: 1, 128>}, {pipeline_mode = #tpu.pipeline_mode<synchronous>, transform_indices = @transform_4, window_bounds = array<i64: 1, 128>}, {pipeline_mode = #tpu.pipeline_mode<synchronous>, transform_indices = @transform_5, window_bounds = array<i64: 1, 128>}, {transform_indices = @transform_6, window_bounds = array<i64: 8, 128>}]} {
    %c0 = arith.constant 0 : index
    %c0_0 = arith.constant 0 : index
    %0 = vector.load %arg3[%c0, %c0_0] : memref<1x128xf32, #tpu.memory_space<vmem>>, vector<1x128xf32>
    %cst = arith.constant 1.250000e-01 : f32
    %1 = vector.broadcast %cst : f32 to vector<1x128xf32>
    %2 = arith.mulf %0, %1 : vector<1x128xf32>
    %c0_1 = arith.constant 0 : index
    %c0_2 = arith.constant 0 : index
    %3 = vector.load %arg4[%c0_1, %c0_2] : memref<1x128xf32, #tpu.memory_space<vmem>>, vector<1x128xf32>
    %cst_3 = arith.constant 1.250000e-01 : f32
    %4 = vector.broadcast %cst_3 : f32 to vector<1x128xf32>
    %5 = arith.mulf %3, %4 : vector<1x128xf32>
    %6 = arith.mulf %2, %2 : vector<1x128xf32>
    %7 = arith.subf %5, %6 : vector<1x128xf32>
    %cst_4 = arith.constant 9.99999974E-6 : f32
    %8 = vector.broadcast %cst_4 : f32 to vector<1x128xf32>
    %9 = arith.addf %7, %8 : vector<1x128xf32>
    %10 = math.rsqrt %9 : vector<1x128xf32>
    %c0_5 = arith.constant 0 : index
    %c0_6 = arith.constant 0 : index
    %11 = vector.load %arg5[%c0_5, %c0_6] : memref<1x128xf32, #tpu.memory_space<vmem>>, vector<1x128xf32>
    %12 = arith.mulf %10, %11 : vector<1x128xf32>
    %c0_7 = arith.constant 0 : index
    %c0_8 = arith.constant 0 : index
    %13 = vector.load %arg1[%c0_7, %c0_8] : memref<8x128xbf16, #tpu.memory_space<vmem>>, vector<8x128xbf16>
    %14 = arith.extf %13 : vector<8x128xbf16> to vector<8x128xf32>
    %15 = vector.broadcast %2 : vector<1x128xf32> to vector<8x128xf32>
    %16 = arith.subf %14, %15 : vector<8x128xf32>
    %17 = vector.broadcast %12 : vector<1x128xf32> to vector<8x128xf32>
    %18 = arith.mulf %16, %17 : vector<8x128xf32>
    %c0_9 = arith.constant 0 : index
    %c0_10 = arith.constant 0 : index
    %19 = vector.load %arg6[%c0_9, %c0_10] : memref<1x128xf32, #tpu.memory_space<vmem>>, vector<1x128xf32>
    %20 = vector.broadcast %19 : vector<1x128xf32> to vector<8x128xf32>
    %21 = arith.addf %18, %20 : vector<8x128xf32>
    %c0_11 = arith.constant 0 : index
    %c0_12 = arith.constant 0 : index
    %22 = vector.load %arg2[%c0_11, %c0_12] : memref<8x128xbf16, #tpu.memory_space<vmem>>, vector<8x128xbf16>
    %23 = arith.extf %22 : vector<8x128xbf16> to vector<8x128xf32>
    %24 = arith.addf %21, %23 : vector<8x128xf32>
    %cst_13 = arith.constant 0.000000e+00 : f32
    %25 = vector.broadcast %cst_13 : f32 to vector<8x128xf32>
    %26 = arith.cmpf ogt, %24, %25 : vector<8x128xf32>
    %cst_14 = arith.constant 2.000000e-01 : f32
    %27 = vector.broadcast %cst_14 : f32 to vector<8x128xf32>
    %28 = arith.mulf %27, %24 : vector<8x128xf32>
    %29 = arith.select %26, %24, %28 : vector<8x128xi1>, vector<8x128xf32>
    %30 = arith.truncf %29 : vector<8x128xf32> to vector<8x128xbf16>
    %c0_15 = arith.constant 0 : index
    %c0_16 = arith.constant 0 : index
    %31 = vector.load %arg7[%c0_15, %c0_16] : memref<8x128xbf16, #tpu.memory_space<vmem>>, vector<8x128xbf16>
    tpu.vector_store %arg7[%c0_15, %c0_16], %30 {strides = array<i32>} : memref<8x128xbf16, #tpu.memory_space<vmem>>, vector<8x128xbf16>,
    return
  }
  func.func @transform_0(%arg0: i32) -> (i32, i32) {
    %c0_i32 = arith.constant 0 : i32
    %c0_i32_0 = arith.constant 0 : i32
    return %arg0, %c0_i32 : i32, i32
  }
  func.func @transform_1(%arg0: i32) -> (i32, i32) {
    %c0_i32 = arith.constant 0 : i32
    %c0_i32_0 = arith.constant 0 : i32
    return %arg0, %c0_i32 : i32, i32
  }
  func.func @transform_2(%arg0: i32) -> (i32, i32) {
    %c0_i32 = arith.constant 0 : i32
    %c0_i32_0 = arith.constant 0 : i32
    %c0_i32_1 = arith.constant 0 : i32
    return %c0_i32, %c0_i32_0 : i32, i32
  }
  func.func @transform_3(%arg0: i32) -> (i32, i32) {
    %c0_i32 = arith.constant 0 : i32
    %c0_i32_0 = arith.constant 0 : i32
    %c0_i32_1 = arith.constant 0 : i32
    return %c0_i32, %c0_i32_0 : i32, i32
  }
  func.func @transform_4(%arg0: i32) -> (i32, i32) {
    %c0_i32 = arith.constant 0 : i32
    %c0_i32_0 = arith.constant 0 : i32
    %c0_i32_1 = arith.constant 0 : i32
    return %c0_i32, %c0_i32_0 : i32, i32
  }
  func.func @transform_5(%arg0: i32) -> (i32, i32) {
    %c0_i32 = arith.constant 0 : i32
    %c0_i32_0 = arith.constant 0 : i32
    %c0_i32_1 = arith.constant 0 : i32
    return %c0_i32, %c0_i32_0 : i32, i32
  }
  func.func @transform_6(%arg0: i32) -> (i32, i32) {
    %c0_i32 = arith.constant 0 : i32
    %c0_i32_0 = arith.constant 0 : i32
    return %arg0, %c0_i32 : i32, i32
  }
}

module attributes {stable_mosaic.version = 11 : i64} {
  func.func @_proj_reparam_kernel(%arg0: i32, %arg1: memref<8x512xbf16, #tpu.memory_space<vmem>>, %arg2: memref<512x64xbf16, #tpu.memory_space<vmem>>, %arg3: memref<1x64xf32, #tpu.memory_space<vmem>>, %arg4: memref<8x32xf32, #tpu.memory_space<vmem>>, %arg5: memref<8x64xf32, #tpu.memory_space<vmem>>, %arg6: memref<8x32xf32, #tpu.memory_space<vmem>>, %arg7: memref<8x64xf32, #tpu.memory_space<vmem>>) attributes {dimension_semantics = [#tpu.dimension_semantics<arbitrary>], iteration_bounds = array<i64: 1>, scalar_prefetch = 0 : i64, scratch_operands = 1 : i64, tpu.core_type = #tpu.core_type<tc>, window_params = [{transform_indices = @transform_0, window_bounds = array<i64: 8, 512>}, {transform_indices = @transform_1, window_bounds = array<i64: 512, 64>}, {pipeline_mode = #tpu.pipeline_mode<synchronous>, transform_indices = @transform_2, window_bounds = array<i64: 1, 64>}, {pipeline_mode = #tpu.pipeline_mode<synchronous>, transform_indices = @transform_3, window_bounds = array<i64: 8, 32>}, {pipeline_mode = #tpu.pipeline_mode<synchronous>, transform_indices = @transform_4, window_bounds = array<i64: 8, 64>}, {pipeline_mode = #tpu.pipeline_mode<synchronous>, transform_indices = @transform_5, window_bounds = array<i64: 8, 32>}]} {
    %c0_i32 = arith.constant 0 : i32
    %0 = arith.cmpi eq, %arg0, %c0_i32 : i32
    %1 = arith.extui %0 : i1 to i32
    %c0_i32_0 = arith.constant 0 : i32
    %2 = arith.cmpi ne, %1, %c0_i32_0 : i32
    scf.if %2 {
      %cst_10 = arith.constant 0.000000e+00 : f32
      %12 = vector.broadcast %cst_10 : f32 to vector<8x64xf32>
      %c0_11 = arith.constant 0 : index
      %c0_12 = arith.constant 0 : index
      %13 = vector.load %arg7[%c0_11, %c0_12] : memref<8x64xf32, #tpu.memory_space<vmem>>, vector<8x64xf32>
      tpu.vector_store %arg7[%c0_11, %c0_12], %12 {strides = array<i32>} : memref<8x64xf32, #tpu.memory_space<vmem>>, vector<8x64xf32>,
    } else {
    }
    %c0 = arith.constant 0 : index
    %c0_1 = arith.constant 0 : index
    %3 = vector.load %arg7[%c0, %c0_1] : memref<8x64xf32, #tpu.memory_space<vmem>>, vector<8x64xf32>
    %c0_2 = arith.constant 0 : index
    %c0_3 = arith.constant 0 : index
    %4 = vector.load %arg1[%c0_2, %c0_3] : memref<8x512xbf16, #tpu.memory_space<vmem>>, vector<8x512xbf16>
    %c0_4 = arith.constant 0 : index
    %c0_5 = arith.constant 0 : index
    %5 = vector.load %arg2[%c0_4, %c0_5] : memref<512x64xbf16, #tpu.memory_space<vmem>>, vector<512x64xbf16>
    %cst = arith.constant dense<0.000000e+00> : vector<8x64xf32>
    %6 = tpu.matmul %4, %5, %cst {dimension_numbers = #tpu.dot_dimension_numbers<[1], [0], [0], [1], [0, 0, 1, 1], [], []>} : vector<8x512xbf16>, vector<512x64xbf16>, vector<8x64xf32> -> vector<8x64xf32>
    %7 = arith.addf %3, %6 : vector<8x64xf32>
    %c0_6 = arith.constant 0 : index
    %c0_7 = arith.constant 0 : index
    %8 = vector.load %arg7[%c0_6, %c0_7] : memref<8x64xf32, #tpu.memory_space<vmem>>, vector<8x64xf32>
    tpu.vector_store %arg7[%c0_6, %c0_7], %7 {strides = array<i32>} : memref<8x64xf32, #tpu.memory_space<vmem>>, vector<8x64xf32>,
    %c0_i32_8 = arith.constant 0 : i32
    %9 = arith.cmpi eq, %arg0, %c0_i32_8 : i32
    %10 = arith.extui %9 : i1 to i32
    %c0_i32_9 = arith.constant 0 : i32
    %11 = arith.cmpi ne, %10, %c0_i32_9 : i32
    scf.if %11 {
      %c0_10 = arith.constant 0 : index
      %c0_11 = arith.constant 0 : index
      %12 = vector.load %arg7[%c0_10, %c0_11] : memref<8x64xf32, #tpu.memory_space<vmem>>, vector<8x64xf32>
      %c0_12 = arith.constant 0 : index
      %c0_13 = arith.constant 0 : index
      %13 = vector.load %arg3[%c0_12, %c0_13] : memref<1x64xf32, #tpu.memory_space<vmem>>, vector<1x64xf32>
      %14 = vector.broadcast %13 : vector<1x64xf32> to vector<8x64xf32>
      %15 = arith.addf %12, %14 : vector<8x64xf32>
      %c0_14 = arith.constant 0 : index
      %c0_15 = arith.constant 0 : index
      %16 = vector.load %arg5[%c0_14, %c0_15] : memref<8x64xf32, #tpu.memory_space<vmem>>, vector<8x64xf32>
      tpu.vector_store %arg5[%c0_14, %c0_15], %15 {strides = array<i32>} : memref<8x64xf32, #tpu.memory_space<vmem>>, vector<8x64xf32>,
      %17 = vector.extract_strided_slice %15 {offsets = [0, 0], sizes = [8, 32], strides = [1, 1]} : vector<8x64xf32> to vector<8x32xf32>
      %18 = vector.extract_strided_slice %15 {offsets = [0, 32], sizes = [8, 32], strides = [1, 1]} : vector<8x64xf32> to vector<8x32xf32>
      %c0_16 = arith.constant 0 : index
      %c0_17 = arith.constant 0 : index
      %19 = vector.load %arg4[%c0_16, %c0_17] : memref<8x32xf32, #tpu.memory_space<vmem>>, vector<8x32xf32>
      %cst_18 = arith.constant 5.000000e-01 : f32
      %20 = vector.broadcast %cst_18 : f32 to vector<8x32xf32>
      %21 = arith.mulf %20, %18 : vector<8x32xf32>
      %22 = math.exp %21 : vector<8x32xf32>
      %23 = arith.mulf %19, %22 : vector<8x32xf32>
      %24 = arith.addf %17, %23 : vector<8x32xf32>
      %c0_19 = arith.constant 0 : index
      %c0_20 = arith.constant 0 : index
      %25 = vector.load %arg6[%c0_19, %c0_20] : memref<8x32xf32, #tpu.memory_space<vmem>>, vector<8x32xf32>
      tpu.vector_store %arg6[%c0_19, %c0_20], %24 {strides = array<i32>} : memref<8x32xf32, #tpu.memory_space<vmem>>, vector<8x32xf32>,
    } else {
    }
    return
  }
  func.func @transform_0(%arg0: i32) -> (i32, i32) {
    %c0_i32 = arith.constant 0 : i32
    %c0_i32_0 = arith.constant 0 : i32
    return %c0_i32, %arg0 : i32, i32
  }
  func.func @transform_1(%arg0: i32) -> (i32, i32) {
    %c0_i32 = arith.constant 0 : i32
    %c0_i32_0 = arith.constant 0 : i32
    return %arg0, %c0_i32 : i32, i32
  }
  func.func @transform_2(%arg0: i32) -> (i32, i32) {
    %c0_i32 = arith.constant 0 : i32
    %c0_i32_0 = arith.constant 0 : i32
    %c0_i32_1 = arith.constant 0 : i32
    return %c0_i32, %c0_i32_0 : i32, i32
  }
  func.func @transform_3(%arg0: i32) -> (i32, i32) {
    %c0_i32 = arith.constant 0 : i32
    %c0_i32_0 = arith.constant 0 : i32
    %c0_i32_1 = arith.constant 0 : i32
    return %c0_i32, %c0_i32_0 : i32, i32
  }
  func.func @transform_4(%arg0: i32) -> (i32, i32) {
    %c0_i32 = arith.constant 0 : i32
    %c0_i32_0 = arith.constant 0 : i32
    %c0_i32_1 = arith.constant 0 : i32
    return %c0_i32, %c0_i32_0 : i32, i32
  }
  func.func @transform_5(%arg0: i32) -> (i32, i32) {
    %c0_i32 = arith.constant 0 : i32
    %c0_i32_0 = arith.constant 0 : i32
    %c0_i32_1 = arith.constant 0 : i32
    return %c0_i32, %c0_i32_0 : i32, i32
  }
}

module attributes {stable_mosaic.version = 11 : i64} {
  func.func @_mm_kernel(%arg0: i32, %arg1: i32, %arg2: i32, %arg3: memref<8x128xbf16, #tpu.memory_space<vmem>>, %arg4: memref<128x256xbf16, #tpu.memory_space<vmem>>, %arg5: memref<1x256xf32, #tpu.memory_space<vmem>>, %arg6: memref<8x256xbf16, #tpu.memory_space<vmem>>, %arg7: memref<1x256xf32, #tpu.memory_space<vmem>>, %arg8: memref<1x256xf32, #tpu.memory_space<vmem>>, %arg9: memref<8x256xf32, #tpu.memory_space<vmem>>) attributes {dimension_semantics = [#tpu.dimension_semantics<parallel>, #tpu.dimension_semantics<parallel>, #tpu.dimension_semantics<arbitrary>], iteration_bounds = array<i64: 1, 2, 1>, scalar_prefetch = 0 : i64, scratch_operands = 1 : i64, tpu.core_type = #tpu.core_type<tc>, window_params = [{transform_indices = @transform_0, window_bounds = array<i64: 8, 128>}, {transform_indices = @transform_1, window_bounds = array<i64: 128, 256>}, {transform_indices = @transform_2, window_bounds = array<i64: 1, 256>}, {transform_indices = @transform_3, window_bounds = array<i64: 8, 256>}, {transform_indices = @transform_4, window_bounds = array<i64: 1, 256>}, {transform_indices = @transform_5, window_bounds = array<i64: 1, 256>}]} {
    %c0_i32 = arith.constant 0 : i32
    %0 = arith.cmpi eq, %arg2, %c0_i32 : i32
    %1 = arith.extui %0 : i1 to i32
    %c0_i32_0 = arith.constant 0 : i32
    %2 = arith.cmpi ne, %1, %c0_i32_0 : i32
    scf.if %2 {
      %cst_10 = arith.constant 0.000000e+00 : f32
      %12 = vector.broadcast %cst_10 : f32 to vector<8x256xf32>
      %c0_11 = arith.constant 0 : index
      %c0_12 = arith.constant 0 : index
      %13 = vector.load %arg9[%c0_11, %c0_12] : memref<8x256xf32, #tpu.memory_space<vmem>>, vector<8x256xf32>
      tpu.vector_store %arg9[%c0_11, %c0_12], %12 {strides = array<i32>} : memref<8x256xf32, #tpu.memory_space<vmem>>, vector<8x256xf32>,
    } else {
    }
    %c0 = arith.constant 0 : index
    %c0_1 = arith.constant 0 : index
    %3 = vector.load %arg9[%c0, %c0_1] : memref<8x256xf32, #tpu.memory_space<vmem>>, vector<8x256xf32>
    %c0_2 = arith.constant 0 : index
    %c0_3 = arith.constant 0 : index
    %4 = vector.load %arg3[%c0_2, %c0_3] : memref<8x128xbf16, #tpu.memory_space<vmem>>, vector<8x128xbf16>
    %c0_4 = arith.constant 0 : index
    %c0_5 = arith.constant 0 : index
    %5 = vector.load %arg4[%c0_4, %c0_5] : memref<128x256xbf16, #tpu.memory_space<vmem>>, vector<128x256xbf16>
    %cst = arith.constant dense<0.000000e+00> : vector<8x256xf32>
    %6 = tpu.matmul %4, %5, %cst {dimension_numbers = #tpu.dot_dimension_numbers<[1], [0], [0], [1], [0, 0, 1, 1], [], []>} : vector<8x128xbf16>, vector<128x256xbf16>, vector<8x256xf32> -> vector<8x256xf32>
    %7 = arith.addf %3, %6 : vector<8x256xf32>
    %c0_6 = arith.constant 0 : index
    %c0_7 = arith.constant 0 : index
    %8 = vector.load %arg9[%c0_6, %c0_7] : memref<8x256xf32, #tpu.memory_space<vmem>>, vector<8x256xf32>
    tpu.vector_store %arg9[%c0_6, %c0_7], %7 {strides = array<i32>} : memref<8x256xf32, #tpu.memory_space<vmem>>, vector<8x256xf32>,
    %c0_i32_8 = arith.constant 0 : i32
    %9 = arith.cmpi eq, %arg2, %c0_i32_8 : i32
    %10 = arith.extui %9 : i1 to i32
    %c0_i32_9 = arith.constant 0 : i32
    %11 = arith.cmpi ne, %10, %c0_i32_9 : i32
    scf.if %11 {
      %c0_10 = arith.constant 0 : index
      %c0_11 = arith.constant 0 : index
      %12 = vector.load %arg9[%c0_10, %c0_11] : memref<8x256xf32, #tpu.memory_space<vmem>>, vector<8x256xf32>
      %c0_12 = arith.constant 0 : index
      %c0_13 = arith.constant 0 : index
      %13 = vector.load %arg5[%c0_12, %c0_13] : memref<1x256xf32, #tpu.memory_space<vmem>>, vector<1x256xf32>
      %14 = vector.broadcast %13 : vector<1x256xf32> to vector<8x256xf32>
      %15 = arith.addf %12, %14 : vector<8x256xf32>
      %16 = arith.truncf %15 : vector<8x256xf32> to vector<8x256xbf16>
      %c0_14 = arith.constant 0 : index
      %c0_15 = arith.constant 0 : index
      %17 = vector.load %arg6[%c0_14, %c0_15] : memref<8x256xbf16, #tpu.memory_space<vmem>>, vector<8x256xbf16>
      tpu.vector_store %arg6[%c0_14, %c0_15], %16 {strides = array<i32>} : memref<8x256xbf16, #tpu.memory_space<vmem>>, vector<8x256xbf16>,
      %cst_16 = arith.constant dense<0.000000e+00> : vector<256xf32>
      %18 = vector.multi_reduction <add>, %15, %cst_16 [0] : vector<8x256xf32> to vector<256xf32>
      %19 = vector.shape_cast %18 : vector<256xf32> to vector<1x256xf32>
      %c0_17 = arith.constant 0 : index
      %c0_18 = arith.constant 0 : index
      %20 = vector.load %arg7[%c0_17, %c0_18] : memref<1x256xf32, #tpu.memory_space<vmem>>, vector<1x256xf32>
      tpu.vector_store %arg7[%c0_17, %c0_18], %19 {strides = array<i32>} : memref<1x256xf32, #tpu.memory_space<vmem>>, vector<1x256xf32>,
      %21 = arith.mulf %15, %15 : vector<8x256xf32>
      %cst_19 = arith.constant dense<0.000000e+00> : vector<256xf32>
      %22 = vector.multi_reduction <add>, %21, %cst_19 [0] : vector<8x256xf32> to vector<256xf32>
      %23 = vector.shape_cast %22 : vector<256xf32> to vector<1x256xf32>
      %c0_20 = arith.constant 0 : index
      %c0_21 = arith.constant 0 : index
      %24 = vector.load %arg8[%c0_20, %c0_21] : memref<1x256xf32, #tpu.memory_space<vmem>>, vector<1x256xf32>
      tpu.vector_store %arg8[%c0_20, %c0_21], %23 {strides = array<i32>} : memref<1x256xf32, #tpu.memory_space<vmem>>, vector<1x256xf32>,
    } else {
    }
    return
  }
  func.func @transform_0(%arg0: i32, %arg1: i32, %arg2: i32) -> (i32, i32) {
    %c0_i32 = arith.constant 0 : i32
    return %arg0, %arg2 : i32, i32
  }
  func.func @transform_1(%arg0: i32, %arg1: i32, %arg2: i32) -> (i32, i32) {
    %c0_i32 = arith.constant 0 : i32
    return %arg2, %arg1 : i32, i32
  }
  func.func @transform_2(%arg0: i32, %arg1: i32, %arg2: i32) -> (i32, i32) {
    %c0_i32 = arith.constant 0 : i32
    %c0_i32_0 = arith.constant 0 : i32
    return %c0_i32, %arg1 : i32, i32
  }
  func.func @transform_3(%arg0: i32, %arg1: i32, %arg2: i32) -> (i32, i32) {
    %c0_i32 = arith.constant 0 : i32
    return %arg0, %arg1 : i32, i32
  }
  func.func @transform_4(%arg0: i32, %arg1: i32, %arg2: i32) -> (i32, i32) {
    %c0_i32 = arith.constant 0 : i32
    return %arg0, %arg1 : i32, i32
  }
  func.func @transform_5(%arg0: i32, %arg1: i32, %arg2: i32) -> (i32, i32) {
    %c0_i32 = arith.constant 0 : i32
    return %arg0, %arg1 : i32, i32
  }
}

module attributes {stable_mosaic.version = 11 : i64} {
  func.func @_bn_apply_res_kernel(%arg0: i32, %arg1: memref<8x128xbf16, #tpu.memory_space<vmem>>, %arg2: memref<8x128xbf16, #tpu.memory_space<vmem>>, %arg3: memref<1x128xf32, #tpu.memory_space<vmem>>, %arg4: memref<1x128xf32, #tpu.memory_space<vmem>>, %arg5: memref<1x128xf32, #tpu.memory_space<vmem>>, %arg6: memref<1x128xf32, #tpu.memory_space<vmem>>, %arg7: memref<8x128xbf16, #tpu.memory_space<vmem>>) attributes {dimension_semantics = [#tpu.dimension_semantics<parallel>], iteration_bounds = array<i64: 1>, scalar_prefetch = 0 : i64, scratch_operands = 0 : i64, tpu.core_type = #tpu.core_type<tc>, window_params = [{transform_indices = @transform_0, window_bounds = array<i64: 8, 128>}, {transform_indices = @transform_1, window_bounds = array<i64: 8, 128>}, {pipeline_mode = #tpu.pipeline_mode<synchronous>, transform_indices = @transform_2, window_bounds = array<i64: 1, 128>}, {pipeline_mode = #tpu.pipeline_mode<synchronous>, transform_indices = @transform_3, window_bounds = array<i64: 1, 128>}, {pipeline_mode = #tpu.pipeline_mode<synchronous>, transform_indices = @transform_4, window_bounds = array<i64: 1, 128>}, {pipeline_mode = #tpu.pipeline_mode<synchronous>, transform_indices = @transform_5, window_bounds = array<i64: 1, 128>}, {transform_indices = @transform_6, window_bounds = array<i64: 8, 128>}]} {
    %c0 = arith.constant 0 : index
    %c0_0 = arith.constant 0 : index
    %0 = vector.load %arg3[%c0, %c0_0] : memref<1x128xf32, #tpu.memory_space<vmem>>, vector<1x128xf32>
    %cst = arith.constant 1.250000e-01 : f32
    %1 = vector.broadcast %cst : f32 to vector<1x128xf32>
    %2 = arith.mulf %0, %1 : vector<1x128xf32>
    %c0_1 = arith.constant 0 : index
    %c0_2 = arith.constant 0 : index
    %3 = vector.load %arg4[%c0_1, %c0_2] : memref<1x128xf32, #tpu.memory_space<vmem>>, vector<1x128xf32>
    %cst_3 = arith.constant 1.250000e-01 : f32
    %4 = vector.broadcast %cst_3 : f32 to vector<1x128xf32>
    %5 = arith.mulf %3, %4 : vector<1x128xf32>
    %6 = arith.mulf %2, %2 : vector<1x128xf32>
    %7 = arith.subf %5, %6 : vector<1x128xf32>
    %cst_4 = arith.constant 9.99999974E-6 : f32
    %8 = vector.broadcast %cst_4 : f32 to vector<1x128xf32>
    %9 = arith.addf %7, %8 : vector<1x128xf32>
    %10 = math.rsqrt %9 : vector<1x128xf32>
    %c0_5 = arith.constant 0 : index
    %c0_6 = arith.constant 0 : index
    %11 = vector.load %arg5[%c0_5, %c0_6] : memref<1x128xf32, #tpu.memory_space<vmem>>, vector<1x128xf32>
    %12 = arith.mulf %10, %11 : vector<1x128xf32>
    %c0_7 = arith.constant 0 : index
    %c0_8 = arith.constant 0 : index
    %13 = vector.load %arg1[%c0_7, %c0_8] : memref<8x128xbf16, #tpu.memory_space<vmem>>, vector<8x128xbf16>
    %14 = arith.extf %13 : vector<8x128xbf16> to vector<8x128xf32>
    %15 = vector.broadcast %2 : vector<1x128xf32> to vector<8x128xf32>
    %16 = arith.subf %14, %15 : vector<8x128xf32>
    %17 = vector.broadcast %12 : vector<1x128xf32> to vector<8x128xf32>
    %18 = arith.mulf %16, %17 : vector<8x128xf32>
    %c0_9 = arith.constant 0 : index
    %c0_10 = arith.constant 0 : index
    %19 = vector.load %arg6[%c0_9, %c0_10] : memref<1x128xf32, #tpu.memory_space<vmem>>, vector<1x128xf32>
    %20 = vector.broadcast %19 : vector<1x128xf32> to vector<8x128xf32>
    %21 = arith.addf %18, %20 : vector<8x128xf32>
    %c0_11 = arith.constant 0 : index
    %c0_12 = arith.constant 0 : index
    %22 = vector.load %arg2[%c0_11, %c0_12] : memref<8x128xbf16, #tpu.memory_space<vmem>>, vector<8x128xbf16>
    %23 = arith.extf %22 : vector<8x128xbf16> to vector<8x128xf32>
    %24 = arith.addf %21, %23 : vector<8x128xf32>
    %cst_13 = arith.constant 0.000000e+00 : f32
    %25 = vector.broadcast %cst_13 : f32 to vector<8x128xf32>
    %26 = arith.maximumf %24, %25 : vector<8x128xf32>
    %27 = arith.truncf %26 : vector<8x128xf32> to vector<8x128xbf16>
    %c0_14 = arith.constant 0 : index
    %c0_15 = arith.constant 0 : index
    %28 = vector.load %arg7[%c0_14, %c0_15] : memref<8x128xbf16, #tpu.memory_space<vmem>>, vector<8x128xbf16>
    tpu.vector_store %arg7[%c0_14, %c0_15], %27 {strides = array<i32>} : memref<8x128xbf16, #tpu.memory_space<vmem>>, vector<8x128xbf16>,
    return
  }
  func.func @transform_0(%arg0: i32) -> (i32, i32) {
    %c0_i32 = arith.constant 0 : i32
    %c0_i32_0 = arith.constant 0 : i32
    return %arg0, %c0_i32 : i32, i32
  }
  func.func @transform_1(%arg0: i32) -> (i32, i32) {
    %c0_i32 = arith.constant 0 : i32
    %c0_i32_0 = arith.constant 0 : i32
    return %arg0, %c0_i32 : i32, i32
  }
  func.func @transform_2(%arg0: i32) -> (i32, i32) {
    %c0_i32 = arith.constant 0 : i32
    %c0_i32_0 = arith.constant 0 : i32
    %c0_i32_1 = arith.constant 0 : i32
    return %c0_i32, %c0_i32_0 : i32, i32
  }
  func.func @transform_3(%arg0: i32) -> (i32, i32) {
    %c0_i32 = arith.constant 0 : i32
    %c0_i32_0 = arith.constant 0 : i32
    %c0_i32_1 = arith.constant 0 : i32
    return %c0_i32, %c0_i32_0 : i32, i32
  }
  func.func @transform_4(%arg0: i32) -> (i32, i32) {
    %c0_i32 = arith.constant 0 : i32
    %c0_i32_0 = arith.constant 0 : i32
    %c0_i32_1 = arith.constant 0 : i32
    return %c0_i32, %c0_i32_0 : i32, i32
  }
  func.func @transform_5(%arg0: i32) -> (i32, i32) {
    %c0_i32 = arith.constant 0 : i32
    %c0_i32_0 = arith.constant 0 : i32
    %c0_i32_1 = arith.constant 0 : i32
    return %c0_i32, %c0_i32_0 : i32, i32
  }
  func.func @transform_6(%arg0: i32) -> (i32, i32) {
    %c0_i32 = arith.constant 0 : i32
    %c0_i32_0 = arith.constant 0 : i32
    return %arg0, %c0_i32 : i32, i32
  }
}

module attributes {stable_mosaic.version = 11 : i64} {
  func.func @_bn_apply_kernel(%arg0: i32, %arg1: memref<8x128xbf16, #tpu.memory_space<vmem>>, %arg2: memref<1x128xf32, #tpu.memory_space<vmem>>, %arg3: memref<1x128xf32, #tpu.memory_space<vmem>>, %arg4: memref<1x128xf32, #tpu.memory_space<vmem>>, %arg5: memref<1x128xf32, #tpu.memory_space<vmem>>, %arg6: memref<8x128xbf16, #tpu.memory_space<vmem>>) attributes {dimension_semantics = [#tpu.dimension_semantics<parallel>], iteration_bounds = array<i64: 1>, scalar_prefetch = 0 : i64, scratch_operands = 0 : i64, tpu.core_type = #tpu.core_type<tc>, window_params = [{transform_indices = @transform_0, window_bounds = array<i64: 8, 128>}, {pipeline_mode = #tpu.pipeline_mode<synchronous>, transform_indices = @transform_1, window_bounds = array<i64: 1, 128>}, {pipeline_mode = #tpu.pipeline_mode<synchronous>, transform_indices = @transform_2, window_bounds = array<i64: 1, 128>}, {pipeline_mode = #tpu.pipeline_mode<synchronous>, transform_indices = @transform_3, window_bounds = array<i64: 1, 128>}, {pipeline_mode = #tpu.pipeline_mode<synchronous>, transform_indices = @transform_4, window_bounds = array<i64: 1, 128>}, {transform_indices = @transform_5, window_bounds = array<i64: 8, 128>}]} {
    %c0 = arith.constant 0 : index
    %c0_0 = arith.constant 0 : index
    %0 = vector.load %arg2[%c0, %c0_0] : memref<1x128xf32, #tpu.memory_space<vmem>>, vector<1x128xf32>
    %cst = arith.constant 1.250000e-01 : f32
    %1 = vector.broadcast %cst : f32 to vector<1x128xf32>
    %2 = arith.mulf %0, %1 : vector<1x128xf32>
    %c0_1 = arith.constant 0 : index
    %c0_2 = arith.constant 0 : index
    %3 = vector.load %arg3[%c0_1, %c0_2] : memref<1x128xf32, #tpu.memory_space<vmem>>, vector<1x128xf32>
    %cst_3 = arith.constant 1.250000e-01 : f32
    %4 = vector.broadcast %cst_3 : f32 to vector<1x128xf32>
    %5 = arith.mulf %3, %4 : vector<1x128xf32>
    %6 = arith.mulf %2, %2 : vector<1x128xf32>
    %7 = arith.subf %5, %6 : vector<1x128xf32>
    %cst_4 = arith.constant 9.99999974E-6 : f32
    %8 = vector.broadcast %cst_4 : f32 to vector<1x128xf32>
    %9 = arith.addf %7, %8 : vector<1x128xf32>
    %10 = math.rsqrt %9 : vector<1x128xf32>
    %c0_5 = arith.constant 0 : index
    %c0_6 = arith.constant 0 : index
    %11 = vector.load %arg4[%c0_5, %c0_6] : memref<1x128xf32, #tpu.memory_space<vmem>>, vector<1x128xf32>
    %12 = arith.mulf %10, %11 : vector<1x128xf32>
    %c0_7 = arith.constant 0 : index
    %c0_8 = arith.constant 0 : index
    %13 = vector.load %arg1[%c0_7, %c0_8] : memref<8x128xbf16, #tpu.memory_space<vmem>>, vector<8x128xbf16>
    %14 = arith.extf %13 : vector<8x128xbf16> to vector<8x128xf32>
    %15 = vector.broadcast %2 : vector<1x128xf32> to vector<8x128xf32>
    %16 = arith.subf %14, %15 : vector<8x128xf32>
    %17 = vector.broadcast %12 : vector<1x128xf32> to vector<8x128xf32>
    %18 = arith.mulf %16, %17 : vector<8x128xf32>
    %c0_9 = arith.constant 0 : index
    %c0_10 = arith.constant 0 : index
    %19 = vector.load %arg5[%c0_9, %c0_10] : memref<1x128xf32, #tpu.memory_space<vmem>>, vector<1x128xf32>
    %20 = vector.broadcast %19 : vector<1x128xf32> to vector<8x128xf32>
    %21 = arith.addf %18, %20 : vector<8x128xf32>
    %cst_11 = arith.constant 0.000000e+00 : f32
    %22 = vector.broadcast %cst_11 : f32 to vector<8x128xf32>
    %23 = arith.maximumf %21, %22 : vector<8x128xf32>
    %24 = arith.truncf %23 : vector<8x128xf32> to vector<8x128xbf16>
    %c0_12 = arith.constant 0 : index
    %c0_13 = arith.constant 0 : index
    %25 = vector.load %arg6[%c0_12, %c0_13] : memref<8x128xbf16, #tpu.memory_space<vmem>>, vector<8x128xbf16>
    tpu.vector_store %arg6[%c0_12, %c0_13], %24 {strides = array<i32>} : memref<8x128xbf16, #tpu.memory_space<vmem>>, vector<8x128xbf16>,
    return
  }
  func.func @transform_0(%arg0: i32) -> (i32, i32) {
    %c0_i32 = arith.constant 0 : i32
    %c0_i32_0 = arith.constant 0 : i32
    return %arg0, %c0_i32 : i32, i32
  }
  func.func @transform_1(%arg0: i32) -> (i32, i32) {
    %c0_i32 = arith.constant 0 : i32
    %c0_i32_0 = arith.constant 0 : i32
    %c0_i32_1 = arith.constant 0 : i32
    return %c0_i32, %c0_i32_0 : i32, i32
  }
  func.func @transform_2(%arg0: i32) -> (i32, i32) {
    %c0_i32 = arith.constant 0 : i32
    %c0_i32_0 = arith.constant 0 : i32
    %c0_i32_1 = arith.constant 0 : i32
    return %c0_i32, %c0_i32_0 : i32, i32
  }
  func.func @transform_3(%arg0: i32) -> (i32, i32) {
    %c0_i32 = arith.constant 0 : i32
    %c0_i32_0 = arith.constant 0 : i32
    %c0_i32_1 = arith.constant 0 : i32
    return %c0_i32, %c0_i32_0 : i32, i32
  }
  func.func @transform_4(%arg0: i32) -> (i32, i32) {
    %c0_i32 = arith.constant 0 : i32
    %c0_i32_0 = arith.constant 0 : i32
    %c0_i32_1 = arith.constant 0 : i32
    return %c0_i32, %c0_i32_0 : i32, i32
  }
  func.func @transform_5(%arg0: i32) -> (i32, i32) {
    %c0_i32 = arith.constant 0 : i32
    %c0_i32_0 = arith.constant 0 : i32
    return %arg0, %c0_i32 : i32, i32
  }
}

module attributes {stable_mosaic.version = 11 : i64} {
  func.func @_mm_kernel(%arg0: i32, %arg1: i32, %arg2: i32, %arg3: i32, %arg4: memref<1x8x512xbf16, #tpu.memory_space<vmem>>, %arg5: memref<1x512x128xbf16, #tpu.memory_space<vmem>>, %arg6: memref<1x128xf32, #tpu.memory_space<vmem>>, %arg7: memref<1x8x128xbf16, #tpu.memory_space<vmem>>, %arg8: memref<1x1x128xf32, #tpu.memory_space<vmem>>, %arg9: memref<1x1x128xf32, #tpu.memory_space<vmem>>, %arg10: memref<8x128xf32, #tpu.memory_space<vmem>>) attributes {dimension_semantics = [#tpu.dimension_semantics<parallel>, #tpu.dimension_semantics<parallel>, #tpu.dimension_semantics<parallel>, #tpu.dimension_semantics<arbitrary>], iteration_bounds = array<i64: 4, 1, 1, 1>, scalar_prefetch = 0 : i64, scratch_operands = 1 : i64, tpu.core_type = #tpu.core_type<tc>, window_params = [{transform_indices = @transform_0, window_bounds = array<i64: 1, 8, 512>}, {transform_indices = @transform_1, window_bounds = array<i64: 1, 512, 128>}, {transform_indices = @transform_2, window_bounds = array<i64: 1, 128>}, {transform_indices = @transform_3, window_bounds = array<i64: 1, 8, 128>}, {transform_indices = @transform_4, window_bounds = array<i64: 1, 1, 128>}, {transform_indices = @transform_5, window_bounds = array<i64: 1, 1, 128>}]} {
    %c0_i32 = arith.constant 0 : i32
    %0 = arith.cmpi eq, %arg3, %c0_i32 : i32
    %1 = arith.extui %0 : i1 to i32
    %c0_i32_0 = arith.constant 0 : i32
    %2 = arith.cmpi ne, %1, %c0_i32_0 : i32
    scf.if %2 {
      %cst_12 = arith.constant 0.000000e+00 : f32
      %14 = vector.broadcast %cst_12 : f32 to vector<8x128xf32>
      %c0_13 = arith.constant 0 : index
      %c0_14 = arith.constant 0 : index
      %15 = vector.load %arg10[%c0_13, %c0_14] : memref<8x128xf32, #tpu.memory_space<vmem>>, vector<8x128xf32>
      tpu.vector_store %arg10[%c0_13, %c0_14], %14 {strides = array<i32>} : memref<8x128xf32, #tpu.memory_space<vmem>>, vector<8x128xf32>,
    } else {
    }
    %c0 = arith.constant 0 : index
    %c0_1 = arith.constant 0 : index
    %3 = vector.load %arg10[%c0, %c0_1] : memref<8x128xf32, #tpu.memory_space<vmem>>, vector<8x128xf32>
    %c0_2 = arith.constant 0 : index
    %c0_3 = arith.constant 0 : index
    %c0_4 = arith.constant 0 : index
    %4 = vector.load %arg4[%c0_2, %c0_3, %c0_4] : memref<1x8x512xbf16, #tpu.memory_space<vmem>>, vector<1x8x512xbf16>
    %5 = vector.shape_cast %4 : vector<1x8x512xbf16> to vector<8x512xbf16>
    %c0_5 = arith.constant 0 : index
    %c0_6 = arith.constant 0 : index
    %c0_7 = arith.constant 0 : index
    %6 = vector.load %arg5[%c0_5, %c0_6, %c0_7] : memref<1x512x128xbf16, #tpu.memory_space<vmem>>, vector<1x512x128xbf16>
    %7 = vector.shape_cast %6 : vector<1x512x128xbf16> to vector<512x128xbf16>
    %cst = arith.constant dense<0.000000e+00> : vector<8x128xf32>
    %8 = tpu.matmul %5, %7, %cst {dimension_numbers = #tpu.dot_dimension_numbers<[1], [0], [0], [1], [0, 0, 1, 1], [], []>} : vector<8x512xbf16>, vector<512x128xbf16>, vector<8x128xf32> -> vector<8x128xf32>
    %9 = arith.addf %3, %8 : vector<8x128xf32>
    %c0_8 = arith.constant 0 : index
    %c0_9 = arith.constant 0 : index
    %10 = vector.load %arg10[%c0_8, %c0_9] : memref<8x128xf32, #tpu.memory_space<vmem>>, vector<8x128xf32>
    tpu.vector_store %arg10[%c0_8, %c0_9], %9 {strides = array<i32>} : memref<8x128xf32, #tpu.memory_space<vmem>>, vector<8x128xf32>,
    %c0_i32_10 = arith.constant 0 : i32
    %11 = arith.cmpi eq, %arg3, %c0_i32_10 : i32
    %12 = arith.extui %11 : i1 to i32
    %c0_i32_11 = arith.constant 0 : i32
    %13 = arith.cmpi ne, %12, %c0_i32_11 : i32
    scf.if %13 {
      %c0_12 = arith.constant 0 : index
      %c0_13 = arith.constant 0 : index
      %14 = vector.load %arg10[%c0_12, %c0_13] : memref<8x128xf32, #tpu.memory_space<vmem>>, vector<8x128xf32>
      %c0_14 = arith.constant 0 : index
      %c0_15 = arith.constant 0 : index
      %15 = vector.load %arg6[%c0_14, %c0_15] : memref<1x128xf32, #tpu.memory_space<vmem>>, vector<1x128xf32>
      %16 = vector.broadcast %15 : vector<1x128xf32> to vector<8x128xf32>
      %17 = arith.addf %14, %16 : vector<8x128xf32>
      %18 = arith.truncf %17 : vector<8x128xf32> to vector<8x128xbf16>
      %c0_16 = arith.constant 0 : index
      %c0_17 = arith.constant 0 : index
      %c0_18 = arith.constant 0 : index
      %19 = vector.load %arg7[%c0_16, %c0_17, %c0_18] : memref<1x8x128xbf16, #tpu.memory_space<vmem>>, vector<1x8x128xbf16>
      %20 = vector.shape_cast %19 : vector<1x8x128xbf16> to vector<8x128xbf16>
      %21 = vector.shape_cast %18 : vector<8x128xbf16> to vector<1x8x128xbf16>
      tpu.vector_store %arg7[%c0_16, %c0_17, %c0_18], %21 {strides = array<i32>} : memref<1x8x128xbf16, #tpu.memory_space<vmem>>, vector<1x8x128xbf16>,
      %cst_19 = arith.constant dense<0.000000e+00> : vector<128xf32>
      %22 = vector.multi_reduction <add>, %17, %cst_19 [0] : vector<8x128xf32> to vector<128xf32>
      %23 = vector.shape_cast %22 : vector<128xf32> to vector<1x128xf32>
      %c0_20 = arith.constant 0 : index
      %c0_21 = arith.constant 0 : index
      %c0_22 = arith.constant 0 : index
      %24 = vector.load %arg8[%c0_20, %c0_21, %c0_22] : memref<1x1x128xf32, #tpu.memory_space<vmem>>, vector<1x1x128xf32>
      %25 = vector.shape_cast %24 : vector<1x1x128xf32> to vector<1x128xf32>
      %26 = vector.shape_cast %23 : vector<1x128xf32> to vector<1x1x128xf32>
      tpu.vector_store %arg8[%c0_20, %c0_21, %c0_22], %26 {strides = array<i32>} : memref<1x1x128xf32, #tpu.memory_space<vmem>>, vector<1x1x128xf32>,
      %27 = arith.mulf %17, %17 : vector<8x128xf32>
      %cst_23 = arith.constant dense<0.000000e+00> : vector<128xf32>
      %28 = vector.multi_reduction <add>, %27, %cst_23 [0] : vector<8x128xf32> to vector<128xf32>
      %29 = vector.shape_cast %28 : vector<128xf32> to vector<1x128xf32>
      %c0_24 = arith.constant 0 : index
      %c0_25 = arith.constant 0 : index
      %c0_26 = arith.constant 0 : index
      %30 = vector.load %arg9[%c0_24, %c0_25, %c0_26] : memref<1x1x128xf32, #tpu.memory_space<vmem>>, vector<1x1x128xf32>
      %31 = vector.shape_cast %30 : vector<1x1x128xf32> to vector<1x128xf32>
      %32 = vector.shape_cast %29 : vector<1x128xf32> to vector<1x1x128xf32>
      tpu.vector_store %arg9[%c0_24, %c0_25, %c0_26], %32 {strides = array<i32>} : memref<1x1x128xf32, #tpu.memory_space<vmem>>, vector<1x1x128xf32>,
    } else {
    }
    return
  }
  func.func @transform_0(%arg0: i32, %arg1: i32, %arg2: i32, %arg3: i32) -> (i32, i32, i32) {
    %c0_i32 = arith.constant 0 : i32
    return %arg0, %arg1, %arg3 : i32, i32, i32
  }
  func.func @transform_1(%arg0: i32, %arg1: i32, %arg2: i32, %arg3: i32) -> (i32, i32, i32) {
    %c0_i32 = arith.constant 0 : i32
    return %arg0, %arg3, %arg2 : i32, i32, i32
  }
  func.func @transform_2(%arg0: i32, %arg1: i32, %arg2: i32, %arg3: i32) -> (i32, i32) {
    %c0_i32 = arith.constant 0 : i32
    %c0_i32_0 = arith.constant 0 : i32
    return %c0_i32, %arg2 : i32, i32
  }
  func.func @transform_3(%arg0: i32, %arg1: i32, %arg2: i32, %arg3: i32) -> (i32, i32, i32) {
    %c0_i32 = arith.constant 0 : i32
    return %arg0, %arg1, %arg2 : i32, i32, i32
  }
  func.func @transform_4(%arg0: i32, %arg1: i32, %arg2: i32, %arg3: i32) -> (i32, i32, i32) {
    %c0_i32 = arith.constant 0 : i32
    return %arg0, %arg1, %arg2 : i32, i32, i32
  }
  func.func @transform_5(%arg0: i32, %arg1: i32, %arg2: i32, %arg3: i32) -> (i32, i32, i32) {
    %c0_i32 = arith.constant 0 : i32
    return %arg0, %arg1, %arg2 : i32, i32, i32
  }
}

module attributes {stable_mosaic.version = 11 : i64} {
  func.func @_bn_apply_kernel(%arg0: i32, %arg1: memref<32x64xbf16, #tpu.memory_space<vmem>>, %arg2: memref<1x64xf32, #tpu.memory_space<vmem>>, %arg3: memref<1x64xf32, #tpu.memory_space<vmem>>, %arg4: memref<1x64xf32, #tpu.memory_space<vmem>>, %arg5: memref<1x64xf32, #tpu.memory_space<vmem>>, %arg6: memref<32x64xbf16, #tpu.memory_space<vmem>>) attributes {dimension_semantics = [#tpu.dimension_semantics<parallel>], iteration_bounds = array<i64: 1>, scalar_prefetch = 0 : i64, scratch_operands = 0 : i64, tpu.core_type = #tpu.core_type<tc>, window_params = [{transform_indices = @transform_0, window_bounds = array<i64: 32, 64>}, {pipeline_mode = #tpu.pipeline_mode<synchronous>, transform_indices = @transform_1, window_bounds = array<i64: 1, 64>}, {pipeline_mode = #tpu.pipeline_mode<synchronous>, transform_indices = @transform_2, window_bounds = array<i64: 1, 64>}, {pipeline_mode = #tpu.pipeline_mode<synchronous>, transform_indices = @transform_3, window_bounds = array<i64: 1, 64>}, {pipeline_mode = #tpu.pipeline_mode<synchronous>, transform_indices = @transform_4, window_bounds = array<i64: 1, 64>}, {transform_indices = @transform_5, window_bounds = array<i64: 32, 64>}]} {
    %c0 = arith.constant 0 : index
    %c0_0 = arith.constant 0 : index
    %0 = vector.load %arg2[%c0, %c0_0] : memref<1x64xf32, #tpu.memory_space<vmem>>, vector<1x64xf32>
    %cst = arith.constant 3.125000e-02 : f32
    %1 = vector.broadcast %cst : f32 to vector<1x64xf32>
    %2 = arith.mulf %0, %1 : vector<1x64xf32>
    %c0_1 = arith.constant 0 : index
    %c0_2 = arith.constant 0 : index
    %3 = vector.load %arg3[%c0_1, %c0_2] : memref<1x64xf32, #tpu.memory_space<vmem>>, vector<1x64xf32>
    %cst_3 = arith.constant 3.125000e-02 : f32
    %4 = vector.broadcast %cst_3 : f32 to vector<1x64xf32>
    %5 = arith.mulf %3, %4 : vector<1x64xf32>
    %6 = arith.mulf %2, %2 : vector<1x64xf32>
    %7 = arith.subf %5, %6 : vector<1x64xf32>
    %cst_4 = arith.constant 9.99999974E-6 : f32
    %8 = vector.broadcast %cst_4 : f32 to vector<1x64xf32>
    %9 = arith.addf %7, %8 : vector<1x64xf32>
    %10 = math.rsqrt %9 : vector<1x64xf32>
    %c0_5 = arith.constant 0 : index
    %c0_6 = arith.constant 0 : index
    %11 = vector.load %arg4[%c0_5, %c0_6] : memref<1x64xf32, #tpu.memory_space<vmem>>, vector<1x64xf32>
    %12 = arith.mulf %10, %11 : vector<1x64xf32>
    %c0_7 = arith.constant 0 : index
    %c0_8 = arith.constant 0 : index
    %13 = vector.load %arg1[%c0_7, %c0_8] : memref<32x64xbf16, #tpu.memory_space<vmem>>, vector<32x64xbf16>
    %14 = arith.extf %13 : vector<32x64xbf16> to vector<32x64xf32>
    %15 = vector.broadcast %2 : vector<1x64xf32> to vector<32x64xf32>
    %16 = arith.subf %14, %15 : vector<32x64xf32>
    %17 = vector.broadcast %12 : vector<1x64xf32> to vector<32x64xf32>
    %18 = arith.mulf %16, %17 : vector<32x64xf32>
    %c0_9 = arith.constant 0 : index
    %c0_10 = arith.constant 0 : index
    %19 = vector.load %arg5[%c0_9, %c0_10] : memref<1x64xf32, #tpu.memory_space<vmem>>, vector<1x64xf32>
    %20 = vector.broadcast %19 : vector<1x64xf32> to vector<32x64xf32>
    %21 = arith.addf %18, %20 : vector<32x64xf32>
    %cst_11 = arith.constant 0.000000e+00 : f32
    %22 = vector.broadcast %cst_11 : f32 to vector<32x64xf32>
    %23 = arith.maximumf %21, %22 : vector<32x64xf32>
    %24 = arith.truncf %23 : vector<32x64xf32> to vector<32x64xbf16>
    %c0_12 = arith.constant 0 : index
    %c0_13 = arith.constant 0 : index
    %25 = vector.load %arg6[%c0_12, %c0_13] : memref<32x64xbf16, #tpu.memory_space<vmem>>, vector<32x64xbf16>
    tpu.vector_store %arg6[%c0_12, %c0_13], %24 {strides = array<i32>} : memref<32x64xbf16, #tpu.memory_space<vmem>>, vector<32x64xbf16>,
    return
  }
  func.func @transform_0(%arg0: i32) -> (i32, i32) {
    %c0_i32 = arith.constant 0 : i32
    %c0_i32_0 = arith.constant 0 : i32
    return %arg0, %c0_i32 : i32, i32
  }
  func.func @transform_1(%arg0: i32) -> (i32, i32) {
    %c0_i32 = arith.constant 0 : i32
    %c0_i32_0 = arith.constant 0 : i32
    %c0_i32_1 = arith.constant 0 : i32
    return %c0_i32, %c0_i32_0 : i32, i32
  }
  func.func @transform_2(%arg0: i32) -> (i32, i32) {
    %c0_i32 = arith.constant 0 : i32
    %c0_i32_0 = arith.constant 0 : i32
    %c0_i32_1 = arith.constant 0 : i32
    return %c0_i32, %c0_i32_0 : i32, i32
  }
  func.func @transform_3(%arg0: i32) -> (i32, i32) {
    %c0_i32 = arith.constant 0 : i32
    %c0_i32_0 = arith.constant 0 : i32
    %c0_i32_1 = arith.constant 0 : i32
    return %c0_i32, %c0_i32_0 : i32, i32
  }
  func.func @transform_4(%arg0: i32) -> (i32, i32) {
    %c0_i32 = arith.constant 0 : i32
    %c0_i32_0 = arith.constant 0 : i32
    %c0_i32_1 = arith.constant 0 : i32
    return %c0_i32, %c0_i32_0 : i32, i32
  }
  func.func @transform_5(%arg0: i32) -> (i32, i32) {
    %c0_i32 = arith.constant 0 : i32
    %c0_i32_0 = arith.constant 0 : i32
    return %arg0, %c0_i32 : i32, i32
  }
}

module attributes {stable_mosaic.version = 11 : i64} {
  func.func @_mm_kernel(%arg0: i32, %arg1: i32, %arg2: i32, %arg3: i32, %arg4: memref<1x32x256xbf16, #tpu.memory_space<vmem>>, %arg5: memref<1x256x128xbf16, #tpu.memory_space<vmem>>, %arg6: memref<1x128xf32, #tpu.memory_space<vmem>>, %arg7: memref<1x32x128xbf16, #tpu.memory_space<vmem>>, %arg8: memref<1x1x128xf32, #tpu.memory_space<vmem>>, %arg9: memref<1x1x128xf32, #tpu.memory_space<vmem>>, %arg10: memref<32x128xf32, #tpu.memory_space<vmem>>) attributes {dimension_semantics = [#tpu.dimension_semantics<parallel>, #tpu.dimension_semantics<parallel>, #tpu.dimension_semantics<parallel>, #tpu.dimension_semantics<arbitrary>], iteration_bounds = array<i64: 4, 1, 1, 1>, scalar_prefetch = 0 : i64, scratch_operands = 1 : i64, tpu.core_type = #tpu.core_type<tc>, window_params = [{transform_indices = @transform_0, window_bounds = array<i64: 1, 32, 256>}, {transform_indices = @transform_1, window_bounds = array<i64: 1, 256, 128>}, {transform_indices = @transform_2, window_bounds = array<i64: 1, 128>}, {transform_indices = @transform_3, window_bounds = array<i64: 1, 32, 128>}, {transform_indices = @transform_4, window_bounds = array<i64: 1, 1, 128>}, {transform_indices = @transform_5, window_bounds = array<i64: 1, 1, 128>}]} {
    %c0_i32 = arith.constant 0 : i32
    %0 = arith.cmpi eq, %arg3, %c0_i32 : i32
    %1 = arith.extui %0 : i1 to i32
    %c0_i32_0 = arith.constant 0 : i32
    %2 = arith.cmpi ne, %1, %c0_i32_0 : i32
    scf.if %2 {
      %cst_12 = arith.constant 0.000000e+00 : f32
      %14 = vector.broadcast %cst_12 : f32 to vector<32x128xf32>
      %c0_13 = arith.constant 0 : index
      %c0_14 = arith.constant 0 : index
      %15 = vector.load %arg10[%c0_13, %c0_14] : memref<32x128xf32, #tpu.memory_space<vmem>>, vector<32x128xf32>
      tpu.vector_store %arg10[%c0_13, %c0_14], %14 {strides = array<i32>} : memref<32x128xf32, #tpu.memory_space<vmem>>, vector<32x128xf32>,
    } else {
    }
    %c0 = arith.constant 0 : index
    %c0_1 = arith.constant 0 : index
    %3 = vector.load %arg10[%c0, %c0_1] : memref<32x128xf32, #tpu.memory_space<vmem>>, vector<32x128xf32>
    %c0_2 = arith.constant 0 : index
    %c0_3 = arith.constant 0 : index
    %c0_4 = arith.constant 0 : index
    %4 = vector.load %arg4[%c0_2, %c0_3, %c0_4] : memref<1x32x256xbf16, #tpu.memory_space<vmem>>, vector<1x32x256xbf16>
    %5 = vector.shape_cast %4 : vector<1x32x256xbf16> to vector<32x256xbf16>
    %c0_5 = arith.constant 0 : index
    %c0_6 = arith.constant 0 : index
    %c0_7 = arith.constant 0 : index
    %6 = vector.load %arg5[%c0_5, %c0_6, %c0_7] : memref<1x256x128xbf16, #tpu.memory_space<vmem>>, vector<1x256x128xbf16>
    %7 = vector.shape_cast %6 : vector<1x256x128xbf16> to vector<256x128xbf16>
    %cst = arith.constant dense<0.000000e+00> : vector<32x128xf32>
    %8 = tpu.matmul %5, %7, %cst {dimension_numbers = #tpu.dot_dimension_numbers<[1], [0], [0], [1], [0, 0, 1, 1], [], []>} : vector<32x256xbf16>, vector<256x128xbf16>, vector<32x128xf32> -> vector<32x128xf32>
    %9 = arith.addf %3, %8 : vector<32x128xf32>
    %c0_8 = arith.constant 0 : index
    %c0_9 = arith.constant 0 : index
    %10 = vector.load %arg10[%c0_8, %c0_9] : memref<32x128xf32, #tpu.memory_space<vmem>>, vector<32x128xf32>
    tpu.vector_store %arg10[%c0_8, %c0_9], %9 {strides = array<i32>} : memref<32x128xf32, #tpu.memory_space<vmem>>, vector<32x128xf32>,
    %c0_i32_10 = arith.constant 0 : i32
    %11 = arith.cmpi eq, %arg3, %c0_i32_10 : i32
    %12 = arith.extui %11 : i1 to i32
    %c0_i32_11 = arith.constant 0 : i32
    %13 = arith.cmpi ne, %12, %c0_i32_11 : i32
    scf.if %13 {
      %c0_12 = arith.constant 0 : index
      %c0_13 = arith.constant 0 : index
      %14 = vector.load %arg10[%c0_12, %c0_13] : memref<32x128xf32, #tpu.memory_space<vmem>>, vector<32x128xf32>
      %c0_14 = arith.constant 0 : index
      %c0_15 = arith.constant 0 : index
      %15 = vector.load %arg6[%c0_14, %c0_15] : memref<1x128xf32, #tpu.memory_space<vmem>>, vector<1x128xf32>
      %16 = vector.broadcast %15 : vector<1x128xf32> to vector<32x128xf32>
      %17 = arith.addf %14, %16 : vector<32x128xf32>
      %18 = arith.truncf %17 : vector<32x128xf32> to vector<32x128xbf16>
      %c0_16 = arith.constant 0 : index
      %c0_17 = arith.constant 0 : index
      %c0_18 = arith.constant 0 : index
      %19 = vector.load %arg7[%c0_16, %c0_17, %c0_18] : memref<1x32x128xbf16, #tpu.memory_space<vmem>>, vector<1x32x128xbf16>
      %20 = vector.shape_cast %19 : vector<1x32x128xbf16> to vector<32x128xbf16>
      %21 = vector.shape_cast %18 : vector<32x128xbf16> to vector<1x32x128xbf16>
      tpu.vector_store %arg7[%c0_16, %c0_17, %c0_18], %21 {strides = array<i32>} : memref<1x32x128xbf16, #tpu.memory_space<vmem>>, vector<1x32x128xbf16>,
      %cst_19 = arith.constant dense<0.000000e+00> : vector<128xf32>
      %22 = vector.multi_reduction <add>, %17, %cst_19 [0] : vector<32x128xf32> to vector<128xf32>
      %23 = vector.shape_cast %22 : vector<128xf32> to vector<1x128xf32>
      %c0_20 = arith.constant 0 : index
      %c0_21 = arith.constant 0 : index
      %c0_22 = arith.constant 0 : index
      %24 = vector.load %arg8[%c0_20, %c0_21, %c0_22] : memref<1x1x128xf32, #tpu.memory_space<vmem>>, vector<1x1x128xf32>
      %25 = vector.shape_cast %24 : vector<1x1x128xf32> to vector<1x128xf32>
      %26 = vector.shape_cast %23 : vector<1x128xf32> to vector<1x1x128xf32>
      tpu.vector_store %arg8[%c0_20, %c0_21, %c0_22], %26 {strides = array<i32>} : memref<1x1x128xf32, #tpu.memory_space<vmem>>, vector<1x1x128xf32>,
      %27 = arith.mulf %17, %17 : vector<32x128xf32>
      %cst_23 = arith.constant dense<0.000000e+00> : vector<128xf32>
      %28 = vector.multi_reduction <add>, %27, %cst_23 [0] : vector<32x128xf32> to vector<128xf32>
      %29 = vector.shape_cast %28 : vector<128xf32> to vector<1x128xf32>
      %c0_24 = arith.constant 0 : index
      %c0_25 = arith.constant 0 : index
      %c0_26 = arith.constant 0 : index
      %30 = vector.load %arg9[%c0_24, %c0_25, %c0_26] : memref<1x1x128xf32, #tpu.memory_space<vmem>>, vector<1x1x128xf32>
      %31 = vector.shape_cast %30 : vector<1x1x128xf32> to vector<1x128xf32>
      %32 = vector.shape_cast %29 : vector<1x128xf32> to vector<1x1x128xf32>
      tpu.vector_store %arg9[%c0_24, %c0_25, %c0_26], %32 {strides = array<i32>} : memref<1x1x128xf32, #tpu.memory_space<vmem>>, vector<1x1x128xf32>,
    } else {
    }
    return
  }
  func.func @transform_0(%arg0: i32, %arg1: i32, %arg2: i32, %arg3: i32) -> (i32, i32, i32) {
    %c0_i32 = arith.constant 0 : i32
    return %arg0, %arg1, %arg3 : i32, i32, i32
  }
  func.func @transform_1(%arg0: i32, %arg1: i32, %arg2: i32, %arg3: i32) -> (i32, i32, i32) {
    %c0_i32 = arith.constant 0 : i32
    return %arg0, %arg3, %arg2 : i32, i32, i32
  }
  func.func @transform_2(%arg0: i32, %arg1: i32, %arg2: i32, %arg3: i32) -> (i32, i32) {
    %c0_i32 = arith.constant 0 : i32
    %c0_i32_0 = arith.constant 0 : i32
    return %c0_i32, %arg2 : i32, i32
  }
  func.func @transform_3(%arg0: i32, %arg1: i32, %arg2: i32, %arg3: i32) -> (i32, i32, i32) {
    %c0_i32 = arith.constant 0 : i32
    return %arg0, %arg1, %arg2 : i32, i32, i32
  }
  func.func @transform_4(%arg0: i32, %arg1: i32, %arg2: i32, %arg3: i32) -> (i32, i32, i32) {
    %c0_i32 = arith.constant 0 : i32
    return %arg0, %arg1, %arg2 : i32, i32, i32
  }
  func.func @transform_5(%arg0: i32, %arg1: i32, %arg2: i32, %arg3: i32) -> (i32, i32, i32) {
    %c0_i32 = arith.constant 0 : i32
    return %arg0, %arg1, %arg2 : i32, i32, i32
  }
}

module attributes {stable_mosaic.version = 11 : i64} {
  func.func @_bn_apply_kernel(%arg0: i32, %arg1: memref<128x32xbf16, #tpu.memory_space<vmem>>, %arg2: memref<1x32xf32, #tpu.memory_space<vmem>>, %arg3: memref<1x32xf32, #tpu.memory_space<vmem>>, %arg4: memref<1x32xf32, #tpu.memory_space<vmem>>, %arg5: memref<1x32xf32, #tpu.memory_space<vmem>>, %arg6: memref<128x32xbf16, #tpu.memory_space<vmem>>) attributes {dimension_semantics = [#tpu.dimension_semantics<parallel>], iteration_bounds = array<i64: 1>, scalar_prefetch = 0 : i64, scratch_operands = 0 : i64, tpu.core_type = #tpu.core_type<tc>, window_params = [{transform_indices = @transform_0, window_bounds = array<i64: 128, 32>}, {pipeline_mode = #tpu.pipeline_mode<synchronous>, transform_indices = @transform_1, window_bounds = array<i64: 1, 32>}, {pipeline_mode = #tpu.pipeline_mode<synchronous>, transform_indices = @transform_2, window_bounds = array<i64: 1, 32>}, {pipeline_mode = #tpu.pipeline_mode<synchronous>, transform_indices = @transform_3, window_bounds = array<i64: 1, 32>}, {pipeline_mode = #tpu.pipeline_mode<synchronous>, transform_indices = @transform_4, window_bounds = array<i64: 1, 32>}, {transform_indices = @transform_5, window_bounds = array<i64: 128, 32>}]} {
    %c0 = arith.constant 0 : index
    %c0_0 = arith.constant 0 : index
    %0 = vector.load %arg2[%c0, %c0_0] : memref<1x32xf32, #tpu.memory_space<vmem>>, vector<1x32xf32>
    %cst = arith.constant 7.812500e-03 : f32
    %1 = vector.broadcast %cst : f32 to vector<1x32xf32>
    %2 = arith.mulf %0, %1 : vector<1x32xf32>
    %c0_1 = arith.constant 0 : index
    %c0_2 = arith.constant 0 : index
    %3 = vector.load %arg3[%c0_1, %c0_2] : memref<1x32xf32, #tpu.memory_space<vmem>>, vector<1x32xf32>
    %cst_3 = arith.constant 7.812500e-03 : f32
    %4 = vector.broadcast %cst_3 : f32 to vector<1x32xf32>
    %5 = arith.mulf %3, %4 : vector<1x32xf32>
    %6 = arith.mulf %2, %2 : vector<1x32xf32>
    %7 = arith.subf %5, %6 : vector<1x32xf32>
    %cst_4 = arith.constant 9.99999974E-6 : f32
    %8 = vector.broadcast %cst_4 : f32 to vector<1x32xf32>
    %9 = arith.addf %7, %8 : vector<1x32xf32>
    %10 = math.rsqrt %9 : vector<1x32xf32>
    %c0_5 = arith.constant 0 : index
    %c0_6 = arith.constant 0 : index
    %11 = vector.load %arg4[%c0_5, %c0_6] : memref<1x32xf32, #tpu.memory_space<vmem>>, vector<1x32xf32>
    %12 = arith.mulf %10, %11 : vector<1x32xf32>
    %c0_7 = arith.constant 0 : index
    %c0_8 = arith.constant 0 : index
    %13 = vector.load %arg1[%c0_7, %c0_8] : memref<128x32xbf16, #tpu.memory_space<vmem>>, vector<128x32xbf16>
    %14 = arith.extf %13 : vector<128x32xbf16> to vector<128x32xf32>
    %15 = vector.broadcast %2 : vector<1x32xf32> to vector<128x32xf32>
    %16 = arith.subf %14, %15 : vector<128x32xf32>
    %17 = vector.broadcast %12 : vector<1x32xf32> to vector<128x32xf32>
    %18 = arith.mulf %16, %17 : vector<128x32xf32>
    %c0_9 = arith.constant 0 : index
    %c0_10 = arith.constant 0 : index
    %19 = vector.load %arg5[%c0_9, %c0_10] : memref<1x32xf32, #tpu.memory_space<vmem>>, vector<1x32xf32>
    %20 = vector.broadcast %19 : vector<1x32xf32> to vector<128x32xf32>
    %21 = arith.addf %18, %20 : vector<128x32xf32>
    %cst_11 = arith.constant 0.000000e+00 : f32
    %22 = vector.broadcast %cst_11 : f32 to vector<128x32xf32>
    %23 = arith.maximumf %21, %22 : vector<128x32xf32>
    %24 = arith.truncf %23 : vector<128x32xf32> to vector<128x32xbf16>
    %c0_12 = arith.constant 0 : index
    %c0_13 = arith.constant 0 : index
    %25 = vector.load %arg6[%c0_12, %c0_13] : memref<128x32xbf16, #tpu.memory_space<vmem>>, vector<128x32xbf16>
    tpu.vector_store %arg6[%c0_12, %c0_13], %24 {strides = array<i32>} : memref<128x32xbf16, #tpu.memory_space<vmem>>, vector<128x32xbf16>,
    return
  }
  func.func @transform_0(%arg0: i32) -> (i32, i32) {
    %c0_i32 = arith.constant 0 : i32
    %c0_i32_0 = arith.constant 0 : i32
    return %arg0, %c0_i32 : i32, i32
  }
  func.func @transform_1(%arg0: i32) -> (i32, i32) {
    %c0_i32 = arith.constant 0 : i32
    %c0_i32_0 = arith.constant 0 : i32
    %c0_i32_1 = arith.constant 0 : i32
    return %c0_i32, %c0_i32_0 : i32, i32
  }
  func.func @transform_2(%arg0: i32) -> (i32, i32) {
    %c0_i32 = arith.constant 0 : i32
    %c0_i32_0 = arith.constant 0 : i32
    %c0_i32_1 = arith.constant 0 : i32
    return %c0_i32, %c0_i32_0 : i32, i32
  }
  func.func @transform_3(%arg0: i32) -> (i32, i32) {
    %c0_i32 = arith.constant 0 : i32
    %c0_i32_0 = arith.constant 0 : i32
    %c0_i32_1 = arith.constant 0 : i32
    return %c0_i32, %c0_i32_0 : i32, i32
  }
  func.func @transform_4(%arg0: i32) -> (i32, i32) {
    %c0_i32 = arith.constant 0 : i32
    %c0_i32_0 = arith.constant 0 : i32
    %c0_i32_1 = arith.constant 0 : i32
    return %c0_i32, %c0_i32_0 : i32, i32
  }
  func.func @transform_5(%arg0: i32) -> (i32, i32) {
    %c0_i32 = arith.constant 0 : i32
    %c0_i32_0 = arith.constant 0 : i32
    return %arg0, %c0_i32 : i32, i32
  }
}

module attributes {stable_mosaic.version = 11 : i64} {
  func.func @_mm_kernel(%arg0: i32, %arg1: i32, %arg2: i32, %arg3: i32, %arg4: memref<1x128x128xbf16, #tpu.memory_space<vmem>>, %arg5: memref<1x128x128xbf16, #tpu.memory_space<vmem>>, %arg6: memref<1x128xf32, #tpu.memory_space<vmem>>, %arg7: memref<1x128x128xf32, #tpu.memory_space<vmem>>, %arg8: memref<128x128xf32, #tpu.memory_space<vmem>>) attributes {dimension_semantics = [#tpu.dimension_semantics<parallel>, #tpu.dimension_semantics<parallel>, #tpu.dimension_semantics<parallel>, #tpu.dimension_semantics<arbitrary>], iteration_bounds = array<i64: 4, 1, 1, 1>, scalar_prefetch = 0 : i64, scratch_operands = 1 : i64, tpu.core_type = #tpu.core_type<tc>, window_params = [{transform_indices = @transform_0, window_bounds = array<i64: 1, 128, 128>}, {transform_indices = @transform_1, window_bounds = array<i64: 1, 128, 128>}, {transform_indices = @transform_2, window_bounds = array<i64: 1, 128>}, {transform_indices = @transform_3, window_bounds = array<i64: 1, 128, 128>}]} {
    %c0_i32 = arith.constant 0 : i32
    %0 = arith.cmpi eq, %arg3, %c0_i32 : i32
    %1 = arith.extui %0 : i1 to i32
    %c0_i32_0 = arith.constant 0 : i32
    %2 = arith.cmpi ne, %1, %c0_i32_0 : i32
    scf.if %2 {
      %cst_12 = arith.constant 0.000000e+00 : f32
      %14 = vector.broadcast %cst_12 : f32 to vector<128x128xf32>
      %c0_13 = arith.constant 0 : index
      %c0_14 = arith.constant 0 : index
      %15 = vector.load %arg8[%c0_13, %c0_14] : memref<128x128xf32, #tpu.memory_space<vmem>>, vector<128x128xf32>
      tpu.vector_store %arg8[%c0_13, %c0_14], %14 {strides = array<i32>} : memref<128x128xf32, #tpu.memory_space<vmem>>, vector<128x128xf32>,
    } else {
    }
    %c0 = arith.constant 0 : index
    %c0_1 = arith.constant 0 : index
    %3 = vector.load %arg8[%c0, %c0_1] : memref<128x128xf32, #tpu.memory_space<vmem>>, vector<128x128xf32>
    %c0_2 = arith.constant 0 : index
    %c0_3 = arith.constant 0 : index
    %c0_4 = arith.constant 0 : index
    %4 = vector.load %arg4[%c0_2, %c0_3, %c0_4] : memref<1x128x128xbf16, #tpu.memory_space<vmem>>, vector<1x128x128xbf16>
    %5 = vector.shape_cast %4 : vector<1x128x128xbf16> to vector<128x128xbf16>
    %c0_5 = arith.constant 0 : index
    %c0_6 = arith.constant 0 : index
    %c0_7 = arith.constant 0 : index
    %6 = vector.load %arg5[%c0_5, %c0_6, %c0_7] : memref<1x128x128xbf16, #tpu.memory_space<vmem>>, vector<1x128x128xbf16>
    %7 = vector.shape_cast %6 : vector<1x128x128xbf16> to vector<128x128xbf16>
    %cst = arith.constant dense<0.000000e+00> : vector<128x128xf32>
    %8 = tpu.matmul %5, %7, %cst {dimension_numbers = #tpu.dot_dimension_numbers<[1], [0], [0], [1], [0, 0, 1, 1], [], []>} : vector<128x128xbf16>, vector<128x128xbf16>, vector<128x128xf32> -> vector<128x128xf32>
    %9 = arith.addf %3, %8 : vector<128x128xf32>
    %c0_8 = arith.constant 0 : index
    %c0_9 = arith.constant 0 : index
    %10 = vector.load %arg8[%c0_8, %c0_9] : memref<128x128xf32, #tpu.memory_space<vmem>>, vector<128x128xf32>
    tpu.vector_store %arg8[%c0_8, %c0_9], %9 {strides = array<i32>} : memref<128x128xf32, #tpu.memory_space<vmem>>, vector<128x128xf32>,
    %c0_i32_10 = arith.constant 0 : i32
    %11 = arith.cmpi eq, %arg3, %c0_i32_10 : i32
    %12 = arith.extui %11 : i1 to i32
    %c0_i32_11 = arith.constant 0 : i32
    %13 = arith.cmpi ne, %12, %c0_i32_11 : i32
    scf.if %13 {
      %c0_12 = arith.constant 0 : index
      %c0_13 = arith.constant 0 : index
      %14 = vector.load %arg8[%c0_12, %c0_13] : memref<128x128xf32, #tpu.memory_space<vmem>>, vector<128x128xf32>
      %c0_14 = arith.constant 0 : index
      %c0_15 = arith.constant 0 : index
      %15 = vector.load %arg6[%c0_14, %c0_15] : memref<1x128xf32, #tpu.memory_space<vmem>>, vector<1x128xf32>
      %16 = vector.broadcast %15 : vector<1x128xf32> to vector<128x128xf32>
      %17 = arith.addf %14, %16 : vector<128x128xf32>
      %18 = arith.negf %17 : vector<128x128xf32>
      %19 = math.exp %18 : vector<128x128xf32>
      %cst_16 = arith.constant 1.000000e+00 : f32
      %20 = vector.broadcast %cst_16 : f32 to vector<128x128xf32>
      %21 = arith.addf %20, %19 : vector<128x128xf32>
      %22 = arith.divf %20, %21 : vector<128x128xf32>
      %c0_17 = arith.constant 0 : index
      %c0_18 = arith.constant 0 : index
      %c0_19 = arith.constant 0 : index
      %23 = vector.load %arg7[%c0_17, %c0_18, %c0_19] : memref<1x128x128xf32, #tpu.memory_space<vmem>>, vector<1x128x128xf32>
      %24 = vector.shape_cast %23 : vector<1x128x128xf32> to vector<128x128xf32>
      %25 = vector.shape_cast %22 : vector<128x128xf32> to vector<1x128x128xf32>
      tpu.vector_store %arg7[%c0_17, %c0_18, %c0_19], %25 {strides = array<i32>} : memref<1x128x128xf32, #tpu.memory_space<vmem>>, vector<1x128x128xf32>,
    } else {
    }
    return
  }
  func.func @transform_0(%arg0: i32, %arg1: i32, %arg2: i32, %arg3: i32) -> (i32, i32, i32) {
    %c0_i32 = arith.constant 0 : i32
    return %arg0, %arg1, %arg3 : i32, i32, i32
  }
  func.func @transform_1(%arg0: i32, %arg1: i32, %arg2: i32, %arg3: i32) -> (i32, i32, i32) {
    %c0_i32 = arith.constant 0 : i32
    return %arg0, %arg3, %arg2 : i32, i32, i32
  }
  func.func @transform_2(%arg0: i32, %arg1: i32, %arg2: i32, %arg3: i32) -> (i32, i32) {
    %c0_i32 = arith.constant 0 : i32
    %c0_i32_0 = arith.constant 0 : i32
    return %c0_i32, %arg2 : i32, i32
  }
  func.func @transform_3(%arg0: i32, %arg1: i32, %arg2: i32, %arg3: i32) -> (i32, i32, i32) {
    %c0_i32 = arith.constant 0 : i32
    return %arg0, %arg1, %arg2 : i32, i32, i32
  }
}

</mosaic_0001>

<llo_original>
// kernel: vae_conv_forward.27
$region0: #{vae_conv_forward.27}
  #allocation0 [shape = 'u32[]', space=smem, size = 0x4, offset = 0x4, fixed_abs, tag = 'smem constant byte address 0x4 - core index']
  #allocation1 [shape = 'u32[144,128]{1,0:T(1,128)}', space=vmem, size = 0x12000, scoped, tag = 'internal scratch']
  %s0 = inlined_call_operand.vmem [shape: bf16[128,32], index: 0, kind: input, shape index: {}]
  %s1 = inlined_call_operand.vmem [shape: f32[1,32], index: 1, kind: input, shape index: {}]
  %s2 = inlined_call_operand.vmem [shape: f32[1,32], index: 2, kind: input, shape index: {}]
  %s3 = inlined_call_operand.vmem [shape: f32[1,32], index: 3, kind: input, shape index: {}]
  %s4 = inlined_call_operand.vmem [shape: f32[1,32], index: 4, kind: input, shape index: {}]
  %s5 = inlined_call_operand.vmem [shape: bf16[128,32], index: 5, kind: output, shape index: {}]
  %s6 = sld [smem:[#allocation0]]
  $region30: #{vae_conv_forward.27} parent=0
    _
  %s8 = ssub.s32 1, %s6
  %s9 = scalar_select 0, %s8, %s6
  // Predicated region
  $region2: #{vae_conv_forward.27} parent=0 // pred_check
    _
  $region3: #{vae_conv_forward.27} parent=0 // pred_check_branch
    %11 = sbr.rel (0) target = $region5
  $region4: #{vae_conv_forward.27} parent=0 // pred_region
    _
  $region5: #{vae_conv_forward.27} parent=0 // pred_fallthru
    _
  // Predicated region
  $region6: #{vae_conv_forward.27} parent=0 // pred_check
    _
  $region7: #{vae_conv_forward.27} parent=0 // pred_check_branch
    %13 = sbr.rel (0) target = $region9
  $region8: #{vae_conv_forward.27} parent=0 // pred_region
    _
  $region9: #{vae_conv_forward.27} parent=0 // pred_fallthru
    _
  // Predicated region
  $region10: #{vae_conv_forward.27} parent=0 // pred_check
    _
  $region11: #{vae_conv_forward.27} parent=0 // pred_check_branch
    %15 = sbr.rel (0) target = $region13
  $region12: #{vae_conv_forward.27} parent=0 // pred_region
    _
  $region13: #{vae_conv_forward.27} parent=0 // pred_fallthru
    _
  // Predicated region
  $region14: #{vae_conv_forward.27} parent=0 // pred_check
    _
  $region15: #{vae_conv_forward.27} parent=0 // pred_check_branch
    %17 = sbr.rel (0) target = $region17
  $region16: #{vae_conv_forward.27} parent=0 // pred_region
    _
  $region17: #{vae_conv_forward.27} parent=0 // pred_fallthru
    _
  // Predicated region
  $region18: #{vae_conv_forward.27} parent=0 // pred_check
    _
  $region19: #{vae_conv_forward.27} parent=0 // pred_check_branch
    %19 = sbr.rel (0) target = $region21
  $region20: #{vae_conv_forward.27} parent=0 // pred_region
    _
  $region21: #{vae_conv_forward.27} parent=0 // pred_fallthru
    _
  %v20 = vld [vmem:[%s1] sm:$0x1]
  %v21 = vmul.f32 %v20, 0.0078125
  %v22 = vld [vmem:[%s2] sm:$0x1]
  %v23 = vmul.f32 %v22, 0.0078125
  %v24 = vmul.f32 %v21, %v21
  %v25 = vsub.f32 %v23, %v24
  %v26 = vadd.f32 %v25, 1e-05
  %v27 = vrsqrt.pop %v26
  %v28 = vld [vmem:[%s3] sm:$0x1]
  %v29 = vmul.f32 %v27, %v28
  %v30 = vld [vmem:[%s0] sm:$0xf]
  %v31 = vld [vmem:[%s0 + $0x4] sm:$0xf]
  %v32 = vld [vmem:[%s0 + $0x8] sm:$0xf]
  %v33 = vld [vmem:[%s0 + $0xc] sm:$0xf]
  %v34 = vld [vmem:[%s0 + $0x10] sm:$0xf]
  %v35 = vld [vmem:[%s0 + $0x14] sm:$0xf]
  %v36 = vld [vmem:[%s0 + $0x18] sm:$0xf]
  %v37 = vld [vmem:[%s0 + $0x1c] sm:$0xf]
  %v38 = vld [vmem:[%s0 + $0x20] sm:$0xf]
  %v39 = vld [vmem:[%s0 + $0x24] sm:$0xf]
  %v40 = vld [vmem:[%s0 + $0x28] sm:$0xf]
  %v41 = vld [vmem:[%s0 + $0x2c] sm:$0xf]
  %v42 = vld [vmem:[%s0 + $0x30] sm:$0xf]
  %v43 = vld [vmem:[%s0 + $0x34] sm:$0xf]
  %v44 = vld [vmem:[%s0 + $0x38] sm:$0xf]
  %v45 = vld [vmem:[%s0 + $0x3c] sm:$0xf]
  %v46 = vunpack.c.l.bf16 %v30
  %v47 = vunpack.c.l.bf16 %v31
  %v48 = vunpack.c.l.bf16 %v32
  %v49 = vunpack.c.l.bf16 %v33
  %v50 = vunpack.c.l.bf16 %v34
  %v51 = vunpack.c.l.bf16 %v35
  %v52 = vunpack.c.l.bf16 %v36
  %v53 = vunpack.c.l.bf16 %v37
  %v54 = vunpack.c.l.bf16 %v38
  %v55 = vunpack.c.l.bf16 %v39
  %v56 = vunpack.c.l.bf16 %v40
  %v57 = vunpack.c.l.bf16 %v41
  %v58 = vunpack.c.l.bf16 %v42
  %v59 = vunpack.c.l.bf16 %v43
  %v60 = vunpack.c.l.bf16 %v44
  %v61 = vunpack.c.l.bf16 %v45
  %v63 = vlaneseq
  %v64 = vshrl.u32 %v63, 7
  %v65 = vsub.s32 0, %v64
  %v66 = vrot.slane %v21, %v65
  %v68 = vsub.f32 %v46, %v66
  %v69 = vsub.f32 %v47, %v66
  %v70 = vsub.f32 %v48, %v66
  %v71 = vsub.f32 %v49, %v66
  %v72 = vsub.f32 %v50, %v66
  %v73 = vsub.f32 %v51, %v66
  %v74 = vsub.f32 %v52, %v66
  %v75 = vsub.f32 %v53, %v66
  %v76 = vsub.f32 %v54, %v66
  %v77 = vsub.f32 %v55, %v66
  %v78 = vsub.f32 %v56, %v66
  %v79 = vsub.f32 %v57, %v66
  %v80 = vsub.f32 %v58, %v66
  %v81 = vsub.f32 %v59, %v66
  %v82 = vsub.f32 %v60, %v66
  %v83 = vsub.f32 %v61, %v66
  %v85 = vlaneseq
  %v86 = vshrl.u32 %v85, 7
  %v87 = vsub.s32 0, %v86
  %v88 = vrot.slane %v29, %v87
  %v90 = vmul.f32 %v68, %v88
  %v91 = vmul.f32 %v69, %v88
  %v92 = vmul.f32 %v70, %v88
  %v93 = vmul.f32 %v71, %v88
  %v94 = vmul.f32 %v72, %v88
  %v95 = vmul.f32 %v73, %v88
  %v96 = vmul.f32 %v74, %v88
  %v97 = vmul.f32 %v75, %v88
  %v98 = vmul.f32 %v76, %v88
  %v99 = vmul.f32 %v77, %v88
  %v100 = vmul.f32 %v78, %v88
  %v101 = vmul.f32 %v79, %v88
  %v102 = vmul.f32 %v80, %v88
  %v103 = vmul.f32 %v81, %v88
  %v104 = vmul.f32 %v82, %v88
  %v105 = vmul.f32 %v83, %v88
  %v106 = vld [vmem:[%s4] sm:$0x1]
  %v108 = vlaneseq
  %v109 = vshrl.u32 %v108, 7
  %v110 = vsub.s32 0, %v109
  %v111 = vrot.slane %v106, %v110
  %v113 = vadd.f32 %v90, %v111
  %v114 = vadd.f32 %v91, %v111
  %v115 = vadd.f32 %v92, %v111
  %v116 = vadd.f32 %v93, %v111
  %v117 = vadd.f32 %v94, %v111
  %v118 = vadd.f32 %v95, %v111
  %v119 = vadd.f32 %v96, %v111
  %v120 = vadd.f32 %v97, %v111
  %v121 = vadd.f32 %v98, %v111
  %v122 = vadd.f32 %v99, %v111
  %v123 = vadd.f32 %v100, %v111
  %v124 = vadd.f32 %v101, %v111
  %v125 = vadd.f32 %v102, %v111
  %v126 = vadd.f32 %v103, %v111
  %v127 = vadd.f32 %v104, %v111
  %v128 = vadd.f32 %v105, %v111
  %vm129 = vcmp.gt.f32.partialorder %v113, 0.0
  %vm130 = vcmp.gt.f32.partialorder %v114, 0.0
  %vm131 = vcmp.gt.f32.partialorder %v115, 0.0
  %vm132 = vcmp.gt.f32.partialorder %v116, 0.0
  %vm133 = vcmp.gt.f32.partialorder %v117, 0.0
  %vm134 = vcmp.gt.f32.partialorder %v118, 0.0
  %vm135 = vcmp.gt.f32.partialorder %v119, 0.0
  %vm136 = vcmp.gt.f32.partialorder %v120, 0.0
  %vm137 = vcmp.gt.f32.partialorder %v121, 0.0
  %vm138 = vcmp.gt.f32.partialorder %v122, 0.0
  %vm139 = vcmp.gt.f32.partialorder %v123, 0.0
  %vm140 = vcmp.gt.f32.partialorder %v124, 0.0
  %vm141 = vcmp.gt.f32.partialorder %v125, 0.0
  %vm142 = vcmp.gt.f32.partialorder %v126, 0.0
  %vm143 = vcmp.gt.f32.partialorder %v127, 0.0
  %vm144 = vcmp.gt.f32.partialorder %v128, 0.0
  %v145 = vmul.f32 %v113, 0.2
  %v146 = vmul.f32 %v114, 0.2
  %v147 = vmul.f32 %v115, 0.2
  %v148 = vmul.f32 %v116, 0.2
  %v149 = vmul.f32 %v117, 0.2
  %v150 = vmul.f32 %v118, 0.2
  %v151 = vmul.f32 %v119, 0.2
  %v152 = vmul.f32 %v120, 0.2
  %v153 = vmul.f32 %v121, 0.2
  %v154 = vmul.f32 %v122, 0.2
  %v155 = vmul.f32 %v123, 0.2
  %v156 = vmul.f32 %v124, 0.2
  %v157 = vmul.f32 %v125, 0.2
  %v158 = vmul.f32 %v126, 0.2
  %v159 = vmul.f32 %v127, 0.2
  %v160 = vmul.f32 %v128, 0.2
  %v161 = vsel %vm129, %v113, %v145
  %v162 = vsel %vm130, %v114, %v146
  %v163 = vsel %vm131, %v115, %v147
  %v164 = vsel %vm132, %v116, %v148
  %v165 = vsel %vm133, %v117, %v149
  %v166 = vsel %vm134, %v118, %v150
  %v167 = vsel %vm135, %v119, %v151
  %v168 = vsel %vm136, %v120, %v152
  %v169 = vsel %vm137, %v121, %v153
  %v170 = vsel %vm138, %v122, %v154
  %v171 = vsel %vm139, %v123, %v155
  %v172 = vsel %vm140, %v124, %v156
  %v173 = vsel %vm141, %v125, %v157
  %v174 = vsel %vm142, %v126, %v158
  %v175 = vsel %vm143, %v127, %v159
  %v176 = vsel %vm144, %v128, %v160
  %v177 = vpack.c.bf16 %v162, %v161
  %v178 = vpack.c.bf16 %v164, %v163
  %v179 = vpack.c.bf16 %v166, %v165
  %v180 = vpack.c.bf16 %v168, %v167
  %v181 = vpack.c.bf16 %v170, %v169
  %v182 = vpack.c.bf16 %v172, %v171
  %v183 = vpack.c.bf16 %v174, %v173
  %v184 = vpack.c.bf16 %v176, %v175
  %v193 = vunpack.c.l.b16 %v177
  %v194 = vunpack.c.h.b16 %v177
  %v195 = vunpack.c.l.b16 %v178
  %v196 = vunpack.c.h.b16 %v178
  %v197 = vunpack.c.l.b16 %v179
  %v198 = vunpack.c.h.b16 %v179
  %v199 = vunpack.c.l.b16 %v180
  %v200 = vunpack.c.h.b16 %v180
  %v201 = vunpack.c.l.b16 %v181
  %v202 = vunpack.c.h.b16 %v181
  %v203 = vunpack.c.l.b16 %v182
  %v204 = vunpack.c.h.b16 %v182
  %v205 = vunpack.c.l.b16 %v183
  %v206 = vunpack.c.h.b16 %v183
  %v207 = vunpack.c.l.b16 %v184
  %v208 = vunpack.c.h.b16 %v184
  %v209 = vpack.c.b16 %v193, %v193
  %v210 = vpack.c.b16 %v194, %v194
  %v211 = vpack.c.b16 %v195, %v195
  %v212 = vpack.c.b16 %v196, %v196
  %v213 = vpack.c.b16 %v197, %v197
  %v214 = vpack.c.b16 %v198, %v198
  %v215 = vpack.c.b16 %v199, %v199
  %v216 = vpack.c.b16 %v200, %v200
  %v217 = vpack.c.b16 %v201, %v201
  %v218 = vpack.c.b16 %v202, %v202
  %v219 = vpack.c.b16 %v203, %v203
  %v220 = vpack.c.b16 %v204, %v204
  %v221 = vpack.c.b16 %v205, %v205
  %v222 = vpack.c.b16 %v206, %v206
  %v223 = vpack.c.b16 %v207, %v207
  %v224 = vpack.c.b16 %v208, %v208
  %vm241 = vcmask 257024
  %242 = vst.msk [vmem:[%s5] sm:$0xf] %vm241, %v209
  %243 = vst.msk [vmem:[%s5 + $0x4] sm:$0xf] %vm241, %v210
  %244 = vst.msk [vmem:[%s5 + $0x8] sm:$0xf] %vm241, %v211
  %245 = vst.msk [vmem:[%s5 + $0xc] sm:$0xf] %vm241, %v212
  %246 = vst.msk [vmem:[%s5 + $0x10] sm:$0xf] %vm241, %v213
  %247 = vst.msk [vmem:[%s5 + $0x14] sm:$0xf] %vm241, %v214
  %248 = vst.msk [vmem:[%s5 + $0x18] sm:$0xf] %vm241, %v215
  %249 = vst.msk [vmem:[%s5 + $0x1c] sm:$0xf] %vm241, %v216
  %250 = vst.msk [vmem:[%s5 + $0x20] sm:$0xf] %vm241, %v217
  %251 = vst.msk [vmem:[%s5 + $0x24] sm:$0xf] %vm241, %v218
  %252 = vst.msk [vmem:[%s5 + $0x28] sm:$0xf] %vm241, %v219
  %253 = vst.msk [vmem:[%s5 + $0x2c] sm:$0xf] %vm241, %v220
  %254 = vst.msk [vmem:[%s5 + $0x30] sm:$0xf] %vm241, %v221
  %255 = vst.msk [vmem:[%s5 + $0x34] sm:$0xf] %vm241, %v222
  %256 = vst.msk [vmem:[%s5 + $0x38] sm:$0xf] %vm241, %v223
  %257 = vst.msk [vmem:[%s5 + $0x3c] sm:$0xf] %vm241, %v224
  // Predicated region
  $region22: #{vae_conv_forward.27} parent=0 // pred_check
    _
  $region23: #{vae_conv_forward.27} parent=0 // pred_check_branch
    %259 = sbr.rel (0) target = $region25
  $region24: #{vae_conv_forward.27} parent=0 // pred_region
    _
  $region25: #{vae_conv_forward.27} parent=0 // pred_fallthru
    _
  // Predicated region
  $region26: #{vae_conv_forward.27} parent=0 // pred_check
    _
  $region27: #{vae_conv_forward.27} parent=0 // pred_check_branch
    %261 = sbr.rel (0) target = $region29
  $region28: #{vae_conv_forward.27} parent=0 // pred_region
    _
  $region29: #{vae_conv_forward.27} parent=0 // pred_fallthru
    _

// kernel: vae_conv_forward.26
$region0: #{vae_conv_forward.26}
  #allocation0 [shape = 'u32[]', space=smem, size = 0x4, offset = 0x4, fixed_abs, tag = 'smem constant byte address 0x4 - core index']
  #allocation1 [shape = 'u32[144,128]{1,0:T(1,128)}', space=vmem, size = 0x12000, scoped, tag = 'internal scratch']
  #allocation2 [shape = 'f32[128,128]{1,0:T(8,128)}', space=vmem, size = 0x10000, scoped, tag = 'scratch operand']
  %s0 = inlined_call_operand.vmem [shape: bf16[128,128], index: 0, kind: input, shape index: {}]
  %s1 = inlined_call_operand.vmem [shape: bf16[128,128], index: 1, kind: input, shape index: {}]
  %s2 = inlined_call_operand.vmem [shape: f32[1,128], index: 2, kind: input, shape index: {}]
  %s3 = inlined_call_operand.vmem [shape: bf16[128,128], index: 3, kind: output, shape index: {0}]
  %s4 = inlined_call_operand.vmem [shape: f32[1,128], index: 4, kind: output, shape index: {1}]
  %s5 = inlined_call_operand.vmem [shape: f32[1,128], index: 5, kind: output, shape index: {2}]
  %6 = xla_tuple %s3, %s4, %s5
  %s7 = sld [smem:[#allocation0]]
  $region46: #{vae_conv_forward.26} parent=0
    _
  %s9 = ssub.s32 1, %s7
  %s10 = scalar_select 0, %s9, %s7
  // Predicated region
  $region2: #{vae_conv_forward.26} parent=0 // pred_check
    _
  $region3: #{vae_conv_forward.26} parent=0 // pred_check_branch
    %12 = sbr.rel (0) target = $region5
  $region4: #{vae_conv_forward.26} parent=0 // pred_region
    _
  $region5: #{vae_conv_forward.26} parent=0 // pred_fallthru
    _
  // Predicated region
  $region6: #{vae_conv_forward.26} parent=0 // pred_check
    _
  $region7: #{vae_conv_forward.26} parent=0 // pred_check_branch
    %14 = sbr.rel (0) target = $region9
  $region8: #{vae_conv_forward.26} parent=0 // pred_region
    _
  $region9: #{vae_conv_forward.26} parent=0 // pred_fallthru
    _
  // Predicated region
  $region10: #{vae_conv_forward.26} parent=0 // pred_check
    _
  $region11: #{vae_conv_forward.26} parent=0 // pred_check_branch
    %16 = sbr.rel (0) target = $region13
  $region12: #{vae_conv_forward.26} parent=0 // pred_region
    _
  $region13: #{vae_conv_forward.26} parent=0 // pred_fallthru
    _
  %p18 = scmp.eq.s32.totalorder 0, 0
  // Predicated region
  $region14: #{vae_conv_forward.26} parent=0 // pred_check
    %p19 = pneg %p18
  $region15: #{vae_conv_forward.26} parent=0 // pred_check_branch
    %21 = sbr.rel (%p19) target = $region17
  $region16: #{vae_conv_forward.26} parent=0 // pred_region
    %22 = vst [vmem:[#allocation2] sm:$0xff] 0.0
    %23 = vst [vmem:[#allocation2 + $0x8] sm:$0xff] 0.0
    %24 = vst [vmem:[#allocation2 + $0x10] sm:$0xff] 0.0
    %25 = vst [vmem:[#allocation2 + $0x18] sm:$0xff] 0.0
    %26 = vst [vmem:[#allocation2 + $0x20] sm:$0xff] 0.0
    %27 = vst [vmem:[#allocation2 + $0x28] sm:$0xff] 0.0
    %28 = vst [vmem:[#allocation2 + $0x30] sm:$0xff] 0.0
    %29 = vst [vmem:[#allocation2 + $0x38] sm:$0xff] 0.0
    %30 = vst [vmem:[#allocation2 + $0x40] sm:$0xff] 0.0
    %31 = vst [vmem:[#allocation2 + $0x48] sm:$0xff] 0.0
    %32 = vst [vmem:[#allocation2 + $0x50] sm:$0xff] 0.0
    %33 = vst [vmem:[#allocation2 + $0x58] sm:$0xff] 0.0
    %34 = vst [vmem:[#allocation2 + $0x60] sm:$0xff] 0.0
    %35 = vst [vmem:[#allocation2 + $0x68] sm:$0xff] 0.0
    %36 = vst [vmem:[#allocation2 + $0x70] sm:$0xff] 0.0
    %37 = vst [vmem:[#allocation2 + $0x78] sm:$0xff] 0.0
  $region17: #{vae_conv_forward.26} parent=0 // pred_fallthru
    _
  %v38 = vld [vmem:[#allocation2] sm:$0xff]
  %v39 = vld [vmem:[#allocation2 + $0x8] sm:$0xff]
  %v40 = vld [vmem:[#allocation2 + $0x10] sm:$0xff]
  %v41 = vld [vmem:[#allocation2 + $0x18] sm:$0xff]
  %v42 = vld [vmem:[#allocation2 + $0x20] sm:$0xff]
  %v43 = vld [vmem:[#allocation2 + $0x28] sm:$0xff]
  %v44 = vld [vmem:[#allocation2 + $0x30] sm:$0xff]
  %v45 = vld [vmem:[#allocation2 + $0x38] sm:$0xff]
  %v46 = vld [vmem:[#allocation2 + $0x40] sm:$0xff]
  %v47 = vld [vmem:[#allocation2 + $0x48] sm:$0xff]
  %v48 = vld [vmem:[#allocation2 + $0x50] sm:$0xff]
  %v49 = vld [vmem:[#allocation2 + $0x58] sm:$0xff]
  %v50 = vld [vmem:[#allocation2 + $0x60] sm:$0xff]
  %v51 = vld [vmem:[#allocation2 + $0x68] sm:$0xff]
  %v52 = vld [vmem:[#allocation2 + $0x70] sm:$0xff]
  %v53 = vld [vmem:[#allocation2 + $0x78] sm:$0xff]
  %v54 = vld [vmem:[%s0] sm:$0xf]
  %v55 = vld [vmem:[%s0 + $0x4] sm:$0xf]
  %v56 = vld [vmem:[%s0 + $0x8] sm:$0xf]
  %v57 = vld [vmem:[%s0 + $0xc] sm:$0xf]
  %v58 = vld [vmem:[%s0 + $0x10] sm:$0xf]
  %v59 = vld [vmem:[%s0 + $0x14] sm:$0xf]
  %v60 = vld [vmem:[%s0 + $0x18] sm:$0xf]
  %v61 = vld [vmem:[%s0 + $0x1c] sm:$0xf]
  %v62 = vld [vmem:[%s0 + $0x20] sm:$0xf]
  %v63 = vld [vmem:[%s0 + $0x24] sm:$0xf]
  %v64 = vld [vmem:[%s0 + $0x28] sm:$0xf]
  %v65 = vld [vmem:[%s0 + $0x2c] sm:$0xf]
  %v66 = vld [vmem:[%s0 + $0x30] sm:$0xf]
  %v67 = vld [vmem:[%s0 + $0x34] sm:$0xf]
  %v68 = vld [vmem:[%s0 + $0x38] sm:$0xf]
  %v69 = vld [vmem:[%s0 + $0x3c] sm:$0xf]
  %v70 = vld [vmem:[%s1] sm:$0xf]
  %v71 = vld [vmem:[%s1 + $0x4] sm:$0xf]
  %v72 = vld [vmem:[%s1 + $0x8] sm:$0xf]
  %v73 = vld [vmem:[%s1 + $0xc] sm:$0xf]
  %v74 = vld [vmem:[%s1 + $0x10] sm:$0xf]
  %v75 = vld [vmem:[%s1 + $0x14] sm:$0xf]
  %v76 = vld [vmem:[%s1 + $0x18] sm:$0xf]
  %v77 = vld [vmem:[%s1 + $0x1c] sm:$0xf]
  %v78 = vld [vmem:[%s1 + $0x20] sm:$0xf]
  %v79 = vld [vmem:[%s1 + $0x24] sm:$0xf]
  %v80 = vld [vmem:[%s1 + $0x28] sm:$0xf]
  %v81 = vld [vmem:[%s1 + $0x2c] sm:$0xf]
  %v82 = vld [vmem:[%s1 + $0x30] sm:$0xf]
  %v83 = vld [vmem:[%s1 + $0x34] sm:$0xf]
  %v84 = vld [vmem:[%s1 + $0x38] sm:$0xf]
  %v85 = vld [vmem:[%s1 + $0x3c] sm:$0xf]
  %v102 = vunpack.c.l.b16 %v54
  %v103 = vunpack.c.l.b16 %v55
  %v104 = vunpack.c.l.b16 %v56
  %v105 = vunpack.c.l.b16 %v57
  %v106 = vunpack.c.l.b16 %v58
  %v107 = vunpack.c.l.b16 %v59
  %v108 = vunpack.c.l.b16 %v60
  %v109 = vunpack.c.l.b16 %v61
  %v110 = vunpack.c.l.b16 %v62
  %v111 = vunpack.c.l.b16 %v63
  %v112 = vunpack.c.l.b16 %v64
  %v113 = vunpack.c.l.b16 %v65
  %v114 = vunpack.c.l.b16 %v66
  %v115 = vunpack.c.l.b16 %v67
  %v116 = vunpack.c.l.b16 %v68
  %v117 = vunpack.c.l.b16 %v69
  %v118 = vpack.c.b16 %v103, %v102
  %v119 = vpack.c.b16 %v105, %v104
  %v120 = vpack.c.b16 %v107, %v106
  %v121 = vpack.c.b16 %v109, %v108
  %v122 = vpack.c.b16 %v111, %v110
  %v123 = vpack.c.b16 %v113, %v112
  %v124 = vpack.c.b16 %v115, %v114
  %v125 = vpack.c.b16 %v117, %v116
  %v150 = vunpack.c.l.b16 %v70
  %v151 = vunpack.c.l.b16 %v71
  %v152 = vunpack.c.l.b16 %v72
  %v153 = vunpack.c.l.b16 %v73
  %v154 = vunpack.c.l.b16 %v74
  %v155 = vunpack.c.l.b16 %v75
  %v156 = vunpack.c.l.b16 %v76
  %v157 = vunpack.c.l.b16 %v77
  %v158 = vunpack.c.l.b16 %v78
  %v159 = vunpack.c.l.b16 %v79
  %v160 = vunpack.c.l.b16 %v80
  %v161 = vunpack.c.l.b16 %v81
  %v162 = vunpack.c.l.b16 %v82
  %v163 = vunpack.c.l.b16 %v83
  %v164 = vunpack.c.l.b16 %v84
  %v165 = vunpack.c.l.b16 %v85
  %v166 = vpack.c.b16 %v151, %v150
  %v167 = vpack.c.b16 %v153, %v152
  %v168 = vpack.c.b16 %v155, %v154
  %v169 = vpack.c.b16 %v157, %v156
  %v170 = vpack.c.b16 %v159, %v158
  %v171 = vpack.c.b16 %v161, %v160
  %v172 = vpack.c.b16 %v163, %v162
  %v173 = vpack.c.b16 %v165, %v164
  %182 = vmatprep.subr.bf16.mxu0 0
  %183 = vmatpush1.bf16.msra.mxu0 %v166
  %184 = vmatprep.subr.bf16.mxu0 0
  %185 = vmatpush1.bf16.msra.mxu0 %v167
  %186 = vmatprep.subr.bf16.mxu0 0
  %187 = vmatpush1.bf16.msra.mxu0 %v168
  %188 = vmatprep.subr.bf16.mxu0 0
  %189 = vmatpush1.bf16.msra.mxu0 %v169
  %190 = vmatprep.subr.bf16.mxu0 0
  %191 = vmatpush1.bf16.msra.mxu0 %v170
  %192 = vmatprep.subr.bf16.mxu0 0
  %193 = vmatpush1.bf16.msra.mxu0 %v171
  %194 = vmatprep.subr.bf16.mxu0 0
  %195 = vmatpush1.bf16.msra.mxu0 %v172
  %196 = vmatprep.subr.bf16.mxu0 0
  %197 = vmatpush1.bf16.msra.mxu0 %v173
  %198 = vmatprep.subr.bf16.mxu0 0
  %199 = vmatpush1.bf16.msra.mxu0 0
  %200 = vmatprep.subr.bf16.mxu0 0
  %201 = vmatpush1.bf16.msra.mxu0 0
  %202 = vmatprep.subr.bf16.mxu0 0
  %203 = vmatpush1.bf16.msra.mxu0 0
  %204 = vmatprep.subr.bf16.mxu0 0
  %205 = vmatpush1.bf16.msra.mxu0 0
  %206 = vmatprep.subr.bf16.mxu0 0
  %207 = vmatpush1.bf16.msra.mxu0 0
  %208 = vmatprep.subr.bf16.mxu0 0
  %209 = vmatpush1.bf16.msra.mxu0 0
  %210 = vmatprep.subr.bf16.mxu0 0
  %211 = vmatpush1.bf16.msra.mxu0 0
  %212 = vmatprep.subr.bf16.mxu0 0
  %213 = vmatpush1.bf16.msra.mxu0 0
  %214 = vmatprep.mubr.bf16.mxu0 0
  %215 = vmatmul.mubr.bf16.gmra.mrb[0].mxu0 %v118
  %v216 = vpop.f32.mrb[0].mxu0
  %v217 = vadd.f32 0.0, %v216
  %v218 = vpop.f32.mrb[0].mxu0
  %v219 = vpop.f32.mrb[0].mxu0
  %v220 = vadd.f32 0.0, %v219
  %v221 = vpop.f32.mrb[0].mxu0
  %222 = vmatprep.mubr.bf16.mxu0 0
  %223 = vmatmul.mubr.bf16.gmra.mrb[0].mxu0 %v119
  %v224 = vpop.f32.mrb[0].mxu0
  %v225 = vadd.f32 0.0, %v224
  %v226 = vpop.f32.mrb[0].mxu0
  %v227 = vpop.f32.mrb[0].mxu0
  %v228 = vadd.f32 0.0, %v227
  %v229 = vpop.f32.mrb[0].mxu0
  %230 = vmatprep.mubr.bf16.mxu0 0
  %231 = vmatmul.mubr.bf16.gmra.mrb[0].mxu0 %v120
  %v232 = vpop.f32.mrb[0].mxu0
  %v233 = vadd.f32 0.0, %v232
  %v234 = vpop.f32.mrb[0].mxu0
  %v235 = vpop.f32.mrb[0].mxu0
  %v236 = vadd.f32 0.0, %v235
  %v237 = vpop.f32.mrb[0].mxu0
  %238 = vmatprep.mubr.bf16.mxu0 0
  %239 = vmatmul.mubr.bf16.gmra.mrb[0].mxu0 %v121
  %v240 = vpop.f32.mrb[0].mxu0
  %v241 = vadd.f32 0.0, %v240
  %v242 = vpop.f32.mrb[0].mxu0
  %v243 = vpop.f32.mrb[0].mxu0
  %v244 = vadd.f32 0.0, %v243
  %v245 = vpop.f32.mrb[0].mxu0
  %246 = vmatprep.mubr.bf16.mxu0 0
  %247 = vmatmul.mubr.bf16.gmra.mrb[0].mxu0 %v122
  %v248 = vpop.f32.mrb[0].mxu0
  %v249 = vadd.f32 0.0, %v248
  %v250 = vpop.f32.mrb[0].mxu0
  %v251 = vpop.f32.mrb[0].mxu0
  %v252 = vadd.f32 0.0, %v251
  %v253 = vpop.f32.mrb[0].mxu0
  %254 = vmatprep.mubr.bf16.mxu0 0
  %255 = vmatmul.mubr.bf16.gmra.mrb[0].mxu0 %v123
  %v256 = vpop.f32.mrb[0].mxu0
  %v257 = vadd.f32 0.0, %v256
  %v258 = vpop.f32.mrb[0].mxu0
  %v259 = vpop.f32.mrb[0].mxu0
  %v260 = vadd.f32 0.0, %v259
  %v261 = vpop.f32.mrb[0].mxu0
  %262 = vmatprep.mubr.bf16.mxu0 0
  %263 = vmatmul.mubr.bf16.gmra.mrb[0].mxu0 %v124
  %v264 = vpop.f32.mrb[0].mxu0
  %v265 = vadd.f32 0.0, %v264
  %v266 = vpop.f32.mrb[0].mxu0
  %v267 = vpop.f32.mrb[0].mxu0
  %v268 = vadd.f32 0.0, %v267
  %v269 = vpop.f32.mrb[0].mxu0
  %270 = vmatprep.mubr.bf16.mxu0 0
  %271 = vmatmul.mubr.bf16.gmra.mrb[0].mxu0 %v125
  %v272 = vpop.f32.mrb[0].mxu0
  %v273 = vadd.f32 0.0, %v272
  %v274 = vpop.f32.mrb[0].mxu0
  %v275 = vpop.f32.mrb[0].mxu0
  %v276 = vadd.f32 0.0, %v275
  %v277 = vpop.f32.mrb[0].mxu0
  %278 = vdwg.mxu0
  %v279 = vadd.f32 %v38, %v217
  %v280 = vadd.f32 %v39, %v220
  %v281 = vadd.f32 %v40, %v225
  %v282 = vadd.f32 %v41, %v228
  %v283 = vadd.f32 %v42, %v233
  %v284 = vadd.f32 %v43, %v236
  %v285 = vadd.f32 %v44, %v241
  %v286 = vadd.f32 %v45, %v244
  %v287 = vadd.f32 %v46, %v249
  %v288 = vadd.f32 %v47, %v252
  %v289 = vadd.f32 %v48, %v257
  %v290 = vadd.f32 %v49, %v260
  %v291 = vadd.f32 %v50, %v265
  %v292 = vadd.f32 %v51, %v268
  %v293 = vadd.f32 %v52, %v273
  %v294 = vadd.f32 %v53, %v276
  %295 = vst [vmem:[#allocation2] sm:$0xff] %v279
  %296 = vst [vmem:[#allocation2 + $0x8] sm:$0xff] %v280
  %297 = vst [vmem:[#allocation2 + $0x10] sm:$0xff] %v281
  %298 = vst [vmem:[#allocation2 + $0x18] sm:$0xff] %v282
  %299 = vst [vmem:[#allocation2 + $0x20] sm:$0xff] %v283
  %300 = vst [vmem:[#allocation2 + $0x28] sm:$0xff] %v284
  %301 = vst [vmem:[#allocation2 + $0x30] sm:$0xff] %v285
  %302 = vst [vmem:[#allocation2 + $0x38] sm:$0xff] %v286
  %303 = vst [vmem:[#allocation2 + $0x40] sm:$0xff] %v287
  %304 = vst [vmem:[#allocation2 + $0x48] sm:$0xff] %v288
  %305 = vst [vmem:[#allocation2 + $0x50] sm:$0xff] %v289
  %306 = vst [vmem:[#allocation2 + $0x58] sm:$0xff] %v290
  %307 = vst [vmem:[#allocation2 + $0x60] sm:$0xff] %v291
  %308 = vst [vmem:[#allocation2 + $0x68] sm:$0xff] %v292
  %309 = vst [vmem:[#allocation2 + $0x70] sm:$0xff] %v293
  %310 = vst [vmem:[#allocation2 + $0x78] sm:$0xff] %v294
  // Predicated region
  $region18: #{vae_conv_forward.26} parent=0 // pred_check
    %p311 = pneg %p18
  $region19: #{vae_conv_forward.26} parent=0 // pred_check_branch
    %313 = sbr.rel (%p311) target = $region21
  $region20: #{vae_conv_forward.26} parent=0 // pred_region
    %v314 = vld [vmem:[#allocation2] sm:$0xff]
    %v315 = vld [vmem:[#allocation2 + $0x8] sm:$0xff]
    %v316 = vld [vmem:[#allocation2 + $0x10] sm:$0xff]
    %v317 = vld [vmem:[#allocation2 + $0x18] sm:$0xff]
    %v318 = vld [vmem:[#allocation2 + $0x20] sm:$0xff]
    %v319 = vld [vmem:[#allocation2 + $0x28] sm:$0xff]
    %v320 = vld [vmem:[#allocation2 + $0x30] sm:$0xff]
    %v321 = vld [vmem:[#allocation2 + $0x38] sm:$0xff]
    %v322 = vld [vmem:[#allocation2 + $0x40] sm:$0xff]
    %v323 = vld [vmem:[#allocation2 + $0x48] sm:$0xff]
    %v324 = vld [vmem:[#allocation2 + $0x50] sm:$0xff]
    %v325 = vld [vmem:[#allocation2 + $0x58] sm:$0xff]
    %v326 = vld [vmem:[#allocation2 + $0x60] sm:$0xff]
    %v327 = vld [vmem:[#allocation2 + $0x68] sm:$0xff]
    %v328 = vld [vmem:[#allocation2 + $0x70] sm:$0xff]
    %v329 = vld [vmem:[#allocation2 + $0x78] sm:$0xff]
    %v330 = vld [vmem:[%s2] sm:$0x1]
    %v332 = vlaneseq
    %v333 = vshrl.u32 %v332, 7
    %v334 = vsub.s32 0, %v333
    %v335 = vrot.slane %v330, %v334
    %v337 = vadd.f32 %v314, %v335
    %v338 = vadd.f32 %v315, %v335
    %v339 = vadd.f32 %v316, %v335
    %v340 = vadd.f32 %v317, %v335
    %v341 = vadd.f32 %v318, %v335
    %v342 = vadd.f32 %v319, %v335
    %v343 = vadd.f32 %v320, %v335
    %v344 = vadd.f32 %v321, %v335
    %v345 = vadd.f32 %v322, %v335
    %v346 = vadd.f32 %v323, %v335
    %v347 = vadd.f32 %v324, %v335
    %v348 = vadd.f32 %v325, %v335
    %v349 = vadd.f32 %v326, %v335
    %v350 = vadd.f32 %v327, %v335
    %v351 = vadd.f32 %v328, %v335
    %v352 = vadd.f32 %v329, %v335
    %v353 = vpack.c.bf16 %v338, %v337
    %v354 = vpack.c.bf16 %v340, %v339
    %v355 = vpack.c.bf16 %v342, %v341
    %v356 = vpack.c.bf16 %v344, %v343
    %v357 = vpack.c.bf16 %v346, %v345
    %v358 = vpack.c.bf16 %v348, %v347
    %v359 = vpack.c.bf16 %v350, %v349
    %v360 = vpack.c.bf16 %v352, %v351
    %v369 = vunpack.c.l.b16 %v353
    %v370 = vunpack.c.h.b16 %v353
    %v371 = vunpack.c.l.b16 %v354
    %v372 = vunpack.c.h.b16 %v354
    %v373 = vunpack.c.l.b16 %v355
    %v374 = vunpack.c.h.b16 %v355
    %v375 = vunpack.c.l.b16 %v356
    %v376 = vunpack.c.h.b16 %v356
    %v377 = vunpack.c.l.b16 %v357
    %v378 = vunpack.c.h.b16 %v357
    %v379 = vunpack.c.l.b16 %v358
    %v380 = vunpack.c.h.b16 %v358
    %v381 = vunpack.c.l.b16 %v359
    %v382 = vunpack.c.h.b16 %v359
    %v383 = vunpack.c.l.b16 %v360
    %v384 = vunpack.c.h.b16 %v360
    %v385 = vpack.c.b16 %v369, %v369
    %v386 = vpack.c.b16 %v370, %v370
    %v387 = vpack.c.b16 %v371, %v371
    %v388 = vpack.c.b16 %v372, %v372
    %v389 = vpack.c.b16 %v373, %v373
    %v390 = vpack.c.b16 %v374, %v374
    %v391 = vpack.c.b16 %v375, %v375
    %v392 = vpack.c.b16 %v376, %v376
    %v393 = vpack.c.b16 %v377, %v377
    %v394 = vpack.c.b16 %v378, %v378
    %v395 = vpack.c.b16 %v379, %v379
    %v396 = vpack.c.b16 %v380, %v380
    %v397 = vpack.c.b16 %v381, %v381
    %v398 = vpack.c.b16 %v382, %v382
    %v399 = vpack.c.b16 %v383, %v383
    %v400 = vpack.c.b16 %v384, %v384
    %417 = vst [vmem:[%s3] sm:$0xf] %v385
    %418 = vst [vmem:[%s3 + $0x4] sm:$0xf] %v386
    %419 = vst [vmem:[%s3 + $0x8] sm:$0xf] %v387
    %420 = vst [vmem:[%s3 + $0xc] sm:$0xf] %v388
    %421 = vst [vmem:[%s3 + $0x10] sm:$0xf] %v389
    %422 = vst [vmem:[%s3 + $0x14] sm:$0xf] %v390
    %423 = vst [vmem:[%s3 + $0x18] sm:$0xf] %v391
    %424 = vst [vmem:[%s3 + $0x1c] sm:$0xf] %v392
    %425 = vst [vmem:[%s3 + $0x20] sm:$0xf] %v393
    %426 = vst [vmem:[%s3 + $0x24] sm:$0xf] %v394
    %427 = vst [vmem:[%s3 + $0x28] sm:$0xf] %v395
    %428 = vst [vmem:[%s3 + $0x2c] sm:$0xf] %v396
    %429 = vst [vmem:[%s3 + $0x30] sm:$0xf] %v397
    %430 = vst [vmem:[%s3 + $0x34] sm:$0xf] %v398
    %431 = vst [vmem:[%s3 + $0x38] sm:$0xf] %v399
    %432 = vst [vmem:[%s3 + $0x3c] sm:$0xf] %v400
    %v433 = vadd.f32 %v337, %v338
    %v434 = vadd.f32 %v433, %v339
    %v435 = vadd.f32 %v434, %v340
    %v436 = vadd.f32 %v435, %v341
    %v437 = vadd.f32 %v436, %v342
    %v438 = vadd.f32 %v437, %v343
    %v439 = vadd.f32 %v438, %v344
    %v440 = vadd.f32 %v439, %v345
    %v441 = vadd.f32 %v440, %v346
    %v442 = vadd.f32 %v441, %v347
    %v443 = vadd.f32 %v442, %v348
    %v444 = vadd.f32 %v443, %v349
    %v445 = vadd.f32 %v444, %v350
    %v446 = vadd.f32 %v445, %v351
    %v447 = vadd.f32 %v446, %v352
    %v448 = vrot.slane %v447, 4
    %v449 = vadd.f32 %v447, %v448
    %v450 = vrot.slane %v449, 2
    %v451 = vadd.f32 %v449, %v450
    %v452 = vrot.slane %v451, 1
    %v453 = vadd.f32 %v451, %v452
    %454 = vst [vmem:[%s4] sm:$0x1] %v453
    %v455 = vmul.f32 %v337, %v337
    %v456 = vmul.f32 %v338, %v338
    %v457 = vmul.f32 %v339, %v339
    %v458 = vmul.f32 %v340, %v340
    %v459 = vmul.f32 %v341, %v341
    %v460 = vmul.f32 %v342, %v342
    %v461 = vmul.f32 %v343, %v343
    %v462 = vmul.f32 %v344, %v344
    %v463 = vmul.f32 %v345, %v345
    %v464 = vmul.f32 %v346, %v346
    %v465 = vmul.f32 %v347, %v347
    %v466 = vmul.f32 %v348, %v348
    %v467 = vmul.f32 %v349, %v349
    %v468 = vmul.f32 %v350, %v350
    %v469 = vmul.f32 %v351, %v351
    %v470 = vmul.f32 %v352, %v352
    %v471 = vadd.f32 %v455, %v456
    %v472 = vadd.f32 %v471, %v457
    %v473 = vadd.f32 %v472, %v458
    %v474 = vadd.f32 %v473, %v459
    %v475 = vadd.f32 %v474, %v460
    %v476 = vadd.f32 %v475, %v461
    %v477 = vadd.f32 %v476, %v462
    %v478 = vadd.f32 %v477, %v463
    %v479 = vadd.f32 %v478, %v464
    %v480 = vadd.f32 %v479, %v465
    %v481 = vadd.f32 %v480, %v466
    %v482 = vadd.f32 %v481, %v467
    %v483 = vadd.f32 %v482, %v468
    %v484 = vadd.f32 %v483, %v469
    %v485 = vadd.f32 %v484, %v470
    %v486 = vrot.slane %v485, 4
    %v487 = vadd.f32 %v485, %v486
    %v488 = vrot.slane %v487, 2
    %v489 = vadd.f32 %v487, %v488
    %v490 = vrot.slane %v489, 1
    %v491 = vadd.f32 %v489, %v490
    %492 = vst [vmem:[%s5] sm:$0x1] %v491
  $region21: #{vae_conv_forward.26} parent=0 // pred_fallthru
    _
  // Predicated region
  $region22: #{vae_conv_forward.26} parent=0 // pred_check
    _
  $region23: #{vae_conv_forward.26} parent=0 // pred_check_branch
    %494 = sbr.rel (0) target = $region25
  $region24: #{vae_conv_forward.26} parent=0 // pred_region
    _
  $region25: #{vae_conv_forward.26} parent=0 // pred_fallthru
    _
  // Predicated region
  $region26: #{vae_conv_forward.26} parent=0 // pred_check
    _
  $region27: #{vae_conv_forward.26} parent=0 // pred_check_branch
    %496 = sbr.rel (0) target = $region29
  $region28: #{vae_conv_forward.26} parent=0 // pred_region
    _
  $region29: #{vae_conv_forward.26} parent=0 // pred_fallthru
    _
  // Predicated region
  $region30: #{vae_conv_forward.26} parent=0 // pred_check
    _
  $region31: #{vae_conv_forward.26} parent=0 // pred_check_branch
    %498 = sbr.rel (0) target = $region33
  $region32: #{vae_conv_forward.26} parent=0 // pred_region
    _
  $region33: #{vae_conv_forward.26} parent=0 // pred_fallthru
    _
  // Predicated region
  $region34: #{vae_conv_forward.26} parent=0 // pred_check
    _
  $region35: #{vae_conv_forward.26} parent=0 // pred_check_branch
    %500 = sbr.rel (0) target = $region37
  $region36: #{vae_conv_forward.26} parent=0 // pred_region
    _
  $region37: #{vae_conv_forward.26} parent=0 // pred_fallthru
    _
  // Predicated region
  $region38: #{vae_conv_forward.26} parent=0 // pred_check
    _
  $region39: #{vae_conv_forward.26} parent=0 // pred_check_branch
    %502 = sbr.rel (0) target = $region41
  $region40: #{vae_conv_forward.26} parent=0 // pred_region
    _
  $region41: #{vae_conv_forward.26} parent=0 // pred_fallthru
    _
  // Predicated region
  $region42: #{vae_conv_forward.26} parent=0 // pred_check
    _
  $region43: #{vae_conv_forward.26} parent=0 // pred_check_branch
    %504 = sbr.rel (0) target = $region45
  $region44: #{vae_conv_forward.26} parent=0 // pred_region
    _
  $region45: #{vae_conv_forward.26} parent=0 // pred_fallthru
    _

// kernel: vae_conv_forward.29
$region0: #{vae_conv_forward.29}
  #allocation0 [shape = 'u32[]', space=smem, size = 0x4, offset = 0x4, fixed_abs, tag = 'smem constant byte address 0x4 - core index']
  #allocation1 [shape = 'u32[144,128]{1,0:T(1,128)}', space=vmem, size = 0x12000, scoped, tag = 'internal scratch']
  %s0 = inlined_call_operand.vmem [shape: bf16[32,64], index: 0, kind: input, shape index: {}]
  %s1 = inlined_call_operand.vmem [shape: f32[1,64], index: 1, kind: input, shape index: {}]
  %s2 = inlined_call_operand.vmem [shape: f32[1,64], index: 2, kind: input, shape index: {}]
  %s3 = inlined_call_operand.vmem [shape: f32[1,64], index: 3, kind: input, shape index: {}]
  %s4 = inlined_call_operand.vmem [shape: f32[1,64], index: 4, kind: input, shape index: {}]
  %s5 = inlined_call_operand.vmem [shape: bf16[32,64], index: 5, kind: output, shape index: {}]
  %s6 = sld [smem:[#allocation0]]
  $region30: #{vae_conv_forward.29} parent=0
    _
  %s8 = ssub.s32 1, %s6
  %s9 = scalar_select 0, %s8, %s6
  // Predicated region
  $region2: #{vae_conv_forward.29} parent=0 // pred_check
    _
  $region3: #{vae_conv_forward.29} parent=0 // pred_check_branch
    %11 = sbr.rel (0) target = $region5
  $region4: #{vae_conv_forward.29} parent=0 // pred_region
    _
  $region5: #{vae_conv_forward.29} parent=0 // pred_fallthru
    _
  // Predicated region
  $region6: #{vae_conv_forward.29} parent=0 // pred_check
    _
  $region7: #{vae_conv_forward.29} parent=0 // pred_check_branch
    %13 = sbr.rel (0) target = $region9
  $region8: #{vae_conv_forward.29} parent=0 // pred_region
    _
  $region9: #{vae_conv_forward.29} parent=0 // pred_fallthru
    _
  // Predicated region
  $region10: #{vae_conv_forward.29} parent=0 // pred_check
    _
  $region11: #{vae_conv_forward.29} parent=0 // pred_check_branch
    %15 = sbr.rel (0) target = $region13
  $region12: #{vae_conv_forward.29} parent=0 // pred_region
    _
  $region13: #{vae_conv_forward.29} parent=0 // pred_fallthru
    _
  // Predicated region
  $region14: #{vae_conv_forward.29} parent=0 // pred_check
    _
  $region15: #{vae_conv_forward.29} parent=0 // pred_check_branch
    %17 = sbr.rel (0) target = $region17
  $region16: #{vae_conv_forward.29} parent=0 // pred_region
    _
  $region17: #{vae_conv_forward.29} parent=0 // pred_fallthru
    _
  // Predicated region
  $region18: #{vae_conv_forward.29} parent=0 // pred_check
    _
  $region19: #{vae_conv_forward.29} parent=0 // pred_check_branch
    %19 = sbr.rel (0) target = $region21
  $region20: #{vae_conv_forward.29} parent=0 // pred_region
    _
  $region21: #{vae_conv_forward.29} parent=0 // pred_fallthru
    _
  %v20 = vld [vmem:[%s1] sm:$0x1]
  %v21 = vmul.f32 %v20, 0.03125
  %v22 = vld [vmem:[%s2] sm:$0x1]
  %v23 = vmul.f32 %v22, 0.03125
  %v24 = vmul.f32 %v21, %v21
  %v25 = vsub.f32 %v23, %v24
  %v26 = vadd.f32 %v25, 1e-05
  %v27 = vrsqrt.pop %v26
  %v28 = vld [vmem:[%s3] sm:$0x1]
  %v29 = vmul.f32 %v27, %v28
  %v30 = vld [vmem:[%s0] sm:$0xf]
  %v31 = vld [vmem:[%s0 + $0x4] sm:$0xf]
  %v32 = vld [vmem:[%s0 + $0x8] sm:$0xf]
  %v33 = vld [vmem:[%s0 + $0xc] sm:$0xf]
  %v34 = vunpack.c.l.bf16 %v30
  %v35 = vunpack.c.l.bf16 %v31
  %v36 = vunpack.c.l.bf16 %v32
  %v37 = vunpack.c.l.bf16 %v33
  %v39 = vlaneseq
  %v40 = vshrl.u32 %v39, 7
  %v41 = vsub.s32 0, %v40
  %v42 = vrot.slane %v21, %v41
  %v44 = vsub.f32 %v34, %v42
  %v45 = vsub.f32 %v35, %v42
  %v46 = vsub.f32 %v36, %v42
  %v47 = vsub.f32 %v37, %v42
  %v49 = vlaneseq
  %v50 = vshrl.u32 %v49, 7
  %v51 = vsub.s32 0, %v50
  %v52 = vrot.slane %v29, %v51
  %v54 = vmul.f32 %v44, %v52
  %v55 = vmul.f32 %v45, %v52
  %v56 = vmul.f32 %v46, %v52
  %v57 = vmul.f32 %v47, %v52
  %v58 = vld [vmem:[%s4] sm:$0x1]
  %v60 = vlaneseq
  %v61 = vshrl.u32 %v60, 7
  %v62 = vsub.s32 0, %v61
  %v63 = vrot.slane %v58, %v62
  %v65 = vadd.f32 %v54, %v63
  %v66 = vadd.f32 %v55, %v63
  %v67 = vadd.f32 %v56, %v63
  %v68 = vadd.f32 %v57, %v63
  %vm69 = vcmp.gt.f32.partialorder %v65, 0.0
  %vm70 = vcmp.gt.f32.partialorder %v66, 0.0
  %vm71 = vcmp.gt.f32.partialorder %v67, 0.0
  %vm72 = vcmp.gt.f32.partialorder %v68, 0.0
  %v73 = vmul.f32 %v65, 0.2
  %v74 = vmul.f32 %v66, 0.2
  %v75 = vmul.f32 %v67, 0.2
  %v76 = vmul.f32 %v68, 0.2
  %v77 = vsel %vm69, %v65, %v73
  %v78 = vsel %vm70, %v66, %v74
  %v79 = vsel %vm71, %v67, %v75
  %v80 = vsel %vm72, %v68, %v76
  %v81 = vpack.c.bf16 %v78, %v77
  %v82 = vpack.c.bf16 %v80, %v79
  %v85 = vunpack.c.l.b16 %v81
  %v86 = vunpack.c.h.b16 %v81
  %v87 = vunpack.c.l.b16 %v82
  %v88 = vunpack.c.h.b16 %v82
  %v89 = vpack.c.b16 %v85, %v85
  %v90 = vpack.c.b16 %v86, %v86
  %v91 = vpack.c.b16 %v87, %v87
  %v92 = vpack.c.b16 %v88, %v88
  %vm97 = vcmask 519168
  %98 = vst.msk [vmem:[%s5] sm:$0xf] %vm97, %v89
  %99 = vst.msk [vmem:[%s5 + $0x4] sm:$0xf] %vm97, %v90
  %100 = vst.msk [vmem:[%s5 + $0x8] sm:$0xf] %vm97, %v91
  %101 = vst.msk [vmem:[%s5 + $0xc] sm:$0xf] %vm97, %v92
  // Predicated region
  $region22: #{vae_conv_forward.29} parent=0 // pred_check
    _
  $region23: #{vae_conv_forward.29} parent=0 // pred_check_branch
    %103 = sbr.rel (0) target = $region25
  $region24: #{vae_conv_forward.29} parent=0 // pred_region
    _
  $region25: #{vae_conv_forward.29} parent=0 // pred_fallthru
    _
  // Predicated region
  $region26: #{vae_conv_forward.29} parent=0 // pred_check
    _
  $region27: #{vae_conv_forward.29} parent=0 // pred_check_branch
    %105 = sbr.rel (0) target = $region29
  $region28: #{vae_conv_forward.29} parent=0 // pred_region
    _
  $region29: #{vae_conv_forward.29} parent=0 // pred_fallthru
    _

// kernel: vae_conv_forward.28
$region0: #{vae_conv_forward.28}
  #allocation0 [shape = 'u32[]', space=smem, size = 0x4, offset = 0x4, fixed_abs, tag = 'smem constant byte address 0x4 - core index']
  #allocation1 [shape = 'u32[144,128]{1,0:T(1,128)}', space=vmem, size = 0x12000, scoped, tag = 'internal scratch']
  #allocation2 [shape = 'f32[32,128]{1,0:T(8,128)}', space=vmem, size = 0x4000, scoped, tag = 'scratch operand']
  %s0 = inlined_call_operand.vmem [shape: bf16[32,512], index: 0, kind: input, shape index: {}]
  %s1 = inlined_call_operand.vmem [shape: bf16[512,128], index: 1, kind: input, shape index: {}]
  %s2 = inlined_call_operand.vmem [shape: f32[1,128], index: 2, kind: input, shape index: {}]
  %s3 = inlined_call_operand.vmem [shape: bf16[32,128], index: 3, kind: output, shape index: {0}]
  %s4 = inlined_call_operand.vmem [shape: f32[1,128], index: 4, kind: output, shape index: {1}]
  %s5 = inlined_call_operand.vmem [shape: f32[1,128], index: 5, kind: output, shape index: {2}]
  %6 = xla_tuple %s3, %s4, %s5
  %s7 = sld [smem:[#allocation0]]
  $region46: #{vae_conv_forward.28} parent=0
    _
  %s9 = ssub.s32 1, %s7
  %s10 = scalar_select 0, %s9, %s7
  // Predicated region
  $region2: #{vae_conv_forward.28} parent=0 // pred_check
    _
  $region3: #{vae_conv_forward.28} parent=0 // pred_check_branch
    %12 = sbr.rel (0) target = $region5
  $region4: #{vae_conv_forward.28} parent=0 // pred_region
    _
  $region5: #{vae_conv_forward.28} parent=0 // pred_fallthru
    _
  // Predicated region
  $region6: #{vae_conv_forward.28} parent=0 // pred_check
    _
  $region7: #{vae_conv_forward.28} parent=0 // pred_check_branch
    %14 = sbr.rel (0) target = $region9
  $region8: #{vae_conv_forward.28} parent=0 // pred_region
    _
  $region9: #{vae_conv_forward.28} parent=0 // pred_fallthru
    _
  // Predicated region
  $region10: #{vae_conv_forward.28} parent=0 // pred_check
    _
  $region11: #{vae_conv_forward.28} parent=0 // pred_check_branch
    %16 = sbr.rel (0) target = $region13
  $region12: #{vae_conv_forward.28} parent=0 // pred_region
    _
  $region13: #{vae_conv_forward.28} parent=0 // pred_fallthru
    _
  %p18 = scmp.eq.s32.totalorder 0, 0
  // Predicated region
  $region14: #{vae_conv_forward.28} parent=0 // pred_check
    %p19 = pneg %p18
  $region15: #{vae_conv_forward.28} parent=0 // pred_check_branch
    %21 = sbr.rel (%p19) target = $region17
  $region16: #{vae_conv_forward.28} parent=0 // pred_region
    %22 = vst [vmem:[#allocation2] sm:$0xff] 0.0
    %23 = vst [vmem:[#allocation2 + $0x8] sm:$0xff] 0.0
    %24 = vst [vmem:[#allocation2 + $0x10] sm:$0xff] 0.0
    %25 = vst [vmem:[#allocation2 + $0x18] sm:$0xff] 0.0
  $region17: #{vae_conv_forward.28} parent=0 // pred_fallthru
    _
  %v26 = vld [vmem:[#allocation2] sm:$0xff]
  %v27 = vld [vmem:[#allocation2 + $0x8] sm:$0xff]
  %v28 = vld [vmem:[#allocation2 + $0x10] sm:$0xff]
  %v29 = vld [vmem:[#allocation2 + $0x18] sm:$0xff]
  %v30 = vld [vmem:[%s0] sm:$0xff]
  %v31 = vld [vmem:[%s0 + $0x8] sm:$0xff]
  %v32 = vld [vmem:[%s0 + $0x10] sm:$0xff]
  %v33 = vld [vmem:[%s0 + $0x18] sm:$0xff]
  %v34 = vld [vmem:[%s0 + $0x20] sm:$0xff]
  %v35 = vld [vmem:[%s0 + $0x28] sm:$0xff]
  %v36 = vld [vmem:[%s0 + $0x30] sm:$0xff]
  %v37 = vld [vmem:[%s0 + $0x38] sm:$0xff]
  %v38 = vld [vmem:[%s1] sm:$0xf]
  %v39 = vld [vmem:[%s1 + $0x4] sm:$0xf]
  %v40 = vld [vmem:[%s1 + $0x8] sm:$0xf]
  %v41 = vld [vmem:[%s1 + $0xc] sm:$0xf]
  %v42 = vld [vmem:[%s1 + $0x10] sm:$0xf]
  %v43 = vld [vmem:[%s1 + $0x14] sm:$0xf]
  %v44 = vld [vmem:[%s1 + $0x18] sm:$0xf]
  %v45 = vld [vmem:[%s1 + $0x1c] sm:$0xf]
  %v46 = vld [vmem:[%s1 + $0x20] sm:$0xf]
  %v47 = vld [vmem:[%s1 + $0x24] sm:$0xf]
  %v48 = vld [vmem:[%s1 + $0x28] sm:$0xf]
  %v49 = vld [vmem:[%s1 + $0x2c] sm:$0xf]
  %v50 = vld [vmem:[%s1 + $0x30] sm:$0xf]
  %v51 = vld [vmem:[%s1 + $0x34] sm:$0xf]
  %v52 = vld [vmem:[%s1 + $0x38] sm:$0xf]
  %v53 = vld [vmem:[%s1 + $0x3c] sm:$0xf]
  %v54 = vld [vmem:[%s1 + $0x40] sm:$0xf]
  %v55 = vld [vmem:[%s1 + $0x44] sm:$0xf]
  %v56 = vld [vmem:[%s1 + $0x48] sm:$0xf]
  %v57 = vld [vmem:[%s1 + $0x4c] sm:$0xf]
  %v58 = vld [vmem:[%s1 + $0x50] sm:$0xf]
  %v59 = vld [vmem:[%s1 + $0x54] sm:$0xf]
  %v60 = vld [vmem:[%s1 + $0x58] sm:$0xf]
  %v61 = vld [vmem:[%s1 + $0x5c] sm:$0xf]
  %v62 = vld [vmem:[%s1 + $0x60] sm:$0xf]
  %v63 = vld [vmem:[%s1 + $0x64] sm:$0xf]
  %v64 = vld [vmem:[%s1 + $0x68] sm:$0xf]
  %v65 = vld [vmem:[%s1 + $0x6c] sm:$0xf]
  %v66 = vld [vmem:[%s1 + $0x70] sm:$0xf]
  %v67 = vld [vmem:[%s1 + $0x74] sm:$0xf]
  %v68 = vld [vmem:[%s1 + $0x78] sm:$0xf]
  %v69 = vld [vmem:[%s1 + $0x7c] sm:$0xf]
  %v70 = vld [vmem:[%s1 + $0x80] sm:$0xf]
  %v71 = vld [vmem:[%s1 + $0x84] sm:$0xf]
  %v72 = vld [vmem:[%s1 + $0x88] sm:$0xf]
  %v73 = vld [vmem:[%s1 + $0x8c] sm:$0xf]
  %v74 = vld [vmem:[%s1 + $0x90] sm:$0xf]
  %v75 = vld [vmem:[%s1 + $0x94] sm:$0xf]
  %v76 = vld [vmem:[%s1 + $0x98] sm:$0xf]
  %v77 = vld [vmem:[%s1 + $0x9c] sm:$0xf]
  %v78 = vld [vmem:[%s1 + $0xa0] sm:$0xf]
  %v79 = vld [vmem:[%s1 + $0xa4] sm:$0xf]
  %v80 = vld [vmem:[%s1 + $0xa8] sm:$0xf]
  %v81 = vld [vmem:[%s1 + $0xac] sm:$0xf]
  %v82 = vld [vmem:[%s1 + $0xb0] sm:$0xf]
  %v83 = vld [vmem:[%s1 + $0xb4] sm:$0xf]
  %v84 = vld [vmem:[%s1 + $0xb8] sm:$0xf]
  %v85 = vld [vmem:[%s1 + $0xbc] sm:$0xf]
  %v86 = vld [vmem:[%s1 + $0xc0] sm:$0xf]
  %v87 = vld [vmem:[%s1 + $0xc4] sm:$0xf]
  %v88 = vld [vmem:[%s1 + $0xc8] sm:$0xf]
  %v89 = vld [vmem:[%s1 + $0xcc] sm:$0xf]
  %v90 = vld [vmem:[%s1 + $0xd0] sm:$0xf]
  %v91 = vld [vmem:[%s1 + $0xd4] sm:$0xf]
  %v92 = vld [vmem:[%s1 + $0xd8] sm:$0xf]
  %v93 = vld [vmem:[%s1 + $0xdc] sm:$0xf]
  %v94 = vld [vmem:[%s1 + $0xe0] sm:$0xf]
  %v95 = vld [vmem:[%s1 + $0xe4] sm:$0xf]
  %v96 = vld [vmem:[%s1 + $0xe8] sm:$0xf]
  %v97 = vld [vmem:[%s1 + $0xec] sm:$0xf]
  %v98 = vld [vmem:[%s1 + $0xf0] sm:$0xf]
  %v99 = vld [vmem:[%s1 + $0xf4] sm:$0xf]
  %v100 = vld [vmem:[%s1 + $0xf8] sm:$0xf]
  %v101 = vld [vmem:[%s1 + $0xfc] sm:$0xf]
  %v110 = vunpack.c.l.b16 %v30
  %v111 = vunpack.c.h.b16 %v30
  %v112 = vunpack.c.l.b16 %v31
  %v113 = vunpack.c.h.b16 %v31
  %v114 = vunpack.c.l.b16 %v32
  %v115 = vunpack.c.h.b16 %v32
  %v116 = vunpack.c.l.b16 %v33
  %v117 = vunpack.c.h.b16 %v33
  %v118 = vunpack.c.l.b16 %v34
  %v119 = vunpack.c.h.b16 %v34
  %v120 = vunpack.c.l.b16 %v35
  %v121 = vunpack.c.h.b16 %v35
  %v122 = vunpack.c.l.b16 %v36
  %v123 = vunpack.c.h.b16 %v36
  %v124 = vunpack.c.l.b16 %v37
  %v125 = vunpack.c.h.b16 %v37
  %v126 = vpack.c.b16 %v114, %v110
  %v127 = vpack.c.b16 %v115, %v111
  %v128 = vpack.c.b16 %v116, %v112
  %v129 = vpack.c.b16 %v117, %v113
  %v130 = vpack.c.b16 %v122, %v118
  %v131 = vpack.c.b16 %v123, %v119
  %v132 = vpack.c.b16 %v124, %v120
  %v133 = vpack.c.b16 %v125, %v121
  %v206 = vunpack.c.l.b16 %v38
  %v207 = vunpack.c.l.b16 %v39
  %v208 = vunpack.c.l.b16 %v40
  %v209 = vunpack.c.l.b16 %v41
  %v210 = vunpack.c.l.b16 %v42
  %v211 = vunpack.c.l.b16 %v43
  %v212 = vunpack.c.l.b16 %v44
  %v213 = vunpack.c.l.b16 %v45
  %v214 = vunpack.c.l.b16 %v46
  %v215 = vunpack.c.l.b16 %v47
  %v216 = vunpack.c.l.b16 %v48
  %v217 = vunpack.c.l.b16 %v49
  %v218 = vunpack.c.l.b16 %v50
  %v219 = vunpack.c.l.b16 %v51
  %v220 = vunpack.c.l.b16 %v52
  %v221 = vunpack.c.l.b16 %v53
  %v222 = vunpack.c.l.b16 %v54
  %v223 = vunpack.c.l.b16 %v55
  %v224 = vunpack.c.l.b16 %v56
  %v225 = vunpack.c.l.b16 %v57
  %v226 = vunpack.c.l.b16 %v58
  %v227 = vunpack.c.l.b16 %v59
  %v228 = vunpack.c.l.b16 %v60
  %v229 = vunpack.c.l.b16 %v61
  %v230 = vunpack.c.l.b16 %v62
  %v231 = vunpack.c.l.b16 %v63
  %v232 = vunpack.c.l.b16 %v64
  %v233 = vunpack.c.l.b16 %v65
  %v234 = vunpack.c.l.b16 %v66
  %v235 = vunpack.c.l.b16 %v67
  %v236 = vunpack.c.l.b16 %v68
  %v237 = vunpack.c.l.b16 %v69
  %v238 = vunpack.c.l.b16 %v70
  %v239 = vunpack.c.l.b16 %v71
  %v240 = vunpack.c.l.b16 %v72
  %v241 = vunpack.c.l.b16 %v73
  %v242 = vunpack.c.l.b16 %v74
  %v243 = vunpack.c.l.b16 %v75
  %v244 = vunpack.c.l.b16 %v76
  %v245 = vunpack.c.l.b16 %v77
  %v246 = vunpack.c.l.b16 %v78
  %v247 = vunpack.c.l.b16 %v79
  %v248 = vunpack.c.l.b16 %v80
  %v249 = vunpack.c.l.b16 %v81
  %v250 = vunpack.c.l.b16 %v82
  %v251 = vunpack.c.l.b16 %v83
  %v252 = vunpack.c.l.b16 %v84
  %v253 = vunpack.c.l.b16 %v85
  %v254 = vunpack.c.l.b16 %v86
  %v255 = vunpack.c.l.b16 %v87
  %v256 = vunpack.c.l.b16 %v88
  %v257 = vunpack.c.l.b16 %v89
  %v258 = vunpack.c.l.b16 %v90
  %v259 = vunpack.c.l.b16 %v91
  %v260 = vunpack.c.l.b16 %v92
  %v261 = vunpack.c.l.b16 %v93
  %v262 = vunpack.c.l.b16 %v94
  %v263 = vunpack.c.l.b16 %v95
  %v264 = vunpack.c.l.b16 %v96
  %v265 = vunpack.c.l.b16 %v97
  %v266 = vunpack.c.l.b16 %v98
  %v267 = vunpack.c.l.b16 %v99
  %v268 = vunpack.c.l.b16 %v100
  %v269 = vunpack.c.l.b16 %v101
  %v270 = vpack.c.b16 %v207, %v206
  %v271 = vpack.c.b16 %v209, %v208
  %v272 = vpack.c.b16 %v211, %v210
  %v273 = vpack.c.b16 %v213, %v212
  %v274 = vpack.c.b16 %v215, %v214
  %v275 = vpack.c.b16 %v217, %v216
  %v276 = vpack.c.b16 %v219, %v218
  %v277 = vpack.c.b16 %v221, %v220
  %v278 = vpack.c.b16 %v223, %v222
  %v279 = vpack.c.b16 %v225, %v224
  %v280 = vpack.c.b16 %v227, %v226
  %v281 = vpack.c.b16 %v229, %v228
  %v282 = vpack.c.b16 %v231, %v230
  %v283 = vpack.c.b16 %v233, %v232
  %v284 = vpack.c.b16 %v235, %v234
  %v285 = vpack.c.b16 %v237, %v236
  %v286 = vpack.c.b16 %v239, %v238
  %v287 = vpack.c.b16 %v241, %v240
  %v288 = vpack.c.b16 %v243, %v242
  %v289 = vpack.c.b16 %v245, %v244
  %v290 = vpack.c.b16 %v247, %v246
  %v291 = vpack.c.b16 %v249, %v248
  %v292 = vpack.c.b16 %v251, %v250
  %v293 = vpack.c.b16 %v253, %v252
  %v294 = vpack.c.b16 %v255, %v254
  %v295 = vpack.c.b16 %v257, %v256
  %v296 = vpack.c.b16 %v259, %v258
  %v297 = vpack.c.b16 %v261, %v260
  %v298 = vpack.c.b16 %v263, %v262
  %v299 = vpack.c.b16 %v265, %v264
  %v300 = vpack.c.b16 %v267, %v266
  %v301 = vpack.c.b16 %v269, %v268
  %334 = vmatprep.subr.bf16.mxu0 0
  %335 = vmatpush1.bf16.msra.mxu0 %v270
  %336 = vmatprep.subr.bf16.mxu0 0
  %337 = vmatpush1.bf16.msra.mxu0 %v271
  %338 = vmatprep.subr.bf16.mxu0 0
  %339 = vmatpush1.bf16.msra.mxu0 %v272
  %340 = vmatprep.subr.bf16.mxu0 0
  %341 = vmatpush1.bf16.msra.mxu0 %v273
  %342 = vmatprep.subr.bf16.mxu0 0
  %343 = vmatpush1.bf16.msra.mxu0 %v274
  %344 = vmatprep.subr.bf16.mxu0 0
  %345 = vmatpush1.bf16.msra.mxu0 %v275
  %346 = vmatprep.subr.bf16.mxu0 0
  %347 = vmatpush1.bf16.msra.mxu0 %v276
  %348 = vmatprep.subr.bf16.mxu0 0
  %349 = vmatpush1.bf16.msra.mxu0 %v277
  %350 = vmatprep.subr.bf16.mxu0 0
  %351 = vmatpush1.bf16.msra.mxu0 %v278
  %352 = vmatprep.subr.bf16.mxu0 0
  %353 = vmatpush1.bf16.msra.mxu0 %v279
  %354 = vmatprep.subr.bf16.mxu0 0
  %355 = vmatpush1.bf16.msra.mxu0 %v280
  %356 = vmatprep.subr.bf16.mxu0 0
  %357 = vmatpush1.bf16.msra.mxu0 %v281
  %358 = vmatprep.subr.bf16.mxu0 0
  %359 = vmatpush1.bf16.msra.mxu0 %v282
  %360 = vmatprep.subr.bf16.mxu0 0
  %361 = vmatpush1.bf16.msra.mxu0 %v283
  %362 = vmatprep.subr.bf16.mxu0 0
  %363 = vmatpush1.bf16.msra.mxu0 %v284
  %364 = vmatprep.subr.bf16.mxu0 0
  %365 = vmatpush1.bf16.msra.mxu0 %v285
  %366 = vmatprep.mubr.bf16.mxu0 %v127
  %367 = vmatmul.mubr.bf16.gmra.mrb[0].mxu0 %v126
  %v368 = vpop.f32.mrb[0].mxu0
  %v369 = vadd.f32 0.0, %v368
  %v370 = vpop.f32.mrb[0].mxu0
  %v371 = vpop.f32.mrb[0].mxu0
  %v372 = vadd.f32 0.0, %v371
  %v373 = vpop.f32.mrb[0].mxu0
  %374 = vmatprep.mubr.bf16.mxu0 %v131
  %375 = vmatmul.mubr.bf16.gmra.mrb[0].mxu0 %v130
  %v376 = vpop.f32.mrb[0].mxu0
  %v377 = vadd.f32 0.0, %v376
  %v378 = vpop.f32.mrb[0].mxu0
  %v379 = vpop.f32.mrb[0].mxu0
  %v380 = vadd.f32 0.0, %v379
  %v381 = vpop.f32.mrb[0].mxu0
  %382 = vdwg.mxu0
  %383 = vmatprep.subr.bf16.mxu0 0
  %384 = vmatpush1.bf16.msra.mxu0 %v286
  %385 = vmatprep.subr.bf16.mxu0 0
  %386 = vmatpush1.bf16.msra.mxu0 %v287
  %387 = vmatprep.subr.bf16.mxu0 0
  %388 = vmatpush1.bf16.msra.mxu0 %v288
  %389 = vmatprep.subr.bf16.mxu0 0
  %390 = vmatpush1.bf16.msra.mxu0 %v289
  %391 = vmatprep.subr.bf16.mxu0 0
  %392 = vmatpush1.bf16.msra.mxu0 %v290
  %393 = vmatprep.subr.bf16.mxu0 0
  %394 = vmatpush1.bf16.msra.mxu0 %v291
  %395 = vmatprep.subr.bf16.mxu0 0
  %396 = vmatpush1.bf16.msra.mxu0 %v292
  %397 = vmatprep.subr.bf16.mxu0 0
  %398 = vmatpush1.bf16.msra.mxu0 %v293
  %399 = vmatprep.subr.bf16.mxu0 0
  %400 = vmatpush1.bf16.msra.mxu0 %v294
  %401 = vmatprep.subr.bf16.mxu0 0
  %402 = vmatpush1.bf16.msra.mxu0 %v295
  %403 = vmatprep.subr.bf16.mxu0 0
  %404 = vmatpush1.bf16.msra.mxu0 %v296
  %405 = vmatprep.subr.bf16.mxu0 0
  %406 = vmatpush1.bf16.msra.mxu0 %v297
  %407 = vmatprep.subr.bf16.mxu0 0
  %408 = vmatpush1.bf16.msra.mxu0 %v298
  %409 = vmatprep.subr.bf16.mxu0 0
  %410 = vmatpush1.bf16.msra.mxu0 %v299
  %411 = vmatprep.subr.bf16.mxu0 0
  %412 = vmatpush1.bf16.msra.mxu0 %v300
  %413 = vmatprep.subr.bf16.mxu0 0
  %414 = vmatpush1.bf16.msra.mxu0 %v301
  %415 = vmatprep.mubr.bf16.mxu0 %v129
  %416 = vmatmul.mubr.bf16.gmra.mrb[0].mxu0 %v128
  %v417 = vpop.f32.mrb[0].mxu0
  %v418 = vadd.f32 %v369, %v417
  %v419 = vpop.f32.mrb[0].mxu0
  %v420 = vpop.f32.mrb[0].mxu0
  %v421 = vadd.f32 %v372, %v420
  %v422 = vpop.f32.mrb[0].mxu0
  %423 = vmatprep.mubr.bf16.mxu0 %v133
  %424 = vmatmul.mubr.bf16.gmra.mrb[0].mxu0 %v132
  %v425 = vpop.f32.mrb[0].mxu0
  %v426 = vadd.f32 %v377, %v425
  %v427 = vpop.f32.mrb[0].mxu0
  %v428 = vpop.f32.mrb[0].mxu0
  %v429 = vadd.f32 %v380, %v428
  %v430 = vpop.f32.mrb[0].mxu0
  %431 = vdwg.mxu0
  %v432 = vadd.f32 %v26, %v418
  %v433 = vadd.f32 %v27, %v421
  %v434 = vadd.f32 %v28, %v426
  %v435 = vadd.f32 %v29, %v429
  %436 = vst [vmem:[#allocation2] sm:$0xff] %v432
  %437 = vst [vmem:[#allocation2 + $0x8] sm:$0xff] %v433
  %438 = vst [vmem:[#allocation2 + $0x10] sm:$0xff] %v434
  %439 = vst [vmem:[#allocation2 + $0x18] sm:$0xff] %v435
  // Predicated region
  $region18: #{vae_conv_forward.28} parent=0 // pred_check
    %p440 = pneg %p18
  $region19: #{vae_conv_forward.28} parent=0 // pred_check_branch
    %442 = sbr.rel (%p440) target = $region21
  $region20: #{vae_conv_forward.28} parent=0 // pred_region
    %v443 = vld [vmem:[#allocation2] sm:$0xff]
    %v444 = vld [vmem:[#allocation2 + $0x8] sm:$0xff]
    %v445 = vld [vmem:[#allocation2 + $0x10] sm:$0xff]
    %v446 = vld [vmem:[#allocation2 + $0x18] sm:$0xff]
    %v447 = vld [vmem:[%s2] sm:$0x1]
    %v449 = vlaneseq
    %v450 = vshrl.u32 %v449, 7
    %v451 = vsub.s32 0, %v450
    %v452 = vrot.slane %v447, %v451
    %v454 = vadd.f32 %v443, %v452
    %v455 = vadd.f32 %v444, %v452
    %v456 = vadd.f32 %v445, %v452
    %v457 = vadd.f32 %v446, %v452
    %v458 = vpack.c.bf16 %v455, %v454
    %v459 = vpack.c.bf16 %v457, %v456
    %v462 = vunpack.c.l.b16 %v458
    %v463 = vunpack.c.h.b16 %v458
    %v464 = vunpack.c.l.b16 %v459
    %v465 = vunpack.c.h.b16 %v459
    %v466 = vpack.c.b16 %v462, %v462
    %v467 = vpack.c.b16 %v463, %v463
    %v468 = vpack.c.b16 %v464, %v464
    %v469 = vpack.c.b16 %v465, %v465
    %474 = vst [vmem:[%s3] sm:$0xf] %v466
    %475 = vst [vmem:[%s3 + $0x4] sm:$0xf] %v467
    %476 = vst [vmem:[%s3 + $0x8] sm:$0xf] %v468
    %477 = vst [vmem:[%s3 + $0xc] sm:$0xf] %v469
    %v478 = vadd.f32 %v454, %v455
    %v479 = vadd.f32 %v478, %v456
    %v480 = vadd.f32 %v479, %v457
    %v481 = vrot.slane %v480, 4
    %v482 = vadd.f32 %v480, %v481
    %v483 = vrot.slane %v482, 2
    %v484 = vadd.f32 %v482, %v483
    %v485 = vrot.slane %v484, 1
    %v486 = vadd.f32 %v484, %v485
    %487 = vst [vmem:[%s4] sm:$0x1] %v486
    %v488 = vmul.f32 %v454, %v454
    %v489 = vmul.f32 %v455, %v455
    %v490 = vmul.f32 %v456, %v456
    %v491 = vmul.f32 %v457, %v457
    %v492 = vadd.f32 %v488, %v489
    %v493 = vadd.f32 %v492, %v490
    %v494 = vadd.f32 %v493, %v491
    %v495 = vrot.slane %v494, 4
    %v496 = vadd.f32 %v494, %v495
    %v497 = vrot.slane %v496, 2
    %v498 = vadd.f32 %v496, %v497
    %v499 = vrot.slane %v498, 1
    %v500 = vadd.f32 %v498, %v499
    %501 = vst [vmem:[%s5] sm:$0x1] %v500
  $region21: #{vae_conv_forward.28} parent=0 // pred_fallthru
    _
  // Predicated region
  $region22: #{vae_conv_forward.28} parent=0 // pred_check
    _
  $region23: #{vae_conv_forward.28} parent=0 // pred_check_branch
    %503 = sbr.rel (0) target = $region25
  $region24: #{vae_conv_forward.28} parent=0 // pred_region
    _
  $region25: #{vae_conv_forward.28} parent=0 // pred_fallthru
    _
  // Predicated region
  $region26: #{vae_conv_forward.28} parent=0 // pred_check
    _
  $region27: #{vae_conv_forward.28} parent=0 // pred_check_branch
    %505 = sbr.rel (0) target = $region29
  $region28: #{vae_conv_forward.28} parent=0 // pred_region
    _
  $region29: #{vae_conv_forward.28} parent=0 // pred_fallthru
    _
  // Predicated region
  $region30: #{vae_conv_forward.28} parent=0 // pred_check
    _
  $region31: #{vae_conv_forward.28} parent=0 // pred_check_branch
    %507 = sbr.rel (0) target = $region33
  $region32: #{vae_conv_forward.28} parent=0 // pred_region
    _
  $region33: #{vae_conv_forward.28} parent=0 // pred_fallthru
    _
  // Predicated region
  $region34: #{vae_conv_forward.28} parent=0 // pred_check
    _
  $region35: #{vae_conv_forward.28} parent=0 // pred_check_branch
    %509 = sbr.rel (0) target = $region37
  $region36: #{vae_conv_forward.28} parent=0 // pred_region
    _
  $region37: #{vae_conv_forward.28} parent=0 // pred_fallthru
    _
  // Predicated region
  $region38: #{vae_conv_forward.28} parent=0 // pred_check
    _
  $region39: #{vae_conv_forward.28} parent=0 // pred_check_branch
    %511 = sbr.rel (0) target = $region41
  $region40: #{vae_conv_forward.28} parent=0 // pred_region
    _
  $region41: #{vae_conv_forward.28} parent=0 // pred_fallthru
    _
  // Predicated region
  $region42: #{vae_conv_forward.28} parent=0 // pred_check
    _
  $region43: #{vae_conv_forward.28} parent=0 // pred_check_branch
    %513 = sbr.rel (0) target = $region45
  $region44: #{vae_conv_forward.28} parent=0 // pred_region
    _
  $region45: #{vae_conv_forward.28} parent=0 // pred_fallthru
    _

// kernel: vae_conv_forward.31
$region0: #{vae_conv_forward.31}
  #allocation0 [shape = 'u32[]', space=smem, size = 0x4, offset = 0x4, fixed_abs, tag = 'smem constant byte address 0x4 - core index']
  #allocation1 [shape = 'u32[144,128]{1,0:T(1,128)}', space=vmem, size = 0x12000, scoped, tag = 'internal scratch']
  %s0 = inlined_call_operand.vmem [shape: bf16[8,128], index: 0, kind: input, shape index: {}]
  %s1 = inlined_call_operand.vmem [shape: f32[1,128], index: 1, kind: input, shape index: {}]
  %s2 = inlined_call_operand.vmem [shape: f32[1,128], index: 2, kind: input, shape index: {}]
  %s3 = inlined_call_operand.vmem [shape: f32[1,128], index: 3, kind: input, shape index: {}]
  %s4 = inlined_call_operand.vmem [shape: f32[1,128], index: 4, kind: input, shape index: {}]
  %s5 = inlined_call_operand.vmem [shape: bf16[8,128], index: 5, kind: output, shape index: {}]
  %s6 = sld [smem:[#allocation0]]
  $region30: #{vae_conv_forward.31} parent=0
    _
  %s8 = ssub.s32 1, %s6
  %s9 = scalar_select 0, %s8, %s6
  // Predicated region
  $region2: #{vae_conv_forward.31} parent=0 // pred_check
    _
  $region3: #{vae_conv_forward.31} parent=0 // pred_check_branch
    %11 = sbr.rel (0) target = $region5
  $region4: #{vae_conv_forward.31} parent=0 // pred_region
    _
  $region5: #{vae_conv_forward.31} parent=0 // pred_fallthru
    _
  // Predicated region
  $region6: #{vae_conv_forward.31} parent=0 // pred_check
    _
  $region7: #{vae_conv_forward.31} parent=0 // pred_check_branch
    %13 = sbr.rel (0) target = $region9
  $region8: #{vae_conv_forward.31} parent=0 // pred_region
    _
  $region9: #{vae_conv_forward.31} parent=0 // pred_fallthru
    _
  // Predicated region
  $region10: #{vae_conv_forward.31} parent=0 // pred_check
    _
  $region11: #{vae_conv_forward.31} parent=0 // pred_check_branch
    %15 = sbr.rel (0) target = $region13
  $region12: #{vae_conv_forward.31} parent=0 // pred_region
    _
  $region13: #{vae_conv_forward.31} parent=0 // pred_fallthru
    _
  // Predicated region
  $region14: #{vae_conv_forward.31} parent=0 // pred_check
    _
  $region15: #{vae_conv_forward.31} parent=0 // pred_check_branch
    %17 = sbr.rel (0) target = $region17
  $region16: #{vae_conv_forward.31} parent=0 // pred_region
    _
  $region17: #{vae_conv_forward.31} parent=0 // pred_fallthru
    _
  // Predicated region
  $region18: #{vae_conv_forward.31} parent=0 // pred_check
    _
  $region19: #{vae_conv_forward.31} parent=0 // pred_check_branch
    %19 = sbr.rel (0) target = $region21
  $region20: #{vae_conv_forward.31} parent=0 // pred_region
    _
  $region21: #{vae_conv_forward.31} parent=0 // pred_fallthru
    _
  %v20 = vld [vmem:[%s1] sm:$0x1]
  %v21 = vmul.f32 %v20, 0.125
  %v22 = vld [vmem:[%s2] sm:$0x1]
  %v23 = vmul.f32 %v22, 0.125
  %v24 = vmul.f32 %v21, %v21
  %v25 = vsub.f32 %v23, %v24
  %v26 = vadd.f32 %v25, 1e-05
  %v27 = vrsqrt.pop %v26
  %v28 = vld [vmem:[%s3] sm:$0x1]
  %v29 = vmul.f32 %v27, %v28
  %v30 = vld [vmem:[%s0] sm:$0xf]
  %v31 = vunpack.c.l.bf16 %v30
  %v33 = vlaneseq
  %v34 = vshrl.u32 %v33, 7
  %v35 = vsub.s32 0, %v34
  %v36 = vrot.slane %v21, %v35
  %v38 = vsub.f32 %v31, %v36
  %v40 = vlaneseq
  %v41 = vshrl.u32 %v40, 7
  %v42 = vsub.s32 0, %v41
  %v43 = vrot.slane %v29, %v42
  %v45 = vmul.f32 %v38, %v43
  %v46 = vld [vmem:[%s4] sm:$0x1]
  %v48 = vlaneseq
  %v49 = vshrl.u32 %v48, 7
  %v50 = vsub.s32 0, %v49
  %v51 = vrot.slane %v46, %v50
  %v53 = vadd.f32 %v45, %v51
  %vm54 = vcmp.gt.f32.partialorder %v53, 0.0
  %v55 = vmul.f32 %v53, 0.2
  %v56 = vsel %vm54, %v53, %v55
  %v57 = vpack.c.bf16 %v56, %v56
  %58 = vst [vmem:[%s5] sm:$0xf] %v57
  // Predicated region
  $region22: #{vae_conv_forward.31} parent=0 // pred_check
    _
  $region23: #{vae_conv_forward.31} parent=0 // pred_check_branch
    %60 = sbr.rel (0) target = $region25
  $region24: #{vae_conv_forward.31} parent=0 // pred_region
    _
  $region25: #{vae_conv_forward.31} parent=0 // pred_fallthru
    _
  // Predicated region
  $region26: #{vae_conv_forward.31} parent=0 // pred_check
    _
  $region27: #{vae_conv_forward.31} parent=0 // pred_check_branch
    %62 = sbr.rel (0) target = $region29
  $region28: #{vae_conv_forward.31} parent=0 // pred_region
    _
  $region29: #{vae_conv_forward.31} parent=0 // pred_fallthru
    _

// kernel: vae_conv_forward.33
$region0: #{vae_conv_forward.33}
  #allocation0 [shape = 'u32[]', space=smem, size = 0x4, offset = 0x4, fixed_abs, tag = 'smem constant byte address 0x4 - core index']
  #allocation1 [shape = 'u32[144,128]{1,0:T(1,128)}', space=vmem, size = 0x12000, scoped, tag = 'internal scratch']
  %s0 = inlined_call_operand.vmem [shape: bf16[8,32], index: 0, kind: input, shape index: {}]
  %s1 = inlined_call_operand.vmem [shape: f32[1,32], index: 1, kind: input, shape index: {}]
  %s2 = inlined_call_operand.vmem [shape: f32[1,32], index: 2, kind: input, shape index: {}]
  %s3 = inlined_call_operand.vmem [shape: f32[1,32], index: 3, kind: input, shape index: {}]
  %s4 = inlined_call_operand.vmem [shape: f32[1,32], index: 4, kind: input, shape index: {}]
  %s5 = inlined_call_operand.vmem [shape: bf16[8,32], index: 5, kind: output, shape index: {}]
  %s6 = sld [smem:[#allocation0]]
  $region30: #{vae_conv_forward.33} parent=0
    _
  %s8 = ssub.s32 1, %s6
  %s9 = scalar_select 0, %s8, %s6
  // Predicated region
  $region2: #{vae_conv_forward.33} parent=0 // pred_check
    _
  $region3: #{vae_conv_forward.33} parent=0 // pred_check_branch
    %11 = sbr.rel (0) target = $region5
  $region4: #{vae_conv_forward.33} parent=0 // pred_region
    _
  $region5: #{vae_conv_forward.33} parent=0 // pred_fallthru
    _
  // Predicated region
  $region6: #{vae_conv_forward.33} parent=0 // pred_check
    _
  $region7: #{vae_conv_forward.33} parent=0 // pred_check_branch
    %13 = sbr.rel (0) target = $region9
  $region8: #{vae_conv_forward.33} parent=0 // pred_region
    _
  $region9: #{vae_conv_forward.33} parent=0 // pred_fallthru
    _
  // Predicated region
  $region10: #{vae_conv_forward.33} parent=0 // pred_check
    _
  $region11: #{vae_conv_forward.33} parent=0 // pred_check_branch
    %15 = sbr.rel (0) target = $region13
  $region12: #{vae_conv_forward.33} parent=0 // pred_region
    _
  $region13: #{vae_conv_forward.33} parent=0 // pred_fallthru
    _
  // Predicated region
  $region14: #{vae_conv_forward.33} parent=0 // pred_check
    _
  $region15: #{vae_conv_forward.33} parent=0 // pred_check_branch
    %17 = sbr.rel (0) target = $region17
  $region16: #{vae_conv_forward.33} parent=0 // pred_region
    _
  $region17: #{vae_conv_forward.33} parent=0 // pred_fallthru
    _
  // Predicated region
  $region18: #{vae_conv_forward.33} parent=0 // pred_check
    _
  $region19: #{vae_conv_forward.33} parent=0 // pred_check_branch
    %19 = sbr.rel (0) target = $region21
  $region20: #{vae_conv_forward.33} parent=0 // pred_region
    _
  $region21: #{vae_conv_forward.33} parent=0 // pred_fallthru
    _
  %v20 = vld [vmem:[%s1] sm:$0x1]
  %v21 = vmul.f32 %v20, 0.125
  %v22 = vld [vmem:[%s2] sm:$0x1]
  %v23 = vmul.f32 %v22, 0.125
  %v24 = vmul.f32 %v21, %v21
  %v25 = vsub.f32 %v23, %v24
  %v26 = vadd.f32 %v25, 1e-05
  %v27 = vrsqrt.pop %v26
  %v28 = vld [vmem:[%s3] sm:$0x1]
  %v29 = vmul.f32 %v27, %v28
  %v30 = vld [vmem:[%s0] sm:$0xf]
  %v31 = vunpack.c.l.bf16 %v30
  %v33 = vlaneseq
  %v34 = vshrl.u32 %v33, 7
  %v35 = vsub.s32 0, %v34
  %v36 = vrot.slane %v21, %v35
  %v38 = vsub.f32 %v31, %v36
  %v40 = vlaneseq
  %v41 = vshrl.u32 %v40, 7
  %v42 = vsub.s32 0, %v41
  %v43 = vrot.slane %v29, %v42
  %v45 = vmul.f32 %v38, %v43
  %v46 = vld [vmem:[%s4] sm:$0x1]
  %v48 = vlaneseq
  %v49 = vshrl.u32 %v48, 7
  %v50 = vsub.s32 0, %v49
  %v51 = vrot.slane %v46, %v50
  %v53 = vadd.f32 %v45, %v51
  %v54 = vmax.f32 %v53, 0.0
  %v55 = vpack.c.bf16 %v54, %v54
  %vm56 = vcmask 257024
  %57 = vst.msk [vmem:[%s5] sm:$0xf] %vm56, %v55
  // Predicated region
  $region22: #{vae_conv_forward.33} parent=0 // pred_check
    _
  $region23: #{vae_conv_forward.33} parent=0 // pred_check_branch
    %59 = sbr.rel (0) target = $region25
  $region24: #{vae_conv_forward.33} parent=0 // pred_region
    _
  $region25: #{vae_conv_forward.33} parent=0 // pred_fallthru
    _
  // Predicated region
  $region26: #{vae_conv_forward.33} parent=0 // pred_check
    _
  $region27: #{vae_conv_forward.33} parent=0 // pred_check_branch
    %61 = sbr.rel (0) target = $region29
  $region28: #{vae_conv_forward.33} parent=0 // pred_region
    _
  $region29: #{vae_conv_forward.33} parent=0 // pred_fallthru
    _

// kernel: vae_conv_forward.32
$region0: #{vae_conv_forward.32}
  #allocation0 [shape = 'u32[]', space=smem, size = 0x4, offset = 0x4, fixed_abs, tag = 'smem constant byte address 0x4 - core index']
  #allocation1 [shape = 'u32[144,128]{1,0:T(1,128)}', space=vmem, size = 0x12000, scoped, tag = 'internal scratch']
  #allocation2 [shape = 'f32[8,128]{1,0:T(8,128)}', space=vmem, size = 0x1000, scoped, tag = 'scratch operand']
  %s0 = inlined_call_operand.vmem [shape: bf16[8,128], index: 0, kind: input, shape index: {}]
  %s1 = inlined_call_operand.vmem [shape: bf16[128,128], index: 1, kind: input, shape index: {}]
  %s2 = inlined_call_operand.vmem [shape: f32[1,128], index: 2, kind: input, shape index: {}]
  %s3 = inlined_call_operand.vmem [shape: bf16[8,128], index: 3, kind: output, shape index: {0}]
  %s4 = inlined_call_operand.vmem [shape: f32[1,128], index: 4, kind: output, shape index: {1}]
  %s5 = inlined_call_operand.vmem [shape: f32[1,128], index: 5, kind: output, shape index: {2}]
  %6 = xla_tuple %s3, %s4, %s5
  %s7 = sld [smem:[#allocation0]]
  $region46: #{vae_conv_forward.32} parent=0
    _
  %s9 = ssub.s32 1, %s7
  %s10 = scalar_select 0, %s9, %s7
  // Predicated region
  $region2: #{vae_conv_forward.32} parent=0 // pred_check
    _
  $region3: #{vae_conv_forward.32} parent=0 // pred_check_branch
    %12 = sbr.rel (0) target = $region5
  $region4: #{vae_conv_forward.32} parent=0 // pred_region
    _
  $region5: #{vae_conv_forward.32} parent=0 // pred_fallthru
    _
  // Predicated region
  $region6: #{vae_conv_forward.32} parent=0 // pred_check
    _
  $region7: #{vae_conv_forward.32} parent=0 // pred_check_branch
    %14 = sbr.rel (0) target = $region9
  $region8: #{vae_conv_forward.32} parent=0 // pred_region
    _
  $region9: #{vae_conv_forward.32} parent=0 // pred_fallthru
    _
  // Predicated region
  $region10: #{vae_conv_forward.32} parent=0 // pred_check
    _
  $region11: #{vae_conv_forward.32} parent=0 // pred_check_branch
    %16 = sbr.rel (0) target = $region13
  $region12: #{vae_conv_forward.32} parent=0 // pred_region
    _
  $region13: #{vae_conv_forward.32} parent=0 // pred_fallthru
    _
  %p18 = scmp.eq.s32.totalorder 0, 0
  // Predicated region
  $region14: #{vae_conv_forward.32} parent=0 // pred_check
    %p19 = pneg %p18
  $region15: #{vae_conv_forward.32} parent=0 // pred_check_branch
    %21 = sbr.rel (%p19) target = $region17
  $region16: #{vae_conv_forward.32} parent=0 // pred_region
    %22 = vst [vmem:[#allocation2] sm:$0xff] 0.0
  $region17: #{vae_conv_forward.32} parent=0 // pred_fallthru
    _
  %v23 = vld [vmem:[#allocation2] sm:$0xff]
  %v24 = vld [vmem:[%s0] sm:$0xf]
  %v25 = vld [vmem:[%s1] sm:$0xf]
  %v26 = vld [vmem:[%s1 + $0x4] sm:$0xf]
  %v27 = vld [vmem:[%s1 + $0x8] sm:$0xf]
  %v28 = vld [vmem:[%s1 + $0xc] sm:$0xf]
  %v29 = vld [vmem:[%s1 + $0x10] sm:$0xf]
  %v30 = vld [vmem:[%s1 + $0x14] sm:$0xf]
  %v31 = vld [vmem:[%s1 + $0x18] sm:$0xf]
  %v32 = vld [vmem:[%s1 + $0x1c] sm:$0xf]
  %v33 = vld [vmem:[%s1 + $0x20] sm:$0xf]
  %v34 = vld [vmem:[%s1 + $0x24] sm:$0xf]
  %v35 = vld [vmem:[%s1 + $0x28] sm:$0xf]
  %v36 = vld [vmem:[%s1 + $0x2c] sm:$0xf]
  %v37 = vld [vmem:[%s1 + $0x30] sm:$0xf]
  %v38 = vld [vmem:[%s1 + $0x34] sm:$0xf]
  %v39 = vld [vmem:[%s1 + $0x38] sm:$0xf]
  %v40 = vld [vmem:[%s1 + $0x3c] sm:$0xf]
  %v57 = vunpack.c.l.b16 %v25
  %v58 = vunpack.c.l.b16 %v26
  %v59 = vunpack.c.l.b16 %v27
  %v60 = vunpack.c.l.b16 %v28
  %v61 = vunpack.c.l.b16 %v29
  %v62 = vunpack.c.l.b16 %v30
  %v63 = vunpack.c.l.b16 %v31
  %v64 = vunpack.c.l.b16 %v32
  %v65 = vunpack.c.l.b16 %v33
  %v66 = vunpack.c.l.b16 %v34
  %v67 = vunpack.c.l.b16 %v35
  %v68 = vunpack.c.l.b16 %v36
  %v69 = vunpack.c.l.b16 %v37
  %v70 = vunpack.c.l.b16 %v38
  %v71 = vunpack.c.l.b16 %v39
  %v72 = vunpack.c.l.b16 %v40
  %v73 = vpack.c.b16 %v58, %v57
  %v74 = vpack.c.b16 %v60, %v59
  %v75 = vpack.c.b16 %v62, %v61
  %v76 = vpack.c.b16 %v64, %v63
  %v77 = vpack.c.b16 %v66, %v65
  %v78 = vpack.c.b16 %v68, %v67
  %v79 = vpack.c.b16 %v70, %v69
  %v80 = vpack.c.b16 %v72, %v71
  %89 = vmatprep.subr.bf16.mxu0 0
  %90 = vmatpush1.bf16.msra.mxu0 %v73
  %91 = vmatprep.subr.bf16.mxu0 0
  %92 = vmatpush1.bf16.msra.mxu0 %v74
  %93 = vmatprep.subr.bf16.mxu0 0
  %94 = vmatpush1.bf16.msra.mxu0 %v75
  %95 = vmatprep.subr.bf16.mxu0 0
  %96 = vmatpush1.bf16.msra.mxu0 %v76
  %97 = vmatprep.subr.bf16.mxu0 0
  %98 = vmatpush1.bf16.msra.mxu0 %v77
  %99 = vmatprep.subr.bf16.mxu0 0
  %100 = vmatpush1.bf16.msra.mxu0 %v78
  %101 = vmatprep.subr.bf16.mxu0 0
  %102 = vmatpush1.bf16.msra.mxu0 %v79
  %103 = vmatprep.subr.bf16.mxu0 0
  %104 = vmatpush1.bf16.msra.mxu0 %v80
  %105 = vmatprep.subr.bf16.mxu0 0
  %106 = vmatpush1.bf16.msra.mxu0 0
  %107 = vmatprep.subr.bf16.mxu0 0
  %108 = vmatpush1.bf16.msra.mxu0 0
  %109 = vmatprep.subr.bf16.mxu0 0
  %110 = vmatpush1.bf16.msra.mxu0 0
  %111 = vmatprep.subr.bf16.mxu0 0
  %112 = vmatpush1.bf16.msra.mxu0 0
  %113 = vmatprep.subr.bf16.mxu0 0
  %114 = vmatpush1.bf16.msra.mxu0 0
  %115 = vmatprep.subr.bf16.mxu0 0
  %116 = vmatpush1.bf16.msra.mxu0 0
  %117 = vmatprep.subr.bf16.mxu0 0
  %118 = vmatpush1.bf16.msra.mxu0 0
  %119 = vmatprep.subr.bf16.mxu0 0
  %120 = vmatpush1.bf16.msra.mxu0 0
  %121 = vmatprep.mubr.bf16.mxu0 0
  %122 = vmatmul.mubr.bf16.gmra.mrb[0].mxu0 %v24
  %v123 = vpop.f32.mrb[0].mxu0
  %v124 = vadd.f32 0.0, %v123
  %v125 = vpop.f32.mrb[0].mxu0
  %v126 = vpop.f32.mrb[0].mxu0
  %v127 = vpop.f32.mrb[0].mxu0
  %128 = vdwg.mxu0
  %v129 = vadd.f32 %v23, %v124
  %130 = vst [vmem:[#allocation2] sm:$0xff] %v129
  // Predicated region
  $region18: #{vae_conv_forward.32} parent=0 // pred_check
    %p131 = pneg %p18
  $region19: #{vae_conv_forward.32} parent=0 // pred_check_branch
    %133 = sbr.rel (%p131) target = $region21
  $region20: #{vae_conv_forward.32} parent=0 // pred_region
    %v134 = vld [vmem:[#allocation2] sm:$0xff]
    %v135 = vld [vmem:[%s2] sm:$0x1]
    %v137 = vlaneseq
    %v138 = vshrl.u32 %v137, 7
    %v139 = vsub.s32 0, %v138
    %v140 = vrot.slane %v135, %v139
    %v142 = vadd.f32 %v134, %v140
    %v143 = vpack.c.bf16 %v142, %v142
    %144 = vst [vmem:[%s3] sm:$0xf] %v143
    %v145 = vrot.slane %v142, 4
    %v146 = vadd.f32 %v142, %v145
    %v147 = vrot.slane %v146, 2
    %v148 = vadd.f32 %v146, %v147
    %v149 = vrot.slane %v148, 1
    %v150 = vadd.f32 %v148, %v149
    %151 = vst [vmem:[%s4] sm:$0x1] %v150
    %v152 = vmul.f32 %v142, %v142
    %v153 = vrot.slane %v152, 4
    %v154 = vadd.f32 %v152, %v153
    %v155 = vrot.slane %v154, 2
    %v156 = vadd.f32 %v154, %v155
    %v157 = vrot.slane %v156, 1
    %v158 = vadd.f32 %v156, %v157
    %159 = vst [vmem:[%s5] sm:$0x1] %v158
  $region21: #{vae_conv_forward.32} parent=0 // pred_fallthru
    _
  // Predicated region
  $region22: #{vae_conv_forward.32} parent=0 // pred_check
    _
  $region23: #{vae_conv_forward.32} parent=0 // pred_check_branch
    %161 = sbr.rel (0) target = $region25
  $region24: #{vae_conv_forward.32} parent=0 // pred_region
    _
  $region25: #{vae_conv_forward.32} parent=0 // pred_fallthru
    _
  // Predicated region
  $region26: #{vae_conv_forward.32} parent=0 // pred_check
    _
  $region27: #{vae_conv_forward.32} parent=0 // pred_check_branch
    %163 = sbr.rel (0) target = $region29
  $region28: #{vae_conv_forward.32} parent=0 // pred_region
    _
  $region29: #{vae_conv_forward.32} parent=0 // pred_fallthru
    _
  // Predicated region
  $region30: #{vae_conv_forward.32} parent=0 // pred_check
    _
  $region31: #{vae_conv_forward.32} parent=0 // pred_check_branch
    %165 = sbr.rel (0) target = $region33
  $region32: #{vae_conv_forward.32} parent=0 // pred_region
    _
  $region33: #{vae_conv_forward.32} parent=0 // pred_fallthru
    _
  // Predicated region
  $region34: #{vae_conv_forward.32} parent=0 // pred_check
    _
  $region35: #{vae_conv_forward.32} parent=0 // pred_check_branch
    %167 = sbr.rel (0) target = $region37
  $region36: #{vae_conv_forward.32} parent=0 // pred_region
    _
  $region37: #{vae_conv_forward.32} parent=0 // pred_fallthru
    _
  // Predicated region
  $region38: #{vae_conv_forward.32} parent=0 // pred_check
    _
  $region39: #{vae_conv_forward.32} parent=0 // pred_check_branch
    %169 = sbr.rel (0) target = $region41
  $region40: #{vae_conv_forward.32} parent=0 // pred_region
    _
  $region41: #{vae_conv_forward.32} parent=0 // pred_fallthru
    _
  // Predicated region
  $region42: #{vae_conv_forward.32} parent=0 // pred_check
    _
  $region43: #{vae_conv_forward.32} parent=0 // pred_check_branch
    %171 = sbr.rel (0) target = $region45
  $region44: #{vae_conv_forward.32} parent=0 // pred_region
    _
  $region45: #{vae_conv_forward.32} parent=0 // pred_fallthru
    _

// kernel: vae_conv_forward.30
$region0: #{vae_conv_forward.30}
  #allocation0 [shape = 'u32[]', space=smem, size = 0x4, offset = 0x4, fixed_abs, tag = 'smem constant byte address 0x4 - core index']
  #allocation1 [shape = 'u32[144,128]{1,0:T(1,128)}', space=vmem, size = 0x12000, scoped, tag = 'internal scratch']
  #allocation2 [shape = 'f32[8,128]{1,0:T(8,128)}', space=vmem, size = 0x1000, scoped, tag = 'scratch operand']
  %s0 = inlined_call_operand.vmem [shape: bf16[8,1024], index: 0, kind: input, shape index: {}]
  %s1 = inlined_call_operand.vmem [shape: bf16[1024,128], index: 1, kind: input, shape index: {}]
  %s2 = inlined_call_operand.vmem [shape: f32[1,128], index: 2, kind: input, shape index: {}]
  %s3 = inlined_call_operand.vmem [shape: bf16[8,128], index: 3, kind: output, shape index: {0}]
  %s4 = inlined_call_operand.vmem [shape: f32[1,128], index: 4, kind: output, shape index: {1}]
  %s5 = inlined_call_operand.vmem [shape: f32[1,128], index: 5, kind: output, shape index: {2}]
  %6 = xla_tuple %s3, %s4, %s5
  %s7 = sld [smem:[#allocation0]]
  $region69: #{vae_conv_forward.30} parent=0
    _
  %s9 = ssub.s32 1, %s7
  %s10 = scalar_select 0, %s9, %s7
  loop: start=0, step=1, limit=4
  $region2: #{vae_conv_forward.30} parent=0 // loop_pre_header
    _
  $region3: #{vae_conv_forward.30} parent=0 // loop_header
    %s12 = sphi 0, %s16
    %p13 = scmp.ge.s32.totalorder %s12, 4
    %s19 = sphi 0, %s38
    %s20 = sphi 0, %s34
    %s21 = sphi 0, %s30
    %s22 = sphi 0, %s19
    %s23 = sphi 0, %s20
    %s24 = sphi 0, %s21
    %s25 = sphi 0, %s22
    %s26 = sphi 0, %s23
    %s27 = sphi 0, %s24
    %s43 = sphi 0, %s45
    %s46 = sphi 0, %s43
    %s47 = sphi 0, %s46
    %s63 = sphi 0, %s47
    %s71 = sphi 0, %s73
    %s74 = sphi 0, %s71
    %s75 = sphi 0, %s74
    %s91 = sphi 0, %s75
    %s97 = sphi 0, %s99
    %s100 = sphi 0, %s97
    %s101 = sphi 0, %s100
    %s117 = sphi 0, %s101
    %s125 = sphi 0, %s127
    %s128 = sphi 0, %s125
    %s129 = sphi 0, %s128
    %s145 = sphi 0, %s129
    %s153 = sphi 0, %s155
    %s156 = sphi 0, %s153
    %s157 = sphi 0, %s156
    %s173 = sphi 0, %s157
    %s181 = sphi 0, %s183
    %s184 = sphi 0, %s181
    %s185 = sphi 0, %s184
    %s201 = sphi 0, %s185
  $region4: #{vae_conv_forward.30} parent=0 // loop_header_branch
    %15 = sbr.rel (%p13) target = $region8
  $region5: #{vae_conv_forward.30} parent=0 // loop_body
    %s17 = ssub.s32 %s12, 1
    %s18 = ssub.s32 %s12, 2
    %s28 = sadd.s32 1, %s21
    %p29 = scmp.ge.s32.totalorder %s28, 2
    %s30 = scalar_select %p29, 0, %s28
    %s31 = sadd.s32 1, %s20
    %s32 = scalar_select %p29, %s31, %s20
    %p33 = scmp.ge.s32.totalorder %s32, 1
    %s34 = scalar_select %p33, 0, %s32
    %s35 = sadd.s32 1, %s19
    %s36 = scalar_select %p33, %s35, %s19
    %p37 = scmp.ge.s32.totalorder %s36, 1
    %s38 = scalar_select %p37, 0, %s36
    %s39 = ssub.s32 %s19, %s38
    %s40 = ssub.s32 %s21, %s30
    %s41 = sor.u32 %s39, %s40
    %p42 = scmp.eq.s32.totalorder %s41, 0
    %s44 = sadd.s32 %s43, 1
    %s45 = scalar_select %p42, %s43, %s44
    %p48 = pneg %p42
    %p49 = scmp.eq.s32.totalorder %s12, 1
    %p50 = por %p48, %p49
    %p51 = scmp.ne.s32.totalorder %s43, %s46
    %p52 = scmp.eq.s32.totalorder %s12, 0
    %p53 = por %p51, %p52
    %p54 = scmp.ne.s32.totalorder %s43, %s46
    %p55 = scmp.eq.s32.totalorder %s17, 1
    %p56 = por %p54, %p55
    %p57 = scmp.ne.s32.totalorder %s46, %s47
    %p58 = scmp.eq.s32.totalorder %s17, 0
    %p59 = por %p57, %p58
    %p60 = scmp.ne.s32.totalorder %s46, %s47
    %p61 = scmp.eq.s32.totalorder %s18, 1
    %p62 = por %p60, %p61
    %p64 = scmp.ne.s32.totalorder %s47, %s63
    %p65 = scmp.eq.s32.totalorder %s18, 0
    %p66 = por %p64, %p65
    %s67 = ssub.s32 %s21, %s30
    %s68 = ssub.s32 %s20, %s34
    %s69 = sor.u32 %s67, %s68
    %p70 = scmp.eq.s32.totalorder %s69, 0
    %s72 = sadd.s32 %s71, 1
    %s73 = scalar_select %p70, %s71, %s72
    %p76 = pneg %p70
    %p77 = scmp.eq.s32.totalorder %s12, 1
    %p78 = por %p76, %p77
    %p79 = scmp.ne.s32.totalorder %s71, %s74
    %p80 = scmp.eq.s32.totalorder %s12, 0
    %p81 = por %p79, %p80
    %p82 = scmp.ne.s32.totalorder %s71, %s74
    %p83 = scmp.eq.s32.totalorder %s17, 1
    %p84 = por %p82, %p83
    %p85 = scmp.ne.s32.totalorder %s74, %s75
    %p86 = scmp.eq.s32.totalorder %s17, 0
    %p87 = por %p85, %p86
    %p88 = scmp.ne.s32.totalorder %s74, %s75
    %p89 = scmp.eq.s32.totalorder %s18, 1
    %p90 = por %p88, %p89
    %p92 = scmp.ne.s32.totalorder %s75, %s91
    %p93 = scmp.eq.s32.totalorder %s18, 0
    %p94 = por %p92, %p93
    %s95 = ssub.s32 %s20, %s34
    %p96 = scmp.eq.s32.totalorder %s95, 0
    %s98 = sadd.s32 %s97, 1
    %s99 = scalar_select %p96, %s97, %s98
    %p102 = pneg %p96
    %p103 = scmp.eq.s32.totalorder %s12, 1
    %p104 = por %p102, %p103
    %p105 = scmp.ne.s32.totalorder %s97, %s100
    %p106 = scmp.eq.s32.totalorder %s12, 0
    %p107 = por %p105, %p106
    %p108 = scmp.ne.s32.totalorder %s97, %s100
    %p109 = scmp.eq.s32.totalorder %s17, 1
    %p110 = por %p108, %p109
    %p111 = scmp.ne.s32.totalorder %s100, %s101
    %p112 = scmp.eq.s32.totalorder %s17, 0
    %p113 = por %p111, %p112
    %p114 = scmp.ne.s32.totalorder %s100, %s101
    %p115 = scmp.eq.s32.totalorder %s18, 1
    %p116 = por %p114, %p115
    %p118 = scmp.ne.s32.totalorder %s101, %s117
    %p119 = scmp.eq.s32.totalorder %s18, 0
    %p120 = por %p118, %p119
    %s121 = ssub.s32 %s19, %s38
    %s122 = ssub.s32 %s20, %s34
    %s123 = sor.u32 %s121, %s122
    %p124 = scmp.eq.s32.totalorder %s123, 0
    %s126 = sadd.s32 %s125, 1
    %s127 = scalar_select %p124, %s125, %s126
    %p130 = pneg %p124
    %p131 = scmp.eq.s32.totalorder %s12, 1
    %p132 = por %p130, %p131
    %p133 = scmp.ne.s32.totalorder %s125, %s128
    %p134 = scmp.eq.s32.totalorder %s12, 0
    %p135 = por %p133, %p134
    %p136 = scmp.ne.s32.totalorder %s125, %s128
    %p137 = scmp.eq.s32.totalorder %s17, 1
    %p138 = por %p136, %p137
    %p139 = scmp.ne.s32.totalorder %s128, %s129
    %p140 = scmp.eq.s32.totalorder %s17, 0
    %p141 = por %p139, %p140
    %p142 = scmp.ne.s32.totalorder %s128, %s129
    %p143 = scmp.eq.s32.totalorder %s18, 1
    %p144 = por %p142, %p143
    %p146 = scmp.ne.s32.totalorder %s129, %s145
    %p147 = scmp.eq.s32.totalorder %s18, 0
    %p148 = por %p146, %p147
    %s149 = ssub.s32 %s19, %s38
    %s150 = ssub.s32 %s20, %s34
    %s151 = sor.u32 %s149, %s150
    %p152 = scmp.eq.s32.totalorder %s151, 0
    %s154 = sadd.s32 %s153, 1
    %s155 = scalar_select %p152, %s153, %s154
    %p158 = pneg %p152
    %p159 = scmp.eq.s32.totalorder %s12, 1
    %p160 = por %p158, %p159
    %p161 = scmp.ne.s32.totalorder %s153, %s156
    %p162 = scmp.eq.s32.totalorder %s12, 0
    %p163 = por %p161, %p162
    %p164 = scmp.ne.s32.totalorder %s153, %s156
    %p165 = scmp.eq.s32.totalorder %s17, 1
    %p166 = por %p164, %p165
    %p167 = scmp.ne.s32.totalorder %s156, %s157
    %p168 = scmp.eq.s32.totalorder %s17, 0
    %p169 = por %p167, %p168
    %p170 = scmp.ne.s32.totalorder %s156, %s157
    %p171 = scmp.eq.s32.totalorder %s18, 1
    %p172 = por %p170, %p171
    %p174 = scmp.ne.s32.totalorder %s157, %s173
    %p175 = scmp.eq.s32.totalorder %s18, 0
    %p176 = por %p174, %p175
    %s177 = ssub.s32 %s19, %s38
    %s178 = ssub.s32 %s20, %s34
    %s179 = sor.u32 %s177, %s178
    %p180 = scmp.eq.s32.totalorder %s179, 0
    %s182 = sadd.s32 %s181, 1
    %s183 = scalar_select %p180, %s181, %s182
    %p186 = pneg %p180
    %p187 = scmp.eq.s32.totalorder %s12, 1
    %p188 = por %p186, %p187
    %p189 = scmp.ne.s32.totalorder %s181, %s184
    %p190 = scmp.eq.s32.totalorder %s12, 0
    %p191 = por %p189, %p190
    %p192 = scmp.ne.s32.totalorder %s181, %s184
    %p193 = scmp.eq.s32.totalorder %s17, 1
    %p194 = por %p192, %p193
    %p195 = scmp.ne.s32.totalorder %s184, %s185
    %p196 = scmp.eq.s32.totalorder %s17, 0
    %p197 = por %p195, %p196
    %p198 = scmp.ne.s32.totalorder %s184, %s185
    %p199 = scmp.eq.s32.totalorder %s18, 1
    %p200 = por %p198, %p199
    %p202 = scmp.ne.s32.totalorder %s185, %s201
    %p203 = scmp.eq.s32.totalorder %s18, 0
    %p204 = por %p202, %p203
    %p205 = scmp.le.s32.totalorder 1, %s12
    %p206 = scmp.lt.s32.totalorder %s12, 3
    %p207 = pnand %p205, %p206
    %p208 = pneg %p207
    // Predicated region
    $region9: #{vae_conv_forward.30} parent=5 // pred_check
      _
    $region10: #{vae_conv_forward.30} parent=5 // pred_check_branch
      %210 = sbr.rel (%p207) target = $region12
    $region11: #{vae_conv_forward.30} parent=5 // pred_region
      %s211 = ssub.s32 %s12, 1
      // Predicated region
      $region13: #{vae_conv_forward.30} parent=11 // pred_check
        %p212 = pneg %p113
      $region14: #{vae_conv_forward.30} parent=11 // pred_check_branch
        %214 = sbr.rel (%p212) target = $region16
      $region15: #{vae_conv_forward.30} parent=11 // pred_region
        %p215 = scmp.lt.s32.totalorder %s23, 0
        %s216 = scalar_select %p215, %s23, 0
        %s217 = scalar_lea.vmem %s2, %s216
      $region16: #{vae_conv_forward.30} parent=11 // pred_fallthru
        _
    $region12: #{vae_conv_forward.30} parent=5 // pred_fallthru
      _
    %p218 = scmp.lt.s32.totalorder %s12, 2
    // Predicated region
    $region17: #{vae_conv_forward.30} parent=5 // pred_check
      %p219 = pneg %p218
    $region18: #{vae_conv_forward.30} parent=5 // pred_check_branch
      %221 = sbr.rel (%p219) target = $region20
    $region19: #{vae_conv_forward.30} parent=5 // pred_region
      // Predicated region
      $region21: #{vae_conv_forward.30} parent=19 // pred_check
        %p222 = pneg %p53
      $region22: #{vae_conv_forward.30} parent=19 // pred_check_branch
        %224 = sbr.rel (%p222) target = $region24
      $region23: #{vae_conv_forward.30} parent=19 // pred_region
        %s225 = smul.u32 4, %s21
        %p226 = scmp.lt.s32.totalorder %s19, 0
        %s227 = scalar_select %p226, %s19, 0
        %p228 = scmp.lt.s32.totalorder %s225, 7
        %s229 = scalar_select %p228, %s225, 7
        %s230 = smul.addr %s227, 8
        %s231 = sadd.s32 %s229, %s230
        %s232 = smul.addr %s231, 4
        %s233 = scalar_lea.vmem %s0, %s232
        %s234 = smul.u32 4, %s21
      $region24: #{vae_conv_forward.30} parent=19 // pred_fallthru
        _
      // Predicated region
      $region25: #{vae_conv_forward.30} parent=19 // pred_check
        %p235 = pneg %p81
      $region26: #{vae_conv_forward.30} parent=19 // pred_check_branch
        %237 = sbr.rel (%p235) target = $region28
      $region27: #{vae_conv_forward.30} parent=19 // pred_region
        %s238 = smul.u32 64, %s21
        %p239 = scmp.lt.s32.totalorder %s238, 127
        %s240 = scalar_select %p239, %s238, 127
        %p241 = scmp.lt.s32.totalorder %s20, 0
        %s242 = scalar_select %p241, %s20, 0
        %s243 = sadd.s32 %s242, %s240
        %s244 = smul.addr %s243, 4
        %s245 = scalar_lea.vmem %s1, %s244
        %s246 = smul.u32 64, %s21
      $region28: #{vae_conv_forward.30} parent=19 // pred_fallthru
        _
    $region20: #{vae_conv_forward.30} parent=5 // pred_fallthru
      _
    %p247 = scmp.le.s32.totalorder 1, %s12
    %p248 = scmp.lt.s32.totalorder %s12, 3
    %p249 = pnand %p247, %p248
    %p250 = pneg %p249
    // Predicated region
    $region29: #{vae_conv_forward.30} parent=5 // pred_check
      _
    $region30: #{vae_conv_forward.30} parent=5 // pred_check_branch
      %252 = sbr.rel (%p249) target = $region32
    $region31: #{vae_conv_forward.30} parent=5 // pred_region
      %s253 = ssub.s32 %s12, 1
      %s254 = smul.u32 4, %s24
      %p255 = scmp.lt.s32.totalorder %s22, 0
      %s256 = scalar_select %p255, %s22, 0
      %p257 = scmp.lt.s32.totalorder %s254, 7
      %s258 = scalar_select %p257, %s254, 7
      %s259 = smul.addr %s256, 8
      %s260 = sadd.s32 %s258, %s259
      %s261 = smul.addr %s260, 4
      %s262 = scalar_lea.vmem %s0, %s261
      %p263 = pneg %p59
      %p264 = pneg %p56
      %s265 = smul.u32 64, %s24
      %p266 = scmp.lt.s32.totalorder %s265, 127
      %s267 = scalar_select %p266, %s265, 127
      %p268 = scmp.lt.s32.totalorder %s23, 0
      %s269 = scalar_select %p268, %s23, 0
      %s270 = sadd.s32 %s269, %s267
      %s271 = smul.addr %s270, 4
      %s272 = scalar_lea.vmem %s1, %s271
      %p273 = pneg %p87
      %p274 = pneg %p84
      %p275 = scmp.lt.s32.totalorder %s23, 0
      %s276 = scalar_select %p275, %s23, 0
      %s277 = scalar_lea.vmem %s2, %s276
      %p278 = pneg %p113
      %p279 = pneg %p110
      %p280 = pneg %p141
      %p281 = pneg %p138
      %p282 = scmp.lt.s32.totalorder %s22, 0
      %s283 = scalar_select %p282, %s22, 0
      %p284 = scmp.lt.s32.totalorder %s23, 0
      %s285 = scalar_select %p284, %s23, 0
      %s286 = sadd.s32 %s285, %s283
      %s287 = smul.addr %s286, 4
      %s288 = scalar_lea.vmem %s3, %s287
      %p289 = pneg %p169
      %p290 = pneg %p166
      %p291 = scmp.lt.s32.totalorder %s22, 0
      %s292 = scalar_select %p291, %s22, 0
      %p293 = scmp.lt.s32.totalorder %s23, 0
      %s294 = scalar_select %p293, %s23, 0
      %s295 = sadd.s32 %s294, %s292
      %s296 = scalar_lea.vmem %s4, %s295
      %p297 = pneg %p197
      %p298 = pneg %p194
      %p299 = scmp.lt.s32.totalorder %s22, 0
      %s300 = scalar_select %p299, %s22, 0
      %p301 = scmp.lt.s32.totalorder %s23, 0
      %s302 = scalar_select %p301, %s23, 0
      %s303 = sadd.s32 %s302, %s300
      %s304 = scalar_lea.vmem %s5, %s303
      %s305 = smul.u32 4, %s24
      %p306 = scmp.lt.s32.totalorder %s22, 0
      %s307 = scalar_select %p306, %s22, 0
      %p308 = scmp.lt.s32.totalorder %s305, 7
      %s309 = scalar_select %p308, %s305, 7
      %s310 = smul.addr %s307, 8
      %s311 = sadd.s32 %s309, %s310
      %s312 = smul.addr %s311, 4
      %s313 = scalar_lea.vmem %s0, %s312
      %s314 = smul.u32 4, %s24
      %s315 = smul.u32 64, %s24
      %p316 = scmp.lt.s32.totalorder %s315, 127
      %s317 = scalar_select %p316, %s315, 127
      %p318 = scmp.lt.s32.totalorder %s23, 0
      %s319 = scalar_select %p318, %s23, 0
      %s320 = sadd.s32 %s319, %s317
      %s321 = smul.addr %s320, 4
      %s322 = scalar_lea.vmem %s1, %s321
      %s323 = smul.u32 64, %s24
      %p324 = scmp.lt.s32.totalorder %s23, 0
      %s325 = scalar_select %p324, %s23, 0
      %s326 = scalar_lea.vmem %s2, %s325
      %p327 = scmp.lt.s32.totalorder %s22, 0
      %s328 = scalar_select %p327, %s22, 0
      %p329 = scmp.lt.s32.totalorder %s23, 0
      %s330 = scalar_select %p329, %s23, 0
      %s331 = sadd.s32 %s330, %s328
      %s332 = smul.addr %s331, 4
      %s333 = scalar_lea.vmem %s3, %s332
      %p334 = scmp.lt.s32.totalorder %s22, 0
      %s335 = scalar_select %p334, %s22, 0
      %p336 = scmp.lt.s32.totalorder %s23, 0
      %s337 = scalar_select %p336, %s23, 0
      %s338 = sadd.s32 %s337, %s335
      %s339 = scalar_lea.vmem %s4, %s338
      %p340 = scmp.lt.s32.totalorder %s22, 0
      %s341 = scalar_select %p340, %s22, 0
      %p342 = scmp.lt.s32.totalorder %s23, 0
      %s343 = scalar_select %p342, %s23, 0
      %s344 = sadd.s32 %s343, %s341
      %s345 = scalar_lea.vmem %s5, %s344
      %p347 = scmp.eq.s32.totalorder %s24, 0
      // Predicated region
      $region33: #{vae_conv_forward.30} parent=31 // pred_check
        %p348 = pneg %p347
      $region34: #{vae_conv_forward.30} parent=31 // pred_check_branch
        %350 = sbr.rel (%p348) target = $region36
      $region35: #{vae_conv_forward.30} parent=31 // pred_region
        %351 = vst [vmem:[#allocation2] sm:$0xff] 0.0
      $region36: #{vae_conv_forward.30} parent=31 // pred_fallthru
        _
      %v352 = vld [vmem:[#allocation2] sm:$0xff]
      %v353 = vld [vmem:[%s313] sm:$0xff]
      %v354 = vld [vmem:[%s313 + $0x8] sm:$0xff]
      %v355 = vld [vmem:[%s322] sm:$0xf]
      %v356 = vld [vmem:[%s322 + $0x4] sm:$0xf]
      %v357 = vld [vmem:[%s322 + $0x8] sm:$0xf]
      %v358 = vld [vmem:[%s322 + $0xc] sm:$0xf]
      %v359 = vld [vmem:[%s322 + $0x10] sm:$0xf]
      %v360 = vld [vmem:[%s322 + $0x14] sm:$0xf]
      %v361 = vld [vmem:[%s322 + $0x18] sm:$0xf]
      %v362 = vld [vmem:[%s322 + $0x1c] sm:$0xf]
      %v363 = vld [vmem:[%s322 + $0x20] sm:$0xf]
      %v364 = vld [vmem:[%s322 + $0x24] sm:$0xf]
      %v365 = vld [vmem:[%s322 + $0x28] sm:$0xf]
      %v366 = vld [vmem:[%s322 + $0x2c] sm:$0xf]
      %v367 = vld [vmem:[%s322 + $0x30] sm:$0xf]
      %v368 = vld [vmem:[%s322 + $0x34] sm:$0xf]
      %v369 = vld [vmem:[%s322 + $0x38] sm:$0xf]
      %v370 = vld [vmem:[%s322 + $0x3c] sm:$0xf]
      %v371 = vld [vmem:[%s322 + $0x40] sm:$0xf]
      %v372 = vld [vmem:[%s322 + $0x44] sm:$0xf]
      %v373 = vld [vmem:[%s322 + $0x48] sm:$0xf]
      %v374 = vld [vmem:[%s322 + $0x4c] sm:$0xf]
      %v375 = vld [vmem:[%s322 + $0x50] sm:$0xf]
      %v376 = vld [vmem:[%s322 + $0x54] sm:$0xf]
      %v377 = vld [vmem:[%s322 + $0x58] sm:$0xf]
      %v378 = vld [vmem:[%s322 + $0x5c] sm:$0xf]
      %v379 = vld [vmem:[%s322 + $0x60] sm:$0xf]
      %v380 = vld [vmem:[%s322 + $0x64] sm:$0xf]
      %v381 = vld [vmem:[%s322 + $0x68] sm:$0xf]
      %v382 = vld [vmem:[%s322 + $0x6c] sm:$0xf]
      %v383 = vld [vmem:[%s322 + $0x70] sm:$0xf]
      %v384 = vld [vmem:[%s322 + $0x74] sm:$0xf]
      %v385 = vld [vmem:[%s322 + $0x78] sm:$0xf]
      %v386 = vld [vmem:[%s322 + $0x7c] sm:$0xf]
      %v387 = vld [vmem:[%s322 + $0x80] sm:$0xf]
      %v388 = vld [vmem:[%s322 + $0x84] sm:$0xf]
      %v389 = vld [vmem:[%s322 + $0x88] sm:$0xf]
      %v390 = vld [vmem:[%s322 + $0x8c] sm:$0xf]
      %v391 = vld [vmem:[%s322 + $0x90] sm:$0xf]
      %v392 = vld [vmem:[%s322 + $0x94] sm:$0xf]
      %v393 = vld [vmem:[%s322 + $0x98] sm:$0xf]
      %v394 = vld [vmem:[%s322 + $0x9c] sm:$0xf]
      %v395 = vld [vmem:[%s322 + $0xa0] sm:$0xf]
      %v396 = vld [vmem:[%s322 + $0xa4] sm:$0xf]
      %v397 = vld [vmem:[%s322 + $0xa8] sm:$0xf]
      %v398 = vld [vmem:[%s322 + $0xac] sm:$0xf]
      %v399 = vld [vmem:[%s322 + $0xb0] sm:$0xf]
      %v400 = vld [vmem:[%s322 + $0xb4] sm:$0xf]
      %v401 = vld [vmem:[%s322 + $0xb8] sm:$0xf]
      %v402 = vld [vmem:[%s322 + $0xbc] sm:$0xf]
      %v403 = vld [vmem:[%s322 + $0xc0] sm:$0xf]
      %v404 = vld [vmem:[%s322 + $0xc4] sm:$0xf]
      %v405 = vld [vmem:[%s322 + $0xc8] sm:$0xf]
      %v406 = vld [vmem:[%s322 + $0xcc] sm:$0xf]
      %v407 = vld [vmem:[%s322 + $0xd0] sm:$0xf]
      %v408 = vld [vmem:[%s322 + $0xd4] sm:$0xf]
      %v409 = vld [vmem:[%s322 + $0xd8] sm:$0xf]
      %v410 = vld [vmem:[%s322 + $0xdc] sm:$0xf]
      %v411 = vld [vmem:[%s322 + $0xe0] sm:$0xf]
      %v412 = vld [vmem:[%s322 + $0xe4] sm:$0xf]
      %v413 = vld [vmem:[%s322 + $0xe8] sm:$0xf]
      %v414 = vld [vmem:[%s322 + $0xec] sm:$0xf]
      %v415 = vld [vmem:[%s322 + $0xf0] sm:$0xf]
      %v416 = vld [vmem:[%s322 + $0xf4] sm:$0xf]
      %v417 = vld [vmem:[%s322 + $0xf8] sm:$0xf]
      %v418 = vld [vmem:[%s322 + $0xfc] sm:$0xf]
      %v421 = vunpack.c.l.b16 %v353
      %v422 = vunpack.c.h.b16 %v353
      %v423 = vunpack.c.l.b16 %v354
      %v424 = vunpack.c.h.b16 %v354
      %v425 = vpack.c.b16 %v421, %v421
      %v426 = vpack.c.b16 %v422, %v422
      %v427 = vpack.c.b16 %v423, %v423
      %v428 = vpack.c.b16 %v424, %v424
      %v497 = vunpack.c.l.b16 %v355
      %v498 = vunpack.c.l.b16 %v356
      %v499 = vunpack.c.l.b16 %v357
      %v500 = vunpack.c.l.b16 %v358
      %v501 = vunpack.c.l.b16 %v359
      %v502 = vunpack.c.l.b16 %v360
      %v503 = vunpack.c.l.b16 %v361
      %v504 = vunpack.c.l.b16 %v362
      %v505 = vunpack.c.l.b16 %v363
      %v506 = vunpack.c.l.b16 %v364
      %v507 = vunpack.c.l.b16 %v365
      %v508 = vunpack.c.l.b16 %v366
      %v509 = vunpack.c.l.b16 %v367
      %v510 = vunpack.c.l.b16 %v368
      %v511 = vunpack.c.l.b16 %v369
      %v512 = vunpack.c.l.b16 %v370
      %v513 = vunpack.c.l.b16 %v371
      %v514 = vunpack.c.l.b16 %v372
      %v515 = vunpack.c.l.b16 %v373
      %v516 = vunpack.c.l.b16 %v374
      %v517 = vunpack.c.l.b16 %v375
      %v518 = vunpack.c.l.b16 %v376
      %v519 = vunpack.c.l.b16 %v377
      %v520 = vunpack.c.l.b16 %v378
      %v521 = vunpack.c.l.b16 %v379
      %v522 = vunpack.c.l.b16 %v380
      %v523 = vunpack.c.l.b16 %v381
      %v524 = vunpack.c.l.b16 %v382
      %v525 = vunpack.c.l.b16 %v383
      %v526 = vunpack.c.l.b16 %v384
      %v527 = vunpack.c.l.b16 %v385
      %v528 = vunpack.c.l.b16 %v386
      %v529 = vunpack.c.l.b16 %v387
      %v530 = vunpack.c.l.b16 %v388
      %v531 = vunpack.c.l.b16 %v389
      %v532 = vunpack.c.l.b16 %v390
      %v533 = vunpack.c.l.b16 %v391
      %v534 = vunpack.c.l.b16 %v392
      %v535 = vunpack.c.l.b16 %v393
      %v536 = vunpack.c.l.b16 %v394
      %v537 = vunpack.c.l.b16 %v395
      %v538 = vunpack.c.l.b16 %v396
      %v539 = vunpack.c.l.b16 %v397
      %v540 = vunpack.c.l.b16 %v398
      %v541 = vunpack.c.l.b16 %v399
      %v542 = vunpack.c.l.b16 %v400
      %v543 = vunpack.c.l.b16 %v401
      %v544 = vunpack.c.l.b16 %v402
      %v545 = vunpack.c.l.b16 %v403
      %v546 = vunpack.c.l.b16 %v404
      %v547 = vunpack.c.l.b16 %v405
      %v548 = vunpack.c.l.b16 %v406
      %v549 = vunpack.c.l.b16 %v407
      %v550 = vunpack.c.l.b16 %v408
      %v551 = vunpack.c.l.b16 %v409
      %v552 = vunpack.c.l.b16 %v410
      %v553 = vunpack.c.l.b16 %v411
      %v554 = vunpack.c.l.b16 %v412
      %v555 = vunpack.c.l.b16 %v413
      %v556 = vunpack.c.l.b16 %v414
      %v557 = vunpack.c.l.b16 %v415
      %v558 = vunpack.c.l.b16 %v416
      %v559 = vunpack.c.l.b16 %v417
      %v560 = vunpack.c.l.b16 %v418
      %v561 = vpack.c.b16 %v498, %v497
      %v562 = vpack.c.b16 %v500, %v499
      %v563 = vpack.c.b16 %v502, %v501
      %v564 = vpack.c.b16 %v504, %v503
      %v565 = vpack.c.b16 %v506, %v505
      %v566 = vpack.c.b16 %v508, %v507
      %v567 = vpack.c.b16 %v510, %v509
      %v568 = vpack.c.b16 %v512, %v511
      %v569 = vpack.c.b16 %v514, %v513
      %v570 = vpack.c.b16 %v516, %v515
      %v571 = vpack.c.b16 %v518, %v517
      %v572 = vpack.c.b16 %v520, %v519
      %v573 = vpack.c.b16 %v522, %v521
      %v574 = vpack.c.b16 %v524, %v523
      %v575 = vpack.c.b16 %v526, %v525
      %v576 = vpack.c.b16 %v528, %v527
      %v577 = vpack.c.b16 %v530, %v529
      %v578 = vpack.c.b16 %v532, %v531
      %v579 = vpack.c.b16 %v534, %v533
      %v580 = vpack.c.b16 %v536, %v535
      %v581 = vpack.c.b16 %v538, %v537
      %v582 = vpack.c.b16 %v540, %v539
      %v583 = vpack.c.b16 %v542, %v541
      %v584 = vpack.c.b16 %v544, %v543
      %v585 = vpack.c.b16 %v546, %v545
      %v586 = vpack.c.b16 %v548, %v547
      %v587 = vpack.c.b16 %v550, %v549
      %v588 = vpack.c.b16 %v552, %v551
      %v589 = vpack.c.b16 %v554, %v553
      %v590 = vpack.c.b16 %v556, %v555
      %v591 = vpack.c.b16 %v558, %v557
      %v592 = vpack.c.b16 %v560, %v559
      %625 = vmatprep.subr.bf16.mxu0 0
      %626 = vmatpush1.bf16.msra.mxu0 %v561
      %627 = vmatprep.subr.bf16.mxu0 0
      %628 = vmatpush1.bf16.msra.mxu0 %v562
      %629 = vmatprep.subr.bf16.mxu0 0
      %630 = vmatpush1.bf16.msra.mxu0 %v563
      %631 = vmatprep.subr.bf16.mxu0 0
      %632 = vmatpush1.bf16.msra.mxu0 %v564
      %633 = vmatprep.subr.bf16.mxu0 0
      %634 = vmatpush1.bf16.msra.mxu0 %v565
      %635 = vmatprep.subr.bf16.mxu0 0
      %636 = vmatpush1.bf16.msra.mxu0 %v566
      %637 = vmatprep.subr.bf16.mxu0 0
      %638 = vmatpush1.bf16.msra.mxu0 %v567
      %639 = vmatprep.subr.bf16.mxu0 0
      %640 = vmatpush1.bf16.msra.mxu0 %v568
      %641 = vmatprep.subr.bf16.mxu0 0
      %642 = vmatpush1.bf16.msra.mxu0 %v569
      %643 = vmatprep.subr.bf16.mxu0 0
      %644 = vmatpush1.bf16.msra.mxu0 %v570
      %645 = vmatprep.subr.bf16.mxu0 0
      %646 = vmatpush1.bf16.msra.mxu0 %v571
      %647 = vmatprep.subr.bf16.mxu0 0
      %648 = vmatpush1.bf16.msra.mxu0 %v572
      %649 = vmatprep.subr.bf16.mxu0 0
      %650 = vmatpush1.bf16.msra.mxu0 %v573
      %651 = vmatprep.subr.bf16.mxu0 0
      %652 = vmatpush1.bf16.msra.mxu0 %v574
      %653 = vmatprep.subr.bf16.mxu0 0
      %654 = vmatpush1.bf16.msra.mxu0 %v575
      %655 = vmatprep.subr.bf16.mxu0 0
      %656 = vmatpush1.bf16.msra.mxu0 %v576
      %657 = vmatprep.mubr.bf16.mxu0 %v426
      %658 = vmatmul.mubr.bf16.gmra.mrb[0].mxu0 %v425
      %v659 = vpop.f32.mrb[0].mxu0
      %v660 = vadd.f32 0.0, %v659
      %v661 = vpop.f32.mrb[0].mxu0
      %v662 = vpop.f32.mrb[0].mxu0
      %v663 = vpop.f32.mrb[0].mxu0
      %664 = vdwg.mxu0
      %665 = vmatprep.subr.bf16.mxu0 0
      %666 = vmatpush1.bf16.msra.mxu0 %v577
      %667 = vmatprep.subr.bf16.mxu0 0
      %668 = vmatpush1.bf16.msra.mxu0 %v578
      %669 = vmatprep.subr.bf16.mxu0 0
      %670 = vmatpush1.bf16.msra.mxu0 %v579
      %671 = vmatprep.subr.bf16.mxu0 0
      %672 = vmatpush1.bf16.msra.mxu0 %v580
      %673 = vmatprep.subr.bf16.mxu0 0
      %674 = vmatpush1.bf16.msra.mxu0 %v581
      %675 = vmatprep.subr.bf16.mxu0 0
      %676 = vmatpush1.bf16.msra.mxu0 %v582
      %677 = vmatprep.subr.bf16.mxu0 0
      %678 = vmatpush1.bf16.msra.mxu0 %v583
      %679 = vmatprep.subr.bf16.mxu0 0
      %680 = vmatpush1.bf16.msra.mxu0 %v584
      %681 = vmatprep.subr.bf16.mxu0 0
      %682 = vmatpush1.bf16.msra.mxu0 %v585
      %683 = vmatprep.subr.bf16.mxu0 0
      %684 = vmatpush1.bf16.msra.mxu0 %v586
      %685 = vmatprep.subr.bf16.mxu0 0
      %686 = vmatpush1.bf16.msra.mxu0 %v587
      %687 = vmatprep.subr.bf16.mxu0 0
      %688 = vmatpush1.bf16.msra.mxu0 %v588
      %689 = vmatprep.subr.bf16.mxu0 0
      %690 = vmatpush1.bf16.msra.mxu0 %v589
      %691 = vmatprep.subr.bf16.mxu0 0
      %692 = vmatpush1.bf16.msra.mxu0 %v590
      %693 = vmatprep.subr.bf16.mxu0 0
      %694 = vmatpush1.bf16.msra.mxu0 %v591
      %695 = vmatprep.subr.bf16.mxu0 0
      %696 = vmatpush1.bf16.msra.mxu0 %v592
      %697 = vmatprep.mubr.bf16.mxu0 %v428
      %698 = vmatmul.mubr.bf16.gmra.mrb[0].mxu0 %v427
      %v699 = vpop.f32.mrb[0].mxu0
      %v700 = vadd.f32 %v660, %v699
      %v701 = vpop.f32.mrb[0].mxu0
      %v702 = vpop.f32.mrb[0].mxu0
      %v703 = vpop.f32.mrb[0].mxu0
      %704 = vdwg.mxu0
      %v705 = vadd.f32 %v352, %v700
      %706 = vst [vmem:[#allocation2] sm:$0xff] %v705
      %p707 = scmp.eq.s32.totalorder %s24, 1
      // Predicated region
      $region37: #{vae_conv_forward.30} parent=31 // pred_check
        %p708 = pneg %p707
      $region38: #{vae_conv_forward.30} parent=31 // pred_check_branch
        %710 = sbr.rel (%p708) target = $region40
      $region39: #{vae_conv_forward.30} parent=31 // pred_region
        %v711 = vld [vmem:[#allocation2] sm:$0xff]
        %v712 = vld [vmem:[%s326] sm:$0x1]
        %v714 = vlaneseq
        %v715 = vshrl.u32 %v714, 7
        %v716 = vsub.s32 0, %v715
        %v717 = vrot.slane %v712, %v716
        %v719 = vadd.f32 %v711, %v717
        %v720 = vpack.c.bf16 %v719, %v719
        %721 = vst [vmem:[%s333] sm:$0xf] %v720
        %v722 = vrot.slane %v719, 4
        %v723 = vadd.f32 %v719, %v722
        %v724 = vrot.slane %v723, 2
        %v725 = vadd.f32 %v723, %v724
        %v726 = vrot.slane %v725, 1
        %v727 = vadd.f32 %v725, %v726
        %728 = vst [vmem:[%s339] sm:$0x1] %v727
        %v729 = vmul.f32 %v719, %v719
        %v730 = vrot.slane %v729, 4
        %v731 = vadd.f32 %v729, %v730
        %v732 = vrot.slane %v731, 2
        %v733 = vadd.f32 %v731, %v732
        %v734 = vrot.slane %v733, 1
        %v735 = vadd.f32 %v733, %v734
        %736 = vst [vmem:[%s345] sm:$0x1] %v735
      $region40: #{vae_conv_forward.30} parent=31 // pred_fallthru
        _
      %p737 = scmp.lt.s32.totalorder %s22, 0
      %s738 = scalar_select %p737, %s22, 0
      %p739 = scmp.lt.s32.totalorder %s23, 0
      %s740 = scalar_select %p739, %s23, 0
      %s741 = sadd.s32 %s740, %s738
      %s742 = smul.addr %s741, 4
      %s743 = scalar_lea.vmem %s3, %s742
      %p744 = scmp.lt.s32.totalorder %s22, 0
      %s745 = scalar_select %p744, %s22, 0
      %p746 = scmp.lt.s32.totalorder %s23, 0
      %s747 = scalar_select %p746, %s23, 0
      %s748 = sadd.s32 %s747, %s745
      %s749 = scalar_lea.vmem %s4, %s748
      %p750 = scmp.lt.s32.totalorder %s22, 0
      %s751 = scalar_select %p750, %s22, 0
      %p752 = scmp.lt.s32.totalorder %s23, 0
      %s753 = scalar_select %p752, %s23, 0
      %s754 = sadd.s32 %s753, %s751
      %s755 = scalar_lea.vmem %s5, %s754
      // Predicated region
      $region41: #{vae_conv_forward.30} parent=31 // pred_check
        %p756 = pneg %p138
      $region42: #{vae_conv_forward.30} parent=31 // pred_check_branch
        %758 = sbr.rel (%p756) target = $region44
      $region43: #{vae_conv_forward.30} parent=31 // pred_region
        _
      $region44: #{vae_conv_forward.30} parent=31 // pred_fallthru
        _
      // Predicated region
      $region45: #{vae_conv_forward.30} parent=31 // pred_check
        %p759 = pneg %p166
      $region46: #{vae_conv_forward.30} parent=31 // pred_check_branch
        %761 = sbr.rel (%p759) target = $region48
      $region47: #{vae_conv_forward.30} parent=31 // pred_region
        _
      $region48: #{vae_conv_forward.30} parent=31 // pred_fallthru
        _
      // Predicated region
      $region49: #{vae_conv_forward.30} parent=31 // pred_check
        %p762 = pneg %p194
      $region50: #{vae_conv_forward.30} parent=31 // pred_check_branch
        %764 = sbr.rel (%p762) target = $region52
      $region51: #{vae_conv_forward.30} parent=31 // pred_region
        _
      $region52: #{vae_conv_forward.30} parent=31 // pred_fallthru
        _
      // Predicated region
      $region53: #{vae_conv_forward.30} parent=31 // pred_check
        %p765 = pneg %p138
      $region54: #{vae_conv_forward.30} parent=31 // pred_check_branch
        %767 = sbr.rel (%p765) target = $region56
      $region55: #{vae_conv_forward.30} parent=31 // pred_region
        %p768 = scmp.lt.s32.totalorder %s22, 0
        %s769 = scalar_select %p768, %s22, 0
        %p770 = scmp.lt.s32.totalorder %s23, 0
        %s771 = scalar_select %p770, %s23, 0
        %s772 = sadd.s32 %s771, %s769
        %s773 = smul.addr %s772, 4
        %s774 = scalar_lea.vmem %s3, %s773
      $region56: #{vae_conv_forward.30} parent=31 // pred_fallthru
        _
      // Predicated region
      $region57: #{vae_conv_forward.30} parent=31 // pred_check
        %p775 = pneg %p166
      $region58: #{vae_conv_forward.30} parent=31 // pred_check_branch
        %777 = sbr.rel (%p775) target = $region60
      $region59: #{vae_conv_forward.30} parent=31 // pred_region
        %p778 = scmp.lt.s32.totalorder %s22, 0
        %s779 = scalar_select %p778, %s22, 0
        %p780 = scmp.lt.s32.totalorder %s23, 0
        %s781 = scalar_select %p780, %s23, 0
        %s782 = sadd.s32 %s781, %s779
        %s783 = scalar_lea.vmem %s4, %s782
      $region60: #{vae_conv_forward.30} parent=31 // pred_fallthru
        _
      // Predicated region
      $region61: #{vae_conv_forward.30} parent=31 // pred_check
        %p784 = pneg %p194
      $region62: #{vae_conv_forward.30} parent=31 // pred_check_branch
        %786 = sbr.rel (%p784) target = $region64
      $region63: #{vae_conv_forward.30} parent=31 // pred_region
        %p787 = scmp.lt.s32.totalorder %s22, 0
        %s788 = scalar_select %p787, %s22, 0
        %p789 = scmp.lt.s32.totalorder %s23, 0
        %s790 = scalar_select %p789, %s23, 0
        %s791 = sadd.s32 %s790, %s788
        %s792 = scalar_lea.vmem %s5, %s791
      $region64: #{vae_conv_forward.30} parent=31 // pred_fallthru
        _
    $region32: #{vae_conv_forward.30} parent=5 // pred_fallthru
      _
    %p793 = scmp.le.s32.totalorder 2, %s12
    // Predicated region
    $region65: #{vae_conv_forward.30} parent=5 // pred_check
      %p794 = pneg %p793
    $region66: #{vae_conv_forward.30} parent=5 // pred_check_branch
      %796 = sbr.rel (%p794) target = $region68
    $region67: #{vae_conv_forward.30} parent=5 // pred_region
      %s797 = ssub.s32 %s12, 2
    $region68: #{vae_conv_forward.30} parent=5 // pred_fallthru
      _
  $region6: #{vae_conv_forward.30} parent=0 // loop_footer
    %s16 = sadd.s32 1, %s12
  $region7: #{vae_conv_forward.30} parent=0 // loop_footer_branch
    %11 = sbr.rel target = $region3
  $region8: #{vae_conv_forward.30} parent=0 // loop_exit
    _

// kernel: vae_conv_forward.37
$region0: #{vae_conv_forward.37}
  #allocation0 [shape = 'u32[]', space=smem, size = 0x4, offset = 0x4, fixed_abs, tag = 'smem constant byte address 0x4 - core index']
  #allocation1 [shape = 'u32[144,128]{1,0:T(1,128)}', space=vmem, size = 0x12000, scoped, tag = 'internal scratch']
  %s0 = inlined_call_operand.vmem [shape: bf16[8,128], index: 0, kind: input, shape index: {}]
  %s1 = inlined_call_operand.vmem [shape: bf16[8,128], index: 1, kind: input, shape index: {}]
  %s2 = inlined_call_operand.vmem [shape: f32[1,128], index: 2, kind: input, shape index: {}]
  %s3 = inlined_call_operand.vmem [shape: f32[1,128], index: 3, kind: input, shape index: {}]
  %s4 = inlined_call_operand.vmem [shape: f32[1,128], index: 4, kind: input, shape index: {}]
  %s5 = inlined_call_operand.vmem [shape: f32[1,128], index: 5, kind: input, shape index: {}]
  %s6 = inlined_call_operand.vmem [shape: bf16[8,128], index: 6, kind: output, shape index: {}]
  %s7 = sld [smem:[#allocation0]]
  $region34: #{vae_conv_forward.37} parent=0
    _
  %s9 = ssub.s32 1, %s7
  %s10 = scalar_select 0, %s9, %s7
  // Predicated region
  $region2: #{vae_conv_forward.37} parent=0 // pred_check
    _
  $region3: #{vae_conv_forward.37} parent=0 // pred_check_branch
    %12 = sbr.rel (0) target = $region5
  $region4: #{vae_conv_forward.37} parent=0 // pred_region
    _
  $region5: #{vae_conv_forward.37} parent=0 // pred_fallthru
    _
  // Predicated region
  $region6: #{vae_conv_forward.37} parent=0 // pred_check
    _
  $region7: #{vae_conv_forward.37} parent=0 // pred_check_branch
    %14 = sbr.rel (0) target = $region9
  $region8: #{vae_conv_forward.37} parent=0 // pred_region
    _
  $region9: #{vae_conv_forward.37} parent=0 // pred_fallthru
    _
  // Predicated region
  $region10: #{vae_conv_forward.37} parent=0 // pred_check
    _
  $region11: #{vae_conv_forward.37} parent=0 // pred_check_branch
    %16 = sbr.rel (0) target = $region13
  $region12: #{vae_conv_forward.37} parent=0 // pred_region
    _
  $region13: #{vae_conv_forward.37} parent=0 // pred_fallthru
    _
  // Predicated region
  $region14: #{vae_conv_forward.37} parent=0 // pred_check
    _
  $region15: #{vae_conv_forward.37} parent=0 // pred_check_branch
    %18 = sbr.rel (0) target = $region17
  $region16: #{vae_conv_forward.37} parent=0 // pred_region
    _
  $region17: #{vae_conv_forward.37} parent=0 // pred_fallthru
    _
  // Predicated region
  $region18: #{vae_conv_forward.37} parent=0 // pred_check
    _
  $region19: #{vae_conv_forward.37} parent=0 // pred_check_branch
    %20 = sbr.rel (0) target = $region21
  $region20: #{vae_conv_forward.37} parent=0 // pred_region
    _
  $region21: #{vae_conv_forward.37} parent=0 // pred_fallthru
    _
  // Predicated region
  $region22: #{vae_conv_forward.37} parent=0 // pred_check
    _
  $region23: #{vae_conv_forward.37} parent=0 // pred_check_branch
    %22 = sbr.rel (0) target = $region25
  $region24: #{vae_conv_forward.37} parent=0 // pred_region
    _
  $region25: #{vae_conv_forward.37} parent=0 // pred_fallthru
    _
  %v23 = vld [vmem:[%s2] sm:$0x1]
  %v24 = vmul.f32 %v23, 0.125
  %v25 = vld [vmem:[%s3] sm:$0x1]
  %v26 = vmul.f32 %v25, 0.125
  %v27 = vmul.f32 %v24, %v24
  %v28 = vsub.f32 %v26, %v27
  %v29 = vadd.f32 %v28, 1e-05
  %v30 = vrsqrt.pop %v29
  %v31 = vld [vmem:[%s4] sm:$0x1]
  %v32 = vmul.f32 %v30, %v31
  %v33 = vld [vmem:[%s0] sm:$0xf]
  %v34 = vunpack.c.l.bf16 %v33
  %v36 = vlaneseq
  %v37 = vshrl.u32 %v36, 7
  %v38 = vsub.s32 0, %v37
  %v39 = vrot.slane %v24, %v38
  %v41 = vsub.f32 %v34, %v39
  %v43 = vlaneseq
  %v44 = vshrl.u32 %v43, 7
  %v45 = vsub.s32 0, %v44
  %v46 = vrot.slane %v32, %v45
  %v48 = vmul.f32 %v41, %v46
  %v49 = vld [vmem:[%s5] sm:$0x1]
  %v51 = vlaneseq
  %v52 = vshrl.u32 %v51, 7
  %v53 = vsub.s32 0, %v52
  %v54 = vrot.slane %v49, %v53
  %v56 = vadd.f32 %v48, %v54
  %v57 = vld [vmem:[%s1] sm:$0xf]
  %v58 = vunpack.c.l.bf16 %v57
  %v59 = vadd.f32 %v56, %v58
  %vm60 = vcmp.gt.f32.partialorder %v59, 0.0
  %v61 = vmul.f32 %v59, 0.2
  %v62 = vsel %vm60, %v59, %v61
  %v63 = vpack.c.bf16 %v62, %v62
  %64 = vst [vmem:[%s6] sm:$0xf] %v63
  // Predicated region
  $region26: #{vae_conv_forward.37} parent=0 // pred_check
    _
  $region27: #{vae_conv_forward.37} parent=0 // pred_check_branch
    %66 = sbr.rel (0) target = $region29
  $region28: #{vae_conv_forward.37} parent=0 // pred_region
    _
  $region29: #{vae_conv_forward.37} parent=0 // pred_fallthru
    _
  // Predicated region
  $region30: #{vae_conv_forward.37} parent=0 // pred_check
    _
  $region31: #{vae_conv_forward.37} parent=0 // pred_check_branch
    %68 = sbr.rel (0) target = $region33
  $region32: #{vae_conv_forward.37} parent=0 // pred_region
    _
  $region33: #{vae_conv_forward.37} parent=0 // pred_fallthru
    _

// kernel: vae_conv_forward.34
$region0: #{vae_conv_forward.34}
  #allocation0 [shape = 'u32[]', space=smem, size = 0x4, offset = 0x4, fixed_abs, tag = 'smem constant byte address 0x4 - core index']
  #allocation1 [shape = 'u32[144,128]{1,0:T(1,128)}', space=vmem, size = 0x12000, scoped, tag = 'internal scratch']
  #allocation2 [shape = 'f32[8,128]{1,0:T(8,128)}', space=vmem, size = 0x1000, scoped, tag = 'scratch operand']
  %s0 = inlined_call_operand.vmem [shape: bf16[8,384], index: 0, kind: input, shape index: {}]
  %s1 = inlined_call_operand.vmem [shape: bf16[384,128], index: 1, kind: input, shape index: {}]
  %s2 = inlined_call_operand.vmem [shape: f32[1,128], index: 2, kind: input, shape index: {}]
  %s3 = inlined_call_operand.vmem [shape: bf16[8,128], index: 3, kind: output, shape index: {0}]
  %s4 = inlined_call_operand.vmem [shape: f32[1,128], index: 4, kind: output, shape index: {1}]
  %s5 = inlined_call_operand.vmem [shape: f32[1,128], index: 5, kind: output, shape index: {2}]
  %6 = xla_tuple %s3, %s4, %s5
  %s7 = sld [smem:[#allocation0]]
  $region46: #{vae_conv_forward.34} parent=0
    _
  %s9 = ssub.s32 1, %s7
  %s10 = scalar_select 0, %s9, %s7
  // Predicated region
  $region2: #{vae_conv_forward.34} parent=0 // pred_check
    _
  $region3: #{vae_conv_forward.34} parent=0 // pred_check_branch
    %12 = sbr.rel (0) target = $region5
  $region4: #{vae_conv_forward.34} parent=0 // pred_region
    _
  $region5: #{vae_conv_forward.34} parent=0 // pred_fallthru
    _
  // Predicated region
  $region6: #{vae_conv_forward.34} parent=0 // pred_check
    _
  $region7: #{vae_conv_forward.34} parent=0 // pred_check_branch
    %14 = sbr.rel (0) target = $region9
  $region8: #{vae_conv_forward.34} parent=0 // pred_region
    _
  $region9: #{vae_conv_forward.34} parent=0 // pred_fallthru
    _
  // Predicated region
  $region10: #{vae_conv_forward.34} parent=0 // pred_check
    _
  $region11: #{vae_conv_forward.34} parent=0 // pred_check_branch
    %16 = sbr.rel (0) target = $region13
  $region12: #{vae_conv_forward.34} parent=0 // pred_region
    _
  $region13: #{vae_conv_forward.34} parent=0 // pred_fallthru
    _
  %p18 = scmp.eq.s32.totalorder 0, 0
  // Predicated region
  $region14: #{vae_conv_forward.34} parent=0 // pred_check
    %p19 = pneg %p18
  $region15: #{vae_conv_forward.34} parent=0 // pred_check_branch
    %21 = sbr.rel (%p19) target = $region17
  $region16: #{vae_conv_forward.34} parent=0 // pred_region
    %22 = vst [vmem:[#allocation2] sm:$0xff] 0.0
  $region17: #{vae_conv_forward.34} parent=0 // pred_fallthru
    _
  %v23 = vld [vmem:[#allocation2] sm:$0xff]
  %v24 = vld [vmem:[%s0] sm:$0xff]
  %v25 = vld [vmem:[%s0 + $0x8] sm:$0xf]
  %v26 = vld [vmem:[%s1] sm:$0xf]
  %v27 = vld [vmem:[%s1 + $0x4] sm:$0xf]
  %v28 = vld [vmem:[%s1 + $0x8] sm:$0xf]
  %v29 = vld [vmem:[%s1 + $0xc] sm:$0xf]
  %v30 = vld [vmem:[%s1 + $0x10] sm:$0xf]
  %v31 = vld [vmem:[%s1 + $0x14] sm:$0xf]
  %v32 = vld [vmem:[%s1 + $0x18] sm:$0xf]
  %v33 = vld [vmem:[%s1 + $0x1c] sm:$0xf]
  %v34 = vld [vmem:[%s1 + $0x20] sm:$0xf]
  %v35 = vld [vmem:[%s1 + $0x24] sm:$0xf]
  %v36 = vld [vmem:[%s1 + $0x28] sm:$0xf]
  %v37 = vld [vmem:[%s1 + $0x2c] sm:$0xf]
  %v38 = vld [vmem:[%s1 + $0x30] sm:$0xf]
  %v39 = vld [vmem:[%s1 + $0x34] sm:$0xf]
  %v40 = vld [vmem:[%s1 + $0x38] sm:$0xf]
  %v41 = vld [vmem:[%s1 + $0x3c] sm:$0xf]
  %v42 = vld [vmem:[%s1 + $0x40] sm:$0xf]
  %v43 = vld [vmem:[%s1 + $0x44] sm:$0xf]
  %v44 = vld [vmem:[%s1 + $0x48] sm:$0xf]
  %v45 = vld [vmem:[%s1 + $0x4c] sm:$0xf]
  %v46 = vld [vmem:[%s1 + $0x50] sm:$0xf]
  %v47 = vld [vmem:[%s1 + $0x54] sm:$0xf]
  %v48 = vld [vmem:[%s1 + $0x58] sm:$0xf]
  %v49 = vld [vmem:[%s1 + $0x5c] sm:$0xf]
  %v50 = vld [vmem:[%s1 + $0x60] sm:$0xf]
  %v51 = vld [vmem:[%s1 + $0x64] sm:$0xf]
  %v52 = vld [vmem:[%s1 + $0x68] sm:$0xf]
  %v53 = vld [vmem:[%s1 + $0x6c] sm:$0xf]
  %v54 = vld [vmem:[%s1 + $0x70] sm:$0xf]
  %v55 = vld [vmem:[%s1 + $0x74] sm:$0xf]
  %v56 = vld [vmem:[%s1 + $0x78] sm:$0xf]
  %v57 = vld [vmem:[%s1 + $0x7c] sm:$0xf]
  %v58 = vld [vmem:[%s1 + $0x80] sm:$0xf]
  %v59 = vld [vmem:[%s1 + $0x84] sm:$0xf]
  %v60 = vld [vmem:[%s1 + $0x88] sm:$0xf]
  %v61 = vld [vmem:[%s1 + $0x8c] sm:$0xf]
  %v62 = vld [vmem:[%s1 + $0x90] sm:$0xf]
  %v63 = vld [vmem:[%s1 + $0x94] sm:$0xf]
  %v64 = vld [vmem:[%s1 + $0x98] sm:$0xf]
  %v65 = vld [vmem:[%s1 + $0x9c] sm:$0xf]
  %v66 = vld [vmem:[%s1 + $0xa0] sm:$0xf]
  %v67 = vld [vmem:[%s1 + $0xa4] sm:$0xf]
  %v68 = vld [vmem:[%s1 + $0xa8] sm:$0xf]
  %v69 = vld [vmem:[%s1 + $0xac] sm:$0xf]
  %v70 = vld [vmem:[%s1 + $0xb0] sm:$0xf]
  %v71 = vld [vmem:[%s1 + $0xb4] sm:$0xf]
  %v72 = vld [vmem:[%s1 + $0xb8] sm:$0xf]
  %v73 = vld [vmem:[%s1 + $0xbc] sm:$0xf]
  %v76 = vunpack.c.l.b16 %v24
  %v77 = vunpack.c.h.b16 %v24
  %v78 = vunpack.c.l.b16 %v25
  %v79 = vpack.c.b16 %v76, %v76
  %v80 = vpack.c.b16 %v77, %v77
  %v81 = vpack.c.b16 %v78, %v78
  %v133 = vunpack.c.l.b16 %v26
  %v134 = vunpack.c.l.b16 %v27
  %v135 = vunpack.c.l.b16 %v28
  %v136 = vunpack.c.l.b16 %v29
  %v137 = vunpack.c.l.b16 %v30
  %v138 = vunpack.c.l.b16 %v31
  %v139 = vunpack.c.l.b16 %v32
  %v140 = vunpack.c.l.b16 %v33
  %v141 = vunpack.c.l.b16 %v34
  %v142 = vunpack.c.l.b16 %v35
  %v143 = vunpack.c.l.b16 %v36
  %v144 = vunpack.c.l.b16 %v37
  %v145 = vunpack.c.l.b16 %v38
  %v146 = vunpack.c.l.b16 %v39
  %v147 = vunpack.c.l.b16 %v40
  %v148 = vunpack.c.l.b16 %v41
  %v149 = vunpack.c.l.b16 %v42
  %v150 = vunpack.c.l.b16 %v43
  %v151 = vunpack.c.l.b16 %v44
  %v152 = vunpack.c.l.b16 %v45
  %v153 = vunpack.c.l.b16 %v46
  %v154 = vunpack.c.l.b16 %v47
  %v155 = vunpack.c.l.b16 %v48
  %v156 = vunpack.c.l.b16 %v49
  %v157 = vunpack.c.l.b16 %v50
  %v158 = vunpack.c.l.b16 %v51
  %v159 = vunpack.c.l.b16 %v52
  %v160 = vunpack.c.l.b16 %v53
  %v161 = vunpack.c.l.b16 %v54
  %v162 = vunpack.c.l.b16 %v55
  %v163 = vunpack.c.l.b16 %v56
  %v164 = vunpack.c.l.b16 %v57
  %v165 = vunpack.c.l.b16 %v58
  %v166 = vunpack.c.l.b16 %v59
  %v167 = vunpack.c.l.b16 %v60
  %v168 = vunpack.c.l.b16 %v61
  %v169 = vunpack.c.l.b16 %v62
  %v170 = vunpack.c.l.b16 %v63
  %v171 = vunpack.c.l.b16 %v64
  %v172 = vunpack.c.l.b16 %v65
  %v173 = vunpack.c.l.b16 %v66
  %v174 = vunpack.c.l.b16 %v67
  %v175 = vunpack.c.l.b16 %v68
  %v176 = vunpack.c.l.b16 %v69
  %v177 = vunpack.c.l.b16 %v70
  %v178 = vunpack.c.l.b16 %v71
  %v179 = vunpack.c.l.b16 %v72
  %v180 = vunpack.c.l.b16 %v73
  %v181 = vpack.c.b16 %v134, %v133
  %v182 = vpack.c.b16 %v136, %v135
  %v183 = vpack.c.b16 %v138, %v137
  %v184 = vpack.c.b16 %v140, %v139
  %v185 = vpack.c.b16 %v142, %v141
  %v186 = vpack.c.b16 %v144, %v143
  %v187 = vpack.c.b16 %v146, %v145
  %v188 = vpack.c.b16 %v148, %v147
  %v189 = vpack.c.b16 %v150, %v149
  %v190 = vpack.c.b16 %v152, %v151
  %v191 = vpack.c.b16 %v154, %v153
  %v192 = vpack.c.b16 %v156, %v155
  %v193 = vpack.c.b16 %v158, %v157
  %v194 = vpack.c.b16 %v160, %v159
  %v195 = vpack.c.b16 %v162, %v161
  %v196 = vpack.c.b16 %v164, %v163
  %v197 = vpack.c.b16 %v166, %v165
  %v198 = vpack.c.b16 %v168, %v167
  %v199 = vpack.c.b16 %v170, %v169
  %v200 = vpack.c.b16 %v172, %v171
  %v201 = vpack.c.b16 %v174, %v173
  %v202 = vpack.c.b16 %v176, %v175
  %v203 = vpack.c.b16 %v178, %v177
  %v204 = vpack.c.b16 %v180, %v179
  %229 = vmatprep.subr.bf16.mxu0 0
  %230 = vmatpush1.bf16.msra.mxu0 %v181
  %231 = vmatprep.subr.bf16.mxu0 0
  %232 = vmatpush1.bf16.msra.mxu0 %v182
  %233 = vmatprep.subr.bf16.mxu0 0
  %234 = vmatpush1.bf16.msra.mxu0 %v183
  %235 = vmatprep.subr.bf16.mxu0 0
  %236 = vmatpush1.bf16.msra.mxu0 %v184
  %237 = vmatprep.subr.bf16.mxu0 0
  %238 = vmatpush1.bf16.msra.mxu0 %v185
  %239 = vmatprep.subr.bf16.mxu0 0
  %240 = vmatpush1.bf16.msra.mxu0 %v186
  %241 = vmatprep.subr.bf16.mxu0 0
  %242 = vmatpush1.bf16.msra.mxu0 %v187
  %243 = vmatprep.subr.bf16.mxu0 0
  %244 = vmatpush1.bf16.msra.mxu0 %v188
  %245 = vmatprep.subr.bf16.mxu0 0
  %246 = vmatpush1.bf16.msra.mxu0 %v189
  %247 = vmatprep.subr.bf16.mxu0 0
  %248 = vmatpush1.bf16.msra.mxu0 %v190
  %249 = vmatprep.subr.bf16.mxu0 0
  %250 = vmatpush1.bf16.msra.mxu0 %v191
  %251 = vmatprep.subr.bf16.mxu0 0
  %252 = vmatpush1.bf16.msra.mxu0 %v192
  %253 = vmatprep.subr.bf16.mxu0 0
  %254 = vmatpush1.bf16.msra.mxu0 %v193
  %255 = vmatprep.subr.bf16.mxu0 0
  %256 = vmatpush1.bf16.msra.mxu0 %v194
  %257 = vmatprep.subr.bf16.mxu0 0
  %258 = vmatpush1.bf16.msra.mxu0 %v195
  %259 = vmatprep.subr.bf16.mxu0 0
  %260 = vmatpush1.bf16.msra.mxu0 %v196
  %261 = vmatprep.mubr.bf16.mxu0 %v80
  %262 = vmatmul.mubr.bf16.gmra.mrb[0].mxu0 %v79
  %v263 = vpop.f32.mrb[0].mxu0
  %v264 = vadd.f32 0.0, %v263
  %v265 = vpop.f32.mrb[0].mxu0
  %v266 = vpop.f32.mrb[0].mxu0
  %v267 = vpop.f32.mrb[0].mxu0
  %268 = vdwg.mxu0
  %269 = vmatprep.subr.bf16.mxu0 0
  %270 = vmatpush1.bf16.msra.mxu0 %v197
  %271 = vmatprep.subr.bf16.mxu0 0
  %272 = vmatpush1.bf16.msra.mxu0 %v198
  %273 = vmatprep.subr.bf16.mxu0 0
  %274 = vmatpush1.bf16.msra.mxu0 %v199
  %275 = vmatprep.subr.bf16.mxu0 0
  %276 = vmatpush1.bf16.msra.mxu0 %v200
  %277 = vmatprep.subr.bf16.mxu0 0
  %278 = vmatpush1.bf16.msra.mxu0 %v201
  %279 = vmatprep.subr.bf16.mxu0 0
  %280 = vmatpush1.bf16.msra.mxu0 %v202
  %281 = vmatprep.subr.bf16.mxu0 0
  %282 = vmatpush1.bf16.msra.mxu0 %v203
  %283 = vmatprep.subr.bf16.mxu0 0
  %284 = vmatpush1.bf16.msra.mxu0 %v204
  %285 = vmatprep.subr.bf16.mxu0 0
  %286 = vmatpush1.bf16.msra.mxu0 0
  %287 = vmatprep.subr.bf16.mxu0 0
  %288 = vmatpush1.bf16.msra.mxu0 0
  %289 = vmatprep.subr.bf16.mxu0 0
  %290 = vmatpush1.bf16.msra.mxu0 0
  %291 = vmatprep.subr.bf16.mxu0 0
  %292 = vmatpush1.bf16.msra.mxu0 0
  %293 = vmatprep.subr.bf16.mxu0 0
  %294 = vmatpush1.bf16.msra.mxu0 0
  %295 = vmatprep.subr.bf16.mxu0 0
  %296 = vmatpush1.bf16.msra.mxu0 0
  %297 = vmatprep.subr.bf16.mxu0 0
  %298 = vmatpush1.bf16.msra.mxu0 0
  %299 = vmatprep.subr.bf16.mxu0 0
  %300 = vmatpush1.bf16.msra.mxu0 0
  %301 = vmatprep.mubr.bf16.mxu0 0
  %302 = vmatmul.mubr.bf16.gmra.mrb[0].mxu0 %v81
  %v303 = vpop.f32.mrb[0].mxu0
  %v304 = vadd.f32 %v264, %v303
  %v305 = vpop.f32.mrb[0].mxu0
  %v306 = vpop.f32.mrb[0].mxu0
  %v307 = vpop.f32.mrb[0].mxu0
  %308 = vdwg.mxu0
  %v309 = vadd.f32 %v23, %v304
  %310 = vst [vmem:[#allocation2] sm:$0xff] %v309
  // Predicated region
  $region18: #{vae_conv_forward.34} parent=0 // pred_check
    %p311 = pneg %p18
  $region19: #{vae_conv_forward.34} parent=0 // pred_check_branch
    %313 = sbr.rel (%p311) target = $region21
  $region20: #{vae_conv_forward.34} parent=0 // pred_region
    %v314 = vld [vmem:[#allocation2] sm:$0xff]
    %v315 = vld [vmem:[%s2] sm:$0x1]
    %v317 = vlaneseq
    %v318 = vshrl.u32 %v317, 7
    %v319 = vsub.s32 0, %v318
    %v320 = vrot.slane %v315, %v319
    %v322 = vadd.f32 %v314, %v320
    %v323 = vpack.c.bf16 %v322, %v322
    %324 = vst [vmem:[%s3] sm:$0xf] %v323
    %v325 = vrot.slane %v322, 4
    %v326 = vadd.f32 %v322, %v325
    %v327 = vrot.slane %v326, 2
    %v328 = vadd.f32 %v326, %v327
    %v329 = vrot.slane %v328, 1
    %v330 = vadd.f32 %v328, %v329
    %331 = vst [vmem:[%s4] sm:$0x1] %v330
    %v332 = vmul.f32 %v322, %v322
    %v333 = vrot.slane %v332, 4
    %v334 = vadd.f32 %v332, %v333
    %v335 = vrot.slane %v334, 2
    %v336 = vadd.f32 %v334, %v335
    %v337 = vrot.slane %v336, 1
    %v338 = vadd.f32 %v336, %v337
    %339 = vst [vmem:[%s5] sm:$0x1] %v338
  $region21: #{vae_conv_forward.34} parent=0 // pred_fallthru
    _
  // Predicated region
  $region22: #{vae_conv_forward.34} parent=0 // pred_check
    _
  $region23: #{vae_conv_forward.34} parent=0 // pred_check_branch
    %341 = sbr.rel (0) target = $region25
  $region24: #{vae_conv_forward.34} parent=0 // pred_region
    _
  $region25: #{vae_conv_forward.34} parent=0 // pred_fallthru
    _
  // Predicated region
  $region26: #{vae_conv_forward.34} parent=0 // pred_check
    _
  $region27: #{vae_conv_forward.34} parent=0 // pred_check_branch
    %343 = sbr.rel (0) target = $region29
  $region28: #{vae_conv_forward.34} parent=0 // pred_region
    _
  $region29: #{vae_conv_forward.34} parent=0 // pred_fallthru
    _
  // Predicated region
  $region30: #{vae_conv_forward.34} parent=0 // pred_check
    _
  $region31: #{vae_conv_forward.34} parent=0 // pred_check_branch
    %345 = sbr.rel (0) target = $region33
  $region32: #{vae_conv_forward.34} parent=0 // pred_region
    _
  $region33: #{vae_conv_forward.34} parent=0 // pred_fallthru
    _
  // Predicated region
  $region34: #{vae_conv_forward.34} parent=0 // pred_check
    _
  $region35: #{vae_conv_forward.34} parent=0 // pred_check_branch
    %347 = sbr.rel (0) target = $region37
  $region36: #{vae_conv_forward.34} parent=0 // pred_region
    _
  $region37: #{vae_conv_forward.34} parent=0 // pred_fallthru
    _
  // Predicated region
  $region38: #{vae_conv_forward.34} parent=0 // pred_check
    _
  $region39: #{vae_conv_forward.34} parent=0 // pred_check_branch
    %349 = sbr.rel (0) target = $region41
  $region40: #{vae_conv_forward.34} parent=0 // pred_region
    _
  $region41: #{vae_conv_forward.34} parent=0 // pred_fallthru
    _
  // Predicated region
  $region42: #{vae_conv_forward.34} parent=0 // pred_check
    _
  $region43: #{vae_conv_forward.34} parent=0 // pred_check_branch
    %351 = sbr.rel (0) target = $region45
  $region44: #{vae_conv_forward.34} parent=0 // pred_region
    _
  $region45: #{vae_conv_forward.34} parent=0 // pred_fallthru
    _

// kernel: vae_conv_forward.38
$region0: #{vae_conv_forward.38}
  #allocation0 [shape = 'u32[]', space=smem, size = 0x4, offset = 0x4, fixed_abs, tag = 'smem constant byte address 0x4 - core index']
  #allocation1 [shape = 'u32[144,128]{1,0:T(1,128)}', space=vmem, size = 0x12000, scoped, tag = 'internal scratch']
  #allocation2 [shape = 'f32[8,64]{1,0:T(8,128)}', space=vmem, size = 0x1000, scoped, tag = 'scratch operand']
  %s0 = inlined_call_operand.vmem [shape: bf16[8,512], index: 0, kind: input, shape index: {}]
  %s1 = inlined_call_operand.vmem [shape: bf16[512,64], index: 1, kind: input, shape index: {}]
  %s2 = inlined_call_operand.vmem [shape: f32[1,64], index: 2, kind: input, shape index: {}]
  %s3 = inlined_call_operand.vmem [shape: f32[8,32], index: 3, kind: input, shape index: {}]
  %s4 = inlined_call_operand.vmem [shape: f32[8,64], index: 4, kind: output, shape index: {0}]
  %s5 = inlined_call_operand.vmem [shape: f32[8,32], index: 5, kind: output, shape index: {1}]
  %6 = xla_tuple %s4, %s5
  %s7 = sld [smem:[#allocation0]]
  $region42: #{vae_conv_forward.38} parent=0
    _
  %s9 = ssub.s32 1, %s7
  %s10 = scalar_select 0, %s9, %s7
  // Predicated region
  $region2: #{vae_conv_forward.38} parent=0 // pred_check
    _
  $region3: #{vae_conv_forward.38} parent=0 // pred_check_branch
    %12 = sbr.rel (0) target = $region5
  $region4: #{vae_conv_forward.38} parent=0 // pred_region
    _
  $region5: #{vae_conv_forward.38} parent=0 // pred_fallthru
    _
  // Predicated region
  $region6: #{vae_conv_forward.38} parent=0 // pred_check
    _
  $region7: #{vae_conv_forward.38} parent=0 // pred_check_branch
    %14 = sbr.rel (0) target = $region9
  $region8: #{vae_conv_forward.38} parent=0 // pred_region
    _
  $region9: #{vae_conv_forward.38} parent=0 // pred_fallthru
    _
  // Predicated region
  $region10: #{vae_conv_forward.38} parent=0 // pred_check
    _
  $region11: #{vae_conv_forward.38} parent=0 // pred_check_branch
    %16 = sbr.rel (0) target = $region13
  $region12: #{vae_conv_forward.38} parent=0 // pred_region
    _
  $region13: #{vae_conv_forward.38} parent=0 // pred_fallthru
    _
  // Predicated region
  $region14: #{vae_conv_forward.38} parent=0 // pred_check
    _
  $region15: #{vae_conv_forward.38} parent=0 // pred_check_branch
    %18 = sbr.rel (0) target = $region17
  $region16: #{vae_conv_forward.38} parent=0 // pred_region
    _
  $region17: #{vae_conv_forward.38} parent=0 // pred_fallthru
    _
  %p20 = scmp.eq.s32.totalorder 0, 0
  // Predicated region
  $region18: #{vae_conv_forward.38} parent=0 // pred_check
    %p21 = pneg %p20
  $region19: #{vae_conv_forward.38} parent=0 // pred_check_branch
    %23 = sbr.rel (%p21) target = $region21
  $region20: #{vae_conv_forward.38} parent=0 // pred_region
    %vm24 = vcmask 523264
    %25 = vst.msk [vmem:[#allocation2] sm:$0xff] %vm24, 0.0
  $region21: #{vae_conv_forward.38} parent=0 // pred_fallthru
    _
  %v26 = vld [vmem:[#allocation2] sm:$0xff]
  %v27 = vld [vmem:[%s0] sm:$0xff]
  %v28 = vld [vmem:[%s0 + $0x8] sm:$0xff]
  %v29 = vld [vmem:[%s1] sm:$0xf]
  %v30 = vld [vmem:[%s1 + $0x4] sm:$0xf]
  %v31 = vld [vmem:[%s1 + $0x8] sm:$0xf]
  %v32 = vld [vmem:[%s1 + $0xc] sm:$0xf]
  %v33 = vld [vmem:[%s1 + $0x10] sm:$0xf]
  %v34 = vld [vmem:[%s1 + $0x14] sm:$0xf]
  %v35 = vld [vmem:[%s1 + $0x18] sm:$0xf]
  %v36 = vld [vmem:[%s1 + $0x1c] sm:$0xf]
  %v37 = vld [vmem:[%s1 + $0x20] sm:$0xf]
  %v38 = vld [vmem:[%s1 + $0x24] sm:$0xf]
  %v39 = vld [vmem:[%s1 + $0x28] sm:$0xf]
  %v40 = vld [vmem:[%s1 + $0x2c] sm:$0xf]
  %v41 = vld [vmem:[%s1 + $0x30] sm:$0xf]
  %v42 = vld [vmem:[%s1 + $0x34] sm:$0xf]
  %v43 = vld [vmem:[%s1 + $0x38] sm:$0xf]
  %v44 = vld [vmem:[%s1 + $0x3c] sm:$0xf]
  %v45 = vld [vmem:[%s1 + $0x40] sm:$0xf]
  %v46 = vld [vmem:[%s1 + $0x44] sm:$0xf]
  %v47 = vld [vmem:[%s1 + $0x48] sm:$0xf]
  %v48 = vld [vmem:[%s1 + $0x4c] sm:$0xf]
  %v49 = vld [vmem:[%s1 + $0x50] sm:$0xf]
  %v50 = vld [vmem:[%s1 + $0x54] sm:$0xf]
  %v51 = vld [vmem:[%s1 + $0x58] sm:$0xf]
  %v52 = vld [vmem:[%s1 + $0x5c] sm:$0xf]
  %v53 = vld [vmem:[%s1 + $0x60] sm:$0xf]
  %v54 = vld [vmem:[%s1 + $0x64] sm:$0xf]
  %v55 = vld [vmem:[%s1 + $0x68] sm:$0xf]
  %v56 = vld [vmem:[%s1 + $0x6c] sm:$0xf]
  %v57 = vld [vmem:[%s1 + $0x70] sm:$0xf]
  %v58 = vld [vmem:[%s1 + $0x74] sm:$0xf]
  %v59 = vld [vmem:[%s1 + $0x78] sm:$0xf]
  %v60 = vld [vmem:[%s1 + $0x7c] sm:$0xf]
  %v61 = vld [vmem:[%s1 + $0x80] sm:$0xf]
  %v62 = vld [vmem:[%s1 + $0x84] sm:$0xf]
  %v63 = vld [vmem:[%s1 + $0x88] sm:$0xf]
  %v64 = vld [vmem:[%s1 + $0x8c] sm:$0xf]
  %v65 = vld [vmem:[%s1 + $0x90] sm:$0xf]
  %v66 = vld [vmem:[%s1 + $0x94] sm:$0xf]
  %v67 = vld [vmem:[%s1 + $0x98] sm:$0xf]
  %v68 = vld [vmem:[%s1 + $0x9c] sm:$0xf]
  %v69 = vld [vmem:[%s1 + $0xa0] sm:$0xf]
  %v70 = vld [vmem:[%s1 + $0xa4] sm:$0xf]
  %v71 = vld [vmem:[%s1 + $0xa8] sm:$0xf]
  %v72 = vld [vmem:[%s1 + $0xac] sm:$0xf]
  %v73 = vld [vmem:[%s1 + $0xb0] sm:$0xf]
  %v74 = vld [vmem:[%s1 + $0xb4] sm:$0xf]
  %v75 = vld [vmem:[%s1 + $0xb8] sm:$0xf]
  %v76 = vld [vmem:[%s1 + $0xbc] sm:$0xf]
  %v77 = vld [vmem:[%s1 + $0xc0] sm:$0xf]
  %v78 = vld [vmem:[%s1 + $0xc4] sm:$0xf]
  %v79 = vld [vmem:[%s1 + $0xc8] sm:$0xf]
  %v80 = vld [vmem:[%s1 + $0xcc] sm:$0xf]
  %v81 = vld [vmem:[%s1 + $0xd0] sm:$0xf]
  %v82 = vld [vmem:[%s1 + $0xd4] sm:$0xf]
  %v83 = vld [vmem:[%s1 + $0xd8] sm:$0xf]
  %v84 = vld [vmem:[%s1 + $0xdc] sm:$0xf]
  %v85 = vld [vmem:[%s1 + $0xe0] sm:$0xf]
  %v86 = vld [vmem:[%s1 + $0xe4] sm:$0xf]
  %v87 = vld [vmem:[%s1 + $0xe8] sm:$0xf]
  %v88 = vld [vmem:[%s1 + $0xec] sm:$0xf]
  %v89 = vld [vmem:[%s1 + $0xf0] sm:$0xf]
  %v90 = vld [vmem:[%s1 + $0xf4] sm:$0xf]
  %v91 = vld [vmem:[%s1 + $0xf8] sm:$0xf]
  %v92 = vld [vmem:[%s1 + $0xfc] sm:$0xf]
  %v95 = vunpack.c.l.b16 %v27
  %v96 = vunpack.c.h.b16 %v27
  %v97 = vunpack.c.l.b16 %v28
  %v98 = vunpack.c.h.b16 %v28
  %v99 = vpack.c.b16 %v95, %v95
  %v100 = vpack.c.b16 %v96, %v96
  %v101 = vpack.c.b16 %v97, %v97
  %v102 = vpack.c.b16 %v98, %v98
  %v171 = vunpack.c.l.b16 %v29
  %v172 = vunpack.c.l.b16 %v30
  %v173 = vunpack.c.l.b16 %v31
  %v174 = vunpack.c.l.b16 %v32
  %v175 = vunpack.c.l.b16 %v33
  %v176 = vunpack.c.l.b16 %v34
  %v177 = vunpack.c.l.b16 %v35
  %v178 = vunpack.c.l.b16 %v36
  %v179 = vunpack.c.l.b16 %v37
  %v180 = vunpack.c.l.b16 %v38
  %v181 = vunpack.c.l.b16 %v39
  %v182 = vunpack.c.l.b16 %v40
  %v183 = vunpack.c.l.b16 %v41
  %v184 = vunpack.c.l.b16 %v42
  %v185 = vunpack.c.l.b16 %v43
  %v186 = vunpack.c.l.b16 %v44
  %v187 = vunpack.c.l.b16 %v45
  %v188 = vunpack.c.l.b16 %v46
  %v189 = vunpack.c.l.b16 %v47
  %v190 = vunpack.c.l.b16 %v48
  %v191 = vunpack.c.l.b16 %v49
  %v192 = vunpack.c.l.b16 %v50
  %v193 = vunpack.c.l.b16 %v51
  %v194 = vunpack.c.l.b16 %v52
  %v195 = vunpack.c.l.b16 %v53
  %v196 = vunpack.c.l.b16 %v54
  %v197 = vunpack.c.l.b16 %v55
  %v198 = vunpack.c.l.b16 %v56
  %v199 = vunpack.c.l.b16 %v57
  %v200 = vunpack.c.l.b16 %v58
  %v201 = vunpack.c.l.b16 %v59
  %v202 = vunpack.c.l.b16 %v60
  %v203 = vunpack.c.l.b16 %v61
  %v204 = vunpack.c.l.b16 %v62
  %v205 = vunpack.c.l.b16 %v63
  %v206 = vunpack.c.l.b16 %v64
  %v207 = vunpack.c.l.b16 %v65
  %v208 = vunpack.c.l.b16 %v66
  %v209 = vunpack.c.l.b16 %v67
  %v210 = vunpack.c.l.b16 %v68
  %v211 = vunpack.c.l.b16 %v69
  %v212 = vunpack.c.l.b16 %v70
  %v213 = vunpack.c.l.b16 %v71
  %v214 = vunpack.c.l.b16 %v72
  %v215 = vunpack.c.l.b16 %v73
  %v216 = vunpack.c.l.b16 %v74
  %v217 = vunpack.c.l.b16 %v75
  %v218 = vunpack.c.l.b16 %v76
  %v219 = vunpack.c.l.b16 %v77
  %v220 = vunpack.c.l.b16 %v78
  %v221 = vunpack.c.l.b16 %v79
  %v222 = vunpack.c.l.b16 %v80
  %v223 = vunpack.c.l.b16 %v81
  %v224 = vunpack.c.l.b16 %v82
  %v225 = vunpack.c.l.b16 %v83
  %v226 = vunpack.c.l.b16 %v84
  %v227 = vunpack.c.l.b16 %v85
  %v228 = vunpack.c.l.b16 %v86
  %v229 = vunpack.c.l.b16 %v87
  %v230 = vunpack.c.l.b16 %v88
  %v231 = vunpack.c.l.b16 %v89
  %v232 = vunpack.c.l.b16 %v90
  %v233 = vunpack.c.l.b16 %v91
  %v234 = vunpack.c.l.b16 %v92
  %v235 = vpack.c.b16 %v172, %v171
  %v236 = vpack.c.b16 %v174, %v173
  %v237 = vpack.c.b16 %v176, %v175
  %v238 = vpack.c.b16 %v178, %v177
  %v239 = vpack.c.b16 %v180, %v179
  %v240 = vpack.c.b16 %v182, %v181
  %v241 = vpack.c.b16 %v184, %v183
  %v242 = vpack.c.b16 %v186, %v185
  %v243 = vpack.c.b16 %v188, %v187
  %v244 = vpack.c.b16 %v190, %v189
  %v245 = vpack.c.b16 %v192, %v191
  %v246 = vpack.c.b16 %v194, %v193
  %v247 = vpack.c.b16 %v196, %v195
  %v248 = vpack.c.b16 %v198, %v197
  %v249 = vpack.c.b16 %v200, %v199
  %v250 = vpack.c.b16 %v202, %v201
  %v251 = vpack.c.b16 %v204, %v203
  %v252 = vpack.c.b16 %v206, %v205
  %v253 = vpack.c.b16 %v208, %v207
  %v254 = vpack.c.b16 %v210, %v209
  %v255 = vpack.c.b16 %v212, %v211
  %v256 = vpack.c.b16 %v214, %v213
  %v257 = vpack.c.b16 %v216, %v215
  %v258 = vpack.c.b16 %v218, %v217
  %v259 = vpack.c.b16 %v220, %v219
  %v260 = vpack.c.b16 %v222, %v221
  %v261 = vpack.c.b16 %v224, %v223
  %v262 = vpack.c.b16 %v226, %v225
  %v263 = vpack.c.b16 %v228, %v227
  %v264 = vpack.c.b16 %v230, %v229
  %v265 = vpack.c.b16 %v232, %v231
  %v266 = vpack.c.b16 %v234, %v233
  %299 = vmatprep.subr.bf16.mxu0 0
  %300 = vmatpush1.bf16.msra.mxu0 %v235
  %301 = vmatprep.subr.bf16.mxu0 0
  %302 = vmatpush1.bf16.msra.mxu0 %v236
  %303 = vmatprep.subr.bf16.mxu0 0
  %304 = vmatpush1.bf16.msra.mxu0 %v237
  %305 = vmatprep.subr.bf16.mxu0 0
  %306 = vmatpush1.bf16.msra.mxu0 %v238
  %307 = vmatprep.subr.bf16.mxu0 0
  %308 = vmatpush1.bf16.msra.mxu0 %v239
  %309 = vmatprep.subr.bf16.mxu0 0
  %310 = vmatpush1.bf16.msra.mxu0 %v240
  %311 = vmatprep.subr.bf16.mxu0 0
  %312 = vmatpush1.bf16.msra.mxu0 %v241
  %313 = vmatprep.subr.bf16.mxu0 0
  %314 = vmatpush1.bf16.msra.mxu0 %v242
  %315 = vmatprep.subr.bf16.mxu0 0
  %316 = vmatpush1.bf16.msra.mxu0 %v243
  %317 = vmatprep.subr.bf16.mxu0 0
  %318 = vmatpush1.bf16.msra.mxu0 %v244
  %319 = vmatprep.subr.bf16.mxu0 0
  %320 = vmatpush1.bf16.msra.mxu0 %v245
  %321 = vmatprep.subr.bf16.mxu0 0
  %322 = vmatpush1.bf16.msra.mxu0 %v246
  %323 = vmatprep.subr.bf16.mxu0 0
  %324 = vmatpush1.bf16.msra.mxu0 %v247
  %325 = vmatprep.subr.bf16.mxu0 0
  %326 = vmatpush1.bf16.msra.mxu0 %v248
  %327 = vmatprep.subr.bf16.mxu0 0
  %328 = vmatpush1.bf16.msra.mxu0 %v249
  %329 = vmatprep.subr.bf16.mxu0 0
  %330 = vmatpush1.bf16.msra.mxu0 %v250
  %331 = vmatprep.mubr.bf16.mxu0 %v100
  %332 = vmatmul.mubr.bf16.gmra.mrb[0].mxu0 %v99
  %v333 = vpop.f32.mrb[0].mxu0
  %v334 = vadd.f32 0.0, %v333
  %v335 = vpop.f32.mrb[0].mxu0
  %v336 = vpop.f32.mrb[0].mxu0
  %v337 = vpop.f32.mrb[0].mxu0
  %338 = vdwg.mxu0
  %339 = vmatprep.subr.bf16.mxu0 0
  %340 = vmatpush1.bf16.msra.mxu0 %v251
  %341 = vmatprep.subr.bf16.mxu0 0
  %342 = vmatpush1.bf16.msra.mxu0 %v252
  %343 = vmatprep.subr.bf16.mxu0 0
  %344 = vmatpush1.bf16.msra.mxu0 %v253
  %345 = vmatprep.subr.bf16.mxu0 0
  %346 = vmatpush1.bf16.msra.mxu0 %v254
  %347 = vmatprep.subr.bf16.mxu0 0
  %348 = vmatpush1.bf16.msra.mxu0 %v255
  %349 = vmatprep.subr.bf16.mxu0 0
  %350 = vmatpush1.bf16.msra.mxu0 %v256
  %351 = vmatprep.subr.bf16.mxu0 0
  %352 = vmatpush1.bf16.msra.mxu0 %v257
  %353 = vmatprep.subr.bf16.mxu0 0
  %354 = vmatpush1.bf16.msra.mxu0 %v258
  %355 = vmatprep.subr.bf16.mxu0 0
  %356 = vmatpush1.bf16.msra.mxu0 %v259
  %357 = vmatprep.subr.bf16.mxu0 0
  %358 = vmatpush1.bf16.msra.mxu0 %v260
  %359 = vmatprep.subr.bf16.mxu0 0
  %360 = vmatpush1.bf16.msra.mxu0 %v261
  %361 = vmatprep.subr.bf16.mxu0 0
  %362 = vmatpush1.bf16.msra.mxu0 %v262
  %363 = vmatprep.subr.bf16.mxu0 0
  %364 = vmatpush1.bf16.msra.mxu0 %v263
  %365 = vmatprep.subr.bf16.mxu0 0
  %366 = vmatpush1.bf16.msra.mxu0 %v264
  %367 = vmatprep.subr.bf16.mxu0 0
  %368 = vmatpush1.bf16.msra.mxu0 %v265
  %369 = vmatprep.subr.bf16.mxu0 0
  %370 = vmatpush1.bf16.msra.mxu0 %v266
  %371 = vmatprep.mubr.bf16.mxu0 %v102
  %372 = vmatmul.mubr.bf16.gmra.mrb[0].mxu0 %v101
  %v373 = vpop.f32.mrb[0].mxu0
  %v374 = vadd.f32 %v334, %v373
  %v375 = vpop.f32.mrb[0].mxu0
  %v376 = vpop.f32.mrb[0].mxu0
  %v377 = vpop.f32.mrb[0].mxu0
  %378 = vdwg.mxu0
  %v379 = vadd.f32 %v26, %v374
  %vm380 = vcmask 523264
  %381 = vst.msk [vmem:[#allocation2] sm:$0xff] %vm380, %v379
  // Predicated region
  $region22: #{vae_conv_forward.38} parent=0 // pred_check
    %p382 = pneg %p20
  $region23: #{vae_conv_forward.38} parent=0 // pred_check_branch
    %384 = sbr.rel (%p382) target = $region25
  $region24: #{vae_conv_forward.38} parent=0 // pred_region
    %v385 = vld [vmem:[#allocation2] sm:$0xff]
    %v386 = vld [vmem:[%s2] sm:$0x1]
    %v388 = vlaneseq
    %v389 = vshrl.u32 %v388, 7
    %v390 = vsub.s32 0, %v389
    %v391 = vrot.slane %v386, %v390
    %v393 = vadd.f32 %v385, %v391
    %394 = vst.msk [vmem:[%s4] sm:$0xff] %vm380, %v393
    %v395 = vld [vmem:[%s3] sm:$0xff]
    %v396 = vmul.f32 %v393, 0.5
    %v397 = vmul.f32 %v396, 1.442695
    %v398 = vpow.pop %v397
    %400 = vrot.lane.b32.xlu0 %v398, 96
    %v401 = vpop.permute.xlu0 %400
    %v403 = vmul.f32 %v395, %v401
    %v404 = vadd.f32 %v393, %v403
    %vm405 = vcmask 261120
    %406 = vst.msk [vmem:[%s5] sm:$0xff] %vm405, %v404
  $region25: #{vae_conv_forward.38} parent=0 // pred_fallthru
    _
  // Predicated region
  $region26: #{vae_conv_forward.38} parent=0 // pred_check
    _
  $region27: #{vae_conv_forward.38} parent=0 // pred_check_branch
    %408 = sbr.rel (0) target = $region29
  $region28: #{vae_conv_forward.38} parent=0 // pred_region
    _
  $region29: #{vae_conv_forward.38} parent=0 // pred_fallthru
    _
  // Predicated region
  $region30: #{vae_conv_forward.38} parent=0 // pred_check
    _
  $region31: #{vae_conv_forward.38} parent=0 // pred_check_branch
    %410 = sbr.rel (0) target = $region33
  $region32: #{vae_conv_forward.38} parent=0 // pred_region
    _
  $region33: #{vae_conv_forward.38} parent=0 // pred_fallthru
    _
  // Predicated region
  $region34: #{vae_conv_forward.38} parent=0 // pred_check
    _
  $region35: #{vae_conv_forward.38} parent=0 // pred_check_branch
    %412 = sbr.rel (0) target = $region37
  $region36: #{vae_conv_forward.38} parent=0 // pred_region
    _
  $region37: #{vae_conv_forward.38} parent=0 // pred_fallthru
    _
  // Predicated region
  $region38: #{vae_conv_forward.38} parent=0 // pred_check
    _
  $region39: #{vae_conv_forward.38} parent=0 // pred_check_branch
    %414 = sbr.rel (0) target = $region41
  $region40: #{vae_conv_forward.38} parent=0 // pred_region
    _
  $region41: #{vae_conv_forward.38} parent=0 // pred_fallthru
    _

// kernel: vae_conv_forward.39
$region0: #{vae_conv_forward.39}
  #allocation0 [shape = 'u32[]', space=smem, size = 0x4, offset = 0x4, fixed_abs, tag = 'smem constant byte address 0x4 - core index']
  #allocation1 [shape = 'u32[144,128]{1,0:T(1,128)}', space=vmem, size = 0x12000, scoped, tag = 'internal scratch']
  #allocation2 [shape = 'f32[8,256]{1,0:T(8,128)}', space=vmem, size = 0x2000, scoped, tag = 'scratch operand']
  %s0 = inlined_call_operand.vmem [shape: bf16[8,128], index: 0, kind: input, shape index: {}]
  %s1 = inlined_call_operand.vmem [shape: bf16[128,512], index: 1, kind: input, shape index: {}]
  %s2 = inlined_call_operand.vmem [shape: f32[1,512], index: 2, kind: input, shape index: {}]
  %s3 = inlined_call_operand.vmem [shape: bf16[8,512], index: 3, kind: output, shape index: {0}]
  %s4 = inlined_call_operand.vmem [shape: f32[1,512], index: 4, kind: output, shape index: {1}]
  %s5 = inlined_call_operand.vmem [shape: f32[1,512], index: 5, kind: output, shape index: {2}]
  %6 = xla_tuple %s3, %s4, %s5
  %s7 = sld [smem:[#allocation0]]
  $region107: #{vae_conv_forward.39} parent=0
    _
  %s9 = ssub.s32 1, %s7
  %s10 = scalar_select 0, %s9, %s7
  $region1: #{vae_conv_forward.39} parent=0
    #allocation3 [shape = 'u8[131072]{0}', space=vmem, size = 0x20000, scoped, tag = 'input window, operand 1']
    loop: start=0, step=1, limit=4
    $region2: #{vae_conv_forward.39} parent=1 // loop_pre_header
      _
    $region3: #{vae_conv_forward.39} parent=1 // loop_header
      %s12 = sphi 0, %s16
      %p13 = scmp.ge.s32.totalorder %s12, 4
      %s19 = sphi 0, %s38
      %s20 = sphi 0, %s34
      %s21 = sphi 0, %s30
      %s22 = sphi 0, %s19
      %s23 = sphi 0, %s20
      %s24 = sphi 0, %s21
      %s25 = sphi 0, %s22
      %s26 = sphi 0, %s23
      %s27 = sphi 0, %s24
      %s43 = sphi 0, %s45
      %s46 = sphi 0, %s43
      %s47 = sphi 0, %s46
      %s63 = sphi 0, %s47
      %s71 = sphi 0, %s73
      %s74 = sphi 0, %s71
      %s75 = sphi 0, %s74
      %s91 = sphi 0, %s75
      %s97 = sphi 0, %s99
      %s100 = sphi 0, %s97
      %s101 = sphi 0, %s100
      %s117 = sphi 0, %s101
      %s125 = sphi 0, %s127
      %s128 = sphi 0, %s125
      %s129 = sphi 0, %s128
      %s145 = sphi 0, %s129
      %s153 = sphi 0, %s155
      %s156 = sphi 0, %s153
      %s157 = sphi 0, %s156
      %s173 = sphi 0, %s157
      %s181 = sphi 0, %s183
      %s184 = sphi 0, %s181
      %s185 = sphi 0, %s184
      %s201 = sphi 0, %s185
    $region4: #{vae_conv_forward.39} parent=1 // loop_header_branch
      %15 = sbr.rel (%p13) target = $region8
    $region5: #{vae_conv_forward.39} parent=1 // loop_body
      %s17 = ssub.s32 %s12, 1
      %s18 = ssub.s32 %s12, 2
      %s28 = sadd.s32 1, %s21
      %p29 = scmp.ge.s32.totalorder %s28, 1
      %s30 = scalar_select %p29, 0, %s28
      %s31 = sadd.s32 1, %s20
      %s32 = scalar_select %p29, %s31, %s20
      %p33 = scmp.ge.s32.totalorder %s32, 2
      %s34 = scalar_select %p33, 0, %s32
      %s35 = sadd.s32 1, %s19
      %s36 = scalar_select %p33, %s35, %s19
      %p37 = scmp.ge.s32.totalorder %s36, 1
      %s38 = scalar_select %p37, 0, %s36
      %s39 = ssub.s32 %s19, %s38
      %s40 = ssub.s32 %s21, %s30
      %s41 = sor.u32 %s39, %s40
      %p42 = scmp.eq.s32.totalorder %s41, 0
      %s44 = sadd.s32 %s43, 1
      %s45 = scalar_select %p42, %s43, %s44
      %p48 = pneg %p42
      %p49 = scmp.eq.s32.totalorder %s12, 1
      %p50 = por %p48, %p49
      %p51 = scmp.ne.s32.totalorder %s43, %s46
      %p52 = scmp.eq.s32.totalorder %s12, 0
      %p53 = por %p51, %p52
      %p54 = scmp.ne.s32.totalorder %s43, %s46
      %p55 = scmp.eq.s32.totalorder %s17, 1
      %p56 = por %p54, %p55
      %p57 = scmp.ne.s32.totalorder %s46, %s47
      %p58 = scmp.eq.s32.totalorder %s17, 0
      %p59 = por %p57, %p58
      %p60 = scmp.ne.s32.totalorder %s46, %s47
      %p61 = scmp.eq.s32.totalorder %s18, 1
      %p62 = por %p60, %p61
      %p64 = scmp.ne.s32.totalorder %s47, %s63
      %p65 = scmp.eq.s32.totalorder %s18, 0
      %p66 = por %p64, %p65
      %s67 = ssub.s32 %s21, %s30
      %s68 = ssub.s32 %s20, %s34
      %s69 = sor.u32 %s67, %s68
      %p70 = scmp.eq.s32.totalorder %s69, 0
      %s72 = sadd.s32 %s71, 1
      %s73 = scalar_select %p70, %s71, %s72
      %p76 = pneg %p70
      %p77 = scmp.eq.s32.totalorder %s12, 1
      %p78 = por %p76, %p77
      %p79 = scmp.ne.s32.totalorder %s71, %s74
      %p80 = scmp.eq.s32.totalorder %s12, 0
      %p81 = por %p79, %p80
      %p82 = scmp.ne.s32.totalorder %s71, %s74
      %p83 = scmp.eq.s32.totalorder %s17, 1
      %p84 = por %p82, %p83
      %p85 = scmp.ne.s32.totalorder %s74, %s75
      %p86 = scmp.eq.s32.totalorder %s17, 0
      %p87 = por %p85, %p86
      %p88 = scmp.ne.s32.totalorder %s74, %s75
      %p89 = scmp.eq.s32.totalorder %s18, 1
      %p90 = por %p88, %p89
      %p92 = scmp.ne.s32.totalorder %s75, %s91
      %p93 = scmp.eq.s32.totalorder %s18, 0
      %p94 = por %p92, %p93
      %s95 = ssub.s32 %s20, %s34
      %p96 = scmp.eq.s32.totalorder %s95, 0
      %s98 = sadd.s32 %s97, 1
      %s99 = scalar_select %p96, %s97, %s98
      %p102 = pneg %p96
      %p103 = scmp.eq.s32.totalorder %s12, 1
      %p104 = por %p102, %p103
      %p105 = scmp.ne.s32.totalorder %s97, %s100
      %p106 = scmp.eq.s32.totalorder %s12, 0
      %p107 = por %p105, %p106
      %p108 = scmp.ne.s32.totalorder %s97, %s100
      %p109 = scmp.eq.s32.totalorder %s17, 1
      %p110 = por %p108, %p109
      %p111 = scmp.ne.s32.totalorder %s100, %s101
      %p112 = scmp.eq.s32.totalorder %s17, 0
      %p113 = por %p111, %p112
      %p114 = scmp.ne.s32.totalorder %s100, %s101
      %p115 = scmp.eq.s32.totalorder %s18, 1
      %p116 = por %p114, %p115
      %p118 = scmp.ne.s32.totalorder %s101, %s117
      %p119 = scmp.eq.s32.totalorder %s18, 0
      %p120 = por %p118, %p119
      %s121 = ssub.s32 %s19, %s38
      %s122 = ssub.s32 %s20, %s34
      %s123 = sor.u32 %s121, %s122
      %p124 = scmp.eq.s32.totalorder %s123, 0
      %s126 = sadd.s32 %s125, 1
      %s127 = scalar_select %p124, %s125, %s126
      %p130 = pneg %p124
      %p131 = scmp.eq.s32.totalorder %s12, 1
      %p132 = por %p130, %p131
      %p133 = scmp.ne.s32.totalorder %s125, %s128
      %p134 = scmp.eq.s32.totalorder %s12, 0
      %p135 = por %p133, %p134
      %p136 = scmp.ne.s32.totalorder %s125, %s128
      %p137 = scmp.eq.s32.totalorder %s17, 1
      %p138 = por %p136, %p137
      %p139 = scmp.ne.s32.totalorder %s128, %s129
      %p140 = scmp.eq.s32.totalorder %s17, 0
      %p141 = por %p139, %p140
      %p142 = scmp.ne.s32.totalorder %s128, %s129
      %p143 = scmp.eq.s32.totalorder %s18, 1
      %p144 = por %p142, %p143
      %p146 = scmp.ne.s32.totalorder %s129, %s145
      %p147 = scmp.eq.s32.totalorder %s18, 0
      %p148 = por %p146, %p147
      %s149 = ssub.s32 %s19, %s38
      %s150 = ssub.s32 %s20, %s34
      %s151 = sor.u32 %s149, %s150
      %p152 = scmp.eq.s32.totalorder %s151, 0
      %s154 = sadd.s32 %s153, 1
      %s155 = scalar_select %p152, %s153, %s154
      %p158 = pneg %p152
      %p159 = scmp.eq.s32.totalorder %s12, 1
      %p160 = por %p158, %p159
      %p161 = scmp.ne.s32.totalorder %s153, %s156
      %p162 = scmp.eq.s32.totalorder %s12, 0
      %p163 = por %p161, %p162
      %p164 = scmp.ne.s32.totalorder %s153, %s156
      %p165 = scmp.eq.s32.totalorder %s17, 1
      %p166 = por %p164, %p165
      %p167 = scmp.ne.s32.totalorder %s156, %s157
      %p168 = scmp.eq.s32.totalorder %s17, 0
      %p169 = por %p167, %p168
      %p170 = scmp.ne.s32.totalorder %s156, %s157
      %p171 = scmp.eq.s32.totalorder %s18, 1
      %p172 = por %p170, %p171
      %p174 = scmp.ne.s32.totalorder %s157, %s173
      %p175 = scmp.eq.s32.totalorder %s18, 0
      %p176 = por %p174, %p175
      %s177 = ssub.s32 %s19, %s38
      %s178 = ssub.s32 %s20, %s34
      %s179 = sor.u32 %s177, %s178
      %p180 = scmp.eq.s32.totalorder %s179, 0
      %s182 = sadd.s32 %s181, 1
      %s183 = scalar_select %p180, %s181, %s182
      %p186 = pneg %p180
      %p187 = scmp.eq.s32.totalorder %s12, 1
      %p188 = por %p186, %p187
      %p189 = scmp.ne.s32.totalorder %s181, %s184
      %p190 = scmp.eq.s32.totalorder %s12, 0
      %p191 = por %p189, %p190
      %p192 = scmp.ne.s32.totalorder %s181, %s184
      %p193 = scmp.eq.s32.totalorder %s17, 1
      %p194 = por %p192, %p193
      %p195 = scmp.ne.s32.totalorder %s184, %s185
      %p196 = scmp.eq.s32.totalorder %s17, 0
      %p197 = por %p195, %p196
      %p198 = scmp.ne.s32.totalorder %s184, %s185
      %p199 = scmp.eq.s32.totalorder %s18, 1
      %p200 = por %p198, %p199
      %p202 = scmp.ne.s32.totalorder %s185, %s201
      %p203 = scmp.eq.s32.totalorder %s18, 0
      %p204 = por %p202, %p203
      %p205 = scmp.le.s32.totalorder 1, %s12
      %p206 = scmp.lt.s32.totalorder %s12, 3
      %p207 = pnand %p205, %p206
      %p208 = pneg %p207
      // Predicated region
      $region9: #{vae_conv_forward.39} parent=5 // pred_check
        _
      $region10: #{vae_conv_forward.39} parent=5 // pred_check_branch
        %210 = sbr.rel (%p207) target = $region12
      $region11: #{vae_conv_forward.39} parent=5 // pred_region
        %s211 = ssub.s32 %s12, 1
        // Predicated region
        $region13: #{vae_conv_forward.39} parent=11 // pred_check
          %p212 = pneg %p59
        $region14: #{vae_conv_forward.39} parent=11 // pred_check_branch
          %214 = sbr.rel (%p212) target = $region16
        $region15: #{vae_conv_forward.39} parent=11 // pred_region
          %p215 = scmp.lt.s32.totalorder %s22, 0
          %s216 = scalar_select %p215, %s22, 0
          %p217 = scmp.lt.s32.totalorder %s24, 0
          %s218 = scalar_select %p217, %s24, 0
          %s219 = sadd.s32 %s218, %s216
          %s220 = smul.addr %s219, 4
          %s221 = scalar_lea.vmem %s0, %s220
        $region16: #{vae_conv_forward.39} parent=11 // pred_fallthru
          _
      $region12: #{vae_conv_forward.39} parent=5 // pred_fallthru
        _
      %p222 = scmp.lt.s32.totalorder %s12, 2
      // Predicated region
      $region17: #{vae_conv_forward.39} parent=5 // pred_check
        %p223 = pneg %p222
      $region18: #{vae_conv_forward.39} parent=5 // pred_check_branch
        %225 = sbr.rel (%p223) target = $region20
      $region19: #{vae_conv_forward.39} parent=5 // pred_region
        // Predicated region
        $region21: #{vae_conv_forward.39} parent=19 // pred_check
          %p226 = pneg %p81
        $region22: #{vae_conv_forward.39} parent=19 // pred_check_branch
          %228 = sbr.rel (%p226) target = $region24
        $region23: #{vae_conv_forward.39} parent=19 // pred_region
          %s229 = sand.u32 %s71, 1
          %s230 = sand.u32 %s71, 1
          %s231 = smul.addr %s230, 128
          %s232 = scalar_lea.vmem [#allocation3], %s231
          %s233 = smul.u32 16, %s21
          %s234 = smul.u32 2, %s20
          %s235 = smul.addr %s233, 4
          %s236 = sadd.s32 %s234, %s235
          %s237 = smul.addr %s236, 4
          %s238 = scalar_lea.vmem %s1, %s237
          // Predicated region
          $region25: #{vae_conv_forward.39} parent=23 // pred_check
            _
          $region26: #{vae_conv_forward.39} parent=23 // pred_check_branch
            %240 = sbr.rel (0) target = $region28
          $region27: #{vae_conv_forward.39} parent=23 // pred_region
            // Predicated region
            $region29: #{vae_conv_forward.39} parent=27 // pred_check
              _
            $region30: #{vae_conv_forward.39} parent=27 // pred_check_branch
              %242 = sbr.rel (0) target = $region32
            $region31: #{vae_conv_forward.39} parent=27 // pred_region
              // Predicated region
              $region44: #{vae_conv_forward.39} parent=31 // pred_check
                _
              $region45: #{vae_conv_forward.39} parent=31 // pred_check_branch
                %287 = sbr.rel (0) target = $region47
              $region46: #{vae_conv_forward.39} parent=31 // pred_region
                loop: start=0, step=1, limit=1
                $region48: #{vae_conv_forward.39} parent=46 // loop_pre_header
                  _
                $region49: #{vae_conv_forward.39} parent=46 // loop_header
                  %s289 = sphi 0, %s293
                  %p290 = scmp.ge.s32.totalorder %s289, 1
                  %s294 = sphi %s238, %s238
                  %s295 = sphi %s232, %s232
                $region50: #{vae_conv_forward.39} parent=46 // loop_header_branch
                  %292 = sbr.rel (%p290) target = $region54
                $region51: #{vae_conv_forward.39} parent=46 // loop_body
                  %v296 = vld [vmem:[%s294] sm:$0xff]
                  %297 = vst [vmem:[%s295] sm:$0xff] %v296
                  %v298 = vld [vmem:[%s294 + $0x10] sm:$0xff]
                  %299 = vst [vmem:[%s295 + $0x8] sm:$0xff] %v298
                  %v300 = vld [vmem:[%s294 + $0x20] sm:$0xff]
                  %301 = vst [vmem:[%s295 + $0x10] sm:$0xff] %v300
                  %v302 = vld [vmem:[%s294 + $0x30] sm:$0xff]
                  %303 = vst [vmem:[%s295 + $0x18] sm:$0xff] %v302
                  %v304 = vld [vmem:[%s294 + $0x40] sm:$0xff]
                  %305 = vst [vmem:[%s295 + $0x20] sm:$0xff] %v304
                  %v306 = vld [vmem:[%s294 + $0x50] sm:$0xff]
                  %307 = vst [vmem:[%s295 + $0x28] sm:$0xff] %v306
                  %v308 = vld [vmem:[%s294 + $0x60] sm:$0xff]
                  %309 = vst [vmem:[%s295 + $0x30] sm:$0xff] %v308
                  %v310 = vld [vmem:[%s294 + $0x70] sm:$0xff]
                  %311 = vst [vmem:[%s295 + $0x38] sm:$0xff] %v310
                  %v312 = vld [vmem:[%s294 + $0x80] sm:$0xff]
                  %313 = vst [vmem:[%s295 + $0x40] sm:$0xff] %v312
                  %v314 = vld [vmem:[%s294 + $0x90] sm:$0xff]
                  %315 = vst [vmem:[%s295 + $0x48] sm:$0xff] %v314
                  %v316 = vld [vmem:[%s294 + $0xa0] sm:$0xff]
                  %317 = vst [vmem:[%s295 + $0x50] sm:$0xff] %v316
                  %v318 = vld [vmem:[%s294 + $0xb0] sm:$0xff]
                  %319 = vst [vmem:[%s295 + $0x58] sm:$0xff] %v318
                  %v320 = vld [vmem:[%s294 + $0xc0] sm:$0xff]
                  %321 = vst [vmem:[%s295 + $0x60] sm:$0xff] %v320
                  %v322 = vld [vmem:[%s294 + $0xd0] sm:$0xff]
                  %323 = vst [vmem:[%s295 + $0x68] sm:$0xff] %v322
                  %v324 = vld [vmem:[%s294 + $0xe0] sm:$0xff]
                  %325 = vst [vmem:[%s295 + $0x70] sm:$0xff] %v324
                  %v326 = vld [vmem:[%s294 + $0xf0] sm:$0xff]
                  %327 = vst [vmem:[%s295 + $0x78] sm:$0xff] %v326
                $region52: #{vae_conv_forward.39} parent=46 // loop_footer
                  %s293 = sadd.s32 1, %s289
                $region53: #{vae_conv_forward.39} parent=46 // loop_footer_branch
                  %288 = sbr.rel target = $region49
                $region54: #{vae_conv_forward.39} parent=46 // loop_exit
                  _
              $region47: #{vae_conv_forward.39} parent=31 // pred_fallthru
                _
              // Predicated region
              $region55: #{vae_conv_forward.39} parent=31 // pred_check
                _
              $region56: #{vae_conv_forward.39} parent=31 // pred_check_branch
                %329 = sbr.rel target = $region58
              $region57: #{vae_conv_forward.39} parent=31 // pred_region
                _
              $region58: #{vae_conv_forward.39} parent=31 // pred_fallthru
                _
            $region32: #{vae_conv_forward.39} parent=27 // pred_fallthru
              _
            // Predicated region
            $region33: #{vae_conv_forward.39} parent=27 // pred_check
              _
            $region34: #{vae_conv_forward.39} parent=27 // pred_check_branch
              %244 = sbr.rel target = $region36
            $region35: #{vae_conv_forward.39} parent=27 // pred_region
              loop: start=0, step=1, limit=1
              $region37: #{vae_conv_forward.39} parent=35 // loop_pre_header
                _
              $region38: #{vae_conv_forward.39} parent=35 // loop_header
                %s247 = sphi 0, %s251
                %p248 = scmp.ge.s32.totalorder %s247, 1
                %s252 = sphi %s238, %s238
                %s253 = sphi %s232, %s232
              $region39: #{vae_conv_forward.39} parent=35 // loop_header_branch
                %250 = sbr.rel (%p248) target = $region43
              $region40: #{vae_conv_forward.39} parent=35 // loop_body
                %v254 = vld [vmem:[%s252] sm:$0xff]
                %255 = vst [vmem:[%s253] sm:$0xff] %v254
                %v256 = vld [vmem:[%s252 + $0x10] sm:$0xff]
                %257 = vst [vmem:[%s253 + $0x8] sm:$0xff] %v256
                %v258 = vld [vmem:[%s252 + $0x20] sm:$0xff]
                %259 = vst [vmem:[%s253 + $0x10] sm:$0xff] %v258
                %v260 = vld [vmem:[%s252 + $0x30] sm:$0xff]
                %261 = vst [vmem:[%s253 + $0x18] sm:$0xff] %v260
                %v262 = vld [vmem:[%s252 + $0x40] sm:$0xff]
                %263 = vst [vmem:[%s253 + $0x20] sm:$0xff] %v262
                %v264 = vld [vmem:[%s252 + $0x50] sm:$0xff]
                %265 = vst [vmem:[%s253 + $0x28] sm:$0xff] %v264
                %v266 = vld [vmem:[%s252 + $0x60] sm:$0xff]
                %267 = vst [vmem:[%s253 + $0x30] sm:$0xff] %v266
                %v268 = vld [vmem:[%s252 + $0x70] sm:$0xff]
                %269 = vst [vmem:[%s253 + $0x38] sm:$0xff] %v268
                %v270 = vld [vmem:[%s252 + $0x80] sm:$0xff]
                %271 = vst [vmem:[%s253 + $0x40] sm:$0xff] %v270
                %v272 = vld [vmem:[%s252 + $0x90] sm:$0xff]
                %273 = vst [vmem:[%s253 + $0x48] sm:$0xff] %v272
                %v274 = vld [vmem:[%s252 + $0xa0] sm:$0xff]
                %275 = vst [vmem:[%s253 + $0x50] sm:$0xff] %v274
                %v276 = vld [vmem:[%s252 + $0xb0] sm:$0xff]
                %277 = vst [vmem:[%s253 + $0x58] sm:$0xff] %v276
                %v278 = vld [vmem:[%s252 + $0xc0] sm:$0xff]
                %279 = vst [vmem:[%s253 + $0x60] sm:$0xff] %v278
                %v280 = vld [vmem:[%s252 + $0xd0] sm:$0xff]
                %281 = vst [vmem:[%s253 + $0x68] sm:$0xff] %v280
                %v282 = vld [vmem:[%s252 + $0xe0] sm:$0xff]
                %283 = vst [vmem:[%s253 + $0x70] sm:$0xff] %v282
                %v284 = vld [vmem:[%s252 + $0xf0] sm:$0xff]
                %285 = vst [vmem:[%s253 + $0x78] sm:$0xff] %v284
              $region41: #{vae_conv_forward.39} parent=35 // loop_footer
                %s251 = sadd.s32 1, %s247
              $region42: #{vae_conv_forward.39} parent=35 // loop_footer_branch
                %246 = sbr.rel target = $region38
              $region43: #{vae_conv_forward.39} parent=35 // loop_exit
                _
            $region36: #{vae_conv_forward.39} parent=27 // pred_fallthru
              _
          $region28: #{vae_conv_forward.39} parent=23 // pred_fallthru
            _
          %330 = vnop
        $region24: #{vae_conv_forward.39} parent=19 // pred_fallthru
          _
        // Predicated region
        $region59: #{vae_conv_forward.39} parent=19 // pred_check
          %p331 = pneg %p107
        $region60: #{vae_conv_forward.39} parent=19 // pred_check_branch
          %333 = sbr.rel (%p331) target = $region62
        $region61: #{vae_conv_forward.39} parent=19 // pred_region
          %s334 = smul.u32 2, %s20
          %p335 = scmp.lt.s32.totalorder %s334, 3
          %s336 = scalar_select %p335, %s334, 3
          %s337 = scalar_lea.vmem %s2, %s336
          %s338 = smul.u32 2, %s20
        $region62: #{vae_conv_forward.39} parent=19 // pred_fallthru
          _
      $region20: #{vae_conv_forward.39} parent=5 // pred_fallthru
        _
      %p339 = scmp.le.s32.totalorder 1, %s12
      %p340 = scmp.lt.s32.totalorder %s12, 3
      %p341 = pnand %p339, %p340
      %p342 = pneg %p341
      // Predicated region
      $region63: #{vae_conv_forward.39} parent=5 // pred_check
        _
      $region64: #{vae_conv_forward.39} parent=5 // pred_check_branch
        %344 = sbr.rel (%p341) target = $region66
      $region65: #{vae_conv_forward.39} parent=5 // pred_region
        %s345 = ssub.s32 %s12, 1
        %s346 = sand.u32 %s74, 1
        %s347 = sand.u32 %s74, 1
        %s348 = smul.addr %s347, 128
        %s349 = scalar_lea.vmem [#allocation3], %s348
        // Predicated region
        $region67: #{vae_conv_forward.39} parent=65 // pred_check
          %p350 = pneg %p87
        $region68: #{vae_conv_forward.39} parent=65 // pred_check_branch
          %352 = sbr.rel (%p350) target = $region70
        $region69: #{vae_conv_forward.39} parent=65 // pred_region
          _
        $region70: #{vae_conv_forward.39} parent=65 // pred_fallthru
          _
        %p353 = scmp.lt.s32.totalorder %s22, 0
        %s354 = scalar_select %p353, %s22, 0
        %p355 = scmp.lt.s32.totalorder %s24, 0
        %s356 = scalar_select %p355, %s24, 0
        %s357 = sadd.s32 %s356, %s354
        %s358 = smul.addr %s357, 4
        %s359 = scalar_lea.vmem %s0, %s358
        %p360 = pneg %p59
        %p361 = pneg %p56
        %s362 = sand.u32 %s74, 1
        %s363 = sand.u32 %s74, 1
        %s364 = smul.addr %s363, 128
        %s365 = scalar_lea.vmem [#allocation3], %s364
        %p366 = pneg %p87
        %p367 = pneg %p84
        %s368 = smul.u32 2, %s23
        %p369 = scmp.lt.s32.totalorder %s368, 3
        %s370 = scalar_select %p369, %s368, 3
        %s371 = scalar_lea.vmem %s2, %s370
        %p372 = pneg %p113
        %p373 = pneg %p110
        %p374 = pneg %p141
        %p375 = pneg %p138
        %s376 = smul.u32 2, %s23
        %p377 = scmp.lt.s32.totalorder %s22, 0
        %s378 = scalar_select %p377, %s22, 0
        %p379 = scmp.lt.s32.totalorder %s376, 3
        %s380 = scalar_select %p379, %s376, 3
        %s381 = smul.addr %s378, 4
        %s382 = sadd.s32 %s380, %s381
        %s383 = smul.addr %s382, 4
        %s384 = scalar_lea.vmem %s3, %s383
        %p385 = pneg %p169
        %p386 = pneg %p166
        %s387 = smul.u32 2, %s23
        %p388 = scmp.lt.s32.totalorder %s22, 0
        %s389 = scalar_select %p388, %s22, 0
        %p390 = scmp.lt.s32.totalorder %s387, 3
        %s391 = scalar_select %p390, %s387, 3
        %s392 = smul.addr %s389, 4
        %s393 = sadd.s32 %s391, %s392
        %s394 = scalar_lea.vmem %s4, %s393
        %p395 = pneg %p197
        %p396 = pneg %p194
        %s397 = smul.u32 2, %s23
        %p398 = scmp.lt.s32.totalorder %s22, 0
        %s399 = scalar_select %p398, %s22, 0
        %p400 = scmp.lt.s32.totalorder %s397, 3
        %s401 = scalar_select %p400, %s397, 3
        %s402 = smul.addr %s399, 4
        %s403 = sadd.s32 %s401, %s402
        %s404 = scalar_lea.vmem %s5, %s403
        %p405 = scmp.lt.s32.totalorder %s22, 0
        %s406 = scalar_select %p405, %s22, 0
        %p407 = scmp.lt.s32.totalorder %s24, 0
        %s408 = scalar_select %p407, %s24, 0
        %s409 = sadd.s32 %s408, %s406
        %s410 = smul.addr %s409, 4
        %s411 = scalar_lea.vmem %s0, %s410
        %s412 = smul.u32 16, %s24
        %s413 = smul.u32 2, %s23
        %s414 = smul.u32 2, %s23
        %p415 = scmp.lt.s32.totalorder %s414, 3
        %s416 = scalar_select %p415, %s414, 3
        %s417 = scalar_lea.vmem %s2, %s416
        %s418 = smul.u32 2, %s23
        %s419 = smul.u32 2, %s23
        %p420 = scmp.lt.s32.totalorder %s22, 0
        %s421 = scalar_select %p420, %s22, 0
        %p422 = scmp.lt.s32.totalorder %s419, 3
        %s423 = scalar_select %p422, %s419, 3
        %s424 = smul.addr %s421, 4
        %s425 = sadd.s32 %s423, %s424
        %s426 = smul.addr %s425, 4
        %s427 = scalar_lea.vmem %s3, %s426
        %s428 = smul.u32 2, %s23
        %s429 = smul.u32 2, %s23
        %p430 = scmp.lt.s32.totalorder %s22, 0
        %s431 = scalar_select %p430, %s22, 0
        %p432 = scmp.lt.s32.totalorder %s429, 3
        %s433 = scalar_select %p432, %s429, 3
        %s434 = smul.addr %s431, 4
        %s435 = sadd.s32 %s433, %s434
        %s436 = scalar_lea.vmem %s4, %s435
        %s437 = smul.u32 2, %s23
        %s438 = smul.u32 2, %s23
        %p439 = scmp.lt.s32.totalorder %s22, 0
        %s440 = scalar_select %p439, %s22, 0
        %p441 = scmp.lt.s32.totalorder %s438, 3
        %s442 = scalar_select %p441, %s438, 3
        %s443 = smul.addr %s440, 4
        %s444 = sadd.s32 %s442, %s443
        %s445 = scalar_lea.vmem %s5, %s444
        %s446 = smul.u32 2, %s23
        %p448 = scmp.eq.s32.totalorder %s24, 0
        // Predicated region
        $region71: #{vae_conv_forward.39} parent=65 // pred_check
          %p449 = pneg %p448
        $region72: #{vae_conv_forward.39} parent=65 // pred_check_branch
          %451 = sbr.rel (%p449) target = $region74
        $region73: #{vae_conv_forward.39} parent=65 // pred_region
          %452 = vst [vmem:[#allocation2] sm:$0xff] 0.0
          %453 = vst [vmem:[#allocation2 + $0x8] sm:$0xff] 0.0
        $region74: #{vae_conv_forward.39} parent=65 // pred_fallthru
          _
        %v454 = vld [vmem:[#allocation2] sm:$0xff]
        %v455 = vld [vmem:[#allocation2 + $0x8] sm:$0xff]
        %v456 = vld [vmem:[%s411] sm:$0xf]
        %v457 = vld [vmem:[%s349] sm:$0xff]
        %v458 = vld [vmem:[%s349 + $0x8] sm:$0xff]
        %v459 = vld [vmem:[%s349 + $0x10] sm:$0xff]
        %v460 = vld [vmem:[%s349 + $0x18] sm:$0xff]
        %v461 = vld [vmem:[%s349 + $0x20] sm:$0xff]
        %v462 = vld [vmem:[%s349 + $0x28] sm:$0xff]
        %v463 = vld [vmem:[%s349 + $0x30] sm:$0xff]
        %v464 = vld [vmem:[%s349 + $0x38] sm:$0xff]
        %v465 = vld [vmem:[%s349 + $0x40] sm:$0xff]
        %v466 = vld [vmem:[%s349 + $0x48] sm:$0xff]
        %v467 = vld [vmem:[%s349 + $0x50] sm:$0xff]
        %v468 = vld [vmem:[%s349 + $0x58] sm:$0xff]
        %v469 = vld [vmem:[%s349 + $0x60] sm:$0xff]
        %v470 = vld [vmem:[%s349 + $0x68] sm:$0xff]
        %v471 = vld [vmem:[%s349 + $0x70] sm:$0xff]
        %v472 = vld [vmem:[%s349 + $0x78] sm:$0xff]
        %v489 = vunpack.c.l.b16 %v457
        %v490 = vunpack.c.h.b16 %v457
        %v491 = vunpack.c.l.b16 %v458
        %v492 = vunpack.c.h.b16 %v458
        %v493 = vunpack.c.l.b16 %v459
        %v494 = vunpack.c.h.b16 %v459
        %v495 = vunpack.c.l.b16 %v460
        %v496 = vunpack.c.h.b16 %v460
        %v497 = vunpack.c.l.b16 %v461
        %v498 = vunpack.c.h.b16 %v461
        %v499 = vunpack.c.l.b16 %v462
        %v500 = vunpack.c.h.b16 %v462
        %v501 = vunpack.c.l.b16 %v463
        %v502 = vunpack.c.h.b16 %v463
        %v503 = vunpack.c.l.b16 %v464
        %v504 = vunpack.c.h.b16 %v464
        %v505 = vunpack.c.l.b16 %v465
        %v506 = vunpack.c.h.b16 %v465
        %v507 = vunpack.c.l.b16 %v466
        %v508 = vunpack.c.h.b16 %v466
        %v509 = vunpack.c.l.b16 %v467
        %v510 = vunpack.c.h.b16 %v467
        %v511 = vunpack.c.l.b16 %v468
        %v512 = vunpack.c.h.b16 %v468
        %v513 = vunpack.c.l.b16 %v469
        %v514 = vunpack.c.h.b16 %v469
        %v515 = vunpack.c.l.b16 %v470
        %v516 = vunpack.c.h.b16 %v470
        %v517 = vunpack.c.l.b16 %v471
        %v518 = vunpack.c.h.b16 %v471
        %v519 = vunpack.c.l.b16 %v472
        %v520 = vunpack.c.h.b16 %v472
        %v521 = vpack.c.b16 %v491, %v489
        %v522 = vpack.c.b16 %v492, %v490
        %v523 = vpack.c.b16 %v495, %v493
        %v524 = vpack.c.b16 %v496, %v494
        %v525 = vpack.c.b16 %v499, %v497
        %v526 = vpack.c.b16 %v500, %v498
        %v527 = vpack.c.b16 %v503, %v501
        %v528 = vpack.c.b16 %v504, %v502
        %v529 = vpack.c.b16 %v507, %v505
        %v530 = vpack.c.b16 %v508, %v506
        %v531 = vpack.c.b16 %v511, %v509
        %v532 = vpack.c.b16 %v512, %v510
        %v533 = vpack.c.b16 %v515, %v513
        %v534 = vpack.c.b16 %v516, %v514
        %v535 = vpack.c.b16 %v519, %v517
        %v536 = vpack.c.b16 %v520, %v518
        %553 = vmatprep.subr.bf16.mxu0 %v522
        %554 = vmatpush1.bf16.msra.mxu0 %v521
        %555 = vmatprep.subr.bf16.mxu0 %v524
        %556 = vmatpush1.bf16.msra.mxu0 %v523
        %557 = vmatprep.subr.bf16.mxu0 %v526
        %558 = vmatpush1.bf16.msra.mxu0 %v525
        %559 = vmatprep.subr.bf16.mxu0 %v528
        %560 = vmatpush1.bf16.msra.mxu0 %v527
        %561 = vmatprep.subr.bf16.mxu0 %v530
        %562 = vmatpush1.bf16.msra.mxu0 %v529
        %563 = vmatprep.subr.bf16.mxu0 %v532
        %564 = vmatpush1.bf16.msra.mxu0 %v531
        %565 = vmatprep.subr.bf16.mxu0 %v534
        %566 = vmatpush1.bf16.msra.mxu0 %v533
        %567 = vmatprep.subr.bf16.mxu0 %v536
        %568 = vmatpush1.bf16.msra.mxu0 %v535
        %569 = vmatprep.subr.bf16.mxu0 0
        %570 = vmatpush1.bf16.msra.mxu0 0
        %571 = vmatprep.subr.bf16.mxu0 0
        %572 = vmatpush1.bf16.msra.mxu0 0
        %573 = vmatprep.subr.bf16.mxu0 0
        %574 = vmatpush1.bf16.msra.mxu0 0
        %575 = vmatprep.subr.bf16.mxu0 0
        %576 = vmatpush1.bf16.msra.mxu0 0
        %577 = vmatprep.subr.bf16.mxu0 0
        %578 = vmatpush1.bf16.msra.mxu0 0
        %579 = vmatprep.subr.bf16.mxu0 0
        %580 = vmatpush1.bf16.msra.mxu0 0
        %581 = vmatprep.subr.bf16.mxu0 0
        %582 = vmatpush1.bf16.msra.mxu0 0
        %583 = vmatprep.subr.bf16.mxu0 0
        %584 = vmatpush1.bf16.msra.mxu0 0
        %585 = vmatprep.mubr.bf16.mxu0 0
        %586 = vmatmul.mubr.bf16.gmra.mrb[0].mxu0 %v456
        %v587 = vpop.f32.mrb[0].mxu0
        %v588 = vadd.f32 0.0, %v587
        %v589 = vpop.f32.mrb[0].mxu0
        %v590 = vadd.f32 0.0, %v589
        %v591 = vpop.f32.mrb[0].mxu0
        %v592 = vpop.f32.mrb[0].mxu0
        %593 = vdwg.mxu0
        %v594 = vadd.f32 %v454, %v588
        %v595 = vadd.f32 %v455, %v590
        %596 = vst [vmem:[#allocation2] sm:$0xff] %v594
        %597 = vst [vmem:[#allocation2 + $0x8] sm:$0xff] %v595
        // Predicated region
        $region75: #{vae_conv_forward.39} parent=65 // pred_check
          %p598 = pneg %p448
        $region76: #{vae_conv_forward.39} parent=65 // pred_check_branch
          %600 = sbr.rel (%p598) target = $region78
        $region77: #{vae_conv_forward.39} parent=65 // pred_region
          %v601 = vld [vmem:[#allocation2] sm:$0xff]
          %v602 = vld [vmem:[#allocation2 + $0x8] sm:$0xff]
          %v603 = vld [vmem:[%s417] sm:$0x3]
          %v605 = vlaneseq
          %v606 = vshrl.u32 %v605, 7
          %v607 = vsub.s32 0, %v606
          %v608 = vrot.slane %v603, %v607
          %v609 = vlaneseq
          %v610 = vshrl.u32 %v609, 7
          %v611 = vsub.s32 1, %v610
          %v612 = vrot.slane %v603, %v611
          %v615 = vadd.f32 %v601, %v608
          %v616 = vadd.f32 %v602, %v612
          %v617 = vpack.c.bf16 %v615, %v615
          %v618 = vpack.c.bf16 %v616, %v616
          %v621 = vunpack.c.l.b16 %v617
          %v622 = vunpack.c.l.b16 %v618
          %v623 = vpack.c.b16 %v622, %v621
          %625 = vst [vmem:[%s427] sm:$0xff] %v623
          %v626 = vrot.slane %v615, 4
          %v627 = vadd.f32 %v615, %v626
          %v628 = vrot.slane %v627, 2
          %v629 = vadd.f32 %v627, %v628
          %v630 = vrot.slane %v629, 1
          %v631 = vadd.f32 %v629, %v630
          %v632 = vrot.slane %v616, 4
          %v633 = vadd.f32 %v616, %v632
          %v634 = vrot.slane %v633, 2
          %v635 = vadd.f32 %v633, %v634
          %v636 = vrot.slane %v635, 1
          %v637 = vadd.f32 %v635, %v636
          %v640 = vcombine.low %v631, %v637
          %v642 = vunpack.c.l.s4 1966171168
          %v643 = vunpack.c.0.s8 %v642
          %v644 = vlaneseq
          %v645 = vshrl.u32 %v644, 7
          %v646 = vsub.s32 %v643, %v645
          %v647 = vrot.slane %v640, %v646
          %v649 = vunpack.c.l.s4 1966171168
          %v650 = vunpack.c.0.s8 %v649
          %v651 = vlaneseq
          %v652 = vshrl.u32 %v651, 7
          %v653 = vsub.s32 %v650, %v652
          %v654 = vrot.slane %v647, %v653
          %v656 = vlaneseq
          %vm657 = vcmp.ge.s32.totalorder %v656, 0
          %vm658 = vcmp.lt.s32.totalorder %v656, 256
          %vm659 = vmand %vm657, %vm658
          %660 = vst.msk [vmem:[%s436] sm:$0x3] %vm659, %v654
          %v661 = vmul.f32 %v615, %v615
          %v662 = vmul.f32 %v616, %v616
          %v663 = vrot.slane %v661, 4
          %v664 = vadd.f32 %v661, %v663
          %v665 = vrot.slane %v664, 2
          %v666 = vadd.f32 %v664, %v665
          %v667 = vrot.slane %v666, 1
          %v668 = vadd.f32 %v666, %v667
          %v669 = vrot.slane %v662, 4
          %v670 = vadd.f32 %v662, %v669
          %v671 = vrot.slane %v670, 2
          %v672 = vadd.f32 %v670, %v671
          %v673 = vrot.slane %v672, 1
          %v674 = vadd.f32 %v672, %v673
          %v677 = vcombine.low %v668, %v674
          %v679 = vunpack.c.l.s4 1966171168
          %v680 = vunpack.c.0.s8 %v679
          %v681 = vlaneseq
          %v682 = vshrl.u32 %v681, 7
          %v683 = vsub.s32 %v680, %v682
          %v684 = vrot.slane %v677, %v683
          %v686 = vunpack.c.l.s4 1966171168
          %v687 = vunpack.c.0.s8 %v686
          %v688 = vlaneseq
          %v689 = vshrl.u32 %v688, 7
          %v690 = vsub.s32 %v687, %v689
          %v691 = vrot.slane %v684, %v690
          %693 = vst.msk [vmem:[%s445] sm:$0x3] %vm659, %v691
        $region78: #{vae_conv_forward.39} parent=65 // pred_fallthru
          _
        %s694 = smul.u32 2, %s23
        %p695 = scmp.lt.s32.totalorder %s22, 0
        %s696 = scalar_select %p695, %s22, 0
        %p697 = scmp.lt.s32.totalorder %s694, 3
        %s698 = scalar_select %p697, %s694, 3
        %s699 = smul.addr %s696, 4
        %s700 = sadd.s32 %s698, %s699
        %s701 = smul.addr %s700, 4
        %s702 = scalar_lea.vmem %s3, %s701
        %s703 = smul.u32 2, %s23
        %p704 = scmp.lt.s32.totalorder %s22, 0
        %s705 = scalar_select %p704, %s22, 0
        %p706 = scmp.lt.s32.totalorder %s703, 3
        %s707 = scalar_select %p706, %s703, 3
        %s708 = smul.addr %s705, 4
        %s709 = sadd.s32 %s707, %s708
        %s710 = scalar_lea.vmem %s4, %s709
        %s711 = smul.u32 2, %s23
        %p712 = scmp.lt.s32.totalorder %s22, 0
        %s713 = scalar_select %p712, %s22, 0
        %p714 = scmp.lt.s32.totalorder %s711, 3
        %s715 = scalar_select %p714, %s711, 3
        %s716 = smul.addr %s713, 4
        %s717 = sadd.s32 %s715, %s716
        %s718 = scalar_lea.vmem %s5, %s717
        // Predicated region
        $region79: #{vae_conv_forward.39} parent=65 // pred_check
          %p719 = pneg %p138
        $region80: #{vae_conv_forward.39} parent=65 // pred_check_branch
          %721 = sbr.rel (%p719) target = $region82
        $region81: #{vae_conv_forward.39} parent=65 // pred_region
          %s722 = smul.u32 2, %s23
        $region82: #{vae_conv_forward.39} parent=65 // pred_fallthru
          _
        // Predicated region
        $region83: #{vae_conv_forward.39} parent=65 // pred_check
          %p723 = pneg %p166
        $region84: #{vae_conv_forward.39} parent=65 // pred_check_branch
          %725 = sbr.rel (%p723) target = $region86
        $region85: #{vae_conv_forward.39} parent=65 // pred_region
          %s726 = smul.u32 2, %s23
        $region86: #{vae_conv_forward.39} parent=65 // pred_fallthru
          _
        // Predicated region
        $region87: #{vae_conv_forward.39} parent=65 // pred_check
          %p727 = pneg %p194
        $region88: #{vae_conv_forward.39} parent=65 // pred_check_branch
          %729 = sbr.rel (%p727) target = $region90
        $region89: #{vae_conv_forward.39} parent=65 // pred_region
          %s730 = smul.u32 2, %s23
        $region90: #{vae_conv_forward.39} parent=65 // pred_fallthru
          _
      $region66: #{vae_conv_forward.39} parent=5 // pred_fallthru
        _
      %p731 = scmp.le.s32.totalorder 2, %s12
      // Predicated region
      $region91: #{vae_conv_forward.39} parent=5 // pred_check
        %p732 = pneg %p731
      $region92: #{vae_conv_forward.39} parent=5 // pred_check_branch
        %734 = sbr.rel (%p732) target = $region94
      $region93: #{vae_conv_forward.39} parent=5 // pred_region
        %s735 = ssub.s32 %s12, 2
        // Predicated region
        $region95: #{vae_conv_forward.39} parent=93 // pred_check
          %p736 = pneg %p144
        $region96: #{vae_conv_forward.39} parent=93 // pred_check_branch
          %738 = sbr.rel (%p736) target = $region98
        $region97: #{vae_conv_forward.39} parent=93 // pred_region
          %s739 = smul.u32 2, %s26
          %p740 = scmp.lt.s32.totalorder %s25, 0
          %s741 = scalar_select %p740, %s25, 0
          %p742 = scmp.lt.s32.totalorder %s739, 3
          %s743 = scalar_select %p742, %s739, 3
          %s744 = smul.addr %s741, 4
          %s745 = sadd.s32 %s743, %s744
          %s746 = smul.addr %s745, 4
          %s747 = scalar_lea.vmem %s3, %s746
        $region98: #{vae_conv_forward.39} parent=93 // pred_fallthru
          _
        // Predicated region
        $region99: #{vae_conv_forward.39} parent=93 // pred_check
          %p748 = pneg %p172
        $region100: #{vae_conv_forward.39} parent=93 // pred_check_branch
          %750 = sbr.rel (%p748) target = $region102
        $region101: #{vae_conv_forward.39} parent=93 // pred_region
          %s751 = smul.u32 2, %s26
          %p752 = scmp.lt.s32.totalorder %s25, 0
          %s753 = scalar_select %p752, %s25, 0
          %p754 = scmp.lt.s32.totalorder %s751, 3
          %s755 = scalar_select %p754, %s751, 3
          %s756 = smul.addr %s753, 4
          %s757 = sadd.s32 %s755, %s756
          %s758 = scalar_lea.vmem %s4, %s757
        $region102: #{vae_conv_forward.39} parent=93 // pred_fallthru
          _
        // Predicated region
        $region103: #{vae_conv_forward.39} parent=93 // pred_check
          %p759 = pneg %p200
        $region104: #{vae_conv_forward.39} parent=93 // pred_check_branch
          %761 = sbr.rel (%p759) target = $region106
        $region105: #{vae_conv_forward.39} parent=93 // pred_region
          %s762 = smul.u32 2, %s26
          %p763 = scmp.lt.s32.totalorder %s25, 0
          %s764 = scalar_select %p763, %s25, 0
          %p765 = scmp.lt.s32.totalorder %s762, 3
          %s766 = scalar_select %p765, %s762, 3
          %s767 = smul.addr %s764, 4
          %s768 = sadd.s32 %s766, %s767
          %s769 = scalar_lea.vmem %s5, %s768
        $region106: #{vae_conv_forward.39} parent=93 // pred_fallthru
          _
      $region94: #{vae_conv_forward.39} parent=5 // pred_fallthru
        _
    $region6: #{vae_conv_forward.39} parent=1 // loop_footer
      %s16 = sadd.s32 1, %s12
    $region7: #{vae_conv_forward.39} parent=1 // loop_footer_branch
      %11 = sbr.rel target = $region3
    $region8: #{vae_conv_forward.39} parent=1 // loop_exit
      _

// kernel: vae_conv_forward.46
$region0: #{vae_conv_forward.46}
  #allocation0 [shape = 'u32[]', space=smem, size = 0x4, offset = 0x4, fixed_abs, tag = 'smem constant byte address 0x4 - core index']
  #allocation1 [shape = 'u32[144,128]{1,0:T(1,128)}', space=vmem, size = 0x12000, scoped, tag = 'internal scratch']
  %s0 = inlined_call_operand.vmem [shape: bf16[8,128], index: 0, kind: input, shape index: {}]
  %s1 = inlined_call_operand.vmem [shape: bf16[8,128], index: 1, kind: input, shape index: {}]
  %s2 = inlined_call_operand.vmem [shape: f32[1,128], index: 2, kind: input, shape index: {}]
  %s3 = inlined_call_operand.vmem [shape: f32[1,128], index: 3, kind: input, shape index: {}]
  %s4 = inlined_call_operand.vmem [shape: f32[1,128], index: 4, kind: input, shape index: {}]
  %s5 = inlined_call_operand.vmem [shape: f32[1,128], index: 5, kind: input, shape index: {}]
  %s6 = inlined_call_operand.vmem [shape: bf16[8,128], index: 6, kind: output, shape index: {}]
  %s7 = sld [smem:[#allocation0]]
  $region34: #{vae_conv_forward.46} parent=0
    _
  %s9 = ssub.s32 1, %s7
  %s10 = scalar_select 0, %s9, %s7
  // Predicated region
  $region2: #{vae_conv_forward.46} parent=0 // pred_check
    _
  $region3: #{vae_conv_forward.46} parent=0 // pred_check_branch
    %12 = sbr.rel (0) target = $region5
  $region4: #{vae_conv_forward.46} parent=0 // pred_region
    _
  $region5: #{vae_conv_forward.46} parent=0 // pred_fallthru
    _
  // Predicated region
  $region6: #{vae_conv_forward.46} parent=0 // pred_check
    _
  $region7: #{vae_conv_forward.46} parent=0 // pred_check_branch
    %14 = sbr.rel (0) target = $region9
  $region8: #{vae_conv_forward.46} parent=0 // pred_region
    _
  $region9: #{vae_conv_forward.46} parent=0 // pred_fallthru
    _
  // Predicated region
  $region10: #{vae_conv_forward.46} parent=0 // pred_check
    _
  $region11: #{vae_conv_forward.46} parent=0 // pred_check_branch
    %16 = sbr.rel (0) target = $region13
  $region12: #{vae_conv_forward.46} parent=0 // pred_region
    _
  $region13: #{vae_conv_forward.46} parent=0 // pred_fallthru
    _
  // Predicated region
  $region14: #{vae_conv_forward.46} parent=0 // pred_check
    _
  $region15: #{vae_conv_forward.46} parent=0 // pred_check_branch
    %18 = sbr.rel (0) target = $region17
  $region16: #{vae_conv_forward.46} parent=0 // pred_region
    _
  $region17: #{vae_conv_forward.46} parent=0 // pred_fallthru
    _
  // Predicated region
  $region18: #{vae_conv_forward.46} parent=0 // pred_check
    _
  $region19: #{vae_conv_forward.46} parent=0 // pred_check_branch
    %20 = sbr.rel (0) target = $region21
  $region20: #{vae_conv_forward.46} parent=0 // pred_region
    _
  $region21: #{vae_conv_forward.46} parent=0 // pred_fallthru
    _
  // Predicated region
  $region22: #{vae_conv_forward.46} parent=0 // pred_check
    _
  $region23: #{vae_conv_forward.46} parent=0 // pred_check_branch
    %22 = sbr.rel (0) target = $region25
  $region24: #{vae_conv_forward.46} parent=0 // pred_region
    _
  $region25: #{vae_conv_forward.46} parent=0 // pred_fallthru
    _
  %v23 = vld [vmem:[%s2] sm:$0x1]
  %v24 = vmul.f32 %v23, 0.125
  %v25 = vld [vmem:[%s3] sm:$0x1]
  %v26 = vmul.f32 %v25, 0.125
  %v27 = vmul.f32 %v24, %v24
  %v28 = vsub.f32 %v26, %v27
  %v29 = vadd.f32 %v28, 1e-05
  %v30 = vrsqrt.pop %v29
  %v31 = vld [vmem:[%s4] sm:$0x1]
  %v32 = vmul.f32 %v30, %v31
  %v33 = vld [vmem:[%s0] sm:$0xf]
  %v34 = vunpack.c.l.bf16 %v33
  %v36 = vlaneseq
  %v37 = vshrl.u32 %v36, 7
  %v38 = vsub.s32 0, %v37
  %v39 = vrot.slane %v24, %v38
  %v41 = vsub.f32 %v34, %v39
  %v43 = vlaneseq
  %v44 = vshrl.u32 %v43, 7
  %v45 = vsub.s32 0, %v44
  %v46 = vrot.slane %v32, %v45
  %v48 = vmul.f32 %v41, %v46
  %v49 = vld [vmem:[%s5] sm:$0x1]
  %v51 = vlaneseq
  %v52 = vshrl.u32 %v51, 7
  %v53 = vsub.s32 0, %v52
  %v54 = vrot.slane %v49, %v53
  %v56 = vadd.f32 %v48, %v54
  %v57 = vld [vmem:[%s1] sm:$0xf]
  %v58 = vunpack.c.l.bf16 %v57
  %v59 = vadd.f32 %v56, %v58
  %v60 = vmax.f32 %v59, 0.0
  %v61 = vpack.c.bf16 %v60, %v60
  %62 = vst [vmem:[%s6] sm:$0xf] %v61
  // Predicated region
  $region26: #{vae_conv_forward.46} parent=0 // pred_check
    _
  $region27: #{vae_conv_forward.46} parent=0 // pred_check_branch
    %64 = sbr.rel (0) target = $region29
  $region28: #{vae_conv_forward.46} parent=0 // pred_region
    _
  $region29: #{vae_conv_forward.46} parent=0 // pred_fallthru
    _
  // Predicated region
  $region30: #{vae_conv_forward.46} parent=0 // pred_check
    _
  $region31: #{vae_conv_forward.46} parent=0 // pred_check_branch
    %66 = sbr.rel (0) target = $region33
  $region32: #{vae_conv_forward.46} parent=0 // pred_region
    _
  $region33: #{vae_conv_forward.46} parent=0 // pred_fallthru
    _

// kernel: vae_conv_forward.40
$region0: #{vae_conv_forward.40}
  #allocation0 [shape = 'u32[]', space=smem, size = 0x4, offset = 0x4, fixed_abs, tag = 'smem constant byte address 0x4 - core index']
  #allocation1 [shape = 'u32[144,128]{1,0:T(1,128)}', space=vmem, size = 0x12000, scoped, tag = 'internal scratch']
  %s0 = inlined_call_operand.vmem [shape: bf16[8,128], index: 0, kind: input, shape index: {}]
  %s1 = inlined_call_operand.vmem [shape: f32[1,128], index: 1, kind: input, shape index: {}]
  %s2 = inlined_call_operand.vmem [shape: f32[1,128], index: 2, kind: input, shape index: {}]
  %s3 = inlined_call_operand.vmem [shape: f32[1,128], index: 3, kind: input, shape index: {}]
  %s4 = inlined_call_operand.vmem [shape: f32[1,128], index: 4, kind: input, shape index: {}]
  %s5 = inlined_call_operand.vmem [shape: bf16[8,128], index: 5, kind: output, shape index: {}]
  %s6 = sld [smem:[#allocation0]]
  $region30: #{vae_conv_forward.40} parent=0
    _
  %s8 = ssub.s32 1, %s6
  %s9 = scalar_select 0, %s8, %s6
  // Predicated region
  $region2: #{vae_conv_forward.40} parent=0 // pred_check
    _
  $region3: #{vae_conv_forward.40} parent=0 // pred_check_branch
    %11 = sbr.rel (0) target = $region5
  $region4: #{vae_conv_forward.40} parent=0 // pred_region
    _
  $region5: #{vae_conv_forward.40} parent=0 // pred_fallthru
    _
  // Predicated region
  $region6: #{vae_conv_forward.40} parent=0 // pred_check
    _
  $region7: #{vae_conv_forward.40} parent=0 // pred_check_branch
    %13 = sbr.rel (0) target = $region9
  $region8: #{vae_conv_forward.40} parent=0 // pred_region
    _
  $region9: #{vae_conv_forward.40} parent=0 // pred_fallthru
    _
  // Predicated region
  $region10: #{vae_conv_forward.40} parent=0 // pred_check
    _
  $region11: #{vae_conv_forward.40} parent=0 // pred_check_branch
    %15 = sbr.rel (0) target = $region13
  $region12: #{vae_conv_forward.40} parent=0 // pred_region
    _
  $region13: #{vae_conv_forward.40} parent=0 // pred_fallthru
    _
  // Predicated region
  $region14: #{vae_conv_forward.40} parent=0 // pred_check
    _
  $region15: #{vae_conv_forward.40} parent=0 // pred_check_branch
    %17 = sbr.rel (0) target = $region17
  $region16: #{vae_conv_forward.40} parent=0 // pred_region
    _
  $region17: #{vae_conv_forward.40} parent=0 // pred_fallthru
    _
  // Predicated region
  $region18: #{vae_conv_forward.40} parent=0 // pred_check
    _
  $region19: #{vae_conv_forward.40} parent=0 // pred_check_branch
    %19 = sbr.rel (0) target = $region21
  $region20: #{vae_conv_forward.40} parent=0 // pred_region
    _
  $region21: #{vae_conv_forward.40} parent=0 // pred_fallthru
    _
  %v20 = vld [vmem:[%s1] sm:$0x1]
  %v21 = vmul.f32 %v20, 0.125
  %v22 = vld [vmem:[%s2] sm:$0x1]
  %v23 = vmul.f32 %v22, 0.125
  %v24 = vmul.f32 %v21, %v21
  %v25 = vsub.f32 %v23, %v24
  %v26 = vadd.f32 %v25, 1e-05
  %v27 = vrsqrt.pop %v26
  %v28 = vld [vmem:[%s3] sm:$0x1]
  %v29 = vmul.f32 %v27, %v28
  %v30 = vld [vmem:[%s0] sm:$0xf]
  %v31 = vunpack.c.l.bf16 %v30
  %v33 = vlaneseq
  %v34 = vshrl.u32 %v33, 7
  %v35 = vsub.s32 0, %v34
  %v36 = vrot.slane %v21, %v35
  %v38 = vsub.f32 %v31, %v36
  %v40 = vlaneseq
  %v41 = vshrl.u32 %v40, 7
  %v42 = vsub.s32 0, %v41
  %v43 = vrot.slane %v29, %v42
  %v45 = vmul.f32 %v38, %v43
  %v46 = vld [vmem:[%s4] sm:$0x1]
  %v48 = vlaneseq
  %v49 = vshrl.u32 %v48, 7
  %v50 = vsub.s32 0, %v49
  %v51 = vrot.slane %v46, %v50
  %v53 = vadd.f32 %v45, %v51
  %v54 = vmax.f32 %v53, 0.0
  %v55 = vpack.c.bf16 %v54, %v54
  %56 = vst [vmem:[%s5] sm:$0xf] %v55
  // Predicated region
  $region22: #{vae_conv_forward.40} parent=0 // pred_check
    _
  $region23: #{vae_conv_forward.40} parent=0 // pred_check_branch
    %58 = sbr.rel (0) target = $region25
  $region24: #{vae_conv_forward.40} parent=0 // pred_region
    _
  $region25: #{vae_conv_forward.40} parent=0 // pred_fallthru
    _
  // Predicated region
  $region26: #{vae_conv_forward.40} parent=0 // pred_check
    _
  $region27: #{vae_conv_forward.40} parent=0 // pred_check_branch
    %60 = sbr.rel (0) target = $region29
  $region28: #{vae_conv_forward.40} parent=0 // pred_region
    _
  $region29: #{vae_conv_forward.40} parent=0 // pred_fallthru
    _

// kernel: vae_conv_forward.47
$region0: #{vae_conv_forward.47}
  #allocation0 [shape = 'u32[]', space=smem, size = 0x4, offset = 0x4, fixed_abs, tag = 'smem constant byte address 0x4 - core index']
  #allocation1 [shape = 'u32[144,128]{1,0:T(1,128)}', space=vmem, size = 0x12000, scoped, tag = 'internal scratch']
  #allocation2 [shape = 'f32[8,128]{1,0:T(8,128)}', space=vmem, size = 0x1000, scoped, tag = 'scratch operand']
  %s0 = inlined_call_operand.vmem [shape: bf16[4,8,512], index: 0, kind: input, shape index: {}]
  %s1 = inlined_call_operand.vmem [shape: bf16[4,512,128], index: 1, kind: input, shape index: {}]
  %s2 = inlined_call_operand.vmem [shape: f32[1,128], index: 2, kind: input, shape index: {}]
  %s3 = inlined_call_operand.vmem [shape: bf16[4,8,128], index: 3, kind: output, shape index: {0}]
  %s4 = inlined_call_operand.vmem [shape: f32[4,1,128], index: 4, kind: output, shape index: {1}]
  %s5 = inlined_call_operand.vmem [shape: f32[4,1,128], index: 5, kind: output, shape index: {2}]
  %6 = xla_tuple %s3, %s4, %s5
  %s7 = sld [smem:[#allocation0]]
  $region69: #{vae_conv_forward.47} parent=0
    _
  %s9 = ssub.s32 1, %s7
  %s10 = scalar_select 0, %s9, %s7
  loop: start=0, step=1, limit=6
  $region2: #{vae_conv_forward.47} parent=0 // loop_pre_header
    _
  $region3: #{vae_conv_forward.47} parent=0 // loop_header
    %s12 = sphi 0, %s16
    %p13 = scmp.ge.s32.totalorder %s12, 6
    %s19 = sphi 0, %s45
    %s20 = sphi 0, %s41
    %s21 = sphi 0, %s37
    %s22 = sphi 0, %s33
    %s23 = sphi 0, %s19
    %s24 = sphi 0, %s20
    %s25 = sphi 0, %s21
    %s26 = sphi 0, %s22
    %s27 = sphi 0, %s23
    %s28 = sphi 0, %s24
    %s29 = sphi 0, %s25
    %s30 = sphi 0, %s26
    %s52 = sphi 0, %s54
    %s55 = sphi 0, %s52
    %s56 = sphi 0, %s55
    %s72 = sphi 0, %s56
    %s82 = sphi 0, %s84
    %s85 = sphi 0, %s82
    %s86 = sphi 0, %s85
    %s102 = sphi 0, %s86
    %s108 = sphi 0, %s110
    %s111 = sphi 0, %s108
    %s112 = sphi 0, %s111
    %s128 = sphi 0, %s112
    %s138 = sphi 0, %s140
    %s141 = sphi 0, %s138
    %s142 = sphi 0, %s141
    %s158 = sphi 0, %s142
    %s168 = sphi 0, %s170
    %s171 = sphi 0, %s168
    %s172 = sphi 0, %s171
    %s188 = sphi 0, %s172
    %s198 = sphi 0, %s200
    %s201 = sphi 0, %s198
    %s202 = sphi 0, %s201
    %s218 = sphi 0, %s202
  $region4: #{vae_conv_forward.47} parent=0 // loop_header_branch
    %15 = sbr.rel (%p13) target = $region8
  $region5: #{vae_conv_forward.47} parent=0 // loop_body
    %s17 = ssub.s32 %s12, 1
    %s18 = ssub.s32 %s12, 2
    %s31 = sadd.s32 1, %s22
    %p32 = scmp.ge.s32.totalorder %s31, 1
    %s33 = scalar_select %p32, 0, %s31
    %s34 = sadd.s32 1, %s21
    %s35 = scalar_select %p32, %s34, %s21
    %p36 = scmp.ge.s32.totalorder %s35, 1
    %s37 = scalar_select %p36, 0, %s35
    %s38 = sadd.s32 1, %s20
    %s39 = scalar_select %p36, %s38, %s20
    %p40 = scmp.ge.s32.totalorder %s39, 1
    %s41 = scalar_select %p40, 0, %s39
    %s42 = sadd.s32 1, %s19
    %s43 = scalar_select %p40, %s42, %s19
    %p44 = scmp.ge.s32.totalorder %s43, 4
    %s45 = scalar_select %p44, 0, %s43
    %s46 = ssub.s32 %s19, %s45
    %s47 = ssub.s32 %s20, %s41
    %s48 = sor.u32 %s46, %s47
    %s49 = ssub.s32 %s22, %s33
    %s50 = sor.u32 %s48, %s49
    %p51 = scmp.eq.s32.totalorder %s50, 0
    %s53 = sadd.s32 %s52, 1
    %s54 = scalar_select %p51, %s52, %s53
    %p57 = pneg %p51
    %p58 = scmp.eq.s32.totalorder %s12, 3
    %p59 = por %p57, %p58
    %p60 = scmp.ne.s32.totalorder %s52, %s55
    %p61 = scmp.eq.s32.totalorder %s12, 0
    %p62 = por %p60, %p61
    %p63 = scmp.ne.s32.totalorder %s52, %s55
    %p64 = scmp.eq.s32.totalorder %s17, 3
    %p65 = por %p63, %p64
    %p66 = scmp.ne.s32.totalorder %s55, %s56
    %p67 = scmp.eq.s32.totalorder %s17, 0
    %p68 = por %p66, %p67
    %p69 = scmp.ne.s32.totalorder %s55, %s56
    %p70 = scmp.eq.s32.totalorder %s18, 3
    %p71 = por %p69, %p70
    %p73 = scmp.ne.s32.totalorder %s56, %s72
    %p74 = scmp.eq.s32.totalorder %s18, 0
    %p75 = por %p73, %p74
    %s76 = ssub.s32 %s19, %s45
    %s77 = ssub.s32 %s22, %s33
    %s78 = sor.u32 %s76, %s77
    %s79 = ssub.s32 %s21, %s37
    %s80 = sor.u32 %s78, %s79
    %p81 = scmp.eq.s32.totalorder %s80, 0
    %s83 = sadd.s32 %s82, 1
    %s84 = scalar_select %p81, %s82, %s83
    %p87 = pneg %p81
    %p88 = scmp.eq.s32.totalorder %s12, 3
    %p89 = por %p87, %p88
    %p90 = scmp.ne.s32.totalorder %s82, %s85
    %p91 = scmp.eq.s32.totalorder %s12, 0
    %p92 = por %p90, %p91
    %p93 = scmp.ne.s32.totalorder %s82, %s85
    %p94 = scmp.eq.s32.totalorder %s17, 3
    %p95 = por %p93, %p94
    %p96 = scmp.ne.s32.totalorder %s85, %s86
    %p97 = scmp.eq.s32.totalorder %s17, 0
    %p98 = por %p96, %p97
    %p99 = scmp.ne.s32.totalorder %s85, %s86
    %p100 = scmp.eq.s32.totalorder %s18, 3
    %p101 = por %p99, %p100
    %p103 = scmp.ne.s32.totalorder %s86, %s102
    %p104 = scmp.eq.s32.totalorder %s18, 0
    %p105 = por %p103, %p104
    %s106 = ssub.s32 %s21, %s37
    %p107 = scmp.eq.s32.totalorder %s106, 0
    %s109 = sadd.s32 %s108, 1
    %s110 = scalar_select %p107, %s108, %s109
    %p113 = pneg %p107
    %p114 = scmp.eq.s32.totalorder %s12, 3
    %p115 = por %p113, %p114
    %p116 = scmp.ne.s32.totalorder %s108, %s111
    %p117 = scmp.eq.s32.totalorder %s12, 0
    %p118 = por %p116, %p117
    %p119 = scmp.ne.s32.totalorder %s108, %s111
    %p120 = scmp.eq.s32.totalorder %s17, 3
    %p121 = por %p119, %p120
    %p122 = scmp.ne.s32.totalorder %s111, %s112
    %p123 = scmp.eq.s32.totalorder %s17, 0
    %p124 = por %p122, %p123
    %p125 = scmp.ne.s32.totalorder %s111, %s112
    %p126 = scmp.eq.s32.totalorder %s18, 3
    %p127 = por %p125, %p126
    %p129 = scmp.ne.s32.totalorder %s112, %s128
    %p130 = scmp.eq.s32.totalorder %s18, 0
    %p131 = por %p129, %p130
    %s132 = ssub.s32 %s19, %s45
    %s133 = ssub.s32 %s20, %s41
    %s134 = sor.u32 %s132, %s133
    %s135 = ssub.s32 %s21, %s37
    %s136 = sor.u32 %s134, %s135
    %p137 = scmp.eq.s32.totalorder %s136, 0
    %s139 = sadd.s32 %s138, 1
    %s140 = scalar_select %p137, %s138, %s139
    %p143 = pneg %p137
    %p144 = scmp.eq.s32.totalorder %s12, 3
    %p145 = por %p143, %p144
    %p146 = scmp.ne.s32.totalorder %s138, %s141
    %p147 = scmp.eq.s32.totalorder %s12, 0
    %p148 = por %p146, %p147
    %p149 = scmp.ne.s32.totalorder %s138, %s141
    %p150 = scmp.eq.s32.totalorder %s17, 3
    %p151 = por %p149, %p150
    %p152 = scmp.ne.s32.totalorder %s141, %s142
    %p153 = scmp.eq.s32.totalorder %s17, 0
    %p154 = por %p152, %p153
    %p155 = scmp.ne.s32.totalorder %s141, %s142
    %p156 = scmp.eq.s32.totalorder %s18, 3
    %p157 = por %p155, %p156
    %p159 = scmp.ne.s32.totalorder %s142, %s158
    %p160 = scmp.eq.s32.totalorder %s18, 0
    %p161 = por %p159, %p160
    %s162 = ssub.s32 %s19, %s45
    %s163 = ssub.s32 %s20, %s41
    %s164 = sor.u32 %s162, %s163
    %s165 = ssub.s32 %s21, %s37
    %s166 = sor.u32 %s164, %s165
    %p167 = scmp.eq.s32.totalorder %s166, 0
    %s169 = sadd.s32 %s168, 1
    %s170 = scalar_select %p167, %s168, %s169
    %p173 = pneg %p167
    %p174 = scmp.eq.s32.totalorder %s12, 3
    %p175 = por %p173, %p174
    %p176 = scmp.ne.s32.totalorder %s168, %s171
    %p177 = scmp.eq.s32.totalorder %s12, 0
    %p178 = por %p176, %p177
    %p179 = scmp.ne.s32.totalorder %s168, %s171
    %p180 = scmp.eq.s32.totalorder %s17, 3
    %p181 = por %p179, %p180
    %p182 = scmp.ne.s32.totalorder %s171, %s172
    %p183 = scmp.eq.s32.totalorder %s17, 0
    %p184 = por %p182, %p183
    %p185 = scmp.ne.s32.totalorder %s171, %s172
    %p186 = scmp.eq.s32.totalorder %s18, 3
    %p187 = por %p185, %p186
    %p189 = scmp.ne.s32.totalorder %s172, %s188
    %p190 = scmp.eq.s32.totalorder %s18, 0
    %p191 = por %p189, %p190
    %s192 = ssub.s32 %s19, %s45
    %s193 = ssub.s32 %s20, %s41
    %s194 = sor.u32 %s192, %s193
    %s195 = ssub.s32 %s21, %s37
    %s196 = sor.u32 %s194, %s195
    %p197 = scmp.eq.s32.totalorder %s196, 0
    %s199 = sadd.s32 %s198, 1
    %s200 = scalar_select %p197, %s198, %s199
    %p203 = pneg %p197
    %p204 = scmp.eq.s32.totalorder %s12, 3
    %p205 = por %p203, %p204
    %p206 = scmp.ne.s32.totalorder %s198, %s201
    %p207 = scmp.eq.s32.totalorder %s12, 0
    %p208 = por %p206, %p207
    %p209 = scmp.ne.s32.totalorder %s198, %s201
    %p210 = scmp.eq.s32.totalorder %s17, 3
    %p211 = por %p209, %p210
    %p212 = scmp.ne.s32.totalorder %s201, %s202
    %p213 = scmp.eq.s32.totalorder %s17, 0
    %p214 = por %p212, %p213
    %p215 = scmp.ne.s32.totalorder %s201, %s202
    %p216 = scmp.eq.s32.totalorder %s18, 3
    %p217 = por %p215, %p216
    %p219 = scmp.ne.s32.totalorder %s202, %s218
    %p220 = scmp.eq.s32.totalorder %s18, 0
    %p221 = por %p219, %p220
    %p222 = scmp.le.s32.totalorder 1, %s12
    %p223 = scmp.lt.s32.totalorder %s12, 5
    %p224 = pnand %p222, %p223
    %p225 = pneg %p224
    // Predicated region
    $region9: #{vae_conv_forward.47} parent=5 // pred_check
      _
    $region10: #{vae_conv_forward.47} parent=5 // pred_check_branch
      %227 = sbr.rel (%p224) target = $region12
    $region11: #{vae_conv_forward.47} parent=5 // pred_region
      %s228 = ssub.s32 %s12, 1
      // Predicated region
      $region13: #{vae_conv_forward.47} parent=11 // pred_check
        %p229 = pneg %p124
      $region14: #{vae_conv_forward.47} parent=11 // pred_check_branch
        %231 = sbr.rel (%p229) target = $region16
      $region15: #{vae_conv_forward.47} parent=11 // pred_region
        %p232 = scmp.lt.s32.totalorder %s25, 0
        %s233 = scalar_select %p232, %s25, 0
        %s234 = scalar_lea.vmem %s2, %s233
      $region16: #{vae_conv_forward.47} parent=11 // pred_fallthru
        _
    $region12: #{vae_conv_forward.47} parent=5 // pred_fallthru
      _
    %p235 = scmp.lt.s32.totalorder %s12, 4
    // Predicated region
    $region17: #{vae_conv_forward.47} parent=5 // pred_check
      %p236 = pneg %p235
    $region18: #{vae_conv_forward.47} parent=5 // pred_check_branch
      %238 = sbr.rel (%p236) target = $region20
    $region19: #{vae_conv_forward.47} parent=5 // pred_region
      // Predicated region
      $region21: #{vae_conv_forward.47} parent=19 // pred_check
        %p239 = pneg %p62
      $region22: #{vae_conv_forward.47} parent=19 // pred_check_branch
        %241 = sbr.rel (%p239) target = $region24
      $region23: #{vae_conv_forward.47} parent=19 // pred_region
        %s242 = smul.u32 4, %s22
        %p243 = scmp.lt.s32.totalorder %s19, 3
        %s244 = scalar_select %p243, %s19, 3
        %p245 = scmp.lt.s32.totalorder %s20, 0
        %s246 = scalar_select %p245, %s20, 0
        %p247 = scmp.lt.s32.totalorder %s242, 3
        %s248 = scalar_select %p247, %s242, 3
        %s249 = smul.addr %s246, 4
        %s250 = sadd.s32 %s248, %s249
        %s251 = smul.addr %s244, 4
        %s252 = sadd.s32 %s250, %s251
        %s253 = smul.addr %s252, 4
        %s254 = scalar_lea.vmem %s0, %s253
        %s255 = smul.u32 4, %s22
      $region24: #{vae_conv_forward.47} parent=19 // pred_fallthru
        _
      // Predicated region
      $region25: #{vae_conv_forward.47} parent=19 // pred_check
        %p256 = pneg %p92
      $region26: #{vae_conv_forward.47} parent=19 // pred_check_branch
        %258 = sbr.rel (%p256) target = $region28
      $region27: #{vae_conv_forward.47} parent=19 // pred_region
        %s259 = smul.u32 64, %s22
        %p260 = scmp.lt.s32.totalorder %s19, 3
        %s261 = scalar_select %p260, %s19, 3
        %p262 = scmp.lt.s32.totalorder %s259, 63
        %s263 = scalar_select %p262, %s259, 63
        %p264 = scmp.lt.s32.totalorder %s21, 0
        %s265 = scalar_select %p264, %s21, 0
        %s266 = sadd.s32 %s265, %s263
        %s267 = smul.addr %s261, 64
        %s268 = sadd.s32 %s266, %s267
        %s269 = smul.addr %s268, 4
        %s270 = scalar_lea.vmem %s1, %s269
        %s271 = smul.u32 64, %s22
      $region28: #{vae_conv_forward.47} parent=19 // pred_fallthru
        _
    $region20: #{vae_conv_forward.47} parent=5 // pred_fallthru
      _
    %p272 = scmp.le.s32.totalorder 1, %s12
    %p273 = scmp.lt.s32.totalorder %s12, 5
    %p274 = pnand %p272, %p273
    %p275 = pneg %p274
    // Predicated region
    $region29: #{vae_conv_forward.47} parent=5 // pred_check
      _
    $region30: #{vae_conv_forward.47} parent=5 // pred_check_branch
      %277 = sbr.rel (%p274) target = $region32
    $region31: #{vae_conv_forward.47} parent=5 // pred_region
      %s278 = ssub.s32 %s12, 1
      %s279 = smul.u32 4, %s26
      %p280 = scmp.lt.s32.totalorder %s23, 3
      %s281 = scalar_select %p280, %s23, 3
      %p282 = scmp.lt.s32.totalorder %s24, 0
      %s283 = scalar_select %p282, %s24, 0
      %p284 = scmp.lt.s32.totalorder %s279, 3
      %s285 = scalar_select %p284, %s279, 3
      %s286 = smul.addr %s283, 4
      %s287 = sadd.s32 %s285, %s286
      %s288 = smul.addr %s281, 4
      %s289 = sadd.s32 %s287, %s288
      %s290 = smul.addr %s289, 4
      %s291 = scalar_lea.vmem %s0, %s290
      %p292 = pneg %p68
      %p293 = pneg %p65
      %s294 = smul.u32 64, %s26
      %p295 = scmp.lt.s32.totalorder %s23, 3
      %s296 = scalar_select %p295, %s23, 3
      %p297 = scmp.lt.s32.totalorder %s294, 63
      %s298 = scalar_select %p297, %s294, 63
      %p299 = scmp.lt.s32.totalorder %s25, 0
      %s300 = scalar_select %p299, %s25, 0
      %s301 = sadd.s32 %s300, %s298
      %s302 = smul.addr %s296, 64
      %s303 = sadd.s32 %s301, %s302
      %s304 = smul.addr %s303, 4
      %s305 = scalar_lea.vmem %s1, %s304
      %p306 = pneg %p98
      %p307 = pneg %p95
      %p308 = scmp.lt.s32.totalorder %s25, 0
      %s309 = scalar_select %p308, %s25, 0
      %s310 = scalar_lea.vmem %s2, %s309
      %p311 = pneg %p124
      %p312 = pneg %p121
      %p313 = pneg %p154
      %p314 = pneg %p151
      %p315 = scmp.lt.s32.totalorder %s23, 3
      %s316 = scalar_select %p315, %s23, 3
      %p317 = scmp.lt.s32.totalorder %s24, 0
      %s318 = scalar_select %p317, %s24, 0
      %p319 = scmp.lt.s32.totalorder %s25, 0
      %s320 = scalar_select %p319, %s25, 0
      %s321 = sadd.s32 %s320, %s318
      %s322 = sadd.s32 %s321, %s316
      %s323 = smul.addr %s322, 4
      %s324 = scalar_lea.vmem %s3, %s323
      %p325 = pneg %p184
      %p326 = pneg %p181
      %p327 = scmp.lt.s32.totalorder %s23, 3
      %s328 = scalar_select %p327, %s23, 3
      %p329 = scmp.lt.s32.totalorder %s24, 0
      %s330 = scalar_select %p329, %s24, 0
      %p331 = scmp.lt.s32.totalorder %s25, 0
      %s332 = scalar_select %p331, %s25, 0
      %s333 = sadd.s32 %s332, %s330
      %s334 = sadd.s32 %s333, %s328
      %s335 = scalar_lea.vmem %s4, %s334
      %p336 = pneg %p214
      %p337 = pneg %p211
      %p338 = scmp.lt.s32.totalorder %s23, 3
      %s339 = scalar_select %p338, %s23, 3
      %p340 = scmp.lt.s32.totalorder %s24, 0
      %s341 = scalar_select %p340, %s24, 0
      %p342 = scmp.lt.s32.totalorder %s25, 0
      %s343 = scalar_select %p342, %s25, 0
      %s344 = sadd.s32 %s343, %s341
      %s345 = sadd.s32 %s344, %s339
      %s346 = scalar_lea.vmem %s5, %s345
      %s347 = smul.u32 4, %s26
      %p348 = scmp.lt.s32.totalorder %s23, 3
      %s349 = scalar_select %p348, %s23, 3
      %p350 = scmp.lt.s32.totalorder %s24, 0
      %s351 = scalar_select %p350, %s24, 0
      %p352 = scmp.lt.s32.totalorder %s347, 3
      %s353 = scalar_select %p352, %s347, 3
      %s354 = smul.addr %s351, 4
      %s355 = sadd.s32 %s353, %s354
      %s356 = smul.addr %s349, 4
      %s357 = sadd.s32 %s355, %s356
      %s358 = smul.addr %s357, 4
      %s359 = scalar_lea.vmem %s0, %s358
      %s360 = smul.u32 4, %s26
      %s361 = smul.u32 64, %s26
      %p362 = scmp.lt.s32.totalorder %s23, 3
      %s363 = scalar_select %p362, %s23, 3
      %p364 = scmp.lt.s32.totalorder %s361, 63
      %s365 = scalar_select %p364, %s361, 63
      %p366 = scmp.lt.s32.totalorder %s25, 0
      %s367 = scalar_select %p366, %s25, 0
      %s368 = sadd.s32 %s367, %s365
      %s369 = smul.addr %s363, 64
      %s370 = sadd.s32 %s368, %s369
      %s371 = smul.addr %s370, 4
      %s372 = scalar_lea.vmem %s1, %s371
      %s373 = smul.u32 64, %s26
      %p374 = scmp.lt.s32.totalorder %s25, 0
      %s375 = scalar_select %p374, %s25, 0
      %s376 = scalar_lea.vmem %s2, %s375
      %p377 = scmp.lt.s32.totalorder %s23, 3
      %s378 = scalar_select %p377, %s23, 3
      %p379 = scmp.lt.s32.totalorder %s24, 0
      %s380 = scalar_select %p379, %s24, 0
      %p381 = scmp.lt.s32.totalorder %s25, 0
      %s382 = scalar_select %p381, %s25, 0
      %s383 = sadd.s32 %s382, %s380
      %s384 = sadd.s32 %s383, %s378
      %s385 = smul.addr %s384, 4
      %s386 = scalar_lea.vmem %s3, %s385
      %p387 = scmp.lt.s32.totalorder %s23, 3
      %s388 = scalar_select %p387, %s23, 3
      %p389 = scmp.lt.s32.totalorder %s24, 0
      %s390 = scalar_select %p389, %s24, 0
      %p391 = scmp.lt.s32.totalorder %s25, 0
      %s392 = scalar_select %p391, %s25, 0
      %s393 = sadd.s32 %s392, %s390
      %s394 = sadd.s32 %s393, %s388
      %s395 = scalar_lea.vmem %s4, %s394
      %p396 = scmp.lt.s32.totalorder %s23, 3
      %s397 = scalar_select %p396, %s23, 3
      %p398 = scmp.lt.s32.totalorder %s24, 0
      %s399 = scalar_select %p398, %s24, 0
      %p400 = scmp.lt.s32.totalorder %s25, 0
      %s401 = scalar_select %p400, %s25, 0
      %s402 = sadd.s32 %s401, %s399
      %s403 = sadd.s32 %s402, %s397
      %s404 = scalar_lea.vmem %s5, %s403
      %p406 = scmp.eq.s32.totalorder %s26, 0
      // Predicated region
      $region33: #{vae_conv_forward.47} parent=31 // pred_check
        %p407 = pneg %p406
      $region34: #{vae_conv_forward.47} parent=31 // pred_check_branch
        %409 = sbr.rel (%p407) target = $region36
      $region35: #{vae_conv_forward.47} parent=31 // pred_region
        %410 = vst [vmem:[#allocation2] sm:$0xff] 0.0
      $region36: #{vae_conv_forward.47} parent=31 // pred_fallthru
        _
      %v411 = vld [vmem:[#allocation2] sm:$0xff]
      %v412 = vld [vmem:[%s359] sm:$0xff]
      %v413 = vld [vmem:[%s359 + $0x8] sm:$0xff]
      %v414 = vld [vmem:[%s372] sm:$0xf]
      %v415 = vld [vmem:[%s372 + $0x4] sm:$0xf]
      %v416 = vld [vmem:[%s372 + $0x8] sm:$0xf]
      %v417 = vld [vmem:[%s372 + $0xc] sm:$0xf]
      %v418 = vld [vmem:[%s372 + $0x10] sm:$0xf]
      %v419 = vld [vmem:[%s372 + $0x14] sm:$0xf]
      %v420 = vld [vmem:[%s372 + $0x18] sm:$0xf]
      %v421 = vld [vmem:[%s372 + $0x1c] sm:$0xf]
      %v422 = vld [vmem:[%s372 + $0x20] sm:$0xf]
      %v423 = vld [vmem:[%s372 + $0x24] sm:$0xf]
      %v424 = vld [vmem:[%s372 + $0x28] sm:$0xf]
      %v425 = vld [vmem:[%s372 + $0x2c] sm:$0xf]
      %v426 = vld [vmem:[%s372 + $0x30] sm:$0xf]
      %v427 = vld [vmem:[%s372 + $0x34] sm:$0xf]
      %v428 = vld [vmem:[%s372 + $0x38] sm:$0xf]
      %v429 = vld [vmem:[%s372 + $0x3c] sm:$0xf]
      %v430 = vld [vmem:[%s372 + $0x40] sm:$0xf]
      %v431 = vld [vmem:[%s372 + $0x44] sm:$0xf]
      %v432 = vld [vmem:[%s372 + $0x48] sm:$0xf]
      %v433 = vld [vmem:[%s372 + $0x4c] sm:$0xf]
      %v434 = vld [vmem:[%s372 + $0x50] sm:$0xf]
      %v435 = vld [vmem:[%s372 + $0x54] sm:$0xf]
      %v436 = vld [vmem:[%s372 + $0x58] sm:$0xf]
      %v437 = vld [vmem:[%s372 + $0x5c] sm:$0xf]
      %v438 = vld [vmem:[%s372 + $0x60] sm:$0xf]
      %v439 = vld [vmem:[%s372 + $0x64] sm:$0xf]
      %v440 = vld [vmem:[%s372 + $0x68] sm:$0xf]
      %v441 = vld [vmem:[%s372 + $0x6c] sm:$0xf]
      %v442 = vld [vmem:[%s372 + $0x70] sm:$0xf]
      %v443 = vld [vmem:[%s372 + $0x74] sm:$0xf]
      %v444 = vld [vmem:[%s372 + $0x78] sm:$0xf]
      %v445 = vld [vmem:[%s372 + $0x7c] sm:$0xf]
      %v446 = vld [vmem:[%s372 + $0x80] sm:$0xf]
      %v447 = vld [vmem:[%s372 + $0x84] sm:$0xf]
      %v448 = vld [vmem:[%s372 + $0x88] sm:$0xf]
      %v449 = vld [vmem:[%s372 + $0x8c] sm:$0xf]
      %v450 = vld [vmem:[%s372 + $0x90] sm:$0xf]
      %v451 = vld [vmem:[%s372 + $0x94] sm:$0xf]
      %v452 = vld [vmem:[%s372 + $0x98] sm:$0xf]
      %v453 = vld [vmem:[%s372 + $0x9c] sm:$0xf]
      %v454 = vld [vmem:[%s372 + $0xa0] sm:$0xf]
      %v455 = vld [vmem:[%s372 + $0xa4] sm:$0xf]
      %v456 = vld [vmem:[%s372 + $0xa8] sm:$0xf]
      %v457 = vld [vmem:[%s372 + $0xac] sm:$0xf]
      %v458 = vld [vmem:[%s372 + $0xb0] sm:$0xf]
      %v459 = vld [vmem:[%s372 + $0xb4] sm:$0xf]
      %v460 = vld [vmem:[%s372 + $0xb8] sm:$0xf]
      %v461 = vld [vmem:[%s372 + $0xbc] sm:$0xf]
      %v462 = vld [vmem:[%s372 + $0xc0] sm:$0xf]
      %v463 = vld [vmem:[%s372 + $0xc4] sm:$0xf]
      %v464 = vld [vmem:[%s372 + $0xc8] sm:$0xf]
      %v465 = vld [vmem:[%s372 + $0xcc] sm:$0xf]
      %v466 = vld [vmem:[%s372 + $0xd0] sm:$0xf]
      %v467 = vld [vmem:[%s372 + $0xd4] sm:$0xf]
      %v468 = vld [vmem:[%s372 + $0xd8] sm:$0xf]
      %v469 = vld [vmem:[%s372 + $0xdc] sm:$0xf]
      %v470 = vld [vmem:[%s372 + $0xe0] sm:$0xf]
      %v471 = vld [vmem:[%s372 + $0xe4] sm:$0xf]
      %v472 = vld [vmem:[%s372 + $0xe8] sm:$0xf]
      %v473 = vld [vmem:[%s372 + $0xec] sm:$0xf]
      %v474 = vld [vmem:[%s372 + $0xf0] sm:$0xf]
      %v475 = vld [vmem:[%s372 + $0xf4] sm:$0xf]
      %v476 = vld [vmem:[%s372 + $0xf8] sm:$0xf]
      %v477 = vld [vmem:[%s372 + $0xfc] sm:$0xf]
      %v480 = vunpack.c.l.b16 %v412
      %v481 = vunpack.c.h.b16 %v412
      %v482 = vunpack.c.l.b16 %v413
      %v483 = vunpack.c.h.b16 %v413
      %v484 = vpack.c.b16 %v480, %v480
      %v485 = vpack.c.b16 %v481, %v481
      %v486 = vpack.c.b16 %v482, %v482
      %v487 = vpack.c.b16 %v483, %v483
      %v556 = vunpack.c.l.b16 %v414
      %v557 = vunpack.c.l.b16 %v415
      %v558 = vunpack.c.l.b16 %v416
      %v559 = vunpack.c.l.b16 %v417
      %v560 = vunpack.c.l.b16 %v418
      %v561 = vunpack.c.l.b16 %v419
      %v562 = vunpack.c.l.b16 %v420
      %v563 = vunpack.c.l.b16 %v421
      %v564 = vunpack.c.l.b16 %v422
      %v565 = vunpack.c.l.b16 %v423
      %v566 = vunpack.c.l.b16 %v424
      %v567 = vunpack.c.l.b16 %v425
      %v568 = vunpack.c.l.b16 %v426
      %v569 = vunpack.c.l.b16 %v427
      %v570 = vunpack.c.l.b16 %v428
      %v571 = vunpack.c.l.b16 %v429
      %v572 = vunpack.c.l.b16 %v430
      %v573 = vunpack.c.l.b16 %v431
      %v574 = vunpack.c.l.b16 %v432
      %v575 = vunpack.c.l.b16 %v433
      %v576 = vunpack.c.l.b16 %v434
      %v577 = vunpack.c.l.b16 %v435
      %v578 = vunpack.c.l.b16 %v436
      %v579 = vunpack.c.l.b16 %v437
      %v580 = vunpack.c.l.b16 %v438
      %v581 = vunpack.c.l.b16 %v439
      %v582 = vunpack.c.l.b16 %v440
      %v583 = vunpack.c.l.b16 %v441
      %v584 = vunpack.c.l.b16 %v442
      %v585 = vunpack.c.l.b16 %v443
      %v586 = vunpack.c.l.b16 %v444
      %v587 = vunpack.c.l.b16 %v445
      %v588 = vunpack.c.l.b16 %v446
      %v589 = vunpack.c.l.b16 %v447
      %v590 = vunpack.c.l.b16 %v448
      %v591 = vunpack.c.l.b16 %v449
      %v592 = vunpack.c.l.b16 %v450
      %v593 = vunpack.c.l.b16 %v451
      %v594 = vunpack.c.l.b16 %v452
      %v595 = vunpack.c.l.b16 %v453
      %v596 = vunpack.c.l.b16 %v454
      %v597 = vunpack.c.l.b16 %v455
      %v598 = vunpack.c.l.b16 %v456
      %v599 = vunpack.c.l.b16 %v457
      %v600 = vunpack.c.l.b16 %v458
      %v601 = vunpack.c.l.b16 %v459
      %v602 = vunpack.c.l.b16 %v460
      %v603 = vunpack.c.l.b16 %v461
      %v604 = vunpack.c.l.b16 %v462
      %v605 = vunpack.c.l.b16 %v463
      %v606 = vunpack.c.l.b16 %v464
      %v607 = vunpack.c.l.b16 %v465
      %v608 = vunpack.c.l.b16 %v466
      %v609 = vunpack.c.l.b16 %v467
      %v610 = vunpack.c.l.b16 %v468
      %v611 = vunpack.c.l.b16 %v469
      %v612 = vunpack.c.l.b16 %v470
      %v613 = vunpack.c.l.b16 %v471
      %v614 = vunpack.c.l.b16 %v472
      %v615 = vunpack.c.l.b16 %v473
      %v616 = vunpack.c.l.b16 %v474
      %v617 = vunpack.c.l.b16 %v475
      %v618 = vunpack.c.l.b16 %v476
      %v619 = vunpack.c.l.b16 %v477
      %v620 = vpack.c.b16 %v557, %v556
      %v621 = vpack.c.b16 %v559, %v558
      %v622 = vpack.c.b16 %v561, %v560
      %v623 = vpack.c.b16 %v563, %v562
      %v624 = vpack.c.b16 %v565, %v564
      %v625 = vpack.c.b16 %v567, %v566
      %v626 = vpack.c.b16 %v569, %v568
      %v627 = vpack.c.b16 %v571, %v570
      %v628 = vpack.c.b16 %v573, %v572
      %v629 = vpack.c.b16 %v575, %v574
      %v630 = vpack.c.b16 %v577, %v576
      %v631 = vpack.c.b16 %v579, %v578
      %v632 = vpack.c.b16 %v581, %v580
      %v633 = vpack.c.b16 %v583, %v582
      %v634 = vpack.c.b16 %v585, %v584
      %v635 = vpack.c.b16 %v587, %v586
      %v636 = vpack.c.b16 %v589, %v588
      %v637 = vpack.c.b16 %v591, %v590
      %v638 = vpack.c.b16 %v593, %v592
      %v639 = vpack.c.b16 %v595, %v594
      %v640 = vpack.c.b16 %v597, %v596
      %v641 = vpack.c.b16 %v599, %v598
      %v642 = vpack.c.b16 %v601, %v600
      %v643 = vpack.c.b16 %v603, %v602
      %v644 = vpack.c.b16 %v605, %v604
      %v645 = vpack.c.b16 %v607, %v606
      %v646 = vpack.c.b16 %v609, %v608
      %v647 = vpack.c.b16 %v611, %v610
      %v648 = vpack.c.b16 %v613, %v612
      %v649 = vpack.c.b16 %v615, %v614
      %v650 = vpack.c.b16 %v617, %v616
      %v651 = vpack.c.b16 %v619, %v618
      %684 = vmatprep.subr.bf16.mxu0 0
      %685 = vmatpush1.bf16.msra.mxu0 %v620
      %686 = vmatprep.subr.bf16.mxu0 0
      %687 = vmatpush1.bf16.msra.mxu0 %v621
      %688 = vmatprep.subr.bf16.mxu0 0
      %689 = vmatpush1.bf16.msra.mxu0 %v622
      %690 = vmatprep.subr.bf16.mxu0 0
      %691 = vmatpush1.bf16.msra.mxu0 %v623
      %692 = vmatprep.subr.bf16.mxu0 0
      %693 = vmatpush1.bf16.msra.mxu0 %v624
      %694 = vmatprep.subr.bf16.mxu0 0
      %695 = vmatpush1.bf16.msra.mxu0 %v625
      %696 = vmatprep.subr.bf16.mxu0 0
      %697 = vmatpush1.bf16.msra.mxu0 %v626
      %698 = vmatprep.subr.bf16.mxu0 0
      %699 = vmatpush1.bf16.msra.mxu0 %v627
      %700 = vmatprep.subr.bf16.mxu0 0
      %701 = vmatpush1.bf16.msra.mxu0 %v628
      %702 = vmatprep.subr.bf16.mxu0 0
      %703 = vmatpush1.bf16.msra.mxu0 %v629
      %704 = vmatprep.subr.bf16.mxu0 0
      %705 = vmatpush1.bf16.msra.mxu0 %v630
      %706 = vmatprep.subr.bf16.mxu0 0
      %707 = vmatpush1.bf16.msra.mxu0 %v631
      %708 = vmatprep.subr.bf16.mxu0 0
      %709 = vmatpush1.bf16.msra.mxu0 %v632
      %710 = vmatprep.subr.bf16.mxu0 0
      %711 = vmatpush1.bf16.msra.mxu0 %v633
      %712 = vmatprep.subr.bf16.mxu0 0
      %713 = vmatpush1.bf16.msra.mxu0 %v634
      %714 = vmatprep.subr.bf16.mxu0 0
      %715 = vmatpush1.bf16.msra.mxu0 %v635
      %716 = vmatprep.mubr.bf16.mxu0 %v485
      %717 = vmatmul.mubr.bf16.gmra.mrb[0].mxu0 %v484
      %v718 = vpop.f32.mrb[0].mxu0
      %v719 = vadd.f32 0.0, %v718
      %v720 = vpop.f32.mrb[0].mxu0
      %v721 = vpop.f32.mrb[0].mxu0
      %v722 = vpop.f32.mrb[0].mxu0
      %723 = vdwg.mxu0
      %724 = vmatprep.subr.bf16.mxu0 0
      %725 = vmatpush1.bf16.msra.mxu0 %v636
      %726 = vmatprep.subr.bf16.mxu0 0
      %727 = vmatpush1.bf16.msra.mxu0 %v637
      %728 = vmatprep.subr.bf16.mxu0 0
      %729 = vmatpush1.bf16.msra.mxu0 %v638
      %730 = vmatprep.subr.bf16.mxu0 0
      %731 = vmatpush1.bf16.msra.mxu0 %v639
      %732 = vmatprep.subr.bf16.mxu0 0
      %733 = vmatpush1.bf16.msra.mxu0 %v640
      %734 = vmatprep.subr.bf16.mxu0 0
      %735 = vmatpush1.bf16.msra.mxu0 %v641
      %736 = vmatprep.subr.bf16.mxu0 0
      %737 = vmatpush1.bf16.msra.mxu0 %v642
      %738 = vmatprep.subr.bf16.mxu0 0
      %739 = vmatpush1.bf16.msra.mxu0 %v643
      %740 = vmatprep.subr.bf16.mxu0 0
      %741 = vmatpush1.bf16.msra.mxu0 %v644
      %742 = vmatprep.subr.bf16.mxu0 0
      %743 = vmatpush1.bf16.msra.mxu0 %v645
      %744 = vmatprep.subr.bf16.mxu0 0
      %745 = vmatpush1.bf16.msra.mxu0 %v646
      %746 = vmatprep.subr.bf16.mxu0 0
      %747 = vmatpush1.bf16.msra.mxu0 %v647
      %748 = vmatprep.subr.bf16.mxu0 0
      %749 = vmatpush1.bf16.msra.mxu0 %v648
      %750 = vmatprep.subr.bf16.mxu0 0
      %751 = vmatpush1.bf16.msra.mxu0 %v649
      %752 = vmatprep.subr.bf16.mxu0 0
      %753 = vmatpush1.bf16.msra.mxu0 %v650
      %754 = vmatprep.subr.bf16.mxu0 0
      %755 = vmatpush1.bf16.msra.mxu0 %v651
      %756 = vmatprep.mubr.bf16.mxu0 %v487
      %757 = vmatmul.mubr.bf16.gmra.mrb[0].mxu0 %v486
      %v758 = vpop.f32.mrb[0].mxu0
      %v759 = vadd.f32 %v719, %v758
      %v760 = vpop.f32.mrb[0].mxu0
      %v761 = vpop.f32.mrb[0].mxu0
      %v762 = vpop.f32.mrb[0].mxu0
      %763 = vdwg.mxu0
      %v764 = vadd.f32 %v411, %v759
      %765 = vst [vmem:[#allocation2] sm:$0xff] %v764
      // Predicated region
      $region37: #{vae_conv_forward.47} parent=31 // pred_check
        %p766 = pneg %p406
      $region38: #{vae_conv_forward.47} parent=31 // pred_check_branch
        %768 = sbr.rel (%p766) target = $region40
      $region39: #{vae_conv_forward.47} parent=31 // pred_region
        %v769 = vld [vmem:[#allocation2] sm:$0xff]
        %v770 = vld [vmem:[%s376] sm:$0x1]
        %v772 = vlaneseq
        %v773 = vshrl.u32 %v772, 7
        %v774 = vsub.s32 0, %v773
        %v775 = vrot.slane %v770, %v774
        %v777 = vadd.f32 %v769, %v775
        %v778 = vpack.c.bf16 %v777, %v777
        %779 = vst [vmem:[%s386] sm:$0xf] %v778
        %v780 = vrot.slane %v777, 4
        %v781 = vadd.f32 %v777, %v780
        %v782 = vrot.slane %v781, 2
        %v783 = vadd.f32 %v781, %v782
        %v784 = vrot.slane %v783, 1
        %v785 = vadd.f32 %v783, %v784
        %786 = vst [vmem:[%s395] sm:$0x1] %v785
        %v787 = vmul.f32 %v777, %v777
        %v788 = vrot.slane %v787, 4
        %v789 = vadd.f32 %v787, %v788
        %v790 = vrot.slane %v789, 2
        %v791 = vadd.f32 %v789, %v790
        %v792 = vrot.slane %v791, 1
        %v793 = vadd.f32 %v791, %v792
        %794 = vst [vmem:[%s404] sm:$0x1] %v793
      $region40: #{vae_conv_forward.47} parent=31 // pred_fallthru
        _
      %p795 = scmp.lt.s32.totalorder %s23, 3
      %s796 = scalar_select %p795, %s23, 3
      %p797 = scmp.lt.s32.totalorder %s24, 0
      %s798 = scalar_select %p797, %s24, 0
      %p799 = scmp.lt.s32.totalorder %s25, 0
      %s800 = scalar_select %p799, %s25, 0
      %s801 = sadd.s32 %s800, %s798
      %s802 = sadd.s32 %s801, %s796
      %s803 = smul.addr %s802, 4
      %s804 = scalar_lea.vmem %s3, %s803
      %p805 = scmp.lt.s32.totalorder %s23, 3
      %s806 = scalar_select %p805, %s23, 3
      %p807 = scmp.lt.s32.totalorder %s24, 0
      %s808 = scalar_select %p807, %s24, 0
      %p809 = scmp.lt.s32.totalorder %s25, 0
      %s810 = scalar_select %p809, %s25, 0
      %s811 = sadd.s32 %s810, %s808
      %s812 = sadd.s32 %s811, %s806
      %s813 = scalar_lea.vmem %s4, %s812
      %p814 = scmp.lt.s32.totalorder %s23, 3
      %s815 = scalar_select %p814, %s23, 3
      %p816 = scmp.lt.s32.totalorder %s24, 0
      %s817 = scalar_select %p816, %s24, 0
      %p818 = scmp.lt.s32.totalorder %s25, 0
      %s819 = scalar_select %p818, %s25, 0
      %s820 = sadd.s32 %s819, %s817
      %s821 = sadd.s32 %s820, %s815
      %s822 = scalar_lea.vmem %s5, %s821
      // Predicated region
      $region41: #{vae_conv_forward.47} parent=31 // pred_check
        %p823 = pneg %p151
      $region42: #{vae_conv_forward.47} parent=31 // pred_check_branch
        %825 = sbr.rel (%p823) target = $region44
      $region43: #{vae_conv_forward.47} parent=31 // pred_region
        _
      $region44: #{vae_conv_forward.47} parent=31 // pred_fallthru
        _
      // Predicated region
      $region45: #{vae_conv_forward.47} parent=31 // pred_check
        %p826 = pneg %p181
      $region46: #{vae_conv_forward.47} parent=31 // pred_check_branch
        %828 = sbr.rel (%p826) target = $region48
      $region47: #{vae_conv_forward.47} parent=31 // pred_region
        _
      $region48: #{vae_conv_forward.47} parent=31 // pred_fallthru
        _
      // Predicated region
      $region49: #{vae_conv_forward.47} parent=31 // pred_check
        %p829 = pneg %p211
      $region50: #{vae_conv_forward.47} parent=31 // pred_check_branch
        %831 = sbr.rel (%p829) target = $region52
      $region51: #{vae_conv_forward.47} parent=31 // pred_region
        _
      $region52: #{vae_conv_forward.47} parent=31 // pred_fallthru
        _
    $region32: #{vae_conv_forward.47} parent=5 // pred_fallthru
      _
    %p832 = scmp.le.s32.totalorder 2, %s12
    // Predicated region
    $region53: #{vae_conv_forward.47} parent=5 // pred_check
      %p833 = pneg %p832
    $region54: #{vae_conv_forward.47} parent=5 // pred_check_branch
      %835 = sbr.rel (%p833) target = $region56
    $region55: #{vae_conv_forward.47} parent=5 // pred_region
      %s836 = ssub.s32 %s12, 2
      // Predicated region
      $region57: #{vae_conv_forward.47} parent=55 // pred_check
        %p837 = pneg %p157
      $region58: #{vae_conv_forward.47} parent=55 // pred_check_branch
        %839 = sbr.rel (%p837) target = $region60
      $region59: #{vae_conv_forward.47} parent=55 // pred_region
        %p840 = scmp.lt.s32.totalorder %s27, 3
        %s841 = scalar_select %p840, %s27, 3
        %p842 = scmp.lt.s32.totalorder %s28, 0
        %s843 = scalar_select %p842, %s28, 0
        %p844 = scmp.lt.s32.totalorder %s29, 0
        %s845 = scalar_select %p844, %s29, 0
        %s846 = sadd.s32 %s845, %s843
        %s847 = sadd.s32 %s846, %s841
        %s848 = smul.addr %s847, 4
        %s849 = scalar_lea.vmem %s3, %s848
      $region60: #{vae_conv_forward.47} parent=55 // pred_fallthru
        _
      // Predicated region
      $region61: #{vae_conv_forward.47} parent=55 // pred_check
        %p850 = pneg %p187
      $region62: #{vae_conv_forward.47} parent=55 // pred_check_branch
        %852 = sbr.rel (%p850) target = $region64
      $region63: #{vae_conv_forward.47} parent=55 // pred_region
        %p853 = scmp.lt.s32.totalorder %s27, 3
        %s854 = scalar_select %p853, %s27, 3
        %p855 = scmp.lt.s32.totalorder %s28, 0
        %s856 = scalar_select %p855, %s28, 0
        %p857 = scmp.lt.s32.totalorder %s29, 0
        %s858 = scalar_select %p857, %s29, 0
        %s859 = sadd.s32 %s858, %s856
        %s860 = sadd.s32 %s859, %s854
        %s861 = scalar_lea.vmem %s4, %s860
      $region64: #{vae_conv_forward.47} parent=55 // pred_fallthru
        _
      // Predicated region
      $region65: #{vae_conv_forward.47} parent=55 // pred_check
        %p862 = pneg %p217
      $region66: #{vae_conv_forward.47} parent=55 // pred_check_branch
        %864 = sbr.rel (%p862) target = $region68
      $region67: #{vae_conv_forward.47} parent=55 // pred_region
        %p865 = scmp.lt.s32.totalorder %s27, 3
        %s866 = scalar_select %p865, %s27, 3
        %p867 = scmp.lt.s32.totalorder %s28, 0
        %s868 = scalar_select %p867, %s28, 0
        %p869 = scmp.lt.s32.totalorder %s29, 0
        %s870 = scalar_select %p869, %s29, 0
        %s871 = sadd.s32 %s870, %s868
        %s872 = sadd.s32 %s871, %s866
        %s873 = scalar_lea.vmem %s5, %s872
      $region68: #{vae_conv_forward.47} parent=55 // pred_fallthru
        _
    $region56: #{vae_conv_forward.47} parent=5 // pred_fallthru
      _
  $region6: #{vae_conv_forward.47} parent=0 // loop_footer
    %s16 = sadd.s32 1, %s12
  $region7: #{vae_conv_forward.47} parent=0 // loop_footer_branch
    %11 = sbr.rel target = $region3
  $region8: #{vae_conv_forward.47} parent=0 // loop_exit
    _

// kernel: vae_conv_forward.48
$region0: #{vae_conv_forward.48}
  #allocation0 [shape = 'u32[]', space=smem, size = 0x4, offset = 0x4, fixed_abs, tag = 'smem constant byte address 0x4 - core index']
  #allocation1 [shape = 'u32[144,128]{1,0:T(1,128)}', space=vmem, size = 0x12000, scoped, tag = 'internal scratch']
  %s0 = inlined_call_operand.vmem [shape: bf16[32,64], index: 0, kind: input, shape index: {}]
  %s1 = inlined_call_operand.vmem [shape: f32[1,64], index: 1, kind: input, shape index: {}]
  %s2 = inlined_call_operand.vmem [shape: f32[1,64], index: 2, kind: input, shape index: {}]
  %s3 = inlined_call_operand.vmem [shape: f32[1,64], index: 3, kind: input, shape index: {}]
  %s4 = inlined_call_operand.vmem [shape: f32[1,64], index: 4, kind: input, shape index: {}]
  %s5 = inlined_call_operand.vmem [shape: bf16[32,64], index: 5, kind: output, shape index: {}]
  %s6 = sld [smem:[#allocation0]]
  $region30: #{vae_conv_forward.48} parent=0
    _
  %s8 = ssub.s32 1, %s6
  %s9 = scalar_select 0, %s8, %s6
  // Predicated region
  $region2: #{vae_conv_forward.48} parent=0 // pred_check
    _
  $region3: #{vae_conv_forward.48} parent=0 // pred_check_branch
    %11 = sbr.rel (0) target = $region5
  $region4: #{vae_conv_forward.48} parent=0 // pred_region
    _
  $region5: #{vae_conv_forward.48} parent=0 // pred_fallthru
    _
  // Predicated region
  $region6: #{vae_conv_forward.48} parent=0 // pred_check
    _
  $region7: #{vae_conv_forward.48} parent=0 // pred_check_branch
    %13 = sbr.rel (0) target = $region9
  $region8: #{vae_conv_forward.48} parent=0 // pred_region
    _
  $region9: #{vae_conv_forward.48} parent=0 // pred_fallthru
    _
  // Predicated region
  $region10: #{vae_conv_forward.48} parent=0 // pred_check
    _
  $region11: #{vae_conv_forward.48} parent=0 // pred_check_branch
    %15 = sbr.rel (0) target = $region13
  $region12: #{vae_conv_forward.48} parent=0 // pred_region
    _
  $region13: #{vae_conv_forward.48} parent=0 // pred_fallthru
    _
  // Predicated region
  $region14: #{vae_conv_forward.48} parent=0 // pred_check
    _
  $region15: #{vae_conv_forward.48} parent=0 // pred_check_branch
    %17 = sbr.rel (0) target = $region17
  $region16: #{vae_conv_forward.48} parent=0 // pred_region
    _
  $region17: #{vae_conv_forward.48} parent=0 // pred_fallthru
    _
  // Predicated region
  $region18: #{vae_conv_forward.48} parent=0 // pred_check
    _
  $region19: #{vae_conv_forward.48} parent=0 // pred_check_branch
    %19 = sbr.rel (0) target = $region21
  $region20: #{vae_conv_forward.48} parent=0 // pred_region
    _
  $region21: #{vae_conv_forward.48} parent=0 // pred_fallthru
    _
  %v20 = vld [vmem:[%s1] sm:$0x1]
  %v21 = vmul.f32 %v20, 0.03125
  %v22 = vld [vmem:[%s2] sm:$0x1]
  %v23 = vmul.f32 %v22, 0.03125
  %v24 = vmul.f32 %v21, %v21
  %v25 = vsub.f32 %v23, %v24
  %v26 = vadd.f32 %v25, 1e-05
  %v27 = vrsqrt.pop %v26
  %v28 = vld [vmem:[%s3] sm:$0x1]
  %v29 = vmul.f32 %v27, %v28
  %v30 = vld [vmem:[%s0] sm:$0xf]
  %v31 = vld [vmem:[%s0 + $0x4] sm:$0xf]
  %v32 = vld [vmem:[%s0 + $0x8] sm:$0xf]
  %v33 = vld [vmem:[%s0 + $0xc] sm:$0xf]
  %v34 = vunpack.c.l.bf16 %v30
  %v35 = vunpack.c.l.bf16 %v31
  %v36 = vunpack.c.l.bf16 %v32
  %v37 = vunpack.c.l.bf16 %v33
  %v39 = vlaneseq
  %v40 = vshrl.u32 %v39, 7
  %v41 = vsub.s32 0, %v40
  %v42 = vrot.slane %v21, %v41
  %v44 = vsub.f32 %v34, %v42
  %v45 = vsub.f32 %v35, %v42
  %v46 = vsub.f32 %v36, %v42
  %v47 = vsub.f32 %v37, %v42
  %v49 = vlaneseq
  %v50 = vshrl.u32 %v49, 7
  %v51 = vsub.s32 0, %v50
  %v52 = vrot.slane %v29, %v51
  %v54 = vmul.f32 %v44, %v52
  %v55 = vmul.f32 %v45, %v52
  %v56 = vmul.f32 %v46, %v52
  %v57 = vmul.f32 %v47, %v52
  %v58 = vld [vmem:[%s4] sm:$0x1]
  %v60 = vlaneseq
  %v61 = vshrl.u32 %v60, 7
  %v62 = vsub.s32 0, %v61
  %v63 = vrot.slane %v58, %v62
  %v65 = vadd.f32 %v54, %v63
  %v66 = vadd.f32 %v55, %v63
  %v67 = vadd.f32 %v56, %v63
  %v68 = vadd.f32 %v57, %v63
  %v69 = vmax.f32 %v65, 0.0
  %v70 = vmax.f32 %v66, 0.0
  %v71 = vmax.f32 %v67, 0.0
  %v72 = vmax.f32 %v68, 0.0
  %v73 = vpack.c.bf16 %v70, %v69
  %v74 = vpack.c.bf16 %v72, %v71
  %v77 = vunpack.c.l.b16 %v73
  %v78 = vunpack.c.h.b16 %v73
  %v79 = vunpack.c.l.b16 %v74
  %v80 = vunpack.c.h.b16 %v74
  %v81 = vpack.c.b16 %v77, %v77
  %v82 = vpack.c.b16 %v78, %v78
  %v83 = vpack.c.b16 %v79, %v79
  %v84 = vpack.c.b16 %v80, %v80
  %vm89 = vcmask 519168
  %90 = vst.msk [vmem:[%s5] sm:$0xf] %vm89, %v81
  %91 = vst.msk [vmem:[%s5 + $0x4] sm:$0xf] %vm89, %v82
  %92 = vst.msk [vmem:[%s5 + $0x8] sm:$0xf] %vm89, %v83
  %93 = vst.msk [vmem:[%s5 + $0xc] sm:$0xf] %vm89, %v84
  // Predicated region
  $region22: #{vae_conv_forward.48} parent=0 // pred_check
    _
  $region23: #{vae_conv_forward.48} parent=0 // pred_check_branch
    %95 = sbr.rel (0) target = $region25
  $region24: #{vae_conv_forward.48} parent=0 // pred_region
    _
  $region25: #{vae_conv_forward.48} parent=0 // pred_fallthru
    _
  // Predicated region
  $region26: #{vae_conv_forward.48} parent=0 // pred_check
    _
  $region27: #{vae_conv_forward.48} parent=0 // pred_check_branch
    %97 = sbr.rel (0) target = $region29
  $region28: #{vae_conv_forward.48} parent=0 // pred_region
    _
  $region29: #{vae_conv_forward.48} parent=0 // pred_fallthru
    _

// kernel: vae_conv_forward.49
$region0: #{vae_conv_forward.49}
  #allocation0 [shape = 'u32[]', space=smem, size = 0x4, offset = 0x4, fixed_abs, tag = 'smem constant byte address 0x4 - core index']
  #allocation1 [shape = 'u32[144,128]{1,0:T(1,128)}', space=vmem, size = 0x12000, scoped, tag = 'internal scratch']
  #allocation2 [shape = 'f32[32,128]{1,0:T(8,128)}', space=vmem, size = 0x4000, scoped, tag = 'scratch operand']
  %s0 = inlined_call_operand.vmem [shape: bf16[4,32,256], index: 0, kind: input, shape index: {}]
  %s1 = inlined_call_operand.vmem [shape: bf16[4,256,128], index: 1, kind: input, shape index: {}]
  %s2 = inlined_call_operand.vmem [shape: f32[1,128], index: 2, kind: input, shape index: {}]
  %s3 = inlined_call_operand.vmem [shape: bf16[4,32,128], index: 3, kind: output, shape index: {0}]
  %s4 = inlined_call_operand.vmem [shape: f32[4,1,128], index: 4, kind: output, shape index: {1}]
  %s5 = inlined_call_operand.vmem [shape: f32[4,1,128], index: 5, kind: output, shape index: {2}]
  %6 = xla_tuple %s3, %s4, %s5
  %s7 = sld [smem:[#allocation0]]
  $region69: #{vae_conv_forward.49} parent=0
    _
  %s9 = ssub.s32 1, %s7
  %s10 = scalar_select 0, %s9, %s7
  loop: start=0, step=1, limit=6
  $region2: #{vae_conv_forward.49} parent=0 // loop_pre_header
    _
  $region3: #{vae_conv_forward.49} parent=0 // loop_header
    %s12 = sphi 0, %s16
    %p13 = scmp.ge.s32.totalorder %s12, 6
    %s19 = sphi 0, %s45
    %s20 = sphi 0, %s41
    %s21 = sphi 0, %s37
    %s22 = sphi 0, %s33
    %s23 = sphi 0, %s19
    %s24 = sphi 0, %s20
    %s25 = sphi 0, %s21
    %s26 = sphi 0, %s22
    %s27 = sphi 0, %s23
    %s28 = sphi 0, %s24
    %s29 = sphi 0, %s25
    %s30 = sphi 0, %s26
    %s52 = sphi 0, %s54
    %s55 = sphi 0, %s52
    %s56 = sphi 0, %s55
    %s72 = sphi 0, %s56
    %s82 = sphi 0, %s84
    %s85 = sphi 0, %s82
    %s86 = sphi 0, %s85
    %s102 = sphi 0, %s86
    %s108 = sphi 0, %s110
    %s111 = sphi 0, %s108
    %s112 = sphi 0, %s111
    %s128 = sphi 0, %s112
    %s138 = sphi 0, %s140
    %s141 = sphi 0, %s138
    %s142 = sphi 0, %s141
    %s158 = sphi 0, %s142
    %s168 = sphi 0, %s170
    %s171 = sphi 0, %s168
    %s172 = sphi 0, %s171
    %s188 = sphi 0, %s172
    %s198 = sphi 0, %s200
    %s201 = sphi 0, %s198
    %s202 = sphi 0, %s201
    %s218 = sphi 0, %s202
  $region4: #{vae_conv_forward.49} parent=0 // loop_header_branch
    %15 = sbr.rel (%p13) target = $region8
  $region5: #{vae_conv_forward.49} parent=0 // loop_body
    %s17 = ssub.s32 %s12, 1
    %s18 = ssub.s32 %s12, 2
    %s31 = sadd.s32 1, %s22
    %p32 = scmp.ge.s32.totalorder %s31, 1
    %s33 = scalar_select %p32, 0, %s31
    %s34 = sadd.s32 1, %s21
    %s35 = scalar_select %p32, %s34, %s21
    %p36 = scmp.ge.s32.totalorder %s35, 1
    %s37 = scalar_select %p36, 0, %s35
    %s38 = sadd.s32 1, %s20
    %s39 = scalar_select %p36, %s38, %s20
    %p40 = scmp.ge.s32.totalorder %s39, 1
    %s41 = scalar_select %p40, 0, %s39
    %s42 = sadd.s32 1, %s19
    %s43 = scalar_select %p40, %s42, %s19
    %p44 = scmp.ge.s32.totalorder %s43, 4
    %s45 = scalar_select %p44, 0, %s43
    %s46 = ssub.s32 %s19, %s45
    %s47 = ssub.s32 %s20, %s41
    %s48 = sor.u32 %s46, %s47
    %s49 = ssub.s32 %s22, %s33
    %s50 = sor.u32 %s48, %s49
    %p51 = scmp.eq.s32.totalorder %s50, 0
    %s53 = sadd.s32 %s52, 1
    %s54 = scalar_select %p51, %s52, %s53
    %p57 = pneg %p51
    %p58 = scmp.eq.s32.totalorder %s12, 3
    %p59 = por %p57, %p58
    %p60 = scmp.ne.s32.totalorder %s52, %s55
    %p61 = scmp.eq.s32.totalorder %s12, 0
    %p62 = por %p60, %p61
    %p63 = scmp.ne.s32.totalorder %s52, %s55
    %p64 = scmp.eq.s32.totalorder %s17, 3
    %p65 = por %p63, %p64
    %p66 = scmp.ne.s32.totalorder %s55, %s56
    %p67 = scmp.eq.s32.totalorder %s17, 0
    %p68 = por %p66, %p67
    %p69 = scmp.ne.s32.totalorder %s55, %s56
    %p70 = scmp.eq.s32.totalorder %s18, 3
    %p71 = por %p69, %p70
    %p73 = scmp.ne.s32.totalorder %s56, %s72
    %p74 = scmp.eq.s32.totalorder %s18, 0
    %p75 = por %p73, %p74
    %s76 = ssub.s32 %s19, %s45
    %s77 = ssub.s32 %s22, %s33
    %s78 = sor.u32 %s76, %s77
    %s79 = ssub.s32 %s21, %s37
    %s80 = sor.u32 %s78, %s79
    %p81 = scmp.eq.s32.totalorder %s80, 0
    %s83 = sadd.s32 %s82, 1
    %s84 = scalar_select %p81, %s82, %s83
    %p87 = pneg %p81
    %p88 = scmp.eq.s32.totalorder %s12, 3
    %p89 = por %p87, %p88
    %p90 = scmp.ne.s32.totalorder %s82, %s85
    %p91 = scmp.eq.s32.totalorder %s12, 0
    %p92 = por %p90, %p91
    %p93 = scmp.ne.s32.totalorder %s82, %s85
    %p94 = scmp.eq.s32.totalorder %s17, 3
    %p95 = por %p93, %p94
    %p96 = scmp.ne.s32.totalorder %s85, %s86
    %p97 = scmp.eq.s32.totalorder %s17, 0
    %p98 = por %p96, %p97
    %p99 = scmp.ne.s32.totalorder %s85, %s86
    %p100 = scmp.eq.s32.totalorder %s18, 3
    %p101 = por %p99, %p100
    %p103 = scmp.ne.s32.totalorder %s86, %s102
    %p104 = scmp.eq.s32.totalorder %s18, 0
    %p105 = por %p103, %p104
    %s106 = ssub.s32 %s21, %s37
    %p107 = scmp.eq.s32.totalorder %s106, 0
    %s109 = sadd.s32 %s108, 1
    %s110 = scalar_select %p107, %s108, %s109
    %p113 = pneg %p107
    %p114 = scmp.eq.s32.totalorder %s12, 3
    %p115 = por %p113, %p114
    %p116 = scmp.ne.s32.totalorder %s108, %s111
    %p117 = scmp.eq.s32.totalorder %s12, 0
    %p118 = por %p116, %p117
    %p119 = scmp.ne.s32.totalorder %s108, %s111
    %p120 = scmp.eq.s32.totalorder %s17, 3
    %p121 = por %p119, %p120
    %p122 = scmp.ne.s32.totalorder %s111, %s112
    %p123 = scmp.eq.s32.totalorder %s17, 0
    %p124 = por %p122, %p123
    %p125 = scmp.ne.s32.totalorder %s111, %s112
    %p126 = scmp.eq.s32.totalorder %s18, 3
    %p127 = por %p125, %p126
    %p129 = scmp.ne.s32.totalorder %s112, %s128
    %p130 = scmp.eq.s32.totalorder %s18, 0
    %p131 = por %p129, %p130
    %s132 = ssub.s32 %s19, %s45
    %s133 = ssub.s32 %s20, %s41
    %s134 = sor.u32 %s132, %s133
    %s135 = ssub.s32 %s21, %s37
    %s136 = sor.u32 %s134, %s135
    %p137 = scmp.eq.s32.totalorder %s136, 0
    %s139 = sadd.s32 %s138, 1
    %s140 = scalar_select %p137, %s138, %s139
    %p143 = pneg %p137
    %p144 = scmp.eq.s32.totalorder %s12, 3
    %p145 = por %p143, %p144
    %p146 = scmp.ne.s32.totalorder %s138, %s141
    %p147 = scmp.eq.s32.totalorder %s12, 0
    %p148 = por %p146, %p147
    %p149 = scmp.ne.s32.totalorder %s138, %s141
    %p150 = scmp.eq.s32.totalorder %s17, 3
    %p151 = por %p149, %p150
    %p152 = scmp.ne.s32.totalorder %s141, %s142
    %p153 = scmp.eq.s32.totalorder %s17, 0
    %p154 = por %p152, %p153
    %p155 = scmp.ne.s32.totalorder %s141, %s142
    %p156 = scmp.eq.s32.totalorder %s18, 3
    %p157 = por %p155, %p156
    %p159 = scmp.ne.s32.totalorder %s142, %s158
    %p160 = scmp.eq.s32.totalorder %s18, 0
    %p161 = por %p159, %p160
    %s162 = ssub.s32 %s19, %s45
    %s163 = ssub.s32 %s20, %s41
    %s164 = sor.u32 %s162, %s163
    %s165 = ssub.s32 %s21, %s37
    %s166 = sor.u32 %s164, %s165
    %p167 = scmp.eq.s32.totalorder %s166, 0
    %s169 = sadd.s32 %s168, 1
    %s170 = scalar_select %p167, %s168, %s169
    %p173 = pneg %p167
    %p174 = scmp.eq.s32.totalorder %s12, 3
    %p175 = por %p173, %p174
    %p176 = scmp.ne.s32.totalorder %s168, %s171
    %p177 = scmp.eq.s32.totalorder %s12, 0
    %p178 = por %p176, %p177
    %p179 = scmp.ne.s32.totalorder %s168, %s171
    %p180 = scmp.eq.s32.totalorder %s17, 3
    %p181 = por %p179, %p180
    %p182 = scmp.ne.s32.totalorder %s171, %s172
    %p183 = scmp.eq.s32.totalorder %s17, 0
    %p184 = por %p182, %p183
    %p185 = scmp.ne.s32.totalorder %s171, %s172
    %p186 = scmp.eq.s32.totalorder %s18, 3
    %p187 = por %p185, %p186
    %p189 = scmp.ne.s32.totalorder %s172, %s188
    %p190 = scmp.eq.s32.totalorder %s18, 0
    %p191 = por %p189, %p190
    %s192 = ssub.s32 %s19, %s45
    %s193 = ssub.s32 %s20, %s41
    %s194 = sor.u32 %s192, %s193
    %s195 = ssub.s32 %s21, %s37
    %s196 = sor.u32 %s194, %s195
    %p197 = scmp.eq.s32.totalorder %s196, 0
    %s199 = sadd.s32 %s198, 1
    %s200 = scalar_select %p197, %s198, %s199
    %p203 = pneg %p197
    %p204 = scmp.eq.s32.totalorder %s12, 3
    %p205 = por %p203, %p204
    %p206 = scmp.ne.s32.totalorder %s198, %s201
    %p207 = scmp.eq.s32.totalorder %s12, 0
    %p208 = por %p206, %p207
    %p209 = scmp.ne.s32.totalorder %s198, %s201
    %p210 = scmp.eq.s32.totalorder %s17, 3
    %p211 = por %p209, %p210
    %p212 = scmp.ne.s32.totalorder %s201, %s202
    %p213 = scmp.eq.s32.totalorder %s17, 0
    %p214 = por %p212, %p213
    %p215 = scmp.ne.s32.totalorder %s201, %s202
    %p216 = scmp.eq.s32.totalorder %s18, 3
    %p217 = por %p215, %p216
    %p219 = scmp.ne.s32.totalorder %s202, %s218
    %p220 = scmp.eq.s32.totalorder %s18, 0
    %p221 = por %p219, %p220
    %p222 = scmp.le.s32.totalorder 1, %s12
    %p223 = scmp.lt.s32.totalorder %s12, 5
    %p224 = pnand %p222, %p223
    %p225 = pneg %p224
    // Predicated region
    $region9: #{vae_conv_forward.49} parent=5 // pred_check
      _
    $region10: #{vae_conv_forward.49} parent=5 // pred_check_branch
      %227 = sbr.rel (%p224) target = $region12
    $region11: #{vae_conv_forward.49} parent=5 // pred_region
      %s228 = ssub.s32 %s12, 1
      // Predicated region
      $region13: #{vae_conv_forward.49} parent=11 // pred_check
        %p229 = pneg %p124
      $region14: #{vae_conv_forward.49} parent=11 // pred_check_branch
        %231 = sbr.rel (%p229) target = $region16
      $region15: #{vae_conv_forward.49} parent=11 // pred_region
        %p232 = scmp.lt.s32.totalorder %s25, 0
        %s233 = scalar_select %p232, %s25, 0
        %s234 = scalar_lea.vmem %s2, %s233
      $region16: #{vae_conv_forward.49} parent=11 // pred_fallthru
        _
    $region12: #{vae_conv_forward.49} parent=5 // pred_fallthru
      _
    %p235 = scmp.lt.s32.totalorder %s12, 4
    // Predicated region
    $region17: #{vae_conv_forward.49} parent=5 // pred_check
      %p236 = pneg %p235
    $region18: #{vae_conv_forward.49} parent=5 // pred_check_branch
      %238 = sbr.rel (%p236) target = $region20
    $region19: #{vae_conv_forward.49} parent=5 // pred_region
      // Predicated region
      $region21: #{vae_conv_forward.49} parent=19 // pred_check
        %p239 = pneg %p62
      $region22: #{vae_conv_forward.49} parent=19 // pred_check_branch
        %241 = sbr.rel (%p239) target = $region24
      $region23: #{vae_conv_forward.49} parent=19 // pred_region
        %s242 = smul.u32 4, %s20
        %s243 = smul.u32 2, %s22
        %p244 = scmp.lt.s32.totalorder %s19, 3
        %s245 = scalar_select %p244, %s19, 3
        %p246 = scmp.lt.s32.totalorder %s242, 3
        %s247 = scalar_select %p246, %s242, 3
        %p248 = scmp.lt.s32.totalorder %s243, 1
        %s249 = scalar_select %p248, %s243, 1
        %s250 = smul.addr %s247, 2
        %s251 = sadd.s32 %s249, %s250
        %s252 = smul.addr %s245, 8
        %s253 = sadd.s32 %s251, %s252
        %s254 = smul.addr %s253, 4
        %s255 = scalar_lea.vmem %s0, %s254
        %s256 = smul.u32 4, %s20
        %s257 = smul.u32 2, %s22
      $region24: #{vae_conv_forward.49} parent=19 // pred_fallthru
        _
      // Predicated region
      $region25: #{vae_conv_forward.49} parent=19 // pred_check
        %p258 = pneg %p92
      $region26: #{vae_conv_forward.49} parent=19 // pred_check_branch
        %260 = sbr.rel (%p258) target = $region28
      $region27: #{vae_conv_forward.49} parent=19 // pred_region
        %s261 = smul.u32 32, %s22
        %p262 = scmp.lt.s32.totalorder %s19, 3
        %s263 = scalar_select %p262, %s19, 3
        %p264 = scmp.lt.s32.totalorder %s261, 31
        %s265 = scalar_select %p264, %s261, 31
        %p266 = scmp.lt.s32.totalorder %s21, 0
        %s267 = scalar_select %p266, %s21, 0
        %s268 = sadd.s32 %s267, %s265
        %s269 = smul.addr %s263, 32
        %s270 = sadd.s32 %s268, %s269
        %s271 = smul.addr %s270, 4
        %s272 = scalar_lea.vmem %s1, %s271
        %s273 = smul.u32 32, %s22
      $region28: #{vae_conv_forward.49} parent=19 // pred_fallthru
        _
    $region20: #{vae_conv_forward.49} parent=5 // pred_fallthru
      _
    %p274 = scmp.le.s32.totalorder 1, %s12
    %p275 = scmp.lt.s32.totalorder %s12, 5
    %p276 = pnand %p274, %p275
    %p277 = pneg %p276
    // Predicated region
    $region29: #{vae_conv_forward.49} parent=5 // pred_check
      _
    $region30: #{vae_conv_forward.49} parent=5 // pred_check_branch
      %279 = sbr.rel (%p276) target = $region32
    $region31: #{vae_conv_forward.49} parent=5 // pred_region
      %s280 = ssub.s32 %s12, 1
      %s281 = smul.u32 4, %s24
      %s282 = smul.u32 2, %s26
      %p283 = scmp.lt.s32.totalorder %s23, 3
      %s284 = scalar_select %p283, %s23, 3
      %p285 = scmp.lt.s32.totalorder %s281, 3
      %s286 = scalar_select %p285, %s281, 3
      %p287 = scmp.lt.s32.totalorder %s282, 1
      %s288 = scalar_select %p287, %s282, 1
      %s289 = smul.addr %s286, 2
      %s290 = sadd.s32 %s288, %s289
      %s291 = smul.addr %s284, 8
      %s292 = sadd.s32 %s290, %s291
      %s293 = smul.addr %s292, 4
      %s294 = scalar_lea.vmem %s0, %s293
      %p295 = pneg %p68
      %p296 = pneg %p65
      %s297 = smul.u32 32, %s26
      %p298 = scmp.lt.s32.totalorder %s23, 3
      %s299 = scalar_select %p298, %s23, 3
      %p300 = scmp.lt.s32.totalorder %s297, 31
      %s301 = scalar_select %p300, %s297, 31
      %p302 = scmp.lt.s32.totalorder %s25, 0
      %s303 = scalar_select %p302, %s25, 0
      %s304 = sadd.s32 %s303, %s301
      %s305 = smul.addr %s299, 32
      %s306 = sadd.s32 %s304, %s305
      %s307 = smul.addr %s306, 4
      %s308 = scalar_lea.vmem %s1, %s307
      %p309 = pneg %p98
      %p310 = pneg %p95
      %p311 = scmp.lt.s32.totalorder %s25, 0
      %s312 = scalar_select %p311, %s25, 0
      %s313 = scalar_lea.vmem %s2, %s312
      %p314 = pneg %p124
      %p315 = pneg %p121
      %p316 = pneg %p154
      %p317 = pneg %p151
      %s318 = smul.u32 4, %s24
      %p319 = scmp.lt.s32.totalorder %s23, 3
      %s320 = scalar_select %p319, %s23, 3
      %p321 = scmp.lt.s32.totalorder %s318, 3
      %s322 = scalar_select %p321, %s318, 3
      %p323 = scmp.lt.s32.totalorder %s25, 0
      %s324 = scalar_select %p323, %s25, 0
      %s325 = sadd.s32 %s324, %s322
      %s326 = smul.addr %s320, 4
      %s327 = sadd.s32 %s325, %s326
      %s328 = smul.addr %s327, 4
      %s329 = scalar_lea.vmem %s3, %s328
      %p330 = pneg %p184
      %p331 = pneg %p181
      %p332 = scmp.lt.s32.totalorder %s23, 3
      %s333 = scalar_select %p332, %s23, 3
      %p334 = scmp.lt.s32.totalorder %s24, 0
      %s335 = scalar_select %p334, %s24, 0
      %p336 = scmp.lt.s32.totalorder %s25, 0
      %s337 = scalar_select %p336, %s25, 0
      %s338 = sadd.s32 %s337, %s335
      %s339 = sadd.s32 %s338, %s333
      %s340 = scalar_lea.vmem %s4, %s339
      %p341 = pneg %p214
      %p342 = pneg %p211
      %p343 = scmp.lt.s32.totalorder %s23, 3
      %s344 = scalar_select %p343, %s23, 3
      %p345 = scmp.lt.s32.totalorder %s24, 0
      %s346 = scalar_select %p345, %s24, 0
      %p347 = scmp.lt.s32.totalorder %s25, 0
      %s348 = scalar_select %p347, %s25, 0
      %s349 = sadd.s32 %s348, %s346
      %s350 = sadd.s32 %s349, %s344
      %s351 = scalar_lea.vmem %s5, %s350
      %s352 = smul.u32 4, %s24
      %s353 = smul.u32 2, %s26
      %p354 = scmp.lt.s32.totalorder %s23, 3
      %s355 = scalar_select %p354, %s23, 3
      %p356 = scmp.lt.s32.totalorder %s352, 3
      %s357 = scalar_select %p356, %s352, 3
      %p358 = scmp.lt.s32.totalorder %s353, 1
      %s359 = scalar_select %p358, %s353, 1
      %s360 = smul.addr %s357, 2
      %s361 = sadd.s32 %s359, %s360
      %s362 = smul.addr %s355, 8
      %s363 = sadd.s32 %s361, %s362
      %s364 = smul.addr %s363, 4
      %s365 = scalar_lea.vmem %s0, %s364
      %s366 = smul.u32 4, %s24
      %s367 = smul.u32 2, %s26
      %s368 = smul.u32 32, %s26
      %p369 = scmp.lt.s32.totalorder %s23, 3
      %s370 = scalar_select %p369, %s23, 3
      %p371 = scmp.lt.s32.totalorder %s368, 31
      %s372 = scalar_select %p371, %s368, 31
      %p373 = scmp.lt.s32.totalorder %s25, 0
      %s374 = scalar_select %p373, %s25, 0
      %s375 = sadd.s32 %s374, %s372
      %s376 = smul.addr %s370, 32
      %s377 = sadd.s32 %s375, %s376
      %s378 = smul.addr %s377, 4
      %s379 = scalar_lea.vmem %s1, %s378
      %s380 = smul.u32 32, %s26
      %p381 = scmp.lt.s32.totalorder %s25, 0
      %s382 = scalar_select %p381, %s25, 0
      %s383 = scalar_lea.vmem %s2, %s382
      %s384 = smul.u32 4, %s24
      %p385 = scmp.lt.s32.totalorder %s23, 3
      %s386 = scalar_select %p385, %s23, 3
      %p387 = scmp.lt.s32.totalorder %s384, 3
      %s388 = scalar_select %p387, %s384, 3
      %p389 = scmp.lt.s32.totalorder %s25, 0
      %s390 = scalar_select %p389, %s25, 0
      %s391 = sadd.s32 %s390, %s388
      %s392 = smul.addr %s386, 4
      %s393 = sadd.s32 %s391, %s392
      %s394 = smul.addr %s393, 4
      %s395 = scalar_lea.vmem %s3, %s394
      %s396 = smul.u32 4, %s24
      %p397 = scmp.lt.s32.totalorder %s23, 3
      %s398 = scalar_select %p397, %s23, 3
      %p399 = scmp.lt.s32.totalorder %s24, 0
      %s400 = scalar_select %p399, %s24, 0
      %p401 = scmp.lt.s32.totalorder %s25, 0
      %s402 = scalar_select %p401, %s25, 0
      %s403 = sadd.s32 %s402, %s400
      %s404 = sadd.s32 %s403, %s398
      %s405 = scalar_lea.vmem %s4, %s404
      %p406 = scmp.lt.s32.totalorder %s23, 3
      %s407 = scalar_select %p406, %s23, 3
      %p408 = scmp.lt.s32.totalorder %s24, 0
      %s409 = scalar_select %p408, %s24, 0
      %p410 = scmp.lt.s32.totalorder %s25, 0
      %s411 = scalar_select %p410, %s25, 0
      %s412 = sadd.s32 %s411, %s409
      %s413 = sadd.s32 %s412, %s407
      %s414 = scalar_lea.vmem %s5, %s413
      %p416 = scmp.eq.s32.totalorder %s26, 0
      // Predicated region
      $region33: #{vae_conv_forward.49} parent=31 // pred_check
        %p417 = pneg %p416
      $region34: #{vae_conv_forward.49} parent=31 // pred_check_branch
        %419 = sbr.rel (%p417) target = $region36
      $region35: #{vae_conv_forward.49} parent=31 // pred_region
        %420 = vst [vmem:[#allocation2] sm:$0xff] 0.0
        %421 = vst [vmem:[#allocation2 + $0x8] sm:$0xff] 0.0
        %422 = vst [vmem:[#allocation2 + $0x10] sm:$0xff] 0.0
        %423 = vst [vmem:[#allocation2 + $0x18] sm:$0xff] 0.0
      $region36: #{vae_conv_forward.49} parent=31 // pred_fallthru
        _
      %v424 = vld [vmem:[#allocation2] sm:$0xff]
      %v425 = vld [vmem:[#allocation2 + $0x8] sm:$0xff]
      %v426 = vld [vmem:[#allocation2 + $0x10] sm:$0xff]
      %v427 = vld [vmem:[#allocation2 + $0x18] sm:$0xff]
      %v428 = vld [vmem:[%s365] sm:$0xff]
      %v429 = vld [vmem:[%s365 + $0x8] sm:$0xff]
      %v430 = vld [vmem:[%s365 + $0x10] sm:$0xff]
      %v431 = vld [vmem:[%s365 + $0x18] sm:$0xff]
      %v432 = vld [vmem:[%s379] sm:$0xf]
      %v433 = vld [vmem:[%s379 + $0x4] sm:$0xf]
      %v434 = vld [vmem:[%s379 + $0x8] sm:$0xf]
      %v435 = vld [vmem:[%s379 + $0xc] sm:$0xf]
      %v436 = vld [vmem:[%s379 + $0x10] sm:$0xf]
      %v437 = vld [vmem:[%s379 + $0x14] sm:$0xf]
      %v438 = vld [vmem:[%s379 + $0x18] sm:$0xf]
      %v439 = vld [vmem:[%s379 + $0x1c] sm:$0xf]
      %v440 = vld [vmem:[%s379 + $0x20] sm:$0xf]
      %v441 = vld [vmem:[%s379 + $0x24] sm:$0xf]
      %v442 = vld [vmem:[%s379 + $0x28] sm:$0xf]
      %v443 = vld [vmem:[%s379 + $0x2c] sm:$0xf]
      %v444 = vld [vmem:[%s379 + $0x30] sm:$0xf]
      %v445 = vld [vmem:[%s379 + $0x34] sm:$0xf]
      %v446 = vld [vmem:[%s379 + $0x38] sm:$0xf]
      %v447 = vld [vmem:[%s379 + $0x3c] sm:$0xf]
      %v448 = vld [vmem:[%s379 + $0x40] sm:$0xf]
      %v449 = vld [vmem:[%s379 + $0x44] sm:$0xf]
      %v450 = vld [vmem:[%s379 + $0x48] sm:$0xf]
      %v451 = vld [vmem:[%s379 + $0x4c] sm:$0xf]
      %v452 = vld [vmem:[%s379 + $0x50] sm:$0xf]
      %v453 = vld [vmem:[%s379 + $0x54] sm:$0xf]
      %v454 = vld [vmem:[%s379 + $0x58] sm:$0xf]
      %v455 = vld [vmem:[%s379 + $0x5c] sm:$0xf]
      %v456 = vld [vmem:[%s379 + $0x60] sm:$0xf]
      %v457 = vld [vmem:[%s379 + $0x64] sm:$0xf]
      %v458 = vld [vmem:[%s379 + $0x68] sm:$0xf]
      %v459 = vld [vmem:[%s379 + $0x6c] sm:$0xf]
      %v460 = vld [vmem:[%s379 + $0x70] sm:$0xf]
      %v461 = vld [vmem:[%s379 + $0x74] sm:$0xf]
      %v462 = vld [vmem:[%s379 + $0x78] sm:$0xf]
      %v463 = vld [vmem:[%s379 + $0x7c] sm:$0xf]
      %v468 = vunpack.c.l.b16 %v428
      %v469 = vunpack.c.h.b16 %v428
      %v470 = vunpack.c.l.b16 %v429
      %v471 = vunpack.c.h.b16 %v429
      %v472 = vunpack.c.l.b16 %v430
      %v473 = vunpack.c.h.b16 %v430
      %v474 = vunpack.c.l.b16 %v431
      %v475 = vunpack.c.h.b16 %v431
      %v476 = vpack.c.b16 %v470, %v468
      %v477 = vpack.c.b16 %v471, %v469
      %v478 = vpack.c.b16 %v474, %v472
      %v479 = vpack.c.b16 %v475, %v473
      %v516 = vunpack.c.l.b16 %v432
      %v517 = vunpack.c.l.b16 %v433
      %v518 = vunpack.c.l.b16 %v434
      %v519 = vunpack.c.l.b16 %v435
      %v520 = vunpack.c.l.b16 %v436
      %v521 = vunpack.c.l.b16 %v437
      %v522 = vunpack.c.l.b16 %v438
      %v523 = vunpack.c.l.b16 %v439
      %v524 = vunpack.c.l.b16 %v440
      %v525 = vunpack.c.l.b16 %v441
      %v526 = vunpack.c.l.b16 %v442
      %v527 = vunpack.c.l.b16 %v443
      %v528 = vunpack.c.l.b16 %v444
      %v529 = vunpack.c.l.b16 %v445
      %v530 = vunpack.c.l.b16 %v446
      %v531 = vunpack.c.l.b16 %v447
      %v532 = vunpack.c.l.b16 %v448
      %v533 = vunpack.c.l.b16 %v449
      %v534 = vunpack.c.l.b16 %v450
      %v535 = vunpack.c.l.b16 %v451
      %v536 = vunpack.c.l.b16 %v452
      %v537 = vunpack.c.l.b16 %v453
      %v538 = vunpack.c.l.b16 %v454
      %v539 = vunpack.c.l.b16 %v455
      %v540 = vunpack.c.l.b16 %v456
      %v541 = vunpack.c.l.b16 %v457
      %v542 = vunpack.c.l.b16 %v458
      %v543 = vunpack.c.l.b16 %v459
      %v544 = vunpack.c.l.b16 %v460
      %v545 = vunpack.c.l.b16 %v461
      %v546 = vunpack.c.l.b16 %v462
      %v547 = vunpack.c.l.b16 %v463
      %v548 = vpack.c.b16 %v517, %v516
      %v549 = vpack.c.b16 %v519, %v518
      %v550 = vpack.c.b16 %v521, %v520
      %v551 = vpack.c.b16 %v523, %v522
      %v552 = vpack.c.b16 %v525, %v524
      %v553 = vpack.c.b16 %v527, %v526
      %v554 = vpack.c.b16 %v529, %v528
      %v555 = vpack.c.b16 %v531, %v530
      %v556 = vpack.c.b16 %v533, %v532
      %v557 = vpack.c.b16 %v535, %v534
      %v558 = vpack.c.b16 %v537, %v536
      %v559 = vpack.c.b16 %v539, %v538
      %v560 = vpack.c.b16 %v541, %v540
      %v561 = vpack.c.b16 %v543, %v542
      %v562 = vpack.c.b16 %v545, %v544
      %v563 = vpack.c.b16 %v547, %v546
      %580 = vmatprep.subr.bf16.mxu0 0
      %581 = vmatpush1.bf16.msra.mxu0 %v548
      %582 = vmatprep.subr.bf16.mxu0 0
      %583 = vmatpush1.bf16.msra.mxu0 %v549
      %584 = vmatprep.subr.bf16.mxu0 0
      %585 = vmatpush1.bf16.msra.mxu0 %v550
      %586 = vmatprep.subr.bf16.mxu0 0
      %587 = vmatpush1.bf16.msra.mxu0 %v551
      %588 = vmatprep.subr.bf16.mxu0 0
      %589 = vmatpush1.bf16.msra.mxu0 %v552
      %590 = vmatprep.subr.bf16.mxu0 0
      %591 = vmatpush1.bf16.msra.mxu0 %v553
      %592 = vmatprep.subr.bf16.mxu0 0
      %593 = vmatpush1.bf16.msra.mxu0 %v554
      %594 = vmatprep.subr.bf16.mxu0 0
      %595 = vmatpush1.bf16.msra.mxu0 %v555
      %596 = vmatprep.subr.bf16.mxu0 0
      %597 = vmatpush1.bf16.msra.mxu0 %v556
      %598 = vmatprep.subr.bf16.mxu0 0
      %599 = vmatpush1.bf16.msra.mxu0 %v557
      %600 = vmatprep.subr.bf16.mxu0 0
      %601 = vmatpush1.bf16.msra.mxu0 %v558
      %602 = vmatprep.subr.bf16.mxu0 0
      %603 = vmatpush1.bf16.msra.mxu0 %v559
      %604 = vmatprep.subr.bf16.mxu0 0
      %605 = vmatpush1.bf16.msra.mxu0 %v560
      %606 = vmatprep.subr.bf16.mxu0 0
      %607 = vmatpush1.bf16.msra.mxu0 %v561
      %608 = vmatprep.subr.bf16.mxu0 0
      %609 = vmatpush1.bf16.msra.mxu0 %v562
      %610 = vmatprep.subr.bf16.mxu0 0
      %611 = vmatpush1.bf16.msra.mxu0 %v563
      %612 = vmatprep.mubr.bf16.mxu0 %v477
      %613 = vmatmul.mubr.bf16.gmra.mrb[0].mxu0 %v476
      %v614 = vpop.f32.mrb[0].mxu0
      %v615 = vadd.f32 0.0, %v614
      %v616 = vpop.f32.mrb[0].mxu0
      %v617 = vpop.f32.mrb[0].mxu0
      %v618 = vadd.f32 0.0, %v617
      %v619 = vpop.f32.mrb[0].mxu0
      %620 = vmatprep.mubr.bf16.mxu0 %v479
      %621 = vmatmul.mubr.bf16.gmra.mrb[0].mxu0 %v478
      %v622 = vpop.f32.mrb[0].mxu0
      %v623 = vadd.f32 0.0, %v622
      %v624 = vpop.f32.mrb[0].mxu0
      %v625 = vpop.f32.mrb[0].mxu0
      %v626 = vadd.f32 0.0, %v625
      %v627 = vpop.f32.mrb[0].mxu0
      %628 = vdwg.mxu0
      %v629 = vadd.f32 %v424, %v615
      %v630 = vadd.f32 %v425, %v618
      %v631 = vadd.f32 %v426, %v623
      %v632 = vadd.f32 %v427, %v626
      %633 = vst [vmem:[#allocation2] sm:$0xff] %v629
      %634 = vst [vmem:[#allocation2 + $0x8] sm:$0xff] %v630
      %635 = vst [vmem:[#allocation2 + $0x10] sm:$0xff] %v631
      %636 = vst [vmem:[#allocation2 + $0x18] sm:$0xff] %v632
      // Predicated region
      $region37: #{vae_conv_forward.49} parent=31 // pred_check
        %p637 = pneg %p416
      $region38: #{vae_conv_forward.49} parent=31 // pred_check_branch
        %639 = sbr.rel (%p637) target = $region40
      $region39: #{vae_conv_forward.49} parent=31 // pred_region
        %v640 = vld [vmem:[#allocation2] sm:$0xff]
        %v641 = vld [vmem:[#allocation2 + $0x8] sm:$0xff]
        %v642 = vld [vmem:[#allocation2 + $0x10] sm:$0xff]
        %v643 = vld [vmem:[#allocation2 + $0x18] sm:$0xff]
        %v644 = vld [vmem:[%s383] sm:$0x1]
        %v646 = vlaneseq
        %v647 = vshrl.u32 %v646, 7
        %v648 = vsub.s32 0, %v647
        %v649 = vrot.slane %v644, %v648
        %v651 = vadd.f32 %v640, %v649
        %v652 = vadd.f32 %v641, %v649
        %v653 = vadd.f32 %v642, %v649
        %v654 = vadd.f32 %v643, %v649
        %v655 = vpack.c.bf16 %v652, %v651
        %v656 = vpack.c.bf16 %v654, %v653
        %v659 = vunpack.c.l.b16 %v655
        %v660 = vunpack.c.h.b16 %v655
        %v661 = vunpack.c.l.b16 %v656
        %v662 = vunpack.c.h.b16 %v656
        %v663 = vpack.c.b16 %v659, %v659
        %v664 = vpack.c.b16 %v660, %v660
        %v665 = vpack.c.b16 %v661, %v661
        %v666 = vpack.c.b16 %v662, %v662
        %671 = vst [vmem:[%s395] sm:$0xf] %v663
        %672 = vst [vmem:[%s395 + $0x4] sm:$0xf] %v664
        %673 = vst [vmem:[%s395 + $0x8] sm:$0xf] %v665
        %674 = vst [vmem:[%s395 + $0xc] sm:$0xf] %v666
        %v675 = vadd.f32 %v651, %v652
        %v676 = vadd.f32 %v675, %v653
        %v677 = vadd.f32 %v676, %v654
        %v678 = vrot.slane %v677, 4
        %v679 = vadd.f32 %v677, %v678
        %v680 = vrot.slane %v679, 2
        %v681 = vadd.f32 %v679, %v680
        %v682 = vrot.slane %v681, 1
        %v683 = vadd.f32 %v681, %v682
        %684 = vst [vmem:[%s405] sm:$0x1] %v683
        %v685 = vmul.f32 %v651, %v651
        %v686 = vmul.f32 %v652, %v652
        %v687 = vmul.f32 %v653, %v653
        %v688 = vmul.f32 %v654, %v654
        %v689 = vadd.f32 %v685, %v686
        %v690 = vadd.f32 %v689, %v687
        %v691 = vadd.f32 %v690, %v688
        %v692 = vrot.slane %v691, 4
        %v693 = vadd.f32 %v691, %v692
        %v694 = vrot.slane %v693, 2
        %v695 = vadd.f32 %v693, %v694
        %v696 = vrot.slane %v695, 1
        %v697 = vadd.f32 %v695, %v696
        %698 = vst [vmem:[%s414] sm:$0x1] %v697
      $region40: #{vae_conv_forward.49} parent=31 // pred_fallthru
        _
      %s699 = smul.u32 4, %s24
      %p700 = scmp.lt.s32.totalorder %s23, 3
      %s701 = scalar_select %p700, %s23, 3
      %p702 = scmp.lt.s32.totalorder %s699, 3
      %s703 = scalar_select %p702, %s699, 3
      %p704 = scmp.lt.s32.totalorder %s25, 0
      %s705 = scalar_select %p704, %s25, 0
      %s706 = sadd.s32 %s705, %s703
      %s707 = smul.addr %s701, 4
      %s708 = sadd.s32 %s706, %s707
      %s709 = smul.addr %s708, 4
      %s710 = scalar_lea.vmem %s3, %s709
      %p711 = scmp.lt.s32.totalorder %s23, 3
      %s712 = scalar_select %p711, %s23, 3
      %p713 = scmp.lt.s32.totalorder %s24, 0
      %s714 = scalar_select %p713, %s24, 0
      %p715 = scmp.lt.s32.totalorder %s25, 0
      %s716 = scalar_select %p715, %s25, 0
      %s717 = sadd.s32 %s716, %s714
      %s718 = sadd.s32 %s717, %s712
      %s719 = scalar_lea.vmem %s4, %s718
      %p720 = scmp.lt.s32.totalorder %s23, 3
      %s721 = scalar_select %p720, %s23, 3
      %p722 = scmp.lt.s32.totalorder %s24, 0
      %s723 = scalar_select %p722, %s24, 0
      %p724 = scmp.lt.s32.totalorder %s25, 0
      %s725 = scalar_select %p724, %s25, 0
      %s726 = sadd.s32 %s725, %s723
      %s727 = sadd.s32 %s726, %s721
      %s728 = scalar_lea.vmem %s5, %s727
      // Predicated region
      $region41: #{vae_conv_forward.49} parent=31 // pred_check
        %p729 = pneg %p151
      $region42: #{vae_conv_forward.49} parent=31 // pred_check_branch
        %731 = sbr.rel (%p729) target = $region44
      $region43: #{vae_conv_forward.49} parent=31 // pred_region
        %s732 = smul.u32 4, %s24
      $region44: #{vae_conv_forward.49} parent=31 // pred_fallthru
        _
      // Predicated region
      $region45: #{vae_conv_forward.49} parent=31 // pred_check
        %p733 = pneg %p181
      $region46: #{vae_conv_forward.49} parent=31 // pred_check_branch
        %735 = sbr.rel (%p733) target = $region48
      $region47: #{vae_conv_forward.49} parent=31 // pred_region
        _
      $region48: #{vae_conv_forward.49} parent=31 // pred_fallthru
        _
      // Predicated region
      $region49: #{vae_conv_forward.49} parent=31 // pred_check
        %p736 = pneg %p211
      $region50: #{vae_conv_forward.49} parent=31 // pred_check_branch
        %738 = sbr.rel (%p736) target = $region52
      $region51: #{vae_conv_forward.49} parent=31 // pred_region
        _
      $region52: #{vae_conv_forward.49} parent=31 // pred_fallthru
        _
    $region32: #{vae_conv_forward.49} parent=5 // pred_fallthru
      _
    %p739 = scmp.le.s32.totalorder 2, %s12
    // Predicated region
    $region53: #{vae_conv_forward.49} parent=5 // pred_check
      %p740 = pneg %p739
    $region54: #{vae_conv_forward.49} parent=5 // pred_check_branch
      %742 = sbr.rel (%p740) target = $region56
    $region55: #{vae_conv_forward.49} parent=5 // pred_region
      %s743 = ssub.s32 %s12, 2
      // Predicated region
      $region57: #{vae_conv_forward.49} parent=55 // pred_check
        %p744 = pneg %p157
      $region58: #{vae_conv_forward.49} parent=55 // pred_check_branch
        %746 = sbr.rel (%p744) target = $region60
      $region59: #{vae_conv_forward.49} parent=55 // pred_region
        %s747 = smul.u32 4, %s28
        %p748 = scmp.lt.s32.totalorder %s27, 3
        %s749 = scalar_select %p748, %s27, 3
        %p750 = scmp.lt.s32.totalorder %s747, 3
        %s751 = scalar_select %p750, %s747, 3
        %p752 = scmp.lt.s32.totalorder %s29, 0
        %s753 = scalar_select %p752, %s29, 0
        %s754 = sadd.s32 %s753, %s751
        %s755 = smul.addr %s749, 4
        %s756 = sadd.s32 %s754, %s755
        %s757 = smul.addr %s756, 4
        %s758 = scalar_lea.vmem %s3, %s757
      $region60: #{vae_conv_forward.49} parent=55 // pred_fallthru
        _
      // Predicated region
      $region61: #{vae_conv_forward.49} parent=55 // pred_check
        %p759 = pneg %p187
      $region62: #{vae_conv_forward.49} parent=55 // pred_check_branch
        %761 = sbr.rel (%p759) target = $region64
      $region63: #{vae_conv_forward.49} parent=55 // pred_region
        %p762 = scmp.lt.s32.totalorder %s27, 3
        %s763 = scalar_select %p762, %s27, 3
        %p764 = scmp.lt.s32.totalorder %s28, 0
        %s765 = scalar_select %p764, %s28, 0
        %p766 = scmp.lt.s32.totalorder %s29, 0
        %s767 = scalar_select %p766, %s29, 0
        %s768 = sadd.s32 %s767, %s765
        %s769 = sadd.s32 %s768, %s763
        %s770 = scalar_lea.vmem %s4, %s769
      $region64: #{vae_conv_forward.49} parent=55 // pred_fallthru
        _
      // Predicated region
      $region65: #{vae_conv_forward.49} parent=55 // pred_check
        %p771 = pneg %p217
      $region66: #{vae_conv_forward.49} parent=55 // pred_check_branch
        %773 = sbr.rel (%p771) target = $region68
      $region67: #{vae_conv_forward.49} parent=55 // pred_region
        %p774 = scmp.lt.s32.totalorder %s27, 3
        %s775 = scalar_select %p774, %s27, 3
        %p776 = scmp.lt.s32.totalorder %s28, 0
        %s777 = scalar_select %p776, %s28, 0
        %p778 = scmp.lt.s32.totalorder %s29, 0
        %s779 = scalar_select %p778, %s29, 0
        %s780 = sadd.s32 %s779, %s777
        %s781 = sadd.s32 %s780, %s775
        %s782 = scalar_lea.vmem %s5, %s781
      $region68: #{vae_conv_forward.49} parent=55 // pred_fallthru
        _
    $region56: #{vae_conv_forward.49} parent=5 // pred_fallthru
      _
  $region6: #{vae_conv_forward.49} parent=0 // loop_footer
    %s16 = sadd.s32 1, %s12
  $region7: #{vae_conv_forward.49} parent=0 // loop_footer_branch
    %11 = sbr.rel target = $region3
  $region8: #{vae_conv_forward.49} parent=0 // loop_exit
    _

// kernel: vae_conv_forward.50
$region0: #{vae_conv_forward.50}
  #allocation0 [shape = 'u32[]', space=smem, size = 0x4, offset = 0x4, fixed_abs, tag = 'smem constant byte address 0x4 - core index']
  #allocation1 [shape = 'u32[144,128]{1,0:T(1,128)}', space=vmem, size = 0x12000, scoped, tag = 'internal scratch']
  %s0 = inlined_call_operand.vmem [shape: bf16[128,32], index: 0, kind: input, shape index: {}]
  %s1 = inlined_call_operand.vmem [shape: f32[1,32], index: 1, kind: input, shape index: {}]
  %s2 = inlined_call_operand.vmem [shape: f32[1,32], index: 2, kind: input, shape index: {}]
  %s3 = inlined_call_operand.vmem [shape: f32[1,32], index: 3, kind: input, shape index: {}]
  %s4 = inlined_call_operand.vmem [shape: f32[1,32], index: 4, kind: input, shape index: {}]
  %s5 = inlined_call_operand.vmem [shape: bf16[128,32], index: 5, kind: output, shape index: {}]
  %s6 = sld [smem:[#allocation0]]
  $region30: #{vae_conv_forward.50} parent=0
    _
  %s8 = ssub.s32 1, %s6
  %s9 = scalar_select 0, %s8, %s6
  // Predicated region
  $region2: #{vae_conv_forward.50} parent=0 // pred_check
    _
  $region3: #{vae_conv_forward.50} parent=0 // pred_check_branch
    %11 = sbr.rel (0) target = $region5
  $region4: #{vae_conv_forward.50} parent=0 // pred_region
    _
  $region5: #{vae_conv_forward.50} parent=0 // pred_fallthru
    _
  // Predicated region
  $region6: #{vae_conv_forward.50} parent=0 // pred_check
    _
  $region7: #{vae_conv_forward.50} parent=0 // pred_check_branch
    %13 = sbr.rel (0) target = $region9
  $region8: #{vae_conv_forward.50} parent=0 // pred_region
    _
  $region9: #{vae_conv_forward.50} parent=0 // pred_fallthru
    _
  // Predicated region
  $region10: #{vae_conv_forward.50} parent=0 // pred_check
    _
  $region11: #{vae_conv_forward.50} parent=0 // pred_check_branch
    %15 = sbr.rel (0) target = $region13
  $region12: #{vae_conv_forward.50} parent=0 // pred_region
    _
  $region13: #{vae_conv_forward.50} parent=0 // pred_fallthru
    _
  // Predicated region
  $region14: #{vae_conv_forward.50} parent=0 // pred_check
    _
  $region15: #{vae_conv_forward.50} parent=0 // pred_check_branch
    %17 = sbr.rel (0) target = $region17
  $region16: #{vae_conv_forward.50} parent=0 // pred_region
    _
  $region17: #{vae_conv_forward.50} parent=0 // pred_fallthru
    _
  // Predicated region
  $region18: #{vae_conv_forward.50} parent=0 // pred_check
    _
  $region19: #{vae_conv_forward.50} parent=0 // pred_check_branch
    %19 = sbr.rel (0) target = $region21
  $region20: #{vae_conv_forward.50} parent=0 // pred_region
    _
  $region21: #{vae_conv_forward.50} parent=0 // pred_fallthru
    _
  %v20 = vld [vmem:[%s1] sm:$0x1]
  %v21 = vmul.f32 %v20, 0.0078125
  %v22 = vld [vmem:[%s2] sm:$0x1]
  %v23 = vmul.f32 %v22, 0.0078125
  %v24 = vmul.f32 %v21, %v21
  %v25 = vsub.f32 %v23, %v24
  %v26 = vadd.f32 %v25, 1e-05
  %v27 = vrsqrt.pop %v26
  %v28 = vld [vmem:[%s3] sm:$0x1]
  %v29 = vmul.f32 %v27, %v28
  %v30 = vld [vmem:[%s0] sm:$0xf]
  %v31 = vld [vmem:[%s0 + $0x4] sm:$0xf]
  %v32 = vld [vmem:[%s0 + $0x8] sm:$0xf]
  %v33 = vld [vmem:[%s0 + $0xc] sm:$0xf]
  %v34 = vld [vmem:[%s0 + $0x10] sm:$0xf]
  %v35 = vld [vmem:[%s0 + $0x14] sm:$0xf]
  %v36 = vld [vmem:[%s0 + $0x18] sm:$0xf]
  %v37 = vld [vmem:[%s0 + $0x1c] sm:$0xf]
  %v38 = vld [vmem:[%s0 + $0x20] sm:$0xf]
  %v39 = vld [vmem:[%s0 + $0x24] sm:$0xf]
  %v40 = vld [vmem:[%s0 + $0x28] sm:$0xf]
  %v41 = vld [vmem:[%s0 + $0x2c] sm:$0xf]
  %v42 = vld [vmem:[%s0 + $0x30] sm:$0xf]
  %v43 = vld [vmem:[%s0 + $0x34] sm:$0xf]
  %v44 = vld [vmem:[%s0 + $0x38] sm:$0xf]
  %v45 = vld [vmem:[%s0 + $0x3c] sm:$0xf]
  %v46 = vunpack.c.l.bf16 %v30
  %v47 = vunpack.c.l.bf16 %v31
  %v48 = vunpack.c.l.bf16 %v32
  %v49 = vunpack.c.l.bf16 %v33
  %v50 = vunpack.c.l.bf16 %v34
  %v51 = vunpack.c.l.bf16 %v35
  %v52 = vunpack.c.l.bf16 %v36
  %v53 = vunpack.c.l.bf16 %v37
  %v54 = vunpack.c.l.bf16 %v38
  %v55 = vunpack.c.l.bf16 %v39
  %v56 = vunpack.c.l.bf16 %v40
  %v57 = vunpack.c.l.bf16 %v41
  %v58 = vunpack.c.l.bf16 %v42
  %v59 = vunpack.c.l.bf16 %v43
  %v60 = vunpack.c.l.bf16 %v44
  %v61 = vunpack.c.l.bf16 %v45
  %v63 = vlaneseq
  %v64 = vshrl.u32 %v63, 7
  %v65 = vsub.s32 0, %v64
  %v66 = vrot.slane %v21, %v65
  %v68 = vsub.f32 %v46, %v66
  %v69 = vsub.f32 %v47, %v66
  %v70 = vsub.f32 %v48, %v66
  %v71 = vsub.f32 %v49, %v66
  %v72 = vsub.f32 %v50, %v66
  %v73 = vsub.f32 %v51, %v66
  %v74 = vsub.f32 %v52, %v66
  %v75 = vsub.f32 %v53, %v66
  %v76 = vsub.f32 %v54, %v66
  %v77 = vsub.f32 %v55, %v66
  %v78 = vsub.f32 %v56, %v66
  %v79 = vsub.f32 %v57, %v66
  %v80 = vsub.f32 %v58, %v66
  %v81 = vsub.f32 %v59, %v66
  %v82 = vsub.f32 %v60, %v66
  %v83 = vsub.f32 %v61, %v66
  %v85 = vlaneseq
  %v86 = vshrl.u32 %v85, 7
  %v87 = vsub.s32 0, %v86
  %v88 = vrot.slane %v29, %v87
  %v90 = vmul.f32 %v68, %v88
  %v91 = vmul.f32 %v69, %v88
  %v92 = vmul.f32 %v70, %v88
  %v93 = vmul.f32 %v71, %v88
  %v94 = vmul.f32 %v72, %v88
  %v95 = vmul.f32 %v73, %v88
  %v96 = vmul.f32 %v74, %v88
  %v97 = vmul.f32 %v75, %v88
  %v98 = vmul.f32 %v76, %v88
  %v99 = vmul.f32 %v77, %v88
  %v100 = vmul.f32 %v78, %v88
  %v101 = vmul.f32 %v79, %v88
  %v102 = vmul.f32 %v80, %v88
  %v103 = vmul.f32 %v81, %v88
  %v104 = vmul.f32 %v82, %v88
  %v105 = vmul.f32 %v83, %v88
  %v106 = vld [vmem:[%s4] sm:$0x1]
  %v108 = vlaneseq
  %v109 = vshrl.u32 %v108, 7
  %v110 = vsub.s32 0, %v109
  %v111 = vrot.slane %v106, %v110
  %v113 = vadd.f32 %v90, %v111
  %v114 = vadd.f32 %v91, %v111
  %v115 = vadd.f32 %v92, %v111
  %v116 = vadd.f32 %v93, %v111
  %v117 = vadd.f32 %v94, %v111
  %v118 = vadd.f32 %v95, %v111
  %v119 = vadd.f32 %v96, %v111
  %v120 = vadd.f32 %v97, %v111
  %v121 = vadd.f32 %v98, %v111
  %v122 = vadd.f32 %v99, %v111
  %v123 = vadd.f32 %v100, %v111
  %v124 = vadd.f32 %v101, %v111
  %v125 = vadd.f32 %v102, %v111
  %v126 = vadd.f32 %v103, %v111
  %v127 = vadd.f32 %v104, %v111
  %v128 = vadd.f32 %v105, %v111
  %v129 = vmax.f32 %v113, 0.0
  %v130 = vmax.f32 %v114, 0.0
  %v131 = vmax.f32 %v115, 0.0
  %v132 = vmax.f32 %v116, 0.0
  %v133 = vmax.f32 %v117, 0.0
  %v134 = vmax.f32 %v118, 0.0
  %v135 = vmax.f32 %v119, 0.0
  %v136 = vmax.f32 %v120, 0.0
  %v137 = vmax.f32 %v121, 0.0
  %v138 = vmax.f32 %v122, 0.0
  %v139 = vmax.f32 %v123, 0.0
  %v140 = vmax.f32 %v124, 0.0
  %v141 = vmax.f32 %v125, 0.0
  %v142 = vmax.f32 %v126, 0.0
  %v143 = vmax.f32 %v127, 0.0
  %v144 = vmax.f32 %v128, 0.0
  %v145 = vpack.c.bf16 %v130, %v129
  %v146 = vpack.c.bf16 %v132, %v131
  %v147 = vpack.c.bf16 %v134, %v133
  %v148 = vpack.c.bf16 %v136, %v135
  %v149 = vpack.c.bf16 %v138, %v137
  %v150 = vpack.c.bf16 %v140, %v139
  %v151 = vpack.c.bf16 %v142, %v141
  %v152 = vpack.c.bf16 %v144, %v143
  %v161 = vunpack.c.l.b16 %v145
  %v162 = vunpack.c.h.b16 %v145
  %v163 = vunpack.c.l.b16 %v146
  %v164 = vunpack.c.h.b16 %v146
  %v165 = vunpack.c.l.b16 %v147
  %v166 = vunpack.c.h.b16 %v147
  %v167 = vunpack.c.l.b16 %v148
  %v168 = vunpack.c.h.b16 %v148
  %v169 = vunpack.c.l.b16 %v149
  %v170 = vunpack.c.h.b16 %v149
  %v171 = vunpack.c.l.b16 %v150
  %v172 = vunpack.c.h.b16 %v150
  %v173 = vunpack.c.l.b16 %v151
  %v174 = vunpack.c.h.b16 %v151
  %v175 = vunpack.c.l.b16 %v152
  %v176 = vunpack.c.h.b16 %v152
  %v177 = vpack.c.b16 %v161, %v161
  %v178 = vpack.c.b16 %v162, %v162
  %v179 = vpack.c.b16 %v163, %v163
  %v180 = vpack.c.b16 %v164, %v164
  %v181 = vpack.c.b16 %v165, %v165
  %v182 = vpack.c.b16 %v166, %v166
  %v183 = vpack.c.b16 %v167, %v167
  %v184 = vpack.c.b16 %v168, %v168
  %v185 = vpack.c.b16 %v169, %v169
  %v186 = vpack.c.b16 %v170, %v170
  %v187 = vpack.c.b16 %v171, %v171
  %v188 = vpack.c.b16 %v172, %v172
  %v189 = vpack.c.b16 %v173, %v173
  %v190 = vpack.c.b16 %v174, %v174
  %v191 = vpack.c.b16 %v175, %v175
  %v192 = vpack.c.b16 %v176, %v176
  %vm209 = vcmask 257024
  %210 = vst.msk [vmem:[%s5] sm:$0xf] %vm209, %v177
  %211 = vst.msk [vmem:[%s5 + $0x4] sm:$0xf] %vm209, %v178
  %212 = vst.msk [vmem:[%s5 + $0x8] sm:$0xf] %vm209, %v179
  %213 = vst.msk [vmem:[%s5 + $0xc] sm:$0xf] %vm209, %v180
  %214 = vst.msk [vmem:[%s5 + $0x10] sm:$0xf] %vm209, %v181
  %215 = vst.msk [vmem:[%s5 + $0x14] sm:$0xf] %vm209, %v182
  %216 = vst.msk [vmem:[%s5 + $0x18] sm:$0xf] %vm209, %v183
  %217 = vst.msk [vmem:[%s5 + $0x1c] sm:$0xf] %vm209, %v184
  %218 = vst.msk [vmem:[%s5 + $0x20] sm:$0xf] %vm209, %v185
  %219 = vst.msk [vmem:[%s5 + $0x24] sm:$0xf] %vm209, %v186
  %220 = vst.msk [vmem:[%s5 + $0x28] sm:$0xf] %vm209, %v187
  %221 = vst.msk [vmem:[%s5 + $0x2c] sm:$0xf] %vm209, %v188
  %222 = vst.msk [vmem:[%s5 + $0x30] sm:$0xf] %vm209, %v189
  %223 = vst.msk [vmem:[%s5 + $0x34] sm:$0xf] %vm209, %v190
  %224 = vst.msk [vmem:[%s5 + $0x38] sm:$0xf] %vm209, %v191
  %225 = vst.msk [vmem:[%s5 + $0x3c] sm:$0xf] %vm209, %v192
  // Predicated region
  $region22: #{vae_conv_forward.50} parent=0 // pred_check
    _
  $region23: #{vae_conv_forward.50} parent=0 // pred_check_branch
    %227 = sbr.rel (0) target = $region25
  $region24: #{vae_conv_forward.50} parent=0 // pred_region
    _
  $region25: #{vae_conv_forward.50} parent=0 // pred_fallthru
    _
  // Predicated region
  $region26: #{vae_conv_forward.50} parent=0 // pred_check
    _
  $region27: #{vae_conv_forward.50} parent=0 // pred_check_branch
    %229 = sbr.rel (0) target = $region29
  $region28: #{vae_conv_forward.50} parent=0 // pred_region
    _
  $region29: #{vae_conv_forward.50} parent=0 // pred_fallthru
    _

// kernel: vae_conv_forward.51
$region0: #{vae_conv_forward.51}
  #allocation0 [shape = 'u32[]', space=smem, size = 0x4, offset = 0x4, fixed_abs, tag = 'smem constant byte address 0x4 - core index']
  #allocation1 [shape = 'u32[144,128]{1,0:T(1,128)}', space=vmem, size = 0x12000, scoped, tag = 'internal scratch']
  #allocation2 [shape = 'f32[128,128]{1,0:T(8,128)}', space=vmem, size = 0x10000, scoped, tag = 'scratch operand']
  %s0 = inlined_call_operand.vmem [shape: bf16[4,128,128], index: 0, kind: input, shape index: {}]
  %s1 = inlined_call_operand.vmem [shape: bf16[4,128,128], index: 1, kind: input, shape index: {}]
  %s2 = inlined_call_operand.vmem [shape: f32[1,128], index: 2, kind: input, shape index: {}]
  %s3 = inlined_call_operand.vmem [shape: f32[4,128,128], index: 3, kind: output, shape index: {}]
  %s4 = sld [smem:[#allocation0]]
  $region53: #{vae_conv_forward.51} parent=0
    _
  %s6 = ssub.s32 1, %s4
  %s7 = scalar_select 0, %s6, %s4
  loop: start=0, step=1, limit=6
  $region2: #{vae_conv_forward.51} parent=0 // loop_pre_header
    _
  $region3: #{vae_conv_forward.51} parent=0 // loop_header
    %s9 = sphi 0, %s13
    %p10 = scmp.ge.s32.totalorder %s9, 6
    %s16 = sphi 0, %s42
    %s17 = sphi 0, %s38
    %s18 = sphi 0, %s34
    %s19 = sphi 0, %s30
    %s20 = sphi 0, %s16
    %s21 = sphi 0, %s17
    %s22 = sphi 0, %s18
    %s23 = sphi 0, %s19
    %s24 = sphi 0, %s20
    %s25 = sphi 0, %s21
    %s26 = sphi 0, %s22
    %s27 = sphi 0, %s23
    %s49 = sphi 0, %s51
    %s52 = sphi 0, %s49
    %s53 = sphi 0, %s52
    %s69 = sphi 0, %s53
    %s79 = sphi 0, %s81
    %s82 = sphi 0, %s79
    %s83 = sphi 0, %s82
    %s99 = sphi 0, %s83
    %s105 = sphi 0, %s107
    %s108 = sphi 0, %s105
    %s109 = sphi 0, %s108
    %s125 = sphi 0, %s109
    %s135 = sphi 0, %s137
    %s138 = sphi 0, %s135
    %s139 = sphi 0, %s138
    %s155 = sphi 0, %s139
  $region4: #{vae_conv_forward.51} parent=0 // loop_header_branch
    %12 = sbr.rel (%p10) target = $region8
  $region5: #{vae_conv_forward.51} parent=0 // loop_body
    %s14 = ssub.s32 %s9, 1
    %s15 = ssub.s32 %s9, 2
    %s28 = sadd.s32 1, %s19
    %p29 = scmp.ge.s32.totalorder %s28, 1
    %s30 = scalar_select %p29, 0, %s28
    %s31 = sadd.s32 1, %s18
    %s32 = scalar_select %p29, %s31, %s18
    %p33 = scmp.ge.s32.totalorder %s32, 1
    %s34 = scalar_select %p33, 0, %s32
    %s35 = sadd.s32 1, %s17
    %s36 = scalar_select %p33, %s35, %s17
    %p37 = scmp.ge.s32.totalorder %s36, 1
    %s38 = scalar_select %p37, 0, %s36
    %s39 = sadd.s32 1, %s16
    %s40 = scalar_select %p37, %s39, %s16
    %p41 = scmp.ge.s32.totalorder %s40, 4
    %s42 = scalar_select %p41, 0, %s40
    %s43 = ssub.s32 %s16, %s42
    %s44 = ssub.s32 %s17, %s38
    %s45 = sor.u32 %s43, %s44
    %s46 = ssub.s32 %s19, %s30
    %s47 = sor.u32 %s45, %s46
    %p48 = scmp.eq.s32.totalorder %s47, 0
    %s50 = sadd.s32 %s49, 1
    %s51 = scalar_select %p48, %s49, %s50
    %p54 = pneg %p48
    %p55 = scmp.eq.s32.totalorder %s9, 3
    %p56 = por %p54, %p55
    %p57 = scmp.ne.s32.totalorder %s49, %s52
    %p58 = scmp.eq.s32.totalorder %s9, 0
    %p59 = por %p57, %p58
    %p60 = scmp.ne.s32.totalorder %s49, %s52
    %p61 = scmp.eq.s32.totalorder %s14, 3
    %p62 = por %p60, %p61
    %p63 = scmp.ne.s32.totalorder %s52, %s53
    %p64 = scmp.eq.s32.totalorder %s14, 0
    %p65 = por %p63, %p64
    %p66 = scmp.ne.s32.totalorder %s52, %s53
    %p67 = scmp.eq.s32.totalorder %s15, 3
    %p68 = por %p66, %p67
    %p70 = scmp.ne.s32.totalorder %s53, %s69
    %p71 = scmp.eq.s32.totalorder %s15, 0
    %p72 = por %p70, %p71
    %s73 = ssub.s32 %s16, %s42
    %s74 = ssub.s32 %s19, %s30
    %s75 = sor.u32 %s73, %s74
    %s76 = ssub.s32 %s18, %s34
    %s77 = sor.u32 %s75, %s76
    %p78 = scmp.eq.s32.totalorder %s77, 0
    %s80 = sadd.s32 %s79, 1
    %s81 = scalar_select %p78, %s79, %s80
    %p84 = pneg %p78
    %p85 = scmp.eq.s32.totalorder %s9, 3
    %p86 = por %p84, %p85
    %p87 = scmp.ne.s32.totalorder %s79, %s82
    %p88 = scmp.eq.s32.totalorder %s9, 0
    %p89 = por %p87, %p88
    %p90 = scmp.ne.s32.totalorder %s79, %s82
    %p91 = scmp.eq.s32.totalorder %s14, 3
    %p92 = por %p90, %p91
    %p93 = scmp.ne.s32.totalorder %s82, %s83
    %p94 = scmp.eq.s32.totalorder %s14, 0
    %p95 = por %p93, %p94
    %p96 = scmp.ne.s32.totalorder %s82, %s83
    %p97 = scmp.eq.s32.totalorder %s15, 3
    %p98 = por %p96, %p97
    %p100 = scmp.ne.s32.totalorder %s83, %s99
    %p101 = scmp.eq.s32.totalorder %s15, 0
    %p102 = por %p100, %p101
    %s103 = ssub.s32 %s18, %s34
    %p104 = scmp.eq.s32.totalorder %s103, 0
    %s106 = sadd.s32 %s105, 1
    %s107 = scalar_select %p104, %s105, %s106
    %p110 = pneg %p104
    %p111 = scmp.eq.s32.totalorder %s9, 3
    %p112 = por %p110, %p111
    %p113 = scmp.ne.s32.totalorder %s105, %s108
    %p114 = scmp.eq.s32.totalorder %s9, 0
    %p115 = por %p113, %p114
    %p116 = scmp.ne.s32.totalorder %s105, %s108
    %p117 = scmp.eq.s32.totalorder %s14, 3
    %p118 = por %p116, %p117
    %p119 = scmp.ne.s32.totalorder %s108, %s109
    %p120 = scmp.eq.s32.totalorder %s14, 0
    %p121 = por %p119, %p120
    %p122 = scmp.ne.s32.totalorder %s108, %s109
    %p123 = scmp.eq.s32.totalorder %s15, 3
    %p124 = por %p122, %p123
    %p126 = scmp.ne.s32.totalorder %s109, %s125
    %p127 = scmp.eq.s32.totalorder %s15, 0
    %p128 = por %p126, %p127
    %s129 = ssub.s32 %s16, %s42
    %s130 = ssub.s32 %s17, %s38
    %s131 = sor.u32 %s129, %s130
    %s132 = ssub.s32 %s18, %s34
    %s133 = sor.u32 %s131, %s132
    %p134 = scmp.eq.s32.totalorder %s133, 0
    %s136 = sadd.s32 %s135, 1
    %s137 = scalar_select %p134, %s135, %s136
    %p140 = pneg %p134
    %p141 = scmp.eq.s32.totalorder %s9, 3
    %p142 = por %p140, %p141
    %p143 = scmp.ne.s32.totalorder %s135, %s138
    %p144 = scmp.eq.s32.totalorder %s9, 0
    %p145 = por %p143, %p144
    %p146 = scmp.ne.s32.totalorder %s135, %s138
    %p147 = scmp.eq.s32.totalorder %s14, 3
    %p148 = por %p146, %p147
    %p149 = scmp.ne.s32.totalorder %s138, %s139
    %p150 = scmp.eq.s32.totalorder %s14, 0
    %p151 = por %p149, %p150
    %p152 = scmp.ne.s32.totalorder %s138, %s139
    %p153 = scmp.eq.s32.totalorder %s15, 3
    %p154 = por %p152, %p153
    %p156 = scmp.ne.s32.totalorder %s139, %s155
    %p157 = scmp.eq.s32.totalorder %s15, 0
    %p158 = por %p156, %p157
    %p159 = scmp.le.s32.totalorder 1, %s9
    %p160 = scmp.lt.s32.totalorder %s9, 5
    %p161 = pnand %p159, %p160
    %p162 = pneg %p161
    // Predicated region
    $region9: #{vae_conv_forward.51} parent=5 // pred_check
      _
    $region10: #{vae_conv_forward.51} parent=5 // pred_check_branch
      %164 = sbr.rel (%p161) target = $region12
    $region11: #{vae_conv_forward.51} parent=5 // pred_region
      %s165 = ssub.s32 %s9, 1
      // Predicated region
      $region13: #{vae_conv_forward.51} parent=11 // pred_check
        %p166 = pneg %p121
      $region14: #{vae_conv_forward.51} parent=11 // pred_check_branch
        %168 = sbr.rel (%p166) target = $region16
      $region15: #{vae_conv_forward.51} parent=11 // pred_region
        %p169 = scmp.lt.s32.totalorder %s22, 0
        %s170 = scalar_select %p169, %s22, 0
        %s171 = scalar_lea.vmem %s2, %s170
      $region16: #{vae_conv_forward.51} parent=11 // pred_fallthru
        _
    $region12: #{vae_conv_forward.51} parent=5 // pred_fallthru
      _
    %p172 = scmp.lt.s32.totalorder %s9, 4
    // Predicated region
    $region17: #{vae_conv_forward.51} parent=5 // pred_check
      %p173 = pneg %p172
    $region18: #{vae_conv_forward.51} parent=5 // pred_check_branch
      %175 = sbr.rel (%p173) target = $region20
    $region19: #{vae_conv_forward.51} parent=5 // pred_region
      // Predicated region
      $region21: #{vae_conv_forward.51} parent=19 // pred_check
        %p176 = pneg %p59
      $region22: #{vae_conv_forward.51} parent=19 // pred_check_branch
        %178 = sbr.rel (%p176) target = $region24
      $region23: #{vae_conv_forward.51} parent=19 // pred_region
        %s179 = smul.u32 16, %s17
        %p180 = scmp.lt.s32.totalorder %s16, 3
        %s181 = scalar_select %p180, %s16, 3
        %p182 = scmp.lt.s32.totalorder %s179, 15
        %s183 = scalar_select %p182, %s179, 15
        %p184 = scmp.lt.s32.totalorder %s19, 0
        %s185 = scalar_select %p184, %s19, 0
        %s186 = sadd.s32 %s185, %s183
        %s187 = smul.addr %s181, 16
        %s188 = sadd.s32 %s186, %s187
        %s189 = smul.addr %s188, 4
        %s190 = scalar_lea.vmem %s0, %s189
        %s191 = smul.u32 16, %s17
      $region24: #{vae_conv_forward.51} parent=19 // pred_fallthru
        _
      // Predicated region
      $region25: #{vae_conv_forward.51} parent=19 // pred_check
        %p192 = pneg %p89
      $region26: #{vae_conv_forward.51} parent=19 // pred_check_branch
        %194 = sbr.rel (%p192) target = $region28
      $region27: #{vae_conv_forward.51} parent=19 // pred_region
        %s195 = smul.u32 16, %s19
        %p196 = scmp.lt.s32.totalorder %s16, 3
        %s197 = scalar_select %p196, %s16, 3
        %p198 = scmp.lt.s32.totalorder %s195, 15
        %s199 = scalar_select %p198, %s195, 15
        %p200 = scmp.lt.s32.totalorder %s18, 0
        %s201 = scalar_select %p200, %s18, 0
        %s202 = sadd.s32 %s201, %s199
        %s203 = smul.addr %s197, 16
        %s204 = sadd.s32 %s202, %s203
        %s205 = smul.addr %s204, 4
        %s206 = scalar_lea.vmem %s1, %s205
        %s207 = smul.u32 16, %s19
      $region28: #{vae_conv_forward.51} parent=19 // pred_fallthru
        _
    $region20: #{vae_conv_forward.51} parent=5 // pred_fallthru
      _
    %p208 = scmp.le.s32.totalorder 1, %s9
    %p209 = scmp.lt.s32.totalorder %s9, 5
    %p210 = pnand %p208, %p209
    %p211 = pneg %p210
    // Predicated region
    $region29: #{vae_conv_forward.51} parent=5 // pred_check
      _
    $region30: #{vae_conv_forward.51} parent=5 // pred_check_branch
      %213 = sbr.rel (%p210) target = $region32
    $region31: #{vae_conv_forward.51} parent=5 // pred_region
      %s214 = ssub.s32 %s9, 1
      %s215 = smul.u32 16, %s21
      %p216 = scmp.lt.s32.totalorder %s20, 3
      %s217 = scalar_select %p216, %s20, 3
      %p218 = scmp.lt.s32.totalorder %s215, 15
      %s219 = scalar_select %p218, %s215, 15
      %p220 = scmp.lt.s32.totalorder %s23, 0
      %s221 = scalar_select %p220, %s23, 0
      %s222 = sadd.s32 %s221, %s219
      %s223 = smul.addr %s217, 16
      %s224 = sadd.s32 %s222, %s223
      %s225 = smul.addr %s224, 4
      %s226 = scalar_lea.vmem %s0, %s225
      %p227 = pneg %p65
      %p228 = pneg %p62
      %s229 = smul.u32 16, %s23
      %p230 = scmp.lt.s32.totalorder %s20, 3
      %s231 = scalar_select %p230, %s20, 3
      %p232 = scmp.lt.s32.totalorder %s229, 15
      %s233 = scalar_select %p232, %s229, 15
      %p234 = scmp.lt.s32.totalorder %s22, 0
      %s235 = scalar_select %p234, %s22, 0
      %s236 = sadd.s32 %s235, %s233
      %s237 = smul.addr %s231, 16
      %s238 = sadd.s32 %s236, %s237
      %s239 = smul.addr %s238, 4
      %s240 = scalar_lea.vmem %s1, %s239
      %p241 = pneg %p95
      %p242 = pneg %p92
      %p243 = scmp.lt.s32.totalorder %s22, 0
      %s244 = scalar_select %p243, %s22, 0
      %s245 = scalar_lea.vmem %s2, %s244
      %p246 = pneg %p121
      %p247 = pneg %p118
      %p248 = pneg %p151
      %p249 = pneg %p148
      %s250 = smul.u32 16, %s21
      %p251 = scmp.lt.s32.totalorder %s20, 3
      %s252 = scalar_select %p251, %s20, 3
      %p253 = scmp.lt.s32.totalorder %s250, 15
      %s254 = scalar_select %p253, %s250, 15
      %p255 = scmp.lt.s32.totalorder %s22, 0
      %s256 = scalar_select %p255, %s22, 0
      %s257 = sadd.s32 %s256, %s254
      %s258 = smul.addr %s252, 16
      %s259 = sadd.s32 %s257, %s258
      %s260 = smul.addr %s259, 8
      %s261 = scalar_lea.vmem %s3, %s260
      %s262 = smul.u32 16, %s21
      %p263 = scmp.lt.s32.totalorder %s20, 3
      %s264 = scalar_select %p263, %s20, 3
      %p265 = scmp.lt.s32.totalorder %s262, 15
      %s266 = scalar_select %p265, %s262, 15
      %p267 = scmp.lt.s32.totalorder %s23, 0
      %s268 = scalar_select %p267, %s23, 0
      %s269 = sadd.s32 %s268, %s266
      %s270 = smul.addr %s264, 16
      %s271 = sadd.s32 %s269, %s270
      %s272 = smul.addr %s271, 4
      %s273 = scalar_lea.vmem %s0, %s272
      %s274 = smul.u32 16, %s21
      %s275 = smul.u32 16, %s23
      %p276 = scmp.lt.s32.totalorder %s20, 3
      %s277 = scalar_select %p276, %s20, 3
      %p278 = scmp.lt.s32.totalorder %s275, 15
      %s279 = scalar_select %p278, %s275, 15
      %p280 = scmp.lt.s32.totalorder %s22, 0
      %s281 = scalar_select %p280, %s22, 0
      %s282 = sadd.s32 %s281, %s279
      %s283 = smul.addr %s277, 16
      %s284 = sadd.s32 %s282, %s283
      %s285 = smul.addr %s284, 4
      %s286 = scalar_lea.vmem %s1, %s285
      %s287 = smul.u32 16, %s23
      %p288 = scmp.lt.s32.totalorder %s22, 0
      %s289 = scalar_select %p288, %s22, 0
      %s290 = scalar_lea.vmem %s2, %s289
      %s291 = smul.u32 16, %s21
      %p292 = scmp.lt.s32.totalorder %s20, 3
      %s293 = scalar_select %p292, %s20, 3
      %p294 = scmp.lt.s32.totalorder %s291, 15
      %s295 = scalar_select %p294, %s291, 15
      %p296 = scmp.lt.s32.totalorder %s22, 0
      %s297 = scalar_select %p296, %s22, 0
      %s298 = sadd.s32 %s297, %s295
      %s299 = smul.addr %s293, 16
      %s300 = sadd.s32 %s298, %s299
      %s301 = smul.addr %s300, 8
      %s302 = scalar_lea.vmem %s3, %s301
      %s303 = smul.u32 16, %s21
      %p305 = scmp.eq.s32.totalorder %s23, 0
      // Predicated region
      $region33: #{vae_conv_forward.51} parent=31 // pred_check
        %p306 = pneg %p305
      $region34: #{vae_conv_forward.51} parent=31 // pred_check_branch
        %308 = sbr.rel (%p306) target = $region36
      $region35: #{vae_conv_forward.51} parent=31 // pred_region
        %309 = vst [vmem:[#allocation2] sm:$0xff] 0.0
        %310 = vst [vmem:[#allocation2 + $0x8] sm:$0xff] 0.0
        %311 = vst [vmem:[#allocation2 + $0x10] sm:$0xff] 0.0
        %312 = vst [vmem:[#allocation2 + $0x18] sm:$0xff] 0.0
        %313 = vst [vmem:[#allocation2 + $0x20] sm:$0xff] 0.0
        %314 = vst [vmem:[#allocation2 + $0x28] sm:$0xff] 0.0
        %315 = vst [vmem:[#allocation2 + $0x30] sm:$0xff] 0.0
        %316 = vst [vmem:[#allocation2 + $0x38] sm:$0xff] 0.0
        %317 = vst [vmem:[#allocation2 + $0x40] sm:$0xff] 0.0
        %318 = vst [vmem:[#allocation2 + $0x48] sm:$0xff] 0.0
        %319 = vst [vmem:[#allocation2 + $0x50] sm:$0xff] 0.0
        %320 = vst [vmem:[#allocation2 + $0x58] sm:$0xff] 0.0
        %321 = vst [vmem:[#allocation2 + $0x60] sm:$0xff] 0.0
        %322 = vst [vmem:[#allocation2 + $0x68] sm:$0xff] 0.0
        %323 = vst [vmem:[#allocation2 + $0x70] sm:$0xff] 0.0
        %324 = vst [vmem:[#allocation2 + $0x78] sm:$0xff] 0.0
      $region36: #{vae_conv_forward.51} parent=31 // pred_fallthru
        _
      %v325 = vld [vmem:[#allocation2] sm:$0xff]
      %v326 = vld [vmem:[#allocation2 + $0x8] sm:$0xff]
      %v327 = vld [vmem:[#allocation2 + $0x10] sm:$0xff]
      %v328 = vld [vmem:[#allocation2 + $0x18] sm:$0xff]
      %v329 = vld [vmem:[#allocation2 + $0x20] sm:$0xff]
      %v330 = vld [vmem:[#allocation2 + $0x28] sm:$0xff]
      %v331 = vld [vmem:[#allocation2 + $0x30] sm:$0xff]
      %v332 = vld [vmem:[#allocation2 + $0x38] sm:$0xff]
      %v333 = vld [vmem:[#allocation2 + $0x40] sm:$0xff]
      %v334 = vld [vmem:[#allocation2 + $0x48] sm:$0xff]
      %v335 = vld [vmem:[#allocation2 + $0x50] sm:$0xff]
      %v336 = vld [vmem:[#allocation2 + $0x58] sm:$0xff]
      %v337 = vld [vmem:[#allocation2 + $0x60] sm:$0xff]
      %v338 = vld [vmem:[#allocation2 + $0x68] sm:$0xff]
      %v339 = vld [vmem:[#allocation2 + $0x70] sm:$0xff]
      %v340 = vld [vmem:[#allocation2 + $0x78] sm:$0xff]
      %v341 = vld [vmem:[%s273] sm:$0xf]
      %v342 = vld [vmem:[%s273 + $0x4] sm:$0xf]
      %v343 = vld [vmem:[%s273 + $0x8] sm:$0xf]
      %v344 = vld [vmem:[%s273 + $0xc] sm:$0xf]
      %v345 = vld [vmem:[%s273 + $0x10] sm:$0xf]
      %v346 = vld [vmem:[%s273 + $0x14] sm:$0xf]
      %v347 = vld [vmem:[%s273 + $0x18] sm:$0xf]
      %v348 = vld [vmem:[%s273 + $0x1c] sm:$0xf]
      %v349 = vld [vmem:[%s273 + $0x20] sm:$0xf]
      %v350 = vld [vmem:[%s273 + $0x24] sm:$0xf]
      %v351 = vld [vmem:[%s273 + $0x28] sm:$0xf]
      %v352 = vld [vmem:[%s273 + $0x2c] sm:$0xf]
      %v353 = vld [vmem:[%s273 + $0x30] sm:$0xf]
      %v354 = vld [vmem:[%s273 + $0x34] sm:$0xf]
      %v355 = vld [vmem:[%s273 + $0x38] sm:$0xf]
      %v356 = vld [vmem:[%s273 + $0x3c] sm:$0xf]
      %v357 = vld [vmem:[%s286] sm:$0xf]
      %v358 = vld [vmem:[%s286 + $0x4] sm:$0xf]
      %v359 = vld [vmem:[%s286 + $0x8] sm:$0xf]
      %v360 = vld [vmem:[%s286 + $0xc] sm:$0xf]
      %v361 = vld [vmem:[%s286 + $0x10] sm:$0xf]
      %v362 = vld [vmem:[%s286 + $0x14] sm:$0xf]
      %v363 = vld [vmem:[%s286 + $0x18] sm:$0xf]
      %v364 = vld [vmem:[%s286 + $0x1c] sm:$0xf]
      %v365 = vld [vmem:[%s286 + $0x20] sm:$0xf]
      %v366 = vld [vmem:[%s286 + $0x24] sm:$0xf]
      %v367 = vld [vmem:[%s286 + $0x28] sm:$0xf]
      %v368 = vld [vmem:[%s286 + $0x2c] sm:$0xf]
      %v369 = vld [vmem:[%s286 + $0x30] sm:$0xf]
      %v370 = vld [vmem:[%s286 + $0x34] sm:$0xf]
      %v371 = vld [vmem:[%s286 + $0x38] sm:$0xf]
      %v372 = vld [vmem:[%s286 + $0x3c] sm:$0xf]
      %v389 = vunpack.c.l.b16 %v341
      %v390 = vunpack.c.l.b16 %v342
      %v391 = vunpack.c.l.b16 %v343
      %v392 = vunpack.c.l.b16 %v344
      %v393 = vunpack.c.l.b16 %v345
      %v394 = vunpack.c.l.b16 %v346
      %v395 = vunpack.c.l.b16 %v347
      %v396 = vunpack.c.l.b16 %v348
      %v397 = vunpack.c.l.b16 %v349
      %v398 = vunpack.c.l.b16 %v350
      %v399 = vunpack.c.l.b16 %v351
      %v400 = vunpack.c.l.b16 %v352
      %v401 = vunpack.c.l.b16 %v353
      %v402 = vunpack.c.l.b16 %v354
      %v403 = vunpack.c.l.b16 %v355
      %v404 = vunpack.c.l.b16 %v356
      %v405 = vpack.c.b16 %v390, %v389
      %v406 = vpack.c.b16 %v392, %v391
      %v407 = vpack.c.b16 %v394, %v393
      %v408 = vpack.c.b16 %v396, %v395
      %v409 = vpack.c.b16 %v398, %v397
      %v410 = vpack.c.b16 %v400, %v399
      %v411 = vpack.c.b16 %v402, %v401
      %v412 = vpack.c.b16 %v404, %v403
      %v437 = vunpack.c.l.b16 %v357
      %v438 = vunpack.c.l.b16 %v358
      %v439 = vunpack.c.l.b16 %v359
      %v440 = vunpack.c.l.b16 %v360
      %v441 = vunpack.c.l.b16 %v361
      %v442 = vunpack.c.l.b16 %v362
      %v443 = vunpack.c.l.b16 %v363
      %v444 = vunpack.c.l.b16 %v364
      %v445 = vunpack.c.l.b16 %v365
      %v446 = vunpack.c.l.b16 %v366
      %v447 = vunpack.c.l.b16 %v367
      %v448 = vunpack.c.l.b16 %v368
      %v449 = vunpack.c.l.b16 %v369
      %v450 = vunpack.c.l.b16 %v370
      %v451 = vunpack.c.l.b16 %v371
      %v452 = vunpack.c.l.b16 %v372
      %v453 = vpack.c.b16 %v438, %v437
      %v454 = vpack.c.b16 %v440, %v439
      %v455 = vpack.c.b16 %v442, %v441
      %v456 = vpack.c.b16 %v444, %v443
      %v457 = vpack.c.b16 %v446, %v445
      %v458 = vpack.c.b16 %v448, %v447
      %v459 = vpack.c.b16 %v450, %v449
      %v460 = vpack.c.b16 %v452, %v451
      %469 = vmatprep.subr.bf16.mxu0 0
      %470 = vmatpush1.bf16.msra.mxu0 %v453
      %471 = vmatprep.subr.bf16.mxu0 0
      %472 = vmatpush1.bf16.msra.mxu0 %v454
      %473 = vmatprep.subr.bf16.mxu0 0
      %474 = vmatpush1.bf16.msra.mxu0 %v455
      %475 = vmatprep.subr.bf16.mxu0 0
      %476 = vmatpush1.bf16.msra.mxu0 %v456
      %477 = vmatprep.subr.bf16.mxu0 0
      %478 = vmatpush1.bf16.msra.mxu0 %v457
      %479 = vmatprep.subr.bf16.mxu0 0
      %480 = vmatpush1.bf16.msra.mxu0 %v458
      %481 = vmatprep.subr.bf16.mxu0 0
      %482 = vmatpush1.bf16.msra.mxu0 %v459
      %483 = vmatprep.subr.bf16.mxu0 0
      %484 = vmatpush1.bf16.msra.mxu0 %v460
      %485 = vmatprep.subr.bf16.mxu0 0
      %486 = vmatpush1.bf16.msra.mxu0 0
      %487 = vmatprep.subr.bf16.mxu0 0
      %488 = vmatpush1.bf16.msra.mxu0 0
      %489 = vmatprep.subr.bf16.mxu0 0
      %490 = vmatpush1.bf16.msra.mxu0 0
      %491 = vmatprep.subr.bf16.mxu0 0
      %492 = vmatpush1.bf16.msra.mxu0 0
      %493 = vmatprep.subr.bf16.mxu0 0
      %494 = vmatpush1.bf16.msra.mxu0 0
      %495 = vmatprep.subr.bf16.mxu0 0
      %496 = vmatpush1.bf16.msra.mxu0 0
      %497 = vmatprep.subr.bf16.mxu0 0
      %498 = vmatpush1.bf16.msra.mxu0 0
      %499 = vmatprep.subr.bf16.mxu0 0
      %500 = vmatpush1.bf16.msra.mxu0 0
      %501 = vmatprep.mubr.bf16.mxu0 0
      %502 = vmatmul.mubr.bf16.gmra.mrb[0].mxu0 %v405
      %v503 = vpop.f32.mrb[0].mxu0
      %v504 = vadd.f32 0.0, %v503
      %v505 = vpop.f32.mrb[0].mxu0
      %v506 = vpop.f32.mrb[0].mxu0
      %v507 = vadd.f32 0.0, %v506
      %v508 = vpop.f32.mrb[0].mxu0
      %509 = vmatprep.mubr.bf16.mxu0 0
      %510 = vmatmul.mubr.bf16.gmra.mrb[0].mxu0 %v406
      %v511 = vpop.f32.mrb[0].mxu0
      %v512 = vadd.f32 0.0, %v511
      %v513 = vpop.f32.mrb[0].mxu0
      %v514 = vpop.f32.mrb[0].mxu0
      %v515 = vadd.f32 0.0, %v514
      %v516 = vpop.f32.mrb[0].mxu0
      %517 = vmatprep.mubr.bf16.mxu0 0
      %518 = vmatmul.mubr.bf16.gmra.mrb[0].mxu0 %v407
      %v519 = vpop.f32.mrb[0].mxu0
      %v520 = vadd.f32 0.0, %v519
      %v521 = vpop.f32.mrb[0].mxu0
      %v522 = vpop.f32.mrb[0].mxu0
      %v523 = vadd.f32 0.0, %v522
      %v524 = vpop.f32.mrb[0].mxu0
      %525 = vmatprep.mubr.bf16.mxu0 0
      %526 = vmatmul.mubr.bf16.gmra.mrb[0].mxu0 %v408
      %v527 = vpop.f32.mrb[0].mxu0
      %v528 = vadd.f32 0.0, %v527
      %v529 = vpop.f32.mrb[0].mxu0
      %v530 = vpop.f32.mrb[0].mxu0
      %v531 = vadd.f32 0.0, %v530
      %v532 = vpop.f32.mrb[0].mxu0
      %533 = vmatprep.mubr.bf16.mxu0 0
      %534 = vmatmul.mubr.bf16.gmra.mrb[0].mxu0 %v409
      %v535 = vpop.f32.mrb[0].mxu0
      %v536 = vadd.f32 0.0, %v535
      %v537 = vpop.f32.mrb[0].mxu0
      %v538 = vpop.f32.mrb[0].mxu0
      %v539 = vadd.f32 0.0, %v538
      %v540 = vpop.f32.mrb[0].mxu0
      %541 = vmatprep.mubr.bf16.mxu0 0
      %542 = vmatmul.mubr.bf16.gmra.mrb[0].mxu0 %v410
      %v543 = vpop.f32.mrb[0].mxu0
      %v544 = vadd.f32 0.0, %v543
      %v545 = vpop.f32.mrb[0].mxu0
      %v546 = vpop.f32.mrb[0].mxu0
      %v547 = vadd.f32 0.0, %v546
      %v548 = vpop.f32.mrb[0].mxu0
      %549 = vmatprep.mubr.bf16.mxu0 0
      %550 = vmatmul.mubr.bf16.gmra.mrb[0].mxu0 %v411
      %v551 = vpop.f32.mrb[0].mxu0
      %v552 = vadd.f32 0.0, %v551
      %v553 = vpop.f32.mrb[0].mxu0
      %v554 = vpop.f32.mrb[0].mxu0
      %v555 = vadd.f32 0.0, %v554
      %v556 = vpop.f32.mrb[0].mxu0
      %557 = vmatprep.mubr.bf16.mxu0 0
      %558 = vmatmul.mubr.bf16.gmra.mrb[0].mxu0 %v412
      %v559 = vpop.f32.mrb[0].mxu0
      %v560 = vadd.f32 0.0, %v559
      %v561 = vpop.f32.mrb[0].mxu0
      %v562 = vpop.f32.mrb[0].mxu0
      %v563 = vadd.f32 0.0, %v562
      %v564 = vpop.f32.mrb[0].mxu0
      %565 = vdwg.mxu0
      %v566 = vadd.f32 %v325, %v504
      %v567 = vadd.f32 %v326, %v507
      %v568 = vadd.f32 %v327, %v512
      %v569 = vadd.f32 %v328, %v515
      %v570 = vadd.f32 %v329, %v520
      %v571 = vadd.f32 %v330, %v523
      %v572 = vadd.f32 %v331, %v528
      %v573 = vadd.f32 %v332, %v531
      %v574 = vadd.f32 %v333, %v536
      %v575 = vadd.f32 %v334, %v539
      %v576 = vadd.f32 %v335, %v544
      %v577 = vadd.f32 %v336, %v547
      %v578 = vadd.f32 %v337, %v552
      %v579 = vadd.f32 %v338, %v555
      %v580 = vadd.f32 %v339, %v560
      %v581 = vadd.f32 %v340, %v563
      %582 = vst [vmem:[#allocation2] sm:$0xff] %v566
      %583 = vst [vmem:[#allocation2 + $0x8] sm:$0xff] %v567
      %584 = vst [vmem:[#allocation2 + $0x10] sm:$0xff] %v568
      %585 = vst [vmem:[#allocation2 + $0x18] sm:$0xff] %v569
      %586 = vst [vmem:[#allocation2 + $0x20] sm:$0xff] %v570
      %587 = vst [vmem:[#allocation2 + $0x28] sm:$0xff] %v571
      %588 = vst [vmem:[#allocation2 + $0x30] sm:$0xff] %v572
      %589 = vst [vmem:[#allocation2 + $0x38] sm:$0xff] %v573
      %590 = vst [vmem:[#allocation2 + $0x40] sm:$0xff] %v574
      %591 = vst [vmem:[#allocation2 + $0x48] sm:$0xff] %v575
      %592 = vst [vmem:[#allocation2 + $0x50] sm:$0xff] %v576
      %593 = vst [vmem:[#allocation2 + $0x58] sm:$0xff] %v577
      %594 = vst [vmem:[#allocation2 + $0x60] sm:$0xff] %v578
      %595 = vst [vmem:[#allocation2 + $0x68] sm:$0xff] %v579
      %596 = vst [vmem:[#allocation2 + $0x70] sm:$0xff] %v580
      %597 = vst [vmem:[#allocation2 + $0x78] sm:$0xff] %v581
      // Predicated region
      $region37: #{vae_conv_forward.51} parent=31 // pred_check
        %p598 = pneg %p305
      $region38: #{vae_conv_forward.51} parent=31 // pred_check_branch
        %600 = sbr.rel (%p598) target = $region40
      $region39: #{vae_conv_forward.51} parent=31 // pred_region
        %v601 = vld [vmem:[#allocation2] sm:$0xff]
        %v602 = vld [vmem:[#allocation2 + $0x8] sm:$0xff]
        %v603 = vld [vmem:[#allocation2 + $0x10] sm:$0xff]
        %v604 = vld [vmem:[#allocation2 + $0x18] sm:$0xff]
        %v605 = vld [vmem:[#allocation2 + $0x20] sm:$0xff]
        %v606 = vld [vmem:[#allocation2 + $0x28] sm:$0xff]
        %v607 = vld [vmem:[#allocation2 + $0x30] sm:$0xff]
        %v608 = vld [vmem:[#allocation2 + $0x38] sm:$0xff]
        %v609 = vld [vmem:[#allocation2 + $0x40] sm:$0xff]
        %v610 = vld [vmem:[#allocation2 + $0x48] sm:$0xff]
        %v611 = vld [vmem:[#allocation2 + $0x50] sm:$0xff]
        %v612 = vld [vmem:[#allocation2 + $0x58] sm:$0xff]
        %v613 = vld [vmem:[#allocation2 + $0x60] sm:$0xff]
        %v614 = vld [vmem:[#allocation2 + $0x68] sm:$0xff]
        %v615 = vld [vmem:[#allocation2 + $0x70] sm:$0xff]
        %v616 = vld [vmem:[#allocation2 + $0x78] sm:$0xff]
        %v617 = vld [vmem:[%s290] sm:$0x1]
        %v619 = vlaneseq
        %v620 = vshrl.u32 %v619, 7
        %v621 = vsub.s32 0, %v620
        %v622 = vrot.slane %v617, %v621
        %v624 = vadd.f32 %v601, %v622
        %v625 = vadd.f32 %v602, %v622
        %v626 = vadd.f32 %v603, %v622
        %v627 = vadd.f32 %v604, %v622
        %v628 = vadd.f32 %v605, %v622
        %v629 = vadd.f32 %v606, %v622
        %v630 = vadd.f32 %v607, %v622
        %v631 = vadd.f32 %v608, %v622
        %v632 = vadd.f32 %v609, %v622
        %v633 = vadd.f32 %v610, %v622
        %v634 = vadd.f32 %v611, %v622
        %v635 = vadd.f32 %v612, %v622
        %v636 = vadd.f32 %v613, %v622
        %v637 = vadd.f32 %v614, %v622
        %v638 = vadd.f32 %v615, %v622
        %v639 = vadd.f32 %v616, %v622
        %v640 = vxor.u32 %v624, 2147483648
        %v641 = vxor.u32 %v625, 2147483648
        %v642 = vxor.u32 %v626, 2147483648
        %v643 = vxor.u32 %v627, 2147483648
        %v644 = vxor.u32 %v628, 2147483648
        %v645 = vxor.u32 %v629, 2147483648
        %v646 = vxor.u32 %v630, 2147483648
        %v647 = vxor.u32 %v631, 2147483648
        %v648 = vxor.u32 %v632, 2147483648
        %v649 = vxor.u32 %v633, 2147483648
        %v650 = vxor.u32 %v634, 2147483648
        %v651 = vxor.u32 %v635, 2147483648
        %v652 = vxor.u32 %v636, 2147483648
        %v653 = vxor.u32 %v637, 2147483648
        %v654 = vxor.u32 %v638, 2147483648
        %v655 = vxor.u32 %v639, 2147483648
        %v656 = vmul.f32 %v640, 1.442695
        %v657 = vpow.pop %v656
        %v658 = vmul.f32 %v641, 1.442695
        %v659 = vpow.pop %v658
        %v660 = vmul.f32 %v642, 1.442695
        %v661 = vpow.pop %v660
        %v662 = vmul.f32 %v643, 1.442695
        %v663 = vpow.pop %v662
        %v664 = vmul.f32 %v644, 1.442695
        %v665 = vpow.pop %v664
        %v666 = vmul.f32 %v645, 1.442695
        %v667 = vpow.pop %v666
        %v668 = vmul.f32 %v646, 1.442695
        %v669 = vpow.pop %v668
        %v670 = vmul.f32 %v647, 1.442695
        %v671 = vpow.pop %v670
        %v672 = vmul.f32 %v648, 1.442695
        %v673 = vpow.pop %v672
        %v674 = vmul.f32 %v649, 1.442695
        %v675 = vpow.pop %v674
        %v676 = vmul.f32 %v650, 1.442695
        %v677 = vpow.pop %v676
        %v678 = vmul.f32 %v651, 1.442695
        %v679 = vpow.pop %v678
        %v680 = vmul.f32 %v652, 1.442695
        %v681 = vpow.pop %v680
        %v682 = vmul.f32 %v653, 1.442695
        %v683 = vpow.pop %v682
        %v684 = vmul.f32 %v654, 1.442695
        %v685 = vpow.pop %v684
        %v686 = vmul.f32 %v655, 1.442695
        %v687 = vpow.pop %v686
        %v688 = vadd.f32 %v657, 1.0
        %v689 = vadd.f32 %v659, 1.0
        %v690 = vadd.f32 %v661, 1.0
        %v691 = vadd.f32 %v663, 1.0
        %v692 = vadd.f32 %v665, 1.0
        %v693 = vadd.f32 %v667, 1.0
        %v694 = vadd.f32 %v669, 1.0
        %v695 = vadd.f32 %v671, 1.0
        %v696 = vadd.f32 %v673, 1.0
        %v697 = vadd.f32 %v675, 1.0
        %v698 = vadd.f32 %v677, 1.0
        %v699 = vadd.f32 %v679, 1.0
        %v700 = vadd.f32 %v681, 1.0
        %v701 = vadd.f32 %v683, 1.0
        %v702 = vadd.f32 %v685, 1.0
        %v703 = vadd.f32 %v687, 1.0
        %v704 = vrcp.pop %v688
        %v705 = vmul.f32 1.0, %v704
        %v706 = vrcp.pop %v689
        %v707 = vmul.f32 1.0, %v706
        %v708 = vrcp.pop %v690
        %v709 = vmul.f32 1.0, %v708
        %v710 = vrcp.pop %v691
        %v711 = vmul.f32 1.0, %v710
        %v712 = vrcp.pop %v692
        %v713 = vmul.f32 1.0, %v712
        %v714 = vrcp.pop %v693
        %v715 = vmul.f32 1.0, %v714
        %v716 = vrcp.pop %v694
        %v717 = vmul.f32 1.0, %v716
        %v718 = vrcp.pop %v695
        %v719 = vmul.f32 1.0, %v718
        %v720 = vrcp.pop %v696
        %v721 = vmul.f32 1.0, %v720
        %v722 = vrcp.pop %v697
        %v723 = vmul.f32 1.0, %v722
        %v724 = vrcp.pop %v698
        %v725 = vmul.f32 1.0, %v724
        %v726 = vrcp.pop %v699
        %v727 = vmul.f32 1.0, %v726
        %v728 = vrcp.pop %v700
        %v729 = vmul.f32 1.0, %v728
        %v730 = vrcp.pop %v701
        %v731 = vmul.f32 1.0, %v730
        %v732 = vrcp.pop %v702
        %v733 = vmul.f32 1.0, %v732
        %v734 = vrcp.pop %v703
        %v735 = vmul.f32 1.0, %v734
        %736 = vst [vmem:[%s302] sm:$0xff] %v705
        %737 = vst [vmem:[%s302 + $0x8] sm:$0xff] %v707
        %738 = vst [vmem:[%s302 + $0x10] sm:$0xff] %v709
        %739 = vst [vmem:[%s302 + $0x18] sm:$0xff] %v711
        %740 = vst [vmem:[%s302 + $0x20] sm:$0xff] %v713
        %741 = vst [vmem:[%s302 + $0x28] sm:$0xff] %v715
        %742 = vst [vmem:[%s302 + $0x30] sm:$0xff] %v717
        %743 = vst [vmem:[%s302 + $0x38] sm:$0xff] %v719
        %744 = vst [vmem:[%s302 + $0x40] sm:$0xff] %v721
        %745 = vst [vmem:[%s302 + $0x48] sm:$0xff] %v723
        %746 = vst [vmem:[%s302 + $0x50] sm:$0xff] %v725
        %747 = vst [vmem:[%s302 + $0x58] sm:$0xff] %v727
        %748 = vst [vmem:[%s302 + $0x60] sm:$0xff] %v729
        %749 = vst [vmem:[%s302 + $0x68] sm:$0xff] %v731
        %750 = vst [vmem:[%s302 + $0x70] sm:$0xff] %v733
        %751 = vst [vmem:[%s302 + $0x78] sm:$0xff] %v735
      $region40: #{vae_conv_forward.51} parent=31 // pred_fallthru
        _
      %s752 = smul.u32 16, %s21
      %p753 = scmp.lt.s32.totalorder %s20, 3
      %s754 = scalar_select %p753, %s20, 3
      %p755 = scmp.lt.s32.totalorder %s752, 15
      %s756 = scalar_select %p755, %s752, 15
      %p757 = scmp.lt.s32.totalorder %s22, 0
      %s758 = scalar_select %p757, %s22, 0
      %s759 = sadd.s32 %s758, %s756
      %s760 = smul.addr %s754, 16
      %s761 = sadd.s32 %s759, %s760
      %s762 = smul.addr %s761, 8
      %s763 = scalar_lea.vmem %s3, %s762
      // Predicated region
      $region41: #{vae_conv_forward.51} parent=31 // pred_check
        %p764 = pneg %p148
      $region42: #{vae_conv_forward.51} parent=31 // pred_check_branch
        %766 = sbr.rel (%p764) target = $region44
      $region43: #{vae_conv_forward.51} parent=31 // pred_region
        %s767 = smul.u32 16, %s21
      $region44: #{vae_conv_forward.51} parent=31 // pred_fallthru
        _
    $region32: #{vae_conv_forward.51} parent=5 // pred_fallthru
      _
    %p768 = scmp.le.s32.totalorder 2, %s9
    // Predicated region
    $region45: #{vae_conv_forward.51} parent=5 // pred_check
      %p769 = pneg %p768
    $region46: #{vae_conv_forward.51} parent=5 // pred_check_branch
      %771 = sbr.rel (%p769) target = $region48
    $region47: #{vae_conv_forward.51} parent=5 // pred_region
      %s772 = ssub.s32 %s9, 2
      // Predicated region
      $region49: #{vae_conv_forward.51} parent=47 // pred_check
        %p773 = pneg %p154
      $region50: #{vae_conv_forward.51} parent=47 // pred_check_branch
        %775 = sbr.rel (%p773) target = $region52
      $region51: #{vae_conv_forward.51} parent=47 // pred_region
        %s776 = smul.u32 16, %s25
        %p777 = scmp.lt.s32.totalorder %s24, 3
        %s778 = scalar_select %p777, %s24, 3
        %p779 = scmp.lt.s32.totalorder %s776, 15
        %s780 = scalar_select %p779, %s776, 15
        %p781 = scmp.lt.s32.totalorder %s26, 0
        %s782 = scalar_select %p781, %s26, 0
        %s783 = sadd.s32 %s782, %s780
        %s784 = smul.addr %s778, 16
        %s785 = sadd.s32 %s783, %s784
        %s786 = smul.addr %s785, 8
        %s787 = scalar_lea.vmem %s3, %s786
      $region52: #{vae_conv_forward.51} parent=47 // pred_fallthru
        _
    $region48: #{vae_conv_forward.51} parent=5 // pred_fallthru
      _
  $region6: #{vae_conv_forward.51} parent=0 // loop_footer
    %s13 = sadd.s32 1, %s9
  $region7: #{vae_conv_forward.51} parent=0 // loop_footer_branch
    %8 = sbr.rel target = $region3
  $region8: #{vae_conv_forward.51} parent=0 // loop_exit
    _

</llo_original>
